<compile_context>
chip_gen: v6e
topology: v6e:2x2x1
jax: 0.10.0
libtpu: 0.0.40
codegen_flags: <defaults>
</compile_context>

<pallas_src>
import jax
import jax.numpy as jnp
import numpy as np
from jax.experimental import pallas as pl
from jax.experimental.pallas import tpu as pltpu

_LPAD = 8  # sublane-aligned halo width (left/right) so halo stores are unmasked


def _resblock_kernel(x_ref, t_ref, w1p_ref, w1l_ref, w2p_ref, w2l_ref,
                     wt_ref, ws_ref, pp_ref, out_ref, xpad_ref, hpad_ref):
    """Single-program fused kernel.

    x_ref   : (B, H, W, Cinp)        lane-padded input, compute dtype
    t_ref   : (B, Tdp)               lane-padded time embedding, compute dtype
    w1p_ref : (4, 2*Cinp, Cp)        conv1 paired-tap weights (taps 0..7)
    w1l_ref : (Cinp, Cp)             conv1 last tap (tap 8)
    w2p_ref : (4, 2*Cp, Cp)          conv2 paired-tap weights
    w2l_ref : (Cp, Cp)               conv2 last tap
    wt_ref  : (Tdp, Cp)              time MLP weight
    ws_ref  : (Cinp, Cp)             1x1 shortcut weight
    pp_ref  : (8, Cp) f32            packed params [g1, be1, g2, be2, bt, bs, 0, 0]
    out_ref : (B, H, W, Cout)        output at true channel width, compute dtype
    xpad_ref: (B, H+2, W+16, Cinp)   VMEM scratch, sublane-aligned zero halo
    hpad_ref: (B, H+2, W+16, Cp)     VMEM scratch, sublane-aligned zero halo
    """
    B, H, W, Cinp = x_ref.shape
    Cp = hpad_ref.shape[-1]
    Cout = out_ref.shape[-1]
    BHW = B * H * W
    eps = 1e-5

    g1, be1 = pp_ref[0:1, :], pp_ref[1:2, :]
    g2, be2 = pp_ref[2:3, :], pp_ref[3:4, :]
    bt, bs = pp_ref[4:5, :], pp_ref[5:6, :]

    def bn_silu(h, g, be):
        # train-mode BatchNorm2d over the N*H*W axis (two-pass centered
        # variance -> no catastrophic cancellation), then SiLU.  f32 math.
        m = jnp.mean(h, axis=0, keepdims=True)
        d = h - m
        var = jnp.mean(d * d, axis=0, keepdims=True)
        h = d * (jax.lax.rsqrt(var + eps) * g) + be
        return h * jax.nn.sigmoid(h)

    def fill_halo(pad_ref, v):
        # 1 zero row top/bottom, _LPAD zero columns left/right: every store is
        # a full, sublane-aligned, unmasked vector store.
        Wp = W + 2 * _LPAD
        c = pad_ref.shape[-1]
        zrow = jnp.zeros((B, 1, Wp, c), pad_ref.dtype)
        pad_ref[:, 0:1, :, :] = zrow
        pad_ref[:, H + 1:H + 2, :, :] = zrow
        zcol = jnp.zeros((B, H, _LPAD, c), pad_ref.dtype)
        pad_ref[:, 1:H + 1, 0:_LPAD, :] = zcol
        pad_ref[:, 1:H + 1, W + _LPAD:Wp, :] = zcol
        pad_ref[:, 1:H + 1, _LPAD:W + _LPAD, :] = v.astype(pad_ref.dtype)

    def conv3x3(pad_ref, wp_ref, wl_ref):
        # 3x3 SAME conv as shifted-window matmuls with paired taps (K = 2*C)
        # to fill the 256-wide MXU on v6e/v7x; f32 accumulation on the MXU.
        C = pad_ref.shape[-1]

        def win(tap):
            dy, dx = tap // 3, tap % 3
            c0 = _LPAD - 1 + dx
            return pad_ref[:, dy:dy + H, c0:c0 + W, :].reshape(BHW, C)

        def pair(p):
            return jnp.concatenate([win(2 * p), win(2 * p + 1)], axis=-1)

        acc = jnp.dot(pair(0), wp_ref[0], preferred_element_type=jnp.float32)
        for p in range(1, 4):
            acc = acc + jnp.dot(pair(p), wp_ref[p],
                                preferred_element_type=jnp.float32)
        return acc + jnp.dot(win(8), wl_ref[...],
                             preferred_element_type=jnp.float32)

    # ---- conv1 (bias b1 omitted: exactly cancelled by train-mode BN1 mean) ----
    fill_halo(xpad_ref, x_ref[...])
    h = bn_silu(conv3x3(xpad_ref, w1p_ref, w1l_ref), g1, be1)

    # ---- time MLP, broadcast over spatial positions ----
    temb = jnp.dot(t_ref[...], wt_ref[...],
                   preferred_element_type=jnp.float32) + bt            # (B, Cp)
    h = h.reshape(B, H, W, Cp) + temb.reshape(B, 1, 1, Cp)

    # ---- conv2 (bias b2 likewise cancelled by BN2) ----
    fill_halo(hpad_ref, h)
    h2 = bn_silu(conv3x3(hpad_ref, w2p_ref, w2l_ref), g2, be2)

    # ---- 1x1 shortcut conv + residual; write only the Cout valid channels ----
    sc = jnp.dot(x_ref[...].reshape(BHW, Cinp), ws_ref[...],
                 preferred_element_type=jnp.float32) + bs
    out = (h2 + sc).reshape(B, H, W, Cp)[..., :Cout]
    out_ref[...] = out.astype(out_ref.dtype)


def residual_block_pallas(x_nhwc, t, params, *, compute_dtype=jnp.bfloat16):
    """x_nhwc: (B, H, W, Cin), t: (B, Td) -> (B, H, W, Cout) in compute_dtype."""
    B, H, W, Cin = x_nhwc.shape
    Td = t.shape[-1]
    Cout = params["g1"].shape[0]
    rup = lambda n, m: ((n + m - 1) // m) * m
    Cp, Cinp, Tdp = rup(Cout, 128), rup(Cin, 128), rup(Td, 128)
    cd = compute_dtype

    pad_last = lambda a, n: jnp.pad(a, [(0, 0)] * (a.ndim - 1) + [(0, n - a.shape[-1])])
    padc = lambda v: pad_last(v.astype(jnp.float32).reshape(-1), Cp)

    # conv weights: HWIO -> channel-padded -> stacked tap pairs (layout plumbing)
    w1 = jnp.pad(params["w1"], ((0, 0), (0, 0), (0, Cinp - Cin), (0, Cp - Cout))).astype(cd)
    w1_taps = w1.reshape(9, Cinp, Cp)
    w1p, w1l = w1_taps[:8].reshape(4, 2 * Cinp, Cp), w1_taps[8]
    w2 = jnp.pad(params["w2"], ((0, 0), (0, 0), (0, Cp - Cout), (0, Cp - Cout))).astype(cd)
    w2_taps = w2.reshape(9, Cp, Cp)
    w2p, w2l = w2_taps[:8].reshape(4, 2 * Cp, Cp), w2_taps[8]
    wt = jnp.pad(params["wt"], ((0, Tdp - Td), (0, Cp - Cout))).astype(cd)
    ws = jnp.pad(params["ws"], ((0, Cinp - Cin), (0, Cp - Cout))).astype(cd)
    pp = jnp.stack([padc(params["g1"]), padc(params["be1"]),
                    padc(params["g2"]), padc(params["be2"]),
                    padc(params["bt"]), padc(params["bs"]),
                    jnp.zeros((Cp,), jnp.float32),
                    jnp.zeros((Cp,), jnp.float32)])                    # (8, Cp)

    xk = pad_last(x_nhwc, Cinp).astype(cd)   # lane-dense, compute-dtype boundary
    tk = pad_last(t, Tdp).astype(cd)

    inputs = (xk, tk, w1p, w1l, w2p, w2l, wt, ws, pp)

    # advisory cost estimate so XLA schedules neighbours around the custom call
    BHW = B * H * W
    flops = 2 * BHW * Cp * (9 * Cinp + 9 * Cp + Cinp) + 2 * B * Tdp * Cp
    bytes_acc = sum(int(np.prod(a.shape)) * a.dtype.itemsize for a in inputs) \
                + BHW * Cout * np.dtype(cd).itemsize
    cost = pl.CostEstimate(flops=flops, transcendentals=2 * BHW * Cp,
                           bytes_accessed=bytes_acc)

    # per-generation VMEM cap (v5e/v6e: 128 MiB physical, v7x: 64 MiB)
    try:
        vmem_phys = int(pltpu.get_tpu_info().vmem_capacity_bytes)
    except Exception:
        vmem_phys = 64 * 1024 * 1024
    vmem_limit = min(vmem_phys * 3 // 4, 100 * 1024 * 1024)

    vmem = pltpu.MemorySpace.VMEM
    return pl.pallas_call(
        _resblock_kernel,
        out_shape=jax.ShapeDtypeStruct((B, H, W, Cout), cd),
        in_specs=[pl.BlockSpec(memory_space=vmem) for _ in inputs],
        out_specs=pl.BlockSpec(memory_space=vmem),
        scratch_shapes=[
            pltpu.VMEM((B, H + 2, W + 2 * _LPAD, Cinp), cd),   # zero-halo padded x
            pltpu.VMEM((B, H + 2, W + 2 * _LPAD, Cp), cd),     # zero-halo padded h
        ],
        compiler_params=pltpu.CompilerParams(vmem_limit_bytes=vmem_limit),
        cost_estimate=cost,
    )(*inputs)


# ---------------- pure-JAX reference (numerical sanity check) ----------------
def residual_block_ref(x_nhwc, t, params):
    def conv(x, w, b):
        y = jax.lax.conv_general_dilated(
            x, w, (1, 1), "SAME", dimension_numbers=("NHWC", "HWIO", "NHWC"))
        return y + b

    def bn(h, g, bb):
        m = h.mean(axis=(0, 1, 2), keepdims=True)
        v = ((h - m) ** 2).mean(axis=(0, 1, 2), keepdims=True)
        return (h - m) * jax.lax.rsqrt(v + 1e-5) * g + bb

    silu = lambda z: z * jax.nn.sigmoid(z)

    h = silu(bn(conv(x_nhwc, params["w1"], params["b1"]), params["g1"], params["be1"]))
    temb = t @ params["wt"] + params["bt"]
    h = h + temb[:, None, None, :]
    h = silu(bn(conv(h, params["w2"], params["b2"]), params["g2"], params["be2"]))
    sc = conv(x_nhwc, params["ws"].reshape(1, 1, *params["ws"].shape), params["bs"])
    return h + sc


if __name__ == "__main__":
    B, Cin, Cout, H, W, Td = 2, 4, 8, 16, 16, 16

    key = jax.random.PRNGKey(0)
    ks = jax.random.split(key, 14)
    params = {
        "w1": 0.1 * jax.random.normal(ks[0], (3, 3, Cin, Cout), jnp.float32),
        "b1": 0.1 * jax.random.normal(ks[1], (Cout,), jnp.float32),
        "w2": 0.1 * jax.random.normal(ks[2], (3, 3, Cout, Cout), jnp.float32),
        "b2": 0.1 * jax.random.normal(ks[3], (Cout,), jnp.float32),
        "wt": 0.1 * jax.random.normal(ks[4], (Td, Cout), jnp.float32),
        "bt": 0.1 * jax.random.normal(ks[5], (Cout,), jnp.float32),
        "g1": 1.0 + 0.1 * jax.random.normal(ks[6], (Cout,), jnp.float32),
        "be1": 0.1 * jax.random.normal(ks[7], (Cout,), jnp.float32),
        "g2": 1.0 + 0.1 * jax.random.normal(ks[8], (Cout,), jnp.float32),
        "be2": 0.1 * jax.random.normal(ks[9], (Cout,), jnp.float32),
        # 1x1 shortcut conv (in_channels != out_channels); if Cin == Cout the
        # module uses Identity (ws=I, bs=0).
        "ws": 0.1 * jax.random.normal(ks[10], (Cin, Cout), jnp.float32),
        "bs": 0.1 * jax.random.normal(ks[11], (Cout,), jnp.float32),
    }

    # PyTorch-convention input is NCHW; kernel runs NHWC.
    x_nchw = jax.random.normal(ks[12], (B, Cin, H, W), jnp.float32)
    t = jax.random.normal(ks[13], (B, Td), jnp.float32)
    x_nhwc = jnp.transpose(x_nchw, (0, 2, 3, 1))

    ref = jax.block_until_ready(residual_block_ref(x_nhwc, t, params))

    run = jax.jit(residual_block_pallas, static_argnames="compute_dtype")

    # f32 compute path: tight tolerance (validates kernel structure exactly)
    out_f32 = jax.block_until_ready(run(x_nhwc, t, params, compute_dtype=jnp.float32))
    np.testing.assert_allclose(np.asarray(out_f32), np.asarray(ref),
                               rtol=1e-3, atol=1e-3)

    # bf16 MXU path (default / perf config): looser tolerance for bf16 operands/output
    out_bf16 = jax.block_until_ready(run(x_nhwc, t, params, compute_dtype=jnp.bfloat16))
    np.testing.assert_allclose(np.asarray(out_bf16.astype(jnp.float32)), np.asarray(ref),
                               rtol=5e-2, atol=5e-2)

    print("KERNEL_OK")
</pallas_src>

<mosaic_0001>
module attributes {stable_mosaic.version = 11 : i64} {
  func.func @_resblock_kernel(%arg0: memref<2x16x16x128xf32, #tpu.memory_space<vmem>>, %arg1: memref<2x128xf32, #tpu.memory_space<vmem>>, %arg2: memref<4x256x128xf32, #tpu.memory_space<vmem>>, %arg3: memref<128x128xf32, #tpu.memory_space<vmem>>, %arg4: memref<4x256x128xf32, #tpu.memory_space<vmem>>, %arg5: memref<128x128xf32, #tpu.memory_space<vmem>>, %arg6: memref<128x128xf32, #tpu.memory_space<vmem>>, %arg7: memref<128x128xf32, #tpu.memory_space<vmem>>, %arg8: memref<8x128xf32, #tpu.memory_space<vmem>>, %arg9: memref<2x16x16x8xf32, #tpu.memory_space<vmem>>, %arg10: memref<2x18x32x128xf32, #tpu.memory_space<vmem>>, %arg11: memref<2x18x32x128xf32, #tpu.memory_space<vmem>>) attributes {dimension_semantics = [], scalar_prefetch = 0 : i64, scratch_operands = 2 : i64, tpu.core_type = #tpu.core_type<tc>} {
    %c0 = arith.constant 0 : index
    %c0_0 = arith.constant 0 : index
    %0 = vector.load %arg8[%c0, %c0_0] : memref<8x128xf32, #tpu.memory_space<vmem>>, vector<1x128xf32>
    %c1 = arith.constant 1 : index
    %c0_1 = arith.constant 0 : index
    %1 = vector.load %arg8[%c1, %c0_1] : memref<8x128xf32, #tpu.memory_space<vmem>>, vector<1x128xf32>
    %c2 = arith.constant 2 : index
    %c0_2 = arith.constant 0 : index
    %2 = vector.load %arg8[%c2, %c0_2] : memref<8x128xf32, #tpu.memory_space<vmem>>, vector<1x128xf32>
    %c3 = arith.constant 3 : index
    %c0_3 = arith.constant 0 : index
    %3 = vector.load %arg8[%c3, %c0_3] : memref<8x128xf32, #tpu.memory_space<vmem>>, vector<1x128xf32>
    %c4 = arith.constant 4 : index
    %c0_4 = arith.constant 0 : index
    %4 = vector.load %arg8[%c4, %c0_4] : memref<8x128xf32, #tpu.memory_space<vmem>>, vector<1x128xf32>
    %c5 = arith.constant 5 : index
    %c0_5 = arith.constant 0 : index
    %5 = vector.load %arg8[%c5, %c0_5] : memref<8x128xf32, #tpu.memory_space<vmem>>, vector<1x128xf32>
    %c0_6 = arith.constant 0 : index
    %c0_7 = arith.constant 0 : index
    %c0_8 = arith.constant 0 : index
    %c0_9 = arith.constant 0 : index
    %6 = vector.load %arg0[%c0_6, %c0_7, %c0_8, %c0_9] : memref<2x16x16x128xf32, #tpu.memory_space<vmem>>, vector<2x16x16x128xf32>
    %cst = arith.constant 0.000000e+00 : f32
    %7 = vector.broadcast %cst : f32 to vector<2x1x32x128xf32>
    %c0_10 = arith.constant 0 : index
    %c0_11 = arith.constant 0 : index
    %c0_12 = arith.constant 0 : index
    %c0_13 = arith.constant 0 : index
    %8 = vector.load %arg10[%c0_10, %c0_11, %c0_12, %c0_13] : memref<2x18x32x128xf32, #tpu.memory_space<vmem>>, vector<2x1x32x128xf32>
    tpu.vector_store %arg10[%c0_10, %c0_11, %c0_12, %c0_13], %7 {strides = array<i32>} : memref<2x18x32x128xf32, #tpu.memory_space<vmem>>, vector<2x1x32x128xf32>,
    %c0_14 = arith.constant 0 : index
    %c17 = arith.constant 17 : index
    %c0_15 = arith.constant 0 : index
    %c0_16 = arith.constant 0 : index
    %9 = vector.load %arg10[%c0_14, %c17, %c0_15, %c0_16] : memref<2x18x32x128xf32, #tpu.memory_space<vmem>>, vector<2x1x32x128xf32>
    tpu.vector_store %arg10[%c0_14, %c17, %c0_15, %c0_16], %7 {strides = array<i32>} : memref<2x18x32x128xf32, #tpu.memory_space<vmem>>, vector<2x1x32x128xf32>,
    %cst_17 = arith.constant 0.000000e+00 : f32
    %10 = vector.broadcast %cst_17 : f32 to vector<2x16x8x128xf32>
    %c0_18 = arith.constant 0 : index
    %c1_19 = arith.constant 1 : index
    %c0_20 = arith.constant 0 : index
    %c0_21 = arith.constant 0 : index
    %11 = vector.load %arg10[%c0_18, %c1_19, %c0_20, %c0_21] : memref<2x18x32x128xf32, #tpu.memory_space<vmem>>, vector<2x16x8x128xf32>
    tpu.vector_store %arg10[%c0_18, %c1_19, %c0_20, %c0_21], %10 {strides = array<i32>} : memref<2x18x32x128xf32, #tpu.memory_space<vmem>>, vector<2x16x8x128xf32>,
    %c0_22 = arith.constant 0 : index
    %c1_23 = arith.constant 1 : index
    %c24 = arith.constant 24 : index
    %c0_24 = arith.constant 0 : index
    %12 = vector.load %arg10[%c0_22, %c1_23, %c24, %c0_24] : memref<2x18x32x128xf32, #tpu.memory_space<vmem>>, vector<2x16x8x128xf32>
    tpu.vector_store %arg10[%c0_22, %c1_23, %c24, %c0_24], %10 {strides = array<i32>} : memref<2x18x32x128xf32, #tpu.memory_space<vmem>>, vector<2x16x8x128xf32>,
    %c0_25 = arith.constant 0 : index
    %c1_26 = arith.constant 1 : index
    %c8 = arith.constant 8 : index
    %c0_27 = arith.constant 0 : index
    %13 = vector.load %arg10[%c0_25, %c1_26, %c8, %c0_27] : memref<2x18x32x128xf32, #tpu.memory_space<vmem>>, vector<2x16x16x128xf32>
    tpu.vector_store %arg10[%c0_25, %c1_26, %c8, %c0_27], %6 {strides = array<i32>} : memref<2x18x32x128xf32, #tpu.memory_space<vmem>>, vector<2x16x16x128xf32>,
    %c0_28 = arith.constant 0 : index
    %c0_29 = arith.constant 0 : index
    %c7 = arith.constant 7 : index
    %c0_30 = arith.constant 0 : index
    %14 = vector.load %arg10[%c0_28, %c0_29, %c7, %c0_30] : memref<2x18x32x128xf32, #tpu.memory_space<vmem>>, vector<2x16x16x128xf32>
    %15 = vector.shape_cast %14 : vector<2x16x16x128xf32> to vector<512x128xf32>
    %c0_31 = arith.constant 0 : index
    %c0_32 = arith.constant 0 : index
    %c8_33 = arith.constant 8 : index
    %c0_34 = arith.constant 0 : index
    %16 = vector.load %arg10[%c0_31, %c0_32, %c8_33, %c0_34] : memref<2x18x32x128xf32, #tpu.memory_space<vmem>>, vector<2x16x16x128xf32>
    %17 = vector.shape_cast %16 : vector<2x16x16x128xf32> to vector<512x128xf32>
    %18 = tpu.concatenate %15, %17 in 1 : vector<512x128xf32>, vector<512x128xf32> -> vector<512x256xf32>
    %c0_35 = arith.constant 0 : index
    %c0_36 = arith.constant 0 : index
    %c0_37 = arith.constant 0 : index
    %19 = vector.load %arg2[%c0_35, %c0_36, %c0_37] : memref<4x256x128xf32, #tpu.memory_space<vmem>>, vector<1x256x128xf32>
    %20 = vector.shape_cast %19 : vector<1x256x128xf32> to vector<256x128xf32>
    %cst_38 = arith.constant dense<0.000000e+00> : vector<512x128xf32>
    %21 = tpu.matmul %18, %20, %cst_38 {dimension_numbers = #tpu.dot_dimension_numbers<[1], [0], [0], [1], [0, 0, 1, 1], [], []>} : vector<512x256xf32>, vector<256x128xf32>, vector<512x128xf32> -> vector<512x128xf32>
    %c0_39 = arith.constant 0 : index
    %c0_40 = arith.constant 0 : index
    %c9 = arith.constant 9 : index
    %c0_41 = arith.constant 0 : index
    %22 = vector.load %arg10[%c0_39, %c0_40, %c9, %c0_41] : memref<2x18x32x128xf32, #tpu.memory_space<vmem>>, vector<2x16x16x128xf32>
    %23 = vector.shape_cast %22 : vector<2x16x16x128xf32> to vector<512x128xf32>
    %c0_42 = arith.constant 0 : index
    %c1_43 = arith.constant 1 : index
    %c7_44 = arith.constant 7 : index
    %c0_45 = arith.constant 0 : index
    %24 = vector.load %arg10[%c0_42, %c1_43, %c7_44, %c0_45] : memref<2x18x32x128xf32, #tpu.memory_space<vmem>>, vector<2x16x16x128xf32>
    %25 = vector.shape_cast %24 : vector<2x16x16x128xf32> to vector<512x128xf32>
    %26 = tpu.concatenate %23, %25 in 1 : vector<512x128xf32>, vector<512x128xf32> -> vector<512x256xf32>
    %c1_46 = arith.constant 1 : index
    %c0_47 = arith.constant 0 : index
    %c0_48 = arith.constant 0 : index
    %27 = vector.load %arg2[%c1_46, %c0_47, %c0_48] : memref<4x256x128xf32, #tpu.memory_space<vmem>>, vector<1x256x128xf32>
    %28 = vector.shape_cast %27 : vector<1x256x128xf32> to vector<256x128xf32>
    %cst_49 = arith.constant dense<0.000000e+00> : vector<512x128xf32>
    %29 = tpu.matmul %26, %28, %cst_49 {dimension_numbers = #tpu.dot_dimension_numbers<[1], [0], [0], [1], [0, 0, 1, 1], [], []>} : vector<512x256xf32>, vector<256x128xf32>, vector<512x128xf32> -> vector<512x128xf32>
    %30 = arith.addf %21, %29 : vector<512x128xf32>
    %c0_50 = arith.constant 0 : index
    %c1_51 = arith.constant 1 : index
    %c8_52 = arith.constant 8 : index
    %c0_53 = arith.constant 0 : index
    %31 = vector.load %arg10[%c0_50, %c1_51, %c8_52, %c0_53] : memref<2x18x32x128xf32, #tpu.memory_space<vmem>>, vector<2x16x16x128xf32>
    %32 = vector.shape_cast %31 : vector<2x16x16x128xf32> to vector<512x128xf32>
    %c0_54 = arith.constant 0 : index
    %c1_55 = arith.constant 1 : index
    %c9_56 = arith.constant 9 : index
    %c0_57 = arith.constant 0 : index
    %33 = vector.load %arg10[%c0_54, %c1_55, %c9_56, %c0_57] : memref<2x18x32x128xf32, #tpu.memory_space<vmem>>, vector<2x16x16x128xf32>
    %34 = vector.shape_cast %33 : vector<2x16x16x128xf32> to vector<512x128xf32>
    %35 = tpu.concatenate %32, %34 in 1 : vector<512x128xf32>, vector<512x128xf32> -> vector<512x256xf32>
    %c2_58 = arith.constant 2 : index
    %c0_59 = arith.constant 0 : index
    %c0_60 = arith.constant 0 : index
    %36 = vector.load %arg2[%c2_58, %c0_59, %c0_60] : memref<4x256x128xf32, #tpu.memory_space<vmem>>, vector<1x256x128xf32>
    %37 = vector.shape_cast %36 : vector<1x256x128xf32> to vector<256x128xf32>
    %cst_61 = arith.constant dense<0.000000e+00> : vector<512x128xf32>
    %38 = tpu.matmul %35, %37, %cst_61 {dimension_numbers = #tpu.dot_dimension_numbers<[1], [0], [0], [1], [0, 0, 1, 1], [], []>} : vector<512x256xf32>, vector<256x128xf32>, vector<512x128xf32> -> vector<512x128xf32>
    %39 = arith.addf %30, %38 : vector<512x128xf32>
    %c0_62 = arith.constant 0 : index
    %c2_63 = arith.constant 2 : index
    %c7_64 = arith.constant 7 : index
    %c0_65 = arith.constant 0 : index
    %40 = vector.load %arg10[%c0_62, %c2_63, %c7_64, %c0_65] : memref<2x18x32x128xf32, #tpu.memory_space<vmem>>, vector<2x16x16x128xf32>
    %41 = vector.shape_cast %40 : vector<2x16x16x128xf32> to vector<512x128xf32>
    %c0_66 = arith.constant 0 : index
    %c2_67 = arith.constant 2 : index
    %c8_68 = arith.constant 8 : index
    %c0_69 = arith.constant 0 : index
    %42 = vector.load %arg10[%c0_66, %c2_67, %c8_68, %c0_69] : memref<2x18x32x128xf32, #tpu.memory_space<vmem>>, vector<2x16x16x128xf32>
    %43 = vector.shape_cast %42 : vector<2x16x16x128xf32> to vector<512x128xf32>
    %44 = tpu.concatenate %41, %43 in 1 : vector<512x128xf32>, vector<512x128xf32> -> vector<512x256xf32>
    %c3_70 = arith.constant 3 : index
    %c0_71 = arith.constant 0 : index
    %c0_72 = arith.constant 0 : index
    %45 = vector.load %arg2[%c3_70, %c0_71, %c0_72] : memref<4x256x128xf32, #tpu.memory_space<vmem>>, vector<1x256x128xf32>
    %46 = vector.shape_cast %45 : vector<1x256x128xf32> to vector<256x128xf32>
    %cst_73 = arith.constant dense<0.000000e+00> : vector<512x128xf32>
    %47 = tpu.matmul %44, %46, %cst_73 {dimension_numbers = #tpu.dot_dimension_numbers<[1], [0], [0], [1], [0, 0, 1, 1], [], []>} : vector<512x256xf32>, vector<256x128xf32>, vector<512x128xf32> -> vector<512x128xf32>
    %48 = arith.addf %39, %47 : vector<512x128xf32>
    %c0_74 = arith.constant 0 : index
    %c2_75 = arith.constant 2 : index
    %c9_76 = arith.constant 9 : index
    %c0_77 = arith.constant 0 : index
    %49 = vector.load %arg10[%c0_74, %c2_75, %c9_76, %c0_77] : memref<2x18x32x128xf32, #tpu.memory_space<vmem>>, vector<2x16x16x128xf32>
    %50 = vector.shape_cast %49 : vector<2x16x16x128xf32> to vector<512x128xf32>
    %c0_78 = arith.constant 0 : index
    %c0_79 = arith.constant 0 : index
    %51 = vector.load %arg3[%c0_78, %c0_79] : memref<128x128xf32, #tpu.memory_space<vmem>>, vector<128x128xf32>
    %cst_80 = arith.constant dense<0.000000e+00> : vector<512x128xf32>
    %52 = tpu.matmul %50, %51, %cst_80 {dimension_numbers = #tpu.dot_dimension_numbers<[1], [0], [0], [1], [0, 0, 1, 1], [], []>} : vector<512x128xf32>, vector<128x128xf32>, vector<512x128xf32> -> vector<512x128xf32>
    %53 = arith.addf %48, %52 : vector<512x128xf32>
    %cst_81 = arith.constant dense<0.000000e+00> : vector<128xf32>
    %54 = vector.multi_reduction <add>, %53, %cst_81 [0] : vector<512x128xf32> to vector<128xf32>
    %55 = vector.shape_cast %54 : vector<128xf32> to vector<1x128xf32>
    %cst_82 = arith.constant 5.120000e+02 : f32
    %56 = vector.broadcast %cst_82 : f32 to vector<1x128xf32>
    %57 = arith.divf %55, %56 : vector<1x128xf32>
    %58 = vector.broadcast %57 : vector<1x128xf32> to vector<512x128xf32>
    %59 = arith.subf %53, %58 : vector<512x128xf32>
    %60 = arith.mulf %59, %59 : vector<512x128xf32>
    %cst_83 = arith.constant dense<0.000000e+00> : vector<128xf32>
    %61 = vector.multi_reduction <add>, %60, %cst_83 [0] : vector<512x128xf32> to vector<128xf32>
    %62 = vector.shape_cast %61 : vector<128xf32> to vector<1x128xf32>
    %cst_84 = arith.constant 5.120000e+02 : f32
    %63 = vector.broadcast %cst_84 : f32 to vector<1x128xf32>
    %64 = arith.divf %62, %63 : vector<1x128xf32>
    %cst_85 = arith.constant 9.99999974E-6 : f32
    %65 = vector.broadcast %cst_85 : f32 to vector<1x128xf32>
    %66 = arith.addf %64, %65 : vector<1x128xf32>
    %67 = math.rsqrt %66 : vector<1x128xf32>
    %68 = arith.mulf %67, %0 : vector<1x128xf32>
    %69 = vector.broadcast %68 : vector<1x128xf32> to vector<512x128xf32>
    %70 = arith.mulf %59, %69 : vector<512x128xf32>
    %71 = vector.broadcast %1 : vector<1x128xf32> to vector<512x128xf32>
    %72 = arith.addf %70, %71 : vector<512x128xf32>
    %73 = arith.negf %72 : vector<512x128xf32>
    %74 = math.exp %73 : vector<512x128xf32>
    %cst_86 = arith.constant 1.000000e+00 : f32
    %75 = vector.broadcast %cst_86 : f32 to vector<512x128xf32>
    %76 = arith.addf %75, %74 : vector<512x128xf32>
    %77 = arith.divf %75, %76 : vector<512x128xf32>
    %78 = arith.mulf %72, %77 : vector<512x128xf32>
    %c0_87 = arith.constant 0 : index
    %c0_88 = arith.constant 0 : index
    %79 = vector.load %arg1[%c0_87, %c0_88] : memref<2x128xf32, #tpu.memory_space<vmem>>, vector<2x128xf32>
    %c0_89 = arith.constant 0 : index
    %c0_90 = arith.constant 0 : index
    %80 = vector.load %arg6[%c0_89, %c0_90] : memref<128x128xf32, #tpu.memory_space<vmem>>, vector<128x128xf32>
    %cst_91 = arith.constant dense<0.000000e+00> : vector<2x128xf32>
    %81 = tpu.matmul %79, %80, %cst_91 {dimension_numbers = #tpu.dot_dimension_numbers<[1], [0], [0], [1], [0, 0, 1, 1], [], []>} : vector<2x128xf32>, vector<128x128xf32>, vector<2x128xf32> -> vector<2x128xf32>
    %82 = vector.broadcast %4 : vector<1x128xf32> to vector<2x128xf32>
    %83 = arith.addf %81, %82 : vector<2x128xf32>
    %84 = vector.shape_cast %78 : vector<512x128xf32> to vector<2x16x16x128xf32>
    %85 = vector.shape_cast %83 : vector<2x128xf32> to vector<2x1x1x128xf32>
    %86 = vector.broadcast %85 : vector<2x1x1x128xf32> to vector<2x16x16x128xf32>
    %87 = arith.addf %84, %86 : vector<2x16x16x128xf32>
    %cst_92 = arith.constant 0.000000e+00 : f32
    %88 = vector.broadcast %cst_92 : f32 to vector<2x1x32x128xf32>
    %c0_93 = arith.constant 0 : index
    %c0_94 = arith.constant 0 : index
    %c0_95 = arith.constant 0 : index
    %c0_96 = arith.constant 0 : index
    %89 = vector.load %arg11[%c0_93, %c0_94, %c0_95, %c0_96] : memref<2x18x32x128xf32, #tpu.memory_space<vmem>>, vector<2x1x32x128xf32>
    tpu.vector_store %arg11[%c0_93, %c0_94, %c0_95, %c0_96], %88 {strides = array<i32>} : memref<2x18x32x128xf32, #tpu.memory_space<vmem>>, vector<2x1x32x128xf32>,
    %c0_97 = arith.constant 0 : index
    %c17_98 = arith.constant 17 : index
    %c0_99 = arith.constant 0 : index
    %c0_100 = arith.constant 0 : index
    %90 = vector.load %arg11[%c0_97, %c17_98, %c0_99, %c0_100] : memref<2x18x32x128xf32, #tpu.memory_space<vmem>>, vector<2x1x32x128xf32>
    tpu.vector_store %arg11[%c0_97, %c17_98, %c0_99, %c0_100], %88 {strides = array<i32>} : memref<2x18x32x128xf32, #tpu.memory_space<vmem>>, vector<2x1x32x128xf32>,
    %cst_101 = arith.constant 0.000000e+00 : f32
    %91 = vector.broadcast %cst_101 : f32 to vector<2x16x8x128xf32>
    %c0_102 = arith.constant 0 : index
    %c1_103 = arith.constant 1 : index
    %c0_104 = arith.constant 0 : index
    %c0_105 = arith.constant 0 : index
    %92 = vector.load %arg11[%c0_102, %c1_103, %c0_104, %c0_105] : memref<2x18x32x128xf32, #tpu.memory_space<vmem>>, vector<2x16x8x128xf32>
    tpu.vector_store %arg11[%c0_102, %c1_103, %c0_104, %c0_105], %91 {strides = array<i32>} : memref<2x18x32x128xf32, #tpu.memory_space<vmem>>, vector<2x16x8x128xf32>,
    %c0_106 = arith.constant 0 : index
    %c1_107 = arith.constant 1 : index
    %c24_108 = arith.constant 24 : index
    %c0_109 = arith.constant 0 : index
    %93 = vector.load %arg11[%c0_106, %c1_107, %c24_108, %c0_109] : memref<2x18x32x128xf32, #tpu.memory_space<vmem>>, vector<2x16x8x128xf32>
    tpu.vector_store %arg11[%c0_106, %c1_107, %c24_108, %c0_109], %91 {strides = array<i32>} : memref<2x18x32x128xf32, #tpu.memory_space<vmem>>, vector<2x16x8x128xf32>,
    %c0_110 = arith.constant 0 : index
    %c1_111 = arith.constant 1 : index
    %c8_112 = arith.constant 8 : index
    %c0_113 = arith.constant 0 : index
    %94 = vector.load %arg11[%c0_110, %c1_111, %c8_112, %c0_113] : memref<2x18x32x128xf32, #tpu.memory_space<vmem>>, vector<2x16x16x128xf32>
    tpu.vector_store %arg11[%c0_110, %c1_111, %c8_112, %c0_113], %87 {strides = array<i32>} : memref<2x18x32x128xf32, #tpu.memory_space<vmem>>, vector<2x16x16x128xf32>,
    %c0_114 = arith.constant 0 : index
    %c0_115 = arith.constant 0 : index
    %c7_116 = arith.constant 7 : index
    %c0_117 = arith.constant 0 : index
    %95 = vector.load %arg11[%c0_114, %c0_115, %c7_116, %c0_117] : memref<2x18x32x128xf32, #tpu.memory_space<vmem>>, vector<2x16x16x128xf32>
    %96 = vector.shape_cast %95 : vector<2x16x16x128xf32> to vector<512x128xf32>
    %c0_118 = arith.constant 0 : index
    %c0_119 = arith.constant 0 : index
    %c8_120 = arith.constant 8 : index
    %c0_121 = arith.constant 0 : index
    %97 = vector.load %arg11[%c0_118, %c0_119, %c8_120, %c0_121] : memref<2x18x32x128xf32, #tpu.memory_space<vmem>>, vector<2x16x16x128xf32>
    %98 = vector.shape_cast %97 : vector<2x16x16x128xf32> to vector<512x128xf32>
    %99 = tpu.concatenate %96, %98 in 1 : vector<512x128xf32>, vector<512x128xf32> -> vector<512x256xf32>
    %c0_122 = arith.constant 0 : index
    %c0_123 = arith.constant 0 : index
    %c0_124 = arith.constant 0 : index
    %100 = vector.load %arg4[%c0_122, %c0_123, %c0_124] : memref<4x256x128xf32, #tpu.memory_space<vmem>>, vector<1x256x128xf32>
    %101 = vector.shape_cast %100 : vector<1x256x128xf32> to vector<256x128xf32>
    %cst_125 = arith.constant dense<0.000000e+00> : vector<512x128xf32>
    %102 = tpu.matmul %99, %101, %cst_125 {dimension_numbers = #tpu.dot_dimension_numbers<[1], [0], [0], [1], [0, 0, 1, 1], [], []>} : vector<512x256xf32>, vector<256x128xf32>, vector<512x128xf32> -> vector<512x128xf32>
    %c0_126 = arith.constant 0 : index
    %c0_127 = arith.constant 0 : index
    %c9_128 = arith.constant 9 : index
    %c0_129 = arith.constant 0 : index
    %103 = vector.load %arg11[%c0_126, %c0_127, %c9_128, %c0_129] : memref<2x18x32x128xf32, #tpu.memory_space<vmem>>, vector<2x16x16x128xf32>
    %104 = vector.shape_cast %103 : vector<2x16x16x128xf32> to vector<512x128xf32>
    %c0_130 = arith.constant 0 : index
    %c1_131 = arith.constant 1 : index
    %c7_132 = arith.constant 7 : index
    %c0_133 = arith.constant 0 : index
    %105 = vector.load %arg11[%c0_130, %c1_131, %c7_132, %c0_133] : memref<2x18x32x128xf32, #tpu.memory_space<vmem>>, vector<2x16x16x128xf32>
    %106 = vector.shape_cast %105 : vector<2x16x16x128xf32> to vector<512x128xf32>
    %107 = tpu.concatenate %104, %106 in 1 : vector<512x128xf32>, vector<512x128xf32> -> vector<512x256xf32>
    %c1_134 = arith.constant 1 : index
    %c0_135 = arith.constant 0 : index
    %c0_136 = arith.constant 0 : index
    %108 = vector.load %arg4[%c1_134, %c0_135, %c0_136] : memref<4x256x128xf32, #tpu.memory_space<vmem>>, vector<1x256x128xf32>
    %109 = vector.shape_cast %108 : vector<1x256x128xf32> to vector<256x128xf32>
    %cst_137 = arith.constant dense<0.000000e+00> : vector<512x128xf32>
    %110 = tpu.matmul %107, %109, %cst_137 {dimension_numbers = #tpu.dot_dimension_numbers<[1], [0], [0], [1], [0, 0, 1, 1], [], []>} : vector<512x256xf32>, vector<256x128xf32>, vector<512x128xf32> -> vector<512x128xf32>
    %111 = arith.addf %102, %110 : vector<512x128xf32>
    %c0_138 = arith.constant 0 : index
    %c1_139 = arith.constant 1 : index
    %c8_140 = arith.constant 8 : index
    %c0_141 = arith.constant 0 : index
    %112 = vector.load %arg11[%c0_138, %c1_139, %c8_140, %c0_141] : memref<2x18x32x128xf32, #tpu.memory_space<vmem>>, vector<2x16x16x128xf32>
    %113 = vector.shape_cast %112 : vector<2x16x16x128xf32> to vector<512x128xf32>
    %c0_142 = arith.constant 0 : index
    %c1_143 = arith.constant 1 : index
    %c9_144 = arith.constant 9 : index
    %c0_145 = arith.constant 0 : index
    %114 = vector.load %arg11[%c0_142, %c1_143, %c9_144, %c0_145] : memref<2x18x32x128xf32, #tpu.memory_space<vmem>>, vector<2x16x16x128xf32>
    %115 = vector.shape_cast %114 : vector<2x16x16x128xf32> to vector<512x128xf32>
    %116 = tpu.concatenate %113, %115 in 1 : vector<512x128xf32>, vector<512x128xf32> -> vector<512x256xf32>
    %c2_146 = arith.constant 2 : index
    %c0_147 = arith.constant 0 : index
    %c0_148 = arith.constant 0 : index
    %117 = vector.load %arg4[%c2_146, %c0_147, %c0_148] : memref<4x256x128xf32, #tpu.memory_space<vmem>>, vector<1x256x128xf32>
    %118 = vector.shape_cast %117 : vector<1x256x128xf32> to vector<256x128xf32>
    %cst_149 = arith.constant dense<0.000000e+00> : vector<512x128xf32>
    %119 = tpu.matmul %116, %118, %cst_149 {dimension_numbers = #tpu.dot_dimension_numbers<[1], [0], [0], [1], [0, 0, 1, 1], [], []>} : vector<512x256xf32>, vector<256x128xf32>, vector<512x128xf32> -> vector<512x128xf32>
    %120 = arith.addf %111, %119 : vector<512x128xf32>
    %c0_150 = arith.constant 0 : index
    %c2_151 = arith.constant 2 : index
    %c7_152 = arith.constant 7 : index
    %c0_153 = arith.constant 0 : index
    %121 = vector.load %arg11[%c0_150, %c2_151, %c7_152, %c0_153] : memref<2x18x32x128xf32, #tpu.memory_space<vmem>>, vector<2x16x16x128xf32>
    %122 = vector.shape_cast %121 : vector<2x16x16x128xf32> to vector<512x128xf32>
    %c0_154 = arith.constant 0 : index
    %c2_155 = arith.constant 2 : index
    %c8_156 = arith.constant 8 : index
    %c0_157 = arith.constant 0 : index
    %123 = vector.load %arg11[%c0_154, %c2_155, %c8_156, %c0_157] : memref<2x18x32x128xf32, #tpu.memory_space<vmem>>, vector<2x16x16x128xf32>
    %124 = vector.shape_cast %123 : vector<2x16x16x128xf32> to vector<512x128xf32>
    %125 = tpu.concatenate %122, %124 in 1 : vector<512x128xf32>, vector<512x128xf32> -> vector<512x256xf32>
    %c3_158 = arith.constant 3 : index
    %c0_159 = arith.constant 0 : index
    %c0_160 = arith.constant 0 : index
    %126 = vector.load %arg4[%c3_158, %c0_159, %c0_160] : memref<4x256x128xf32, #tpu.memory_space<vmem>>, vector<1x256x128xf32>
    %127 = vector.shape_cast %126 : vector<1x256x128xf32> to vector<256x128xf32>
    %cst_161 = arith.constant dense<0.000000e+00> : vector<512x128xf32>
    %128 = tpu.matmul %125, %127, %cst_161 {dimension_numbers = #tpu.dot_dimension_numbers<[1], [0], [0], [1], [0, 0, 1, 1], [], []>} : vector<512x256xf32>, vector<256x128xf32>, vector<512x128xf32> -> vector<512x128xf32>
    %129 = arith.addf %120, %128 : vector<512x128xf32>
    %c0_162 = arith.constant 0 : index
    %c2_163 = arith.constant 2 : index
    %c9_164 = arith.constant 9 : index
    %c0_165 = arith.constant 0 : index
    %130 = vector.load %arg11[%c0_162, %c2_163, %c9_164, %c0_165] : memref<2x18x32x128xf32, #tpu.memory_space<vmem>>, vector<2x16x16x128xf32>
    %131 = vector.shape_cast %130 : vector<2x16x16x128xf32> to vector<512x128xf32>
    %c0_166 = arith.constant 0 : index
    %c0_167 = arith.constant 0 : index
    %132 = vector.load %arg5[%c0_166, %c0_167] : memref<128x128xf32, #tpu.memory_space<vmem>>, vector<128x128xf32>
    %cst_168 = arith.constant dense<0.000000e+00> : vector<512x128xf32>
    %133 = tpu.matmul %131, %132, %cst_168 {dimension_numbers = #tpu.dot_dimension_numbers<[1], [0], [0], [1], [0, 0, 1, 1], [], []>} : vector<512x128xf32>, vector<128x128xf32>, vector<512x128xf32> -> vector<512x128xf32>
    %134 = arith.addf %129, %133 : vector<512x128xf32>
    %cst_169 = arith.constant dense<0.000000e+00> : vector<128xf32>
    %135 = vector.multi_reduction <add>, %134, %cst_169 [0] : vector<512x128xf32> to vector<128xf32>
    %136 = vector.shape_cast %135 : vector<128xf32> to vector<1x128xf32>
    %cst_170 = arith.constant 5.120000e+02 : f32
    %137 = vector.broadcast %cst_170 : f32 to vector<1x128xf32>
    %138 = arith.divf %136, %137 : vector<1x128xf32>
    %139 = vector.broadcast %138 : vector<1x128xf32> to vector<512x128xf32>
    %140 = arith.subf %134, %139 : vector<512x128xf32>
    %141 = arith.mulf %140, %140 : vector<512x128xf32>
    %cst_171 = arith.constant dense<0.000000e+00> : vector<128xf32>
    %142 = vector.multi_reduction <add>, %141, %cst_171 [0] : vector<512x128xf32> to vector<128xf32>
    %143 = vector.shape_cast %142 : vector<128xf32> to vector<1x128xf32>
    %cst_172 = arith.constant 5.120000e+02 : f32
    %144 = vector.broadcast %cst_172 : f32 to vector<1x128xf32>
    %145 = arith.divf %143, %144 : vector<1x128xf32>
    %cst_173 = arith.constant 9.99999974E-6 : f32
    %146 = vector.broadcast %cst_173 : f32 to vector<1x128xf32>
    %147 = arith.addf %145, %146 : vector<1x128xf32>
    %148 = math.rsqrt %147 : vector<1x128xf32>
    %149 = arith.mulf %148, %2 : vector<1x128xf32>
    %150 = vector.broadcast %149 : vector<1x128xf32> to vector<512x128xf32>
    %151 = arith.mulf %140, %150 : vector<512x128xf32>
    %152 = vector.broadcast %3 : vector<1x128xf32> to vector<512x128xf32>
    %153 = arith.addf %151, %152 : vector<512x128xf32>
    %154 = arith.negf %153 : vector<512x128xf32>
    %155 = math.exp %154 : vector<512x128xf32>
    %cst_174 = arith.constant 1.000000e+00 : f32
    %156 = vector.broadcast %cst_174 : f32 to vector<512x128xf32>
    %157 = arith.addf %156, %155 : vector<512x128xf32>
    %158 = arith.divf %156, %157 : vector<512x128xf32>
    %159 = arith.mulf %153, %158 : vector<512x128xf32>
    %c0_175 = arith.constant 0 : index
    %c0_176 = arith.constant 0 : index
    %c0_177 = arith.constant 0 : index
    %c0_178 = arith.constant 0 : index
    %160 = vector.load %arg0[%c0_175, %c0_176, %c0_177, %c0_178] : memref<2x16x16x128xf32, #tpu.memory_space<vmem>>, vector<2x16x16x128xf32>
    %161 = vector.shape_cast %160 : vector<2x16x16x128xf32> to vector<512x128xf32>
    %c0_179 = arith.constant 0 : index
    %c0_180 = arith.constant 0 : index
    %162 = vector.load %arg7[%c0_179, %c0_180] : memref<128x128xf32, #tpu.memory_space<vmem>>, vector<128x128xf32>
    %cst_181 = arith.constant dense<0.000000e+00> : vector<512x128xf32>
    %163 = tpu.matmul %161, %162, %cst_181 {dimension_numbers = #tpu.dot_dimension_numbers<[1], [0], [0], [1], [0, 0, 1, 1], [], []>} : vector<512x128xf32>, vector<128x128xf32>, vector<512x128xf32> -> vector<512x128xf32>
    %164 = vector.broadcast %5 : vector<1x128xf32> to vector<512x128xf32>
    %165 = arith.addf %163, %164 : vector<512x128xf32>
    %166 = arith.addf %159, %165 : vector<512x128xf32>
    %167 = vector.shape_cast %166 : vector<512x128xf32> to vector<2x16x16x128xf32>
    %168 = vector.extract_strided_slice %167 {offsets = [0, 0, 0, 0], sizes = [2, 16, 16, 8], strides = [1, 1, 1, 1]} : vector<2x16x16x128xf32> to vector<2x16x16x8xf32>
    %c0_182 = arith.constant 0 : index
    %c0_183 = arith.constant 0 : index
    %c0_184 = arith.constant 0 : index
    %c0_185 = arith.constant 0 : index
    %169 = vector.load %arg9[%c0_182, %c0_183, %c0_184, %c0_185] : memref<2x16x16x8xf32, #tpu.memory_space<vmem>>, vector<2x16x16x8xf32>
    tpu.vector_store %arg9[%c0_182, %c0_183, %c0_184, %c0_185], %168 {strides = array<i32>} : memref<2x16x16x8xf32, #tpu.memory_space<vmem>>, vector<2x16x16x8xf32>,
    return
  }
}

</mosaic_0001>

<llo_original>
// kernel: residual_block_pallas.1
$region0: #{residual_block_pallas.1}
  #allocation0 [shape = 'u32[]', space=smem, size = 0x4, offset = 0x4, fixed_abs, tag = 'smem constant byte address 0x4 - core index']
  #allocation1 [shape = 'u32[144,128]{1,0:T(1,128)}', space=vmem, size = 0x12000, scoped, tag = 'internal scratch']
  #allocation2 [shape = 'f32[2,18,32,128]{3,2,1,0:T(8,128)}', space=vmem, size = 0x90000, scoped, tag = 'scratch operand']
  #allocation3 [shape = 'f32[2,18,32,128]{3,2,1,0:T(8,128)}', space=vmem, size = 0x90000, scoped, tag = 'scratch operand']
  %s0 = inlined_call_operand.vmem [shape: f32[2,16,16,128], index: 0, kind: input, shape index: {}]
  %s1 = inlined_call_operand.vmem [shape: f32[2,128], index: 1, kind: input, shape index: {}]
  %s2 = inlined_call_operand.vmem [shape: f32[4,256,128], index: 2, kind: input, shape index: {}]
  %s3 = inlined_call_operand.vmem [shape: f32[128,128], index: 3, kind: input, shape index: {}]
  %s4 = inlined_call_operand.vmem [shape: f32[4,256,128], index: 4, kind: input, shape index: {}]
  %s5 = inlined_call_operand.vmem [shape: f32[128,128], index: 5, kind: input, shape index: {}]
  %s6 = inlined_call_operand.vmem [shape: f32[128,128], index: 6, kind: input, shape index: {}]
  %s7 = inlined_call_operand.vmem [shape: f32[128,128], index: 7, kind: input, shape index: {}]
  %s8 = inlined_call_operand.vmem [shape: f32[8,128], index: 8, kind: input, shape index: {}]
  %s9 = inlined_call_operand.vmem [shape: f32[2,16,16,8], index: 9, kind: output, shape index: {}]
  %s10 = sld [smem:[#allocation0]]
  $region46: #{residual_block_pallas.1} parent=0
    _
  %s12 = ssub.s32 1, %s10
  %s13 = scalar_select 0, %s12, %s10
  // Predicated region
  $region2: #{residual_block_pallas.1} parent=0 // pred_check
    _
  $region3: #{residual_block_pallas.1} parent=0 // pred_check_branch
    %15 = sbr.rel (0) target = $region5
  $region4: #{residual_block_pallas.1} parent=0 // pred_region
    _
  $region5: #{residual_block_pallas.1} parent=0 // pred_fallthru
    _
  // Predicated region
  $region6: #{residual_block_pallas.1} parent=0 // pred_check
    _
  $region7: #{residual_block_pallas.1} parent=0 // pred_check_branch
    %17 = sbr.rel (0) target = $region9
  $region8: #{residual_block_pallas.1} parent=0 // pred_region
    _
  $region9: #{residual_block_pallas.1} parent=0 // pred_fallthru
    _
  // Predicated region
  $region10: #{residual_block_pallas.1} parent=0 // pred_check
    _
  $region11: #{residual_block_pallas.1} parent=0 // pred_check_branch
    %19 = sbr.rel (0) target = $region13
  $region12: #{residual_block_pallas.1} parent=0 // pred_region
    _
  $region13: #{residual_block_pallas.1} parent=0 // pred_fallthru
    _
  // Predicated region
  $region14: #{residual_block_pallas.1} parent=0 // pred_check
    _
  $region15: #{residual_block_pallas.1} parent=0 // pred_check_branch
    %21 = sbr.rel (0) target = $region17
  $region16: #{residual_block_pallas.1} parent=0 // pred_region
    _
  $region17: #{residual_block_pallas.1} parent=0 // pred_fallthru
    _
  // Predicated region
  $region18: #{residual_block_pallas.1} parent=0 // pred_check
    _
  $region19: #{residual_block_pallas.1} parent=0 // pred_check_branch
    %23 = sbr.rel (0) target = $region21
  $region20: #{residual_block_pallas.1} parent=0 // pred_region
    _
  $region21: #{residual_block_pallas.1} parent=0 // pred_fallthru
    _
  // Predicated region
  $region22: #{residual_block_pallas.1} parent=0 // pred_check
    _
  $region23: #{residual_block_pallas.1} parent=0 // pred_check_branch
    %25 = sbr.rel (0) target = $region25
  $region24: #{residual_block_pallas.1} parent=0 // pred_region
    _
  $region25: #{residual_block_pallas.1} parent=0 // pred_fallthru
    _
  // Predicated region
  $region26: #{residual_block_pallas.1} parent=0 // pred_check
    _
  $region27: #{residual_block_pallas.1} parent=0 // pred_check_branch
    %27 = sbr.rel (0) target = $region29
  $region28: #{residual_block_pallas.1} parent=0 // pred_region
    _
  $region29: #{residual_block_pallas.1} parent=0 // pred_fallthru
    _
  // Predicated region
  $region30: #{residual_block_pallas.1} parent=0 // pred_check
    _
  $region31: #{residual_block_pallas.1} parent=0 // pred_check_branch
    %29 = sbr.rel (0) target = $region33
  $region32: #{residual_block_pallas.1} parent=0 // pred_region
    _
  $region33: #{residual_block_pallas.1} parent=0 // pred_fallthru
    _
  // Predicated region
  $region34: #{residual_block_pallas.1} parent=0 // pred_check
    _
  $region35: #{residual_block_pallas.1} parent=0 // pred_check_branch
    %31 = sbr.rel (0) target = $region37
  $region36: #{residual_block_pallas.1} parent=0 // pred_region
    _
  $region37: #{residual_block_pallas.1} parent=0 // pred_fallthru
    _
  %v32 = vld [vmem:[%s8] sm:$0x1]
  %v33 = vld [vmem:[%s8 + $0x1] sm:$0x1]
  %v34 = vld [vmem:[%s8 + $0x2] sm:$0x1]
  %v35 = vld [vmem:[%s8 + $0x3] sm:$0x1]
  %v36 = vld [vmem:[%s8 + $0x4] sm:$0x1]
  %v37 = vld [vmem:[%s8 + $0x5] sm:$0x1]
  %v38 = vld [vmem:[%s0] sm:$0xff]
  %v39 = vld [vmem:[%s0 + $0x8] sm:$0xff]
  %v40 = vld [vmem:[%s0 + $0x10] sm:$0xff]
  %v41 = vld [vmem:[%s0 + $0x18] sm:$0xff]
  %v42 = vld [vmem:[%s0 + $0x20] sm:$0xff]
  %v43 = vld [vmem:[%s0 + $0x28] sm:$0xff]
  %v44 = vld [vmem:[%s0 + $0x30] sm:$0xff]
  %v45 = vld [vmem:[%s0 + $0x38] sm:$0xff]
  %v46 = vld [vmem:[%s0 + $0x40] sm:$0xff]
  %v47 = vld [vmem:[%s0 + $0x48] sm:$0xff]
  %v48 = vld [vmem:[%s0 + $0x50] sm:$0xff]
  %v49 = vld [vmem:[%s0 + $0x58] sm:$0xff]
  %v50 = vld [vmem:[%s0 + $0x60] sm:$0xff]
  %v51 = vld [vmem:[%s0 + $0x68] sm:$0xff]
  %v52 = vld [vmem:[%s0 + $0x70] sm:$0xff]
  %v53 = vld [vmem:[%s0 + $0x78] sm:$0xff]
  %v54 = vld [vmem:[%s0 + $0x80] sm:$0xff]
  %v55 = vld [vmem:[%s0 + $0x88] sm:$0xff]
  %v56 = vld [vmem:[%s0 + $0x90] sm:$0xff]
  %v57 = vld [vmem:[%s0 + $0x98] sm:$0xff]
  %v58 = vld [vmem:[%s0 + $0xa0] sm:$0xff]
  %v59 = vld [vmem:[%s0 + $0xa8] sm:$0xff]
  %v60 = vld [vmem:[%s0 + $0xb0] sm:$0xff]
  %v61 = vld [vmem:[%s0 + $0xb8] sm:$0xff]
  %v62 = vld [vmem:[%s0 + $0xc0] sm:$0xff]
  %v63 = vld [vmem:[%s0 + $0xc8] sm:$0xff]
  %v64 = vld [vmem:[%s0 + $0xd0] sm:$0xff]
  %v65 = vld [vmem:[%s0 + $0xd8] sm:$0xff]
  %v66 = vld [vmem:[%s0 + $0xe0] sm:$0xff]
  %v67 = vld [vmem:[%s0 + $0xe8] sm:$0xff]
  %v68 = vld [vmem:[%s0 + $0xf0] sm:$0xff]
  %v69 = vld [vmem:[%s0 + $0xf8] sm:$0xff]
  %v70 = vld [vmem:[%s0 + $0x100] sm:$0xff]
  %v71 = vld [vmem:[%s0 + $0x108] sm:$0xff]
  %v72 = vld [vmem:[%s0 + $0x110] sm:$0xff]
  %v73 = vld [vmem:[%s0 + $0x118] sm:$0xff]
  %v74 = vld [vmem:[%s0 + $0x120] sm:$0xff]
  %v75 = vld [vmem:[%s0 + $0x128] sm:$0xff]
  %v76 = vld [vmem:[%s0 + $0x130] sm:$0xff]
  %v77 = vld [vmem:[%s0 + $0x138] sm:$0xff]
  %v78 = vld [vmem:[%s0 + $0x140] sm:$0xff]
  %v79 = vld [vmem:[%s0 + $0x148] sm:$0xff]
  %v80 = vld [vmem:[%s0 + $0x150] sm:$0xff]
  %v81 = vld [vmem:[%s0 + $0x158] sm:$0xff]
  %v82 = vld [vmem:[%s0 + $0x160] sm:$0xff]
  %v83 = vld [vmem:[%s0 + $0x168] sm:$0xff]
  %v84 = vld [vmem:[%s0 + $0x170] sm:$0xff]
  %v85 = vld [vmem:[%s0 + $0x178] sm:$0xff]
  %v86 = vld [vmem:[%s0 + $0x180] sm:$0xff]
  %v87 = vld [vmem:[%s0 + $0x188] sm:$0xff]
  %v88 = vld [vmem:[%s0 + $0x190] sm:$0xff]
  %v89 = vld [vmem:[%s0 + $0x198] sm:$0xff]
  %v90 = vld [vmem:[%s0 + $0x1a0] sm:$0xff]
  %v91 = vld [vmem:[%s0 + $0x1a8] sm:$0xff]
  %v92 = vld [vmem:[%s0 + $0x1b0] sm:$0xff]
  %v93 = vld [vmem:[%s0 + $0x1b8] sm:$0xff]
  %v94 = vld [vmem:[%s0 + $0x1c0] sm:$0xff]
  %v95 = vld [vmem:[%s0 + $0x1c8] sm:$0xff]
  %v96 = vld [vmem:[%s0 + $0x1d0] sm:$0xff]
  %v97 = vld [vmem:[%s0 + $0x1d8] sm:$0xff]
  %v98 = vld [vmem:[%s0 + $0x1e0] sm:$0xff]
  %v99 = vld [vmem:[%s0 + $0x1e8] sm:$0xff]
  %v100 = vld [vmem:[%s0 + $0x1f0] sm:$0xff]
  %v101 = vld [vmem:[%s0 + $0x1f8] sm:$0xff]
  %102 = vst [vmem:[#allocation2] sm:$0xff] 0.0
  %103 = vst [vmem:[#allocation2 + $0x8] sm:$0xff] 0.0
  %104 = vst [vmem:[#allocation2 + $0x10] sm:$0xff] 0.0
  %105 = vst [vmem:[#allocation2 + $0x18] sm:$0xff] 0.0
  %106 = vst [vmem:[#allocation2 + $0x240] sm:$0xff] 0.0
  %107 = vst [vmem:[#allocation2 + $0x248] sm:$0xff] 0.0
  %108 = vst [vmem:[#allocation2 + $0x250] sm:$0xff] 0.0
  %109 = vst [vmem:[#allocation2 + $0x258] sm:$0xff] 0.0
  %s110 = scalar_lea.vmem [#allocation2], 544
  %111 = vst [vmem:[%s110] sm:$0xff] 0.0
  %112 = vst [vmem:[%s110 + $0x8] sm:$0xff] 0.0
  %113 = vst [vmem:[%s110 + $0x10] sm:$0xff] 0.0
  %114 = vst [vmem:[%s110 + $0x18] sm:$0xff] 0.0
  %115 = vst [vmem:[%s110 + $0x240] sm:$0xff] 0.0
  %116 = vst [vmem:[%s110 + $0x248] sm:$0xff] 0.0
  %117 = vst [vmem:[%s110 + $0x250] sm:$0xff] 0.0
  %118 = vst [vmem:[%s110 + $0x258] sm:$0xff] 0.0
  %s119 = scalar_lea.vmem [#allocation2], 32
  %120 = vst [vmem:[%s119] sm:$0xff] 0.0
  %121 = vst [vmem:[%s119 + $0x20] sm:$0xff] 0.0
  %122 = vst [vmem:[%s119 + $0x40] sm:$0xff] 0.0
  %123 = vst [vmem:[%s119 + $0x60] sm:$0xff] 0.0
  %124 = vst [vmem:[%s119 + $0x80] sm:$0xff] 0.0
  %125 = vst [vmem:[%s119 + $0xa0] sm:$0xff] 0.0
  %126 = vst [vmem:[%s119 + $0xc0] sm:$0xff] 0.0
  %127 = vst [vmem:[%s119 + $0xe0] sm:$0xff] 0.0
  %128 = vst [vmem:[%s119 + $0x100] sm:$0xff] 0.0
  %129 = vst [vmem:[%s119 + $0x120] sm:$0xff] 0.0
  %130 = vst [vmem:[%s119 + $0x140] sm:$0xff] 0.0
  %131 = vst [vmem:[%s119 + $0x160] sm:$0xff] 0.0
  %132 = vst [vmem:[%s119 + $0x180] sm:$0xff] 0.0
  %133 = vst [vmem:[%s119 + $0x1a0] sm:$0xff] 0.0
  %134 = vst [vmem:[%s119 + $0x1c0] sm:$0xff] 0.0
  %135 = vst [vmem:[%s119 + $0x1e0] sm:$0xff] 0.0
  %136 = vst [vmem:[%s119 + $0x240] sm:$0xff] 0.0
  %137 = vst [vmem:[%s119 + $0x260] sm:$0xff] 0.0
  %138 = vst [vmem:[%s119 + $0x280] sm:$0xff] 0.0
  %139 = vst [vmem:[%s119 + $0x2a0] sm:$0xff] 0.0
  %140 = vst [vmem:[%s119 + $0x2c0] sm:$0xff] 0.0
  %141 = vst [vmem:[%s119 + $0x2e0] sm:$0xff] 0.0
  %142 = vst [vmem:[%s119 + $0x300] sm:$0xff] 0.0
  %143 = vst [vmem:[%s119 + $0x320] sm:$0xff] 0.0
  %144 = vst [vmem:[%s119 + $0x340] sm:$0xff] 0.0
  %145 = vst [vmem:[%s119 + $0x360] sm:$0xff] 0.0
  %146 = vst [vmem:[%s119 + $0x380] sm:$0xff] 0.0
  %147 = vst [vmem:[%s119 + $0x3a0] sm:$0xff] 0.0
  %148 = vst [vmem:[%s119 + $0x3c0] sm:$0xff] 0.0
  %149 = vst [vmem:[%s119 + $0x3e0] sm:$0xff] 0.0
  %150 = vst [vmem:[%s119 + $0x400] sm:$0xff] 0.0
  %151 = vst [vmem:[%s119 + $0x420] sm:$0xff] 0.0
  %152 = vst [vmem:[%s119 + $0x18] sm:$0xff] 0.0
  %153 = vst [vmem:[%s119 + $0x38] sm:$0xff] 0.0
  %154 = vst [vmem:[%s119 + $0x58] sm:$0xff] 0.0
  %155 = vst [vmem:[%s119 + $0x78] sm:$0xff] 0.0
  %156 = vst [vmem:[%s119 + $0x98] sm:$0xff] 0.0
  %157 = vst [vmem:[%s119 + $0xb8] sm:$0xff] 0.0
  %158 = vst [vmem:[%s119 + $0xd8] sm:$0xff] 0.0
  %159 = vst [vmem:[%s119 + $0xf8] sm:$0xff] 0.0
  %160 = vst [vmem:[%s119 + $0x118] sm:$0xff] 0.0
  %161 = vst [vmem:[%s119 + $0x138] sm:$0xff] 0.0
  %162 = vst [vmem:[%s119 + $0x158] sm:$0xff] 0.0
  %163 = vst [vmem:[%s119 + $0x178] sm:$0xff] 0.0
  %164 = vst [vmem:[%s119 + $0x198] sm:$0xff] 0.0
  %165 = vst [vmem:[%s119 + $0x1b8] sm:$0xff] 0.0
  %166 = vst [vmem:[%s119 + $0x1d8] sm:$0xff] 0.0
  %167 = vst [vmem:[%s119 + $0x1f8] sm:$0xff] 0.0
  %168 = vst [vmem:[%s119 + $0x258] sm:$0xff] 0.0
  %169 = vst [vmem:[%s119 + $0x278] sm:$0xff] 0.0
  %170 = vst [vmem:[%s119 + $0x298] sm:$0xff] 0.0
  %171 = vst [vmem:[%s119 + $0x2b8] sm:$0xff] 0.0
  %172 = vst [vmem:[%s119 + $0x2d8] sm:$0xff] 0.0
  %173 = vst [vmem:[%s119 + $0x2f8] sm:$0xff] 0.0
  %174 = vst [vmem:[%s119 + $0x318] sm:$0xff] 0.0
  %175 = vst [vmem:[%s119 + $0x338] sm:$0xff] 0.0
  %176 = vst [vmem:[%s119 + $0x358] sm:$0xff] 0.0
  %177 = vst [vmem:[%s119 + $0x378] sm:$0xff] 0.0
  %178 = vst [vmem:[%s119 + $0x398] sm:$0xff] 0.0
  %179 = vst [vmem:[%s119 + $0x3b8] sm:$0xff] 0.0
  %180 = vst [vmem:[%s119 + $0x3d8] sm:$0xff] 0.0
  %181 = vst [vmem:[%s119 + $0x3f8] sm:$0xff] 0.0
  %182 = vst [vmem:[%s119 + $0x418] sm:$0xff] 0.0
  %183 = vst [vmem:[%s119 + $0x438] sm:$0xff] 0.0
  %184 = vst [vmem:[%s119 + $0x8] sm:$0xff] %v38
  %185 = vst [vmem:[%s119 + $0x10] sm:$0xff] %v39
  %186 = vst [vmem:[%s119 + $0x28] sm:$0xff] %v40
  %187 = vst [vmem:[%s119 + $0x30] sm:$0xff] %v41
  %188 = vst [vmem:[%s119 + $0x48] sm:$0xff] %v42
  %189 = vst [vmem:[%s119 + $0x50] sm:$0xff] %v43
  %190 = vst [vmem:[%s119 + $0x68] sm:$0xff] %v44
  %191 = vst [vmem:[%s119 + $0x70] sm:$0xff] %v45
  %192 = vst [vmem:[%s119 + $0x88] sm:$0xff] %v46
  %193 = vst [vmem:[%s119 + $0x90] sm:$0xff] %v47
  %194 = vst [vmem:[%s119 + $0xa8] sm:$0xff] %v48
  %195 = vst [vmem:[%s119 + $0xb0] sm:$0xff] %v49
  %196 = vst [vmem:[%s119 + $0xc8] sm:$0xff] %v50
  %197 = vst [vmem:[%s119 + $0xd0] sm:$0xff] %v51
  %198 = vst [vmem:[%s119 + $0xe8] sm:$0xff] %v52
  %199 = vst [vmem:[%s119 + $0xf0] sm:$0xff] %v53
  %200 = vst [vmem:[%s119 + $0x108] sm:$0xff] %v54
  %201 = vst [vmem:[%s119 + $0x110] sm:$0xff] %v55
  %202 = vst [vmem:[%s119 + $0x128] sm:$0xff] %v56
  %203 = vst [vmem:[%s119 + $0x130] sm:$0xff] %v57
  %204 = vst [vmem:[%s119 + $0x148] sm:$0xff] %v58
  %205 = vst [vmem:[%s119 + $0x150] sm:$0xff] %v59
  %206 = vst [vmem:[%s119 + $0x168] sm:$0xff] %v60
  %207 = vst [vmem:[%s119 + $0x170] sm:$0xff] %v61
  %208 = vst [vmem:[%s119 + $0x188] sm:$0xff] %v62
  %209 = vst [vmem:[%s119 + $0x190] sm:$0xff] %v63
  %210 = vst [vmem:[%s119 + $0x1a8] sm:$0xff] %v64
  %211 = vst [vmem:[%s119 + $0x1b0] sm:$0xff] %v65
  %212 = vst [vmem:[%s119 + $0x1c8] sm:$0xff] %v66
  %213 = vst [vmem:[%s119 + $0x1d0] sm:$0xff] %v67
  %214 = vst [vmem:[%s119 + $0x1e8] sm:$0xff] %v68
  %215 = vst [vmem:[%s119 + $0x1f0] sm:$0xff] %v69
  %216 = vst [vmem:[%s119 + $0x248] sm:$0xff] %v70
  %217 = vst [vmem:[%s119 + $0x250] sm:$0xff] %v71
  %218 = vst [vmem:[%s119 + $0x268] sm:$0xff] %v72
  %219 = vst [vmem:[%s119 + $0x270] sm:$0xff] %v73
  %220 = vst [vmem:[%s119 + $0x288] sm:$0xff] %v74
  %221 = vst [vmem:[%s119 + $0x290] sm:$0xff] %v75
  %222 = vst [vmem:[%s119 + $0x2a8] sm:$0xff] %v76
  %223 = vst [vmem:[%s119 + $0x2b0] sm:$0xff] %v77
  %224 = vst [vmem:[%s119 + $0x2c8] sm:$0xff] %v78
  %225 = vst [vmem:[%s119 + $0x2d0] sm:$0xff] %v79
  %226 = vst [vmem:[%s119 + $0x2e8] sm:$0xff] %v80
  %227 = vst [vmem:[%s119 + $0x2f0] sm:$0xff] %v81
  %228 = vst [vmem:[%s119 + $0x308] sm:$0xff] %v82
  %229 = vst [vmem:[%s119 + $0x310] sm:$0xff] %v83
  %230 = vst [vmem:[%s119 + $0x328] sm:$0xff] %v84
  %231 = vst [vmem:[%s119 + $0x330] sm:$0xff] %v85
  %232 = vst [vmem:[%s119 + $0x348] sm:$0xff] %v86
  %233 = vst [vmem:[%s119 + $0x350] sm:$0xff] %v87
  %234 = vst [vmem:[%s119 + $0x368] sm:$0xff] %v88
  %235 = vst [vmem:[%s119 + $0x370] sm:$0xff] %v89
  %236 = vst [vmem:[%s119 + $0x388] sm:$0xff] %v90
  %237 = vst [vmem:[%s119 + $0x390] sm:$0xff] %v91
  %238 = vst [vmem:[%s119 + $0x3a8] sm:$0xff] %v92
  %239 = vst [vmem:[%s119 + $0x3b0] sm:$0xff] %v93
  %240 = vst [vmem:[%s119 + $0x3c8] sm:$0xff] %v94
  %241 = vst [vmem:[%s119 + $0x3d0] sm:$0xff] %v95
  %242 = vst [vmem:[%s119 + $0x3e8] sm:$0xff] %v96
  %243 = vst [vmem:[%s119 + $0x3f0] sm:$0xff] %v97
  %244 = vst [vmem:[%s119 + $0x408] sm:$0xff] %v98
  %245 = vst [vmem:[%s119 + $0x410] sm:$0xff] %v99
  %246 = vst [vmem:[%s119 + $0x428] sm:$0xff] %v100
  %247 = vst [vmem:[%s119 + $0x430] sm:$0xff] %v101
  %v248 = vld [vmem:[#allocation2 + $0x7] sm:$0xff]
  %v249 = vld [vmem:[#allocation2 + $0xf] sm:$0xff]
  %v250 = vld [vmem:[#allocation2 + $0x27] sm:$0xff]
  %v251 = vld [vmem:[#allocation2 + $0x2f] sm:$0xff]
  %v252 = vld [vmem:[#allocation2 + $0x47] sm:$0xff]
  %v253 = vld [vmem:[#allocation2 + $0x4f] sm:$0xff]
  %v254 = vld [vmem:[#allocation2 + $0x67] sm:$0xff]
  %v255 = vld [vmem:[#allocation2 + $0x6f] sm:$0xff]
  %v256 = vld [vmem:[#allocation2 + $0x87] sm:$0xff]
  %v257 = vld [vmem:[#allocation2 + $0x8f] sm:$0xff]
  %v258 = vld [vmem:[#allocation2 + $0xa7] sm:$0xff]
  %v259 = vld [vmem:[#allocation2 + $0xaf] sm:$0xff]
  %v260 = vld [vmem:[#allocation2 + $0xc7] sm:$0xff]
  %v261 = vld [vmem:[#allocation2 + $0xcf] sm:$0xff]
  %v262 = vld [vmem:[#allocation2 + $0xe7] sm:$0xff]
  %v263 = vld [vmem:[#allocation2 + $0xef] sm:$0xff]
  %v264 = vld [vmem:[#allocation2 + $0x107] sm:$0xff]
  %v265 = vld [vmem:[#allocation2 + $0x10f] sm:$0xff]
  %v266 = vld [vmem:[#allocation2 + $0x127] sm:$0xff]
  %v267 = vld [vmem:[#allocation2 + $0x12f] sm:$0xff]
  %v268 = vld [vmem:[#allocation2 + $0x147] sm:$0xff]
  %v269 = vld [vmem:[#allocation2 + $0x14f] sm:$0xff]
  %v270 = vld [vmem:[#allocation2 + $0x167] sm:$0xff]
  %v271 = vld [vmem:[#allocation2 + $0x16f] sm:$0xff]
  %v272 = vld [vmem:[#allocation2 + $0x187] sm:$0xff]
  %v273 = vld [vmem:[#allocation2 + $0x18f] sm:$0xff]
  %v274 = vld [vmem:[#allocation2 + $0x1a7] sm:$0xff]
  %v275 = vld [vmem:[#allocation2 + $0x1af] sm:$0xff]
  %v276 = vld [vmem:[#allocation2 + $0x1c7] sm:$0xff]
  %v277 = vld [vmem:[#allocation2 + $0x1cf] sm:$0xff]
  %v278 = vld [vmem:[#allocation2 + $0x1e7] sm:$0xff]
  %v279 = vld [vmem:[#allocation2 + $0x1ef] sm:$0xff]
  %v280 = vld [vmem:[#allocation2 + $0x247] sm:$0xff]
  %v281 = vld [vmem:[#allocation2 + $0x24f] sm:$0xff]
  %v282 = vld [vmem:[#allocation2 + $0x267] sm:$0xff]
  %v283 = vld [vmem:[#allocation2 + $0x26f] sm:$0xff]
  %v284 = vld [vmem:[#allocation2 + $0x287] sm:$0xff]
  %v285 = vld [vmem:[#allocation2 + $0x28f] sm:$0xff]
  %v286 = vld [vmem:[#allocation2 + $0x2a7] sm:$0xff]
  %v287 = vld [vmem:[#allocation2 + $0x2af] sm:$0xff]
  %v288 = vld [vmem:[#allocation2 + $0x2c7] sm:$0xff]
  %v289 = vld [vmem:[#allocation2 + $0x2cf] sm:$0xff]
  %v290 = vld [vmem:[#allocation2 + $0x2e7] sm:$0xff]
  %v291 = vld [vmem:[#allocation2 + $0x2ef] sm:$0xff]
  %v292 = vld [vmem:[#allocation2 + $0x307] sm:$0xff]
  %v293 = vld [vmem:[#allocation2 + $0x30f] sm:$0xff]
  %v294 = vld [vmem:[#allocation2 + $0x327] sm:$0xff]
  %v295 = vld [vmem:[#allocation2 + $0x32f] sm:$0xff]
  %v296 = vld [vmem:[#allocation2 + $0x347] sm:$0xff]
  %v297 = vld [vmem:[#allocation2 + $0x34f] sm:$0xff]
  %v298 = vld [vmem:[#allocation2 + $0x367] sm:$0xff]
  %v299 = vld [vmem:[#allocation2 + $0x36f] sm:$0xff]
  %v300 = vld [vmem:[#allocation2 + $0x387] sm:$0xff]
  %v301 = vld [vmem:[#allocation2 + $0x38f] sm:$0xff]
  %v302 = vld [vmem:[#allocation2 + $0x3a7] sm:$0xff]
  %v303 = vld [vmem:[#allocation2 + $0x3af] sm:$0xff]
  %v304 = vld [vmem:[#allocation2 + $0x3c7] sm:$0xff]
  %v305 = vld [vmem:[#allocation2 + $0x3cf] sm:$0xff]
  %v306 = vld [vmem:[#allocation2 + $0x3e7] sm:$0xff]
  %v307 = vld [vmem:[#allocation2 + $0x3ef] sm:$0xff]
  %v308 = vld [vmem:[#allocation2 + $0x407] sm:$0xff]
  %v309 = vld [vmem:[#allocation2 + $0x40f] sm:$0xff]
  %v310 = vld [vmem:[#allocation2 + $0x427] sm:$0xff]
  %v311 = vld [vmem:[#allocation2 + $0x42f] sm:$0xff]
  %v312 = vld [vmem:[#allocation2 + $0x8] sm:$0xff]
  %v313 = vld [vmem:[#allocation2 + $0x10] sm:$0xff]
  %v314 = vld [vmem:[#allocation2 + $0x28] sm:$0xff]
  %v315 = vld [vmem:[#allocation2 + $0x30] sm:$0xff]
  %v316 = vld [vmem:[#allocation2 + $0x48] sm:$0xff]
  %v317 = vld [vmem:[#allocation2 + $0x50] sm:$0xff]
  %v318 = vld [vmem:[#allocation2 + $0x68] sm:$0xff]
  %v319 = vld [vmem:[#allocation2 + $0x70] sm:$0xff]
  %v320 = vld [vmem:[#allocation2 + $0x88] sm:$0xff]
  %v321 = vld [vmem:[#allocation2 + $0x90] sm:$0xff]
  %v322 = vld [vmem:[#allocation2 + $0xa8] sm:$0xff]
  %v323 = vld [vmem:[#allocation2 + $0xb0] sm:$0xff]
  %v324 = vld [vmem:[#allocation2 + $0xc8] sm:$0xff]
  %v325 = vld [vmem:[#allocation2 + $0xd0] sm:$0xff]
  %v326 = vld [vmem:[#allocation2 + $0xe8] sm:$0xff]
  %v327 = vld [vmem:[#allocation2 + $0xf0] sm:$0xff]
  %v328 = vld [vmem:[#allocation2 + $0x108] sm:$0xff]
  %v329 = vld [vmem:[#allocation2 + $0x110] sm:$0xff]
  %v330 = vld [vmem:[#allocation2 + $0x128] sm:$0xff]
  %v331 = vld [vmem:[#allocation2 + $0x130] sm:$0xff]
  %v332 = vld [vmem:[#allocation2 + $0x148] sm:$0xff]
  %v333 = vld [vmem:[#allocation2 + $0x150] sm:$0xff]
  %v334 = vld [vmem:[#allocation2 + $0x168] sm:$0xff]
  %v335 = vld [vmem:[#allocation2 + $0x170] sm:$0xff]
  %v336 = vld [vmem:[#allocation2 + $0x188] sm:$0xff]
  %v337 = vld [vmem:[#allocation2 + $0x190] sm:$0xff]
  %v338 = vld [vmem:[#allocation2 + $0x1a8] sm:$0xff]
  %v339 = vld [vmem:[#allocation2 + $0x1b0] sm:$0xff]
  %v340 = vld [vmem:[#allocation2 + $0x1c8] sm:$0xff]
  %v341 = vld [vmem:[#allocation2 + $0x1d0] sm:$0xff]
  %v342 = vld [vmem:[#allocation2 + $0x1e8] sm:$0xff]
  %v343 = vld [vmem:[#allocation2 + $0x1f0] sm:$0xff]
  %v344 = vld [vmem:[#allocation2 + $0x248] sm:$0xff]
  %v345 = vld [vmem:[#allocation2 + $0x250] sm:$0xff]
  %v346 = vld [vmem:[#allocation2 + $0x268] sm:$0xff]
  %v347 = vld [vmem:[#allocation2 + $0x270] sm:$0xff]
  %v348 = vld [vmem:[#allocation2 + $0x288] sm:$0xff]
  %v349 = vld [vmem:[#allocation2 + $0x290] sm:$0xff]
  %v350 = vld [vmem:[#allocation2 + $0x2a8] sm:$0xff]
  %v351 = vld [vmem:[#allocation2 + $0x2b0] sm:$0xff]
  %v352 = vld [vmem:[#allocation2 + $0x2c8] sm:$0xff]
  %v353 = vld [vmem:[#allocation2 + $0x2d0] sm:$0xff]
  %v354 = vld [vmem:[#allocation2 + $0x2e8] sm:$0xff]
  %v355 = vld [vmem:[#allocation2 + $0x2f0] sm:$0xff]
  %v356 = vld [vmem:[#allocation2 + $0x308] sm:$0xff]
  %v357 = vld [vmem:[#allocation2 + $0x310] sm:$0xff]
  %v358 = vld [vmem:[#allocation2 + $0x328] sm:$0xff]
  %v359 = vld [vmem:[#allocation2 + $0x330] sm:$0xff]
  %v360 = vld [vmem:[#allocation2 + $0x348] sm:$0xff]
  %v361 = vld [vmem:[#allocation2 + $0x350] sm:$0xff]
  %v362 = vld [vmem:[#allocation2 + $0x368] sm:$0xff]
  %v363 = vld [vmem:[#allocation2 + $0x370] sm:$0xff]
  %v364 = vld [vmem:[#allocation2 + $0x388] sm:$0xff]
  %v365 = vld [vmem:[#allocation2 + $0x390] sm:$0xff]
  %v366 = vld [vmem:[#allocation2 + $0x3a8] sm:$0xff]
  %v367 = vld [vmem:[#allocation2 + $0x3b0] sm:$0xff]
  %v368 = vld [vmem:[#allocation2 + $0x3c8] sm:$0xff]
  %v369 = vld [vmem:[#allocation2 + $0x3d0] sm:$0xff]
  %v370 = vld [vmem:[#allocation2 + $0x3e8] sm:$0xff]
  %v371 = vld [vmem:[#allocation2 + $0x3f0] sm:$0xff]
  %v372 = vld [vmem:[#allocation2 + $0x408] sm:$0xff]
  %v373 = vld [vmem:[#allocation2 + $0x410] sm:$0xff]
  %v374 = vld [vmem:[#allocation2 + $0x428] sm:$0xff]
  %v375 = vld [vmem:[#allocation2 + $0x430] sm:$0xff]
  %v376 = vld [vmem:[%s2] sm:$0xff]
  %v377 = vld [vmem:[%s2 + $0x8] sm:$0xff]
  %v378 = vld [vmem:[%s2 + $0x10] sm:$0xff]
  %v379 = vld [vmem:[%s2 + $0x18] sm:$0xff]
  %v380 = vld [vmem:[%s2 + $0x20] sm:$0xff]
  %v381 = vld [vmem:[%s2 + $0x28] sm:$0xff]
  %v382 = vld [vmem:[%s2 + $0x30] sm:$0xff]
  %v383 = vld [vmem:[%s2 + $0x38] sm:$0xff]
  %v384 = vld [vmem:[%s2 + $0x40] sm:$0xff]
  %v385 = vld [vmem:[%s2 + $0x48] sm:$0xff]
  %v386 = vld [vmem:[%s2 + $0x50] sm:$0xff]
  %v387 = vld [vmem:[%s2 + $0x58] sm:$0xff]
  %v388 = vld [vmem:[%s2 + $0x60] sm:$0xff]
  %v389 = vld [vmem:[%s2 + $0x68] sm:$0xff]
  %v390 = vld [vmem:[%s2 + $0x70] sm:$0xff]
  %v391 = vld [vmem:[%s2 + $0x78] sm:$0xff]
  %v392 = vld [vmem:[%s2 + $0x80] sm:$0xff]
  %v393 = vld [vmem:[%s2 + $0x88] sm:$0xff]
  %v394 = vld [vmem:[%s2 + $0x90] sm:$0xff]
  %v395 = vld [vmem:[%s2 + $0x98] sm:$0xff]
  %v396 = vld [vmem:[%s2 + $0xa0] sm:$0xff]
  %v397 = vld [vmem:[%s2 + $0xa8] sm:$0xff]
  %v398 = vld [vmem:[%s2 + $0xb0] sm:$0xff]
  %v399 = vld [vmem:[%s2 + $0xb8] sm:$0xff]
  %v400 = vld [vmem:[%s2 + $0xc0] sm:$0xff]
  %v401 = vld [vmem:[%s2 + $0xc8] sm:$0xff]
  %v402 = vld [vmem:[%s2 + $0xd0] sm:$0xff]
  %v403 = vld [vmem:[%s2 + $0xd8] sm:$0xff]
  %v404 = vld [vmem:[%s2 + $0xe0] sm:$0xff]
  %v405 = vld [vmem:[%s2 + $0xe8] sm:$0xff]
  %v406 = vld [vmem:[%s2 + $0xf0] sm:$0xff]
  %v407 = vld [vmem:[%s2 + $0xf8] sm:$0xff]
  %v408 = vld [vmem:[#allocation2 + $0x9] sm:$0xff]
  %v409 = vld [vmem:[#allocation2 + $0x11] sm:$0xff]
  %v410 = vld [vmem:[#allocation2 + $0x29] sm:$0xff]
  %v411 = vld [vmem:[#allocation2 + $0x31] sm:$0xff]
  %v412 = vld [vmem:[#allocation2 + $0x49] sm:$0xff]
  %v413 = vld [vmem:[#allocation2 + $0x51] sm:$0xff]
  %v414 = vld [vmem:[#allocation2 + $0x69] sm:$0xff]
  %v415 = vld [vmem:[#allocation2 + $0x71] sm:$0xff]
  %v416 = vld [vmem:[#allocation2 + $0x89] sm:$0xff]
  %v417 = vld [vmem:[#allocation2 + $0x91] sm:$0xff]
  %v418 = vld [vmem:[#allocation2 + $0xa9] sm:$0xff]
  %v419 = vld [vmem:[#allocation2 + $0xb1] sm:$0xff]
  %v420 = vld [vmem:[#allocation2 + $0xc9] sm:$0xff]
  %v421 = vld [vmem:[#allocation2 + $0xd1] sm:$0xff]
  %v422 = vld [vmem:[#allocation2 + $0xe9] sm:$0xff]
  %v423 = vld [vmem:[#allocation2 + $0xf1] sm:$0xff]
  %v424 = vld [vmem:[#allocation2 + $0x109] sm:$0xff]
  %v425 = vld [vmem:[#allocation2 + $0x111] sm:$0xff]
  %v426 = vld [vmem:[#allocation2 + $0x129] sm:$0xff]
  %v427 = vld [vmem:[#allocation2 + $0x131] sm:$0xff]
  %v428 = vld [vmem:[#allocation2 + $0x149] sm:$0xff]
  %v429 = vld [vmem:[#allocation2 + $0x151] sm:$0xff]
  %v430 = vld [vmem:[#allocation2 + $0x169] sm:$0xff]
  %v431 = vld [vmem:[#allocation2 + $0x171] sm:$0xff]
  %v432 = vld [vmem:[#allocation2 + $0x189] sm:$0xff]
  %v433 = vld [vmem:[#allocation2 + $0x191] sm:$0xff]
  %v434 = vld [vmem:[#allocation2 + $0x1a9] sm:$0xff]
  %v435 = vld [vmem:[#allocation2 + $0x1b1] sm:$0xff]
  %v436 = vld [vmem:[#allocation2 + $0x1c9] sm:$0xff]
  %v437 = vld [vmem:[#allocation2 + $0x1d1] sm:$0xff]
  %v438 = vld [vmem:[#allocation2 + $0x1e9] sm:$0xff]
  %v439 = vld [vmem:[#allocation2 + $0x1f1] sm:$0xff]
  %v440 = vld [vmem:[#allocation2 + $0x249] sm:$0xff]
  %v441 = vld [vmem:[#allocation2 + $0x251] sm:$0xff]
  %v442 = vld [vmem:[#allocation2 + $0x269] sm:$0xff]
  %v443 = vld [vmem:[#allocation2 + $0x271] sm:$0xff]
  %v444 = vld [vmem:[#allocation2 + $0x289] sm:$0xff]
  %v445 = vld [vmem:[#allocation2 + $0x291] sm:$0xff]
  %v446 = vld [vmem:[#allocation2 + $0x2a9] sm:$0xff]
  %v447 = vld [vmem:[#allocation2 + $0x2b1] sm:$0xff]
  %v448 = vld [vmem:[#allocation2 + $0x2c9] sm:$0xff]
  %v449 = vld [vmem:[#allocation2 + $0x2d1] sm:$0xff]
  %v450 = vld [vmem:[#allocation2 + $0x2e9] sm:$0xff]
  %v451 = vld [vmem:[#allocation2 + $0x2f1] sm:$0xff]
  %v452 = vld [vmem:[#allocation2 + $0x309] sm:$0xff]
  %v453 = vld [vmem:[#allocation2 + $0x311] sm:$0xff]
  %v454 = vld [vmem:[#allocation2 + $0x329] sm:$0xff]
  %v455 = vld [vmem:[#allocation2 + $0x331] sm:$0xff]
  %v456 = vld [vmem:[#allocation2 + $0x349] sm:$0xff]
  %v457 = vld [vmem:[#allocation2 + $0x351] sm:$0xff]
  %v458 = vld [vmem:[#allocation2 + $0x369] sm:$0xff]
  %v459 = vld [vmem:[#allocation2 + $0x371] sm:$0xff]
  %v460 = vld [vmem:[#allocation2 + $0x389] sm:$0xff]
  %v461 = vld [vmem:[#allocation2 + $0x391] sm:$0xff]
  %v462 = vld [vmem:[#allocation2 + $0x3a9] sm:$0xff]
  %v463 = vld [vmem:[#allocation2 + $0x3b1] sm:$0xff]
  %v464 = vld [vmem:[#allocation2 + $0x3c9] sm:$0xff]
  %v465 = vld [vmem:[#allocation2 + $0x3d1] sm:$0xff]
  %v466 = vld [vmem:[#allocation2 + $0x3e9] sm:$0xff]
  %v467 = vld [vmem:[#allocation2 + $0x3f1] sm:$0xff]
  %v468 = vld [vmem:[#allocation2 + $0x409] sm:$0xff]
  %v469 = vld [vmem:[#allocation2 + $0x411] sm:$0xff]
  %v470 = vld [vmem:[#allocation2 + $0x429] sm:$0xff]
  %v471 = vld [vmem:[#allocation2 + $0x431] sm:$0xff]
  %v472 = vld [vmem:[%s119 + $0x7] sm:$0xff]
  %v473 = vld [vmem:[%s119 + $0xf] sm:$0xff]
  %v474 = vld [vmem:[%s119 + $0x27] sm:$0xff]
  %v475 = vld [vmem:[%s119 + $0x2f] sm:$0xff]
  %v476 = vld [vmem:[%s119 + $0x47] sm:$0xff]
  %v477 = vld [vmem:[%s119 + $0x4f] sm:$0xff]
  %v478 = vld [vmem:[%s119 + $0x67] sm:$0xff]
  %v479 = vld [vmem:[%s119 + $0x6f] sm:$0xff]
  %v480 = vld [vmem:[%s119 + $0x87] sm:$0xff]
  %v481 = vld [vmem:[%s119 + $0x8f] sm:$0xff]
  %v482 = vld [vmem:[%s119 + $0xa7] sm:$0xff]
  %v483 = vld [vmem:[%s119 + $0xaf] sm:$0xff]
  %v484 = vld [vmem:[%s119 + $0xc7] sm:$0xff]
  %v485 = vld [vmem:[%s119 + $0xcf] sm:$0xff]
  %v486 = vld [vmem:[%s119 + $0xe7] sm:$0xff]
  %v487 = vld [vmem:[%s119 + $0xef] sm:$0xff]
  %v488 = vld [vmem:[%s119 + $0x107] sm:$0xff]
  %v489 = vld [vmem:[%s119 + $0x10f] sm:$0xff]
  %v490 = vld [vmem:[%s119 + $0x127] sm:$0xff]
  %v491 = vld [vmem:[%s119 + $0x12f] sm:$0xff]
  %v492 = vld [vmem:[%s119 + $0x147] sm:$0xff]
  %v493 = vld [vmem:[%s119 + $0x14f] sm:$0xff]
  %v494 = vld [vmem:[%s119 + $0x167] sm:$0xff]
  %v495 = vld [vmem:[%s119 + $0x16f] sm:$0xff]
  %v496 = vld [vmem:[%s119 + $0x187] sm:$0xff]
  %v497 = vld [vmem:[%s119 + $0x18f] sm:$0xff]
  %v498 = vld [vmem:[%s119 + $0x1a7] sm:$0xff]
  %v499 = vld [vmem:[%s119 + $0x1af] sm:$0xff]
  %v500 = vld [vmem:[%s119 + $0x1c7] sm:$0xff]
  %v501 = vld [vmem:[%s119 + $0x1cf] sm:$0xff]
  %v502 = vld [vmem:[%s119 + $0x1e7] sm:$0xff]
  %v503 = vld [vmem:[%s119 + $0x1ef] sm:$0xff]
  %v504 = vld [vmem:[%s119 + $0x247] sm:$0xff]
  %v505 = vld [vmem:[%s119 + $0x24f] sm:$0xff]
  %v506 = vld [vmem:[%s119 + $0x267] sm:$0xff]
  %v507 = vld [vmem:[%s119 + $0x26f] sm:$0xff]
  %v508 = vld [vmem:[%s119 + $0x287] sm:$0xff]
  %v509 = vld [vmem:[%s119 + $0x28f] sm:$0xff]
  %v510 = vld [vmem:[%s119 + $0x2a7] sm:$0xff]
  %v511 = vld [vmem:[%s119 + $0x2af] sm:$0xff]
  %v512 = vld [vmem:[%s119 + $0x2c7] sm:$0xff]
  %v513 = vld [vmem:[%s119 + $0x2cf] sm:$0xff]
  %v514 = vld [vmem:[%s119 + $0x2e7] sm:$0xff]
  %v515 = vld [vmem:[%s119 + $0x2ef] sm:$0xff]
  %v516 = vld [vmem:[%s119 + $0x307] sm:$0xff]
  %v517 = vld [vmem:[%s119 + $0x30f] sm:$0xff]
  %v518 = vld [vmem:[%s119 + $0x327] sm:$0xff]
  %v519 = vld [vmem:[%s119 + $0x32f] sm:$0xff]
  %v520 = vld [vmem:[%s119 + $0x347] sm:$0xff]
  %v521 = vld [vmem:[%s119 + $0x34f] sm:$0xff]
  %v522 = vld [vmem:[%s119 + $0x367] sm:$0xff]
  %v523 = vld [vmem:[%s119 + $0x36f] sm:$0xff]
  %v524 = vld [vmem:[%s119 + $0x387] sm:$0xff]
  %v525 = vld [vmem:[%s119 + $0x38f] sm:$0xff]
  %v526 = vld [vmem:[%s119 + $0x3a7] sm:$0xff]
  %v527 = vld [vmem:[%s119 + $0x3af] sm:$0xff]
  %v528 = vld [vmem:[%s119 + $0x3c7] sm:$0xff]
  %v529 = vld [vmem:[%s119 + $0x3cf] sm:$0xff]
  %v530 = vld [vmem:[%s119 + $0x3e7] sm:$0xff]
  %v531 = vld [vmem:[%s119 + $0x3ef] sm:$0xff]
  %v532 = vld [vmem:[%s119 + $0x407] sm:$0xff]
  %v533 = vld [vmem:[%s119 + $0x40f] sm:$0xff]
  %v534 = vld [vmem:[%s119 + $0x427] sm:$0xff]
  %v535 = vld [vmem:[%s119 + $0x42f] sm:$0xff]
  %s536 = scalar_lea.vmem %s2, 256
  %v537 = vld [vmem:[%s536] sm:$0xff]
  %v538 = vld [vmem:[%s536 + $0x8] sm:$0xff]
  %v539 = vld [vmem:[%s536 + $0x10] sm:$0xff]
  %v540 = vld [vmem:[%s536 + $0x18] sm:$0xff]
  %v541 = vld [vmem:[%s536 + $0x20] sm:$0xff]
  %v542 = vld [vmem:[%s536 + $0x28] sm:$0xff]
  %v543 = vld [vmem:[%s536 + $0x30] sm:$0xff]
  %v544 = vld [vmem:[%s536 + $0x38] sm:$0xff]
  %v545 = vld [vmem:[%s536 + $0x40] sm:$0xff]
  %v546 = vld [vmem:[%s536 + $0x48] sm:$0xff]
  %v547 = vld [vmem:[%s536 + $0x50] sm:$0xff]
  %v548 = vld [vmem:[%s536 + $0x58] sm:$0xff]
  %v549 = vld [vmem:[%s536 + $0x60] sm:$0xff]
  %v550 = vld [vmem:[%s536 + $0x68] sm:$0xff]
  %v551 = vld [vmem:[%s536 + $0x70] sm:$0xff]
  %v552 = vld [vmem:[%s536 + $0x78] sm:$0xff]
  %v553 = vld [vmem:[%s536 + $0x80] sm:$0xff]
  %v554 = vld [vmem:[%s536 + $0x88] sm:$0xff]
  %v555 = vld [vmem:[%s536 + $0x90] sm:$0xff]
  %v556 = vld [vmem:[%s536 + $0x98] sm:$0xff]
  %v557 = vld [vmem:[%s536 + $0xa0] sm:$0xff]
  %v558 = vld [vmem:[%s536 + $0xa8] sm:$0xff]
  %v559 = vld [vmem:[%s536 + $0xb0] sm:$0xff]
  %v560 = vld [vmem:[%s536 + $0xb8] sm:$0xff]
  %v561 = vld [vmem:[%s536 + $0xc0] sm:$0xff]
  %v562 = vld [vmem:[%s536 + $0xc8] sm:$0xff]
  %v563 = vld [vmem:[%s536 + $0xd0] sm:$0xff]
  %v564 = vld [vmem:[%s536 + $0xd8] sm:$0xff]
  %v565 = vld [vmem:[%s536 + $0xe0] sm:$0xff]
  %v566 = vld [vmem:[%s536 + $0xe8] sm:$0xff]
  %v567 = vld [vmem:[%s536 + $0xf0] sm:$0xff]
  %v568 = vld [vmem:[%s536 + $0xf8] sm:$0xff]
  %569 = vmatprep.subr.mxu0 0.0
  %570 = vmatpush1.msra.mxu0 %v552
  %571 = vmatprep.subr.mxu0 0.0
  %572 = vmatpush1.msra.mxu0 %v551
  %573 = vmatprep.subr.mxu0 0.0
  %574 = vmatpush1.msra.mxu0 %v550
  %575 = vmatprep.subr.mxu0 0.0
  %576 = vmatpush1.msra.mxu0 %v549
  %577 = vmatprep.subr.mxu0 0.0
  %578 = vmatpush1.msra.mxu0 %v548
  %579 = vmatprep.subr.mxu0 0.0
  %580 = vmatpush1.msra.mxu0 %v547
  %581 = vmatprep.subr.mxu0 0.0
  %582 = vmatpush1.msra.mxu0 %v546
  %583 = vmatprep.subr.mxu0 0.0
  %584 = vmatpush1.msra.mxu0 %v545
  %585 = vmatprep.subr.mxu0 0.0
  %586 = vmatpush1.msra.mxu0 %v544
  %587 = vmatprep.subr.mxu0 0.0
  %588 = vmatpush1.msra.mxu0 %v543
  %589 = vmatprep.subr.mxu0 0.0
  %590 = vmatpush1.msra.mxu0 %v542
  %591 = vmatprep.subr.mxu0 0.0
  %592 = vmatpush1.msra.mxu0 %v541
  %593 = vmatprep.subr.mxu0 0.0
  %594 = vmatpush1.msra.mxu0 %v540
  %595 = vmatprep.subr.mxu0 0.0
  %596 = vmatpush1.msra.mxu0 %v539
  %597 = vmatprep.subr.mxu0 0.0
  %598 = vmatpush1.msra.mxu0 %v538
  %599 = vmatprep.subr.mxu0 0.0
  %600 = vmatpush1.msra.mxu0 %v537
  %601 = vmatprep.subr.mxu0 0.0
  %602 = vmatpush2.msra.mxu0 %v568
  %603 = vmatprep.subr.mxu0 0.0
  %604 = vmatpush2.msra.mxu0 %v567
  %605 = vmatprep.subr.mxu0 0.0
  %606 = vmatpush2.msra.mxu0 %v566
  %607 = vmatprep.subr.mxu0 0.0
  %608 = vmatpush2.msra.mxu0 %v565
  %609 = vmatprep.subr.mxu0 0.0
  %610 = vmatpush2.msra.mxu0 %v564
  %611 = vmatprep.subr.mxu0 0.0
  %612 = vmatpush2.msra.mxu0 %v563
  %613 = vmatprep.subr.mxu0 0.0
  %614 = vmatpush2.msra.mxu0 %v562
  %615 = vmatprep.subr.mxu0 0.0
  %616 = vmatpush2.msra.mxu0 %v561
  %617 = vmatprep.subr.mxu0 0.0
  %618 = vmatpush2.msra.mxu0 %v560
  %619 = vmatprep.subr.mxu0 0.0
  %620 = vmatpush2.msra.mxu0 %v559
  %621 = vmatprep.subr.mxu0 0.0
  %622 = vmatpush2.msra.mxu0 %v558
  %623 = vmatprep.subr.mxu0 0.0
  %624 = vmatpush2.msra.mxu0 %v557
  %625 = vmatprep.subr.mxu0 0.0
  %626 = vmatpush2.msra.mxu0 %v556
  %627 = vmatprep.subr.mxu0 0.0
  %628 = vmatpush2.msra.mxu0 %v555
  %629 = vmatprep.subr.mxu0 0.0
  %630 = vmatpush2.msra.mxu0 %v554
  %631 = vmatprep.subr.mxu0 0.0
  %632 = vmatpush2.msra.mxu0 %v553
  %633 = vmatprep.mubr.f32.mxu0 %v472
  %634 = vmatmul.mubr.f32.gmra.mxu0 %v408
  %v635 = vpop.f32.mrf.mxu0
  %v636 = vadd.f32 0.0, %v635
  %v637 = vpop.f32.mrf.mxu0
  %638 = vmatprep.mubr.f32.mxu0 %v473
  %639 = vmatmul.mubr.f32.gmra.mxu0 %v409
  %v640 = vpop.f32.mrf.mxu0
  %v641 = vadd.f32 0.0, %v640
  %v642 = vpop.f32.mrf.mxu0
  %643 = vmatprep.mubr.f32.mxu0 %v474
  %644 = vmatmul.mubr.f32.gmra.mxu0 %v410
  %v645 = vpop.f32.mrf.mxu0
  %v646 = vadd.f32 0.0, %v645
  %v647 = vpop.f32.mrf.mxu0
  %648 = vmatprep.mubr.f32.mxu0 %v475
  %649 = vmatmul.mubr.f32.gmra.mxu0 %v411
  %v650 = vpop.f32.mrf.mxu0
  %v651 = vadd.f32 0.0, %v650
  %v652 = vpop.f32.mrf.mxu0
  %653 = vmatprep.mubr.f32.mxu0 %v476
  %654 = vmatmul.mubr.f32.gmra.mxu0 %v412
  %v655 = vpop.f32.mrf.mxu0
  %v656 = vadd.f32 0.0, %v655
  %v657 = vpop.f32.mrf.mxu0
  %658 = vmatprep.mubr.f32.mxu0 %v477
  %659 = vmatmul.mubr.f32.gmra.mxu0 %v413
  %v660 = vpop.f32.mrf.mxu0
  %v661 = vadd.f32 0.0, %v660
  %v662 = vpop.f32.mrf.mxu0
  %663 = vmatprep.mubr.f32.mxu0 %v478
  %664 = vmatmul.mubr.f32.gmra.mxu0 %v414
  %v665 = vpop.f32.mrf.mxu0
  %v666 = vadd.f32 0.0, %v665
  %v667 = vpop.f32.mrf.mxu0
  %668 = vmatprep.mubr.f32.mxu0 %v479
  %669 = vmatmul.mubr.f32.gmra.mxu0 %v415
  %v670 = vpop.f32.mrf.mxu0
  %v671 = vadd.f32 0.0, %v670
  %v672 = vpop.f32.mrf.mxu0
  %673 = vmatprep.mubr.f32.mxu0 %v480
  %674 = vmatmul.mubr.f32.gmra.mxu0 %v416
  %v675 = vpop.f32.mrf.mxu0
  %v676 = vadd.f32 0.0, %v675
  %v677 = vpop.f32.mrf.mxu0
  %678 = vmatprep.mubr.f32.mxu0 %v481
  %679 = vmatmul.mubr.f32.gmra.mxu0 %v417
  %v680 = vpop.f32.mrf.mxu0
  %v681 = vadd.f32 0.0, %v680
  %v682 = vpop.f32.mrf.mxu0
  %683 = vmatprep.mubr.f32.mxu0 %v482
  %684 = vmatmul.mubr.f32.gmra.mxu0 %v418
  %v685 = vpop.f32.mrf.mxu0
  %v686 = vadd.f32 0.0, %v685
  %v687 = vpop.f32.mrf.mxu0
  %688 = vmatprep.mubr.f32.mxu0 %v483
  %689 = vmatmul.mubr.f32.gmra.mxu0 %v419
  %v690 = vpop.f32.mrf.mxu0
  %v691 = vadd.f32 0.0, %v690
  %v692 = vpop.f32.mrf.mxu0
  %693 = vmatprep.mubr.f32.mxu0 %v484
  %694 = vmatmul.mubr.f32.gmra.mxu0 %v420
  %v695 = vpop.f32.mrf.mxu0
  %v696 = vadd.f32 0.0, %v695
  %v697 = vpop.f32.mrf.mxu0
  %698 = vmatprep.mubr.f32.mxu0 %v485
  %699 = vmatmul.mubr.f32.gmra.mxu0 %v421
  %v700 = vpop.f32.mrf.mxu0
  %v701 = vadd.f32 0.0, %v700
  %v702 = vpop.f32.mrf.mxu0
  %703 = vmatprep.mubr.f32.mxu0 %v486
  %704 = vmatmul.mubr.f32.gmra.mxu0 %v422
  %v705 = vpop.f32.mrf.mxu0
  %v706 = vadd.f32 0.0, %v705
  %v707 = vpop.f32.mrf.mxu0
  %708 = vmatprep.mubr.f32.mxu0 %v487
  %709 = vmatmul.mubr.f32.gmra.mxu0 %v423
  %v710 = vpop.f32.mrf.mxu0
  %v711 = vadd.f32 0.0, %v710
  %v712 = vpop.f32.mrf.mxu0
  %713 = vmatprep.mubr.f32.mxu0 %v488
  %714 = vmatmul.mubr.f32.gmra.mxu0 %v424
  %v715 = vpop.f32.mrf.mxu0
  %v716 = vadd.f32 0.0, %v715
  %v717 = vpop.f32.mrf.mxu0
  %718 = vmatprep.mubr.f32.mxu0 %v489
  %719 = vmatmul.mubr.f32.gmra.mxu0 %v425
  %v720 = vpop.f32.mrf.mxu0
  %v721 = vadd.f32 0.0, %v720
  %v722 = vpop.f32.mrf.mxu0
  %723 = vmatprep.mubr.f32.mxu0 %v490
  %724 = vmatmul.mubr.f32.gmra.mxu0 %v426
  %v725 = vpop.f32.mrf.mxu0
  %v726 = vadd.f32 0.0, %v725
  %v727 = vpop.f32.mrf.mxu0
  %728 = vmatprep.mubr.f32.mxu0 %v491
  %729 = vmatmul.mubr.f32.gmra.mxu0 %v427
  %v730 = vpop.f32.mrf.mxu0
  %v731 = vadd.f32 0.0, %v730
  %v732 = vpop.f32.mrf.mxu0
  %733 = vmatprep.mubr.f32.mxu0 %v492
  %734 = vmatmul.mubr.f32.gmra.mxu0 %v428
  %v735 = vpop.f32.mrf.mxu0
  %v736 = vadd.f32 0.0, %v735
  %v737 = vpop.f32.mrf.mxu0
  %738 = vmatprep.mubr.f32.mxu0 %v493
  %739 = vmatmul.mubr.f32.gmra.mxu0 %v429
  %v740 = vpop.f32.mrf.mxu0
  %v741 = vadd.f32 0.0, %v740
  %v742 = vpop.f32.mrf.mxu0
  %743 = vmatprep.mubr.f32.mxu0 %v494
  %744 = vmatmul.mubr.f32.gmra.mxu0 %v430
  %v745 = vpop.f32.mrf.mxu0
  %v746 = vadd.f32 0.0, %v745
  %v747 = vpop.f32.mrf.mxu0
  %748 = vmatprep.mubr.f32.mxu0 %v495
  %749 = vmatmul.mubr.f32.gmra.mxu0 %v431
  %v750 = vpop.f32.mrf.mxu0
  %v751 = vadd.f32 0.0, %v750
  %v752 = vpop.f32.mrf.mxu0
  %753 = vmatprep.mubr.f32.mxu0 %v496
  %754 = vmatmul.mubr.f32.gmra.mxu0 %v432
  %v755 = vpop.f32.mrf.mxu0
  %v756 = vadd.f32 0.0, %v755
  %v757 = vpop.f32.mrf.mxu0
  %758 = vmatprep.mubr.f32.mxu0 %v497
  %759 = vmatmul.mubr.f32.gmra.mxu0 %v433
  %v760 = vpop.f32.mrf.mxu0
  %v761 = vadd.f32 0.0, %v760
  %v762 = vpop.f32.mrf.mxu0
  %763 = vmatprep.mubr.f32.mxu0 %v498
  %764 = vmatmul.mubr.f32.gmra.mxu0 %v434
  %v765 = vpop.f32.mrf.mxu0
  %v766 = vadd.f32 0.0, %v765
  %v767 = vpop.f32.mrf.mxu0
  %768 = vmatprep.mubr.f32.mxu0 %v499
  %769 = vmatmul.mubr.f32.gmra.mxu0 %v435
  %v770 = vpop.f32.mrf.mxu0
  %v771 = vadd.f32 0.0, %v770
  %v772 = vpop.f32.mrf.mxu0
  %773 = vmatprep.mubr.f32.mxu0 %v500
  %774 = vmatmul.mubr.f32.gmra.mxu0 %v436
  %v775 = vpop.f32.mrf.mxu0
  %v776 = vadd.f32 0.0, %v775
  %v777 = vpop.f32.mrf.mxu0
  %778 = vmatprep.mubr.f32.mxu0 %v501
  %779 = vmatmul.mubr.f32.gmra.mxu0 %v437
  %v780 = vpop.f32.mrf.mxu0
  %v781 = vadd.f32 0.0, %v780
  %v782 = vpop.f32.mrf.mxu0
  %783 = vmatprep.mubr.f32.mxu0 %v502
  %784 = vmatmul.mubr.f32.gmra.mxu0 %v438
  %v785 = vpop.f32.mrf.mxu0
  %v786 = vadd.f32 0.0, %v785
  %v787 = vpop.f32.mrf.mxu0
  %788 = vmatprep.mubr.f32.mxu0 %v503
  %789 = vmatmul.mubr.f32.gmra.mxu0 %v439
  %v790 = vpop.f32.mrf.mxu0
  %v791 = vadd.f32 0.0, %v790
  %v792 = vpop.f32.mrf.mxu0
  %793 = vmatprep.mubr.f32.mxu0 %v504
  %794 = vmatmul.mubr.f32.gmra.mxu0 %v440
  %v795 = vpop.f32.mrf.mxu0
  %v796 = vadd.f32 0.0, %v795
  %v797 = vpop.f32.mrf.mxu0
  %798 = vmatprep.mubr.f32.mxu0 %v505
  %799 = vmatmul.mubr.f32.gmra.mxu0 %v441
  %v800 = vpop.f32.mrf.mxu0
  %v801 = vadd.f32 0.0, %v800
  %v802 = vpop.f32.mrf.mxu0
  %803 = vmatprep.mubr.f32.mxu0 %v506
  %804 = vmatmul.mubr.f32.gmra.mxu0 %v442
  %v805 = vpop.f32.mrf.mxu0
  %v806 = vadd.f32 0.0, %v805
  %v807 = vpop.f32.mrf.mxu0
  %808 = vmatprep.mubr.f32.mxu0 %v507
  %809 = vmatmul.mubr.f32.gmra.mxu0 %v443
  %v810 = vpop.f32.mrf.mxu0
  %v811 = vadd.f32 0.0, %v810
  %v812 = vpop.f32.mrf.mxu0
  %813 = vmatprep.mubr.f32.mxu0 %v508
  %814 = vmatmul.mubr.f32.gmra.mxu0 %v444
  %v815 = vpop.f32.mrf.mxu0
  %v816 = vadd.f32 0.0, %v815
  %v817 = vpop.f32.mrf.mxu0
  %818 = vmatprep.mubr.f32.mxu0 %v509
  %819 = vmatmul.mubr.f32.gmra.mxu0 %v445
  %v820 = vpop.f32.mrf.mxu0
  %v821 = vadd.f32 0.0, %v820
  %v822 = vpop.f32.mrf.mxu0
  %823 = vmatprep.mubr.f32.mxu0 %v510
  %824 = vmatmul.mubr.f32.gmra.mxu0 %v446
  %v825 = vpop.f32.mrf.mxu0
  %v826 = vadd.f32 0.0, %v825
  %v827 = vpop.f32.mrf.mxu0
  %828 = vmatprep.mubr.f32.mxu0 %v511
  %829 = vmatmul.mubr.f32.gmra.mxu0 %v447
  %v830 = vpop.f32.mrf.mxu0
  %v831 = vadd.f32 0.0, %v830
  %v832 = vpop.f32.mrf.mxu0
  %833 = vmatprep.mubr.f32.mxu0 %v512
  %834 = vmatmul.mubr.f32.gmra.mxu0 %v448
  %v835 = vpop.f32.mrf.mxu0
  %v836 = vadd.f32 0.0, %v835
  %v837 = vpop.f32.mrf.mxu0
  %838 = vmatprep.mubr.f32.mxu0 %v513
  %839 = vmatmul.mubr.f32.gmra.mxu0 %v449
  %v840 = vpop.f32.mrf.mxu0
  %v841 = vadd.f32 0.0, %v840
  %v842 = vpop.f32.mrf.mxu0
  %843 = vmatprep.mubr.f32.mxu0 %v514
  %844 = vmatmul.mubr.f32.gmra.mxu0 %v450
  %v845 = vpop.f32.mrf.mxu0
  %v846 = vadd.f32 0.0, %v845
  %v847 = vpop.f32.mrf.mxu0
  %848 = vmatprep.mubr.f32.mxu0 %v515
  %849 = vmatmul.mubr.f32.gmra.mxu0 %v451
  %v850 = vpop.f32.mrf.mxu0
  %v851 = vadd.f32 0.0, %v850
  %v852 = vpop.f32.mrf.mxu0
  %853 = vmatprep.mubr.f32.mxu0 %v516
  %854 = vmatmul.mubr.f32.gmra.mxu0 %v452
  %v855 = vpop.f32.mrf.mxu0
  %v856 = vadd.f32 0.0, %v855
  %v857 = vpop.f32.mrf.mxu0
  %858 = vmatprep.mubr.f32.mxu0 %v517
  %859 = vmatmul.mubr.f32.gmra.mxu0 %v453
  %v860 = vpop.f32.mrf.mxu0
  %v861 = vadd.f32 0.0, %v860
  %v862 = vpop.f32.mrf.mxu0
  %863 = vmatprep.mubr.f32.mxu0 %v518
  %864 = vmatmul.mubr.f32.gmra.mxu0 %v454
  %v865 = vpop.f32.mrf.mxu0
  %v866 = vadd.f32 0.0, %v865
  %v867 = vpop.f32.mrf.mxu0
  %868 = vmatprep.mubr.f32.mxu0 %v519
  %869 = vmatmul.mubr.f32.gmra.mxu0 %v455
  %v870 = vpop.f32.mrf.mxu0
  %v871 = vadd.f32 0.0, %v870
  %v872 = vpop.f32.mrf.mxu0
  %873 = vmatprep.mubr.f32.mxu0 %v520
  %874 = vmatmul.mubr.f32.gmra.mxu0 %v456
  %v875 = vpop.f32.mrf.mxu0
  %v876 = vadd.f32 0.0, %v875
  %v877 = vpop.f32.mrf.mxu0
  %878 = vmatprep.mubr.f32.mxu0 %v521
  %879 = vmatmul.mubr.f32.gmra.mxu0 %v457
  %v880 = vpop.f32.mrf.mxu0
  %v881 = vadd.f32 0.0, %v880
  %v882 = vpop.f32.mrf.mxu0
  %883 = vmatprep.mubr.f32.mxu0 %v522
  %884 = vmatmul.mubr.f32.gmra.mxu0 %v458
  %v885 = vpop.f32.mrf.mxu0
  %v886 = vadd.f32 0.0, %v885
  %v887 = vpop.f32.mrf.mxu0
  %888 = vmatprep.mubr.f32.mxu0 %v523
  %889 = vmatmul.mubr.f32.gmra.mxu0 %v459
  %v890 = vpop.f32.mrf.mxu0
  %v891 = vadd.f32 0.0, %v890
  %v892 = vpop.f32.mrf.mxu0
  %893 = vmatprep.mubr.f32.mxu0 %v524
  %894 = vmatmul.mubr.f32.gmra.mxu0 %v460
  %v895 = vpop.f32.mrf.mxu0
  %v896 = vadd.f32 0.0, %v895
  %v897 = vpop.f32.mrf.mxu0
  %898 = vmatprep.mubr.f32.mxu0 %v525
  %899 = vmatmul.mubr.f32.gmra.mxu0 %v461
  %v900 = vpop.f32.mrf.mxu0
  %v901 = vadd.f32 0.0, %v900
  %v902 = vpop.f32.mrf.mxu0
  %903 = vmatprep.mubr.f32.mxu0 %v526
  %904 = vmatmul.mubr.f32.gmra.mxu0 %v462
  %v905 = vpop.f32.mrf.mxu0
  %v906 = vadd.f32 0.0, %v905
  %v907 = vpop.f32.mrf.mxu0
  %908 = vmatprep.mubr.f32.mxu0 %v527
  %909 = vmatmul.mubr.f32.gmra.mxu0 %v463
  %v910 = vpop.f32.mrf.mxu0
  %v911 = vadd.f32 0.0, %v910
  %v912 = vpop.f32.mrf.mxu0
  %913 = vmatprep.mubr.f32.mxu0 %v528
  %914 = vmatmul.mubr.f32.gmra.mxu0 %v464
  %v915 = vpop.f32.mrf.mxu0
  %v916 = vadd.f32 0.0, %v915
  %v917 = vpop.f32.mrf.mxu0
  %918 = vmatprep.mubr.f32.mxu0 %v529
  %919 = vmatmul.mubr.f32.gmra.mxu0 %v465
  %v920 = vpop.f32.mrf.mxu0
  %v921 = vadd.f32 0.0, %v920
  %v922 = vpop.f32.mrf.mxu0
  %923 = vmatprep.mubr.f32.mxu0 %v530
  %924 = vmatmul.mubr.f32.gmra.mxu0 %v466
  %v925 = vpop.f32.mrf.mxu0
  %v926 = vadd.f32 0.0, %v925
  %v927 = vpop.f32.mrf.mxu0
  %928 = vmatprep.mubr.f32.mxu0 %v531
  %929 = vmatmul.mubr.f32.gmra.mxu0 %v467
  %v930 = vpop.f32.mrf.mxu0
  %v931 = vadd.f32 0.0, %v930
  %v932 = vpop.f32.mrf.mxu0
  %933 = vmatprep.mubr.f32.mxu0 %v532
  %934 = vmatmul.mubr.f32.gmra.mxu0 %v468
  %v935 = vpop.f32.mrf.mxu0
  %v936 = vadd.f32 0.0, %v935
  %v937 = vpop.f32.mrf.mxu0
  %938 = vmatprep.mubr.f32.mxu0 %v533
  %939 = vmatmul.mubr.f32.gmra.mxu0 %v469
  %v940 = vpop.f32.mrf.mxu0
  %v941 = vadd.f32 0.0, %v940
  %v942 = vpop.f32.mrf.mxu0
  %943 = vmatprep.mubr.f32.mxu0 %v534
  %944 = vmatmul.mubr.f32.gmra.mxu0 %v470
  %v945 = vpop.f32.mrf.mxu0
  %v946 = vadd.f32 0.0, %v945
  %v947 = vpop.f32.mrf.mxu0
  %948 = vmatprep.mubr.f32.mxu0 %v535
  %949 = vmatmul.mubr.f32.gmra.mxu0 %v471
  %v950 = vpop.f32.mrf.mxu0
  %v951 = vadd.f32 0.0, %v950
  %v952 = vpop.f32.mrf.mxu0
  %953 = vdwg.mxu0
  %954 = vmatprep.subr.mxu0 0.0
  %955 = vmatpush1.msra.mxu0 %v391
  %956 = vmatprep.subr.mxu0 0.0
  %957 = vmatpush1.msra.mxu0 %v390
  %958 = vmatprep.subr.mxu0 0.0
  %959 = vmatpush1.msra.mxu0 %v389
  %960 = vmatprep.subr.mxu0 0.0
  %961 = vmatpush1.msra.mxu0 %v388
  %962 = vmatprep.subr.mxu0 0.0
  %963 = vmatpush1.msra.mxu0 %v387
  %964 = vmatprep.subr.mxu0 0.0
  %965 = vmatpush1.msra.mxu0 %v386
  %966 = vmatprep.subr.mxu0 0.0
  %967 = vmatpush1.msra.mxu0 %v385
  %968 = vmatprep.subr.mxu0 0.0
  %969 = vmatpush1.msra.mxu0 %v384
  %970 = vmatprep.subr.mxu0 0.0
  %971 = vmatpush1.msra.mxu0 %v383
  %972 = vmatprep.subr.mxu0 0.0
  %973 = vmatpush1.msra.mxu0 %v382
  %974 = vmatprep.subr.mxu0 0.0
  %975 = vmatpush1.msra.mxu0 %v381
  %976 = vmatprep.subr.mxu0 0.0
  %977 = vmatpush1.msra.mxu0 %v380
  %978 = vmatprep.subr.mxu0 0.0
  %979 = vmatpush1.msra.mxu0 %v379
  %980 = vmatprep.subr.mxu0 0.0
  %981 = vmatpush1.msra.mxu0 %v378
  %982 = vmatprep.subr.mxu0 0.0
  %983 = vmatpush1.msra.mxu0 %v377
  %984 = vmatprep.subr.mxu0 0.0
  %985 = vmatpush1.msra.mxu0 %v376
  %986 = vmatprep.subr.mxu0 0.0
  %987 = vmatpush2.msra.mxu0 %v407
  %988 = vmatprep.subr.mxu0 0.0
  %989 = vmatpush2.msra.mxu0 %v406
  %990 = vmatprep.subr.mxu0 0.0
  %991 = vmatpush2.msra.mxu0 %v405
  %992 = vmatprep.subr.mxu0 0.0
  %993 = vmatpush2.msra.mxu0 %v404
  %994 = vmatprep.subr.mxu0 0.0
  %995 = vmatpush2.msra.mxu0 %v403
  %996 = vmatprep.subr.mxu0 0.0
  %997 = vmatpush2.msra.mxu0 %v402
  %998 = vmatprep.subr.mxu0 0.0
  %999 = vmatpush2.msra.mxu0 %v401
  %1000 = vmatprep.subr.mxu0 0.0
  %1001 = vmatpush2.msra.mxu0 %v400
  %1002 = vmatprep.subr.mxu0 0.0
  %1003 = vmatpush2.msra.mxu0 %v399
  %1004 = vmatprep.subr.mxu0 0.0
  %1005 = vmatpush2.msra.mxu0 %v398
  %1006 = vmatprep.subr.mxu0 0.0
  %1007 = vmatpush2.msra.mxu0 %v397
  %1008 = vmatprep.subr.mxu0 0.0
  %1009 = vmatpush2.msra.mxu0 %v396
  %1010 = vmatprep.subr.mxu0 0.0
  %1011 = vmatpush2.msra.mxu0 %v395
  %1012 = vmatprep.subr.mxu0 0.0
  %1013 = vmatpush2.msra.mxu0 %v394
  %1014 = vmatprep.subr.mxu0 0.0
  %1015 = vmatpush2.msra.mxu0 %v393
  %1016 = vmatprep.subr.mxu0 0.0
  %1017 = vmatpush2.msra.mxu0 %v392
  %1018 = vmatprep.mubr.f32.mxu0 %v312
  %1019 = vmatmul.mubr.f32.gmra.mxu0 %v248
  %v1020 = vpop.f32.mrf.mxu0
  %v1021 = vadd.f32 %v636, %v1020
  %v1022 = vpop.f32.mrf.mxu0
  %1023 = vmatprep.mubr.f32.mxu0 %v313
  %1024 = vmatmul.mubr.f32.gmra.mxu0 %v249
  %v1025 = vpop.f32.mrf.mxu0
  %v1026 = vadd.f32 %v641, %v1025
  %v1027 = vpop.f32.mrf.mxu0
  %1028 = vmatprep.mubr.f32.mxu0 %v314
  %1029 = vmatmul.mubr.f32.gmra.mxu0 %v250
  %v1030 = vpop.f32.mrf.mxu0
  %v1031 = vadd.f32 %v646, %v1030
  %v1032 = vpop.f32.mrf.mxu0
  %1033 = vmatprep.mubr.f32.mxu0 %v315
  %1034 = vmatmul.mubr.f32.gmra.mxu0 %v251
  %v1035 = vpop.f32.mrf.mxu0
  %v1036 = vadd.f32 %v651, %v1035
  %v1037 = vpop.f32.mrf.mxu0
  %1038 = vmatprep.mubr.f32.mxu0 %v316
  %1039 = vmatmul.mubr.f32.gmra.mxu0 %v252
  %v1040 = vpop.f32.mrf.mxu0
  %v1041 = vadd.f32 %v656, %v1040
  %v1042 = vpop.f32.mrf.mxu0
  %1043 = vmatprep.mubr.f32.mxu0 %v317
  %1044 = vmatmul.mubr.f32.gmra.mxu0 %v253
  %v1045 = vpop.f32.mrf.mxu0
  %v1046 = vadd.f32 %v661, %v1045
  %v1047 = vpop.f32.mrf.mxu0
  %1048 = vmatprep.mubr.f32.mxu0 %v318
  %1049 = vmatmul.mubr.f32.gmra.mxu0 %v254
  %v1050 = vpop.f32.mrf.mxu0
  %v1051 = vadd.f32 %v666, %v1050
  %v1052 = vpop.f32.mrf.mxu0
  %1053 = vmatprep.mubr.f32.mxu0 %v319
  %1054 = vmatmul.mubr.f32.gmra.mxu0 %v255
  %v1055 = vpop.f32.mrf.mxu0
  %v1056 = vadd.f32 %v671, %v1055
  %v1057 = vpop.f32.mrf.mxu0
  %1058 = vmatprep.mubr.f32.mxu0 %v320
  %1059 = vmatmul.mubr.f32.gmra.mxu0 %v256
  %v1060 = vpop.f32.mrf.mxu0
  %v1061 = vadd.f32 %v676, %v1060
  %v1062 = vpop.f32.mrf.mxu0
  %1063 = vmatprep.mubr.f32.mxu0 %v321
  %1064 = vmatmul.mubr.f32.gmra.mxu0 %v257
  %v1065 = vpop.f32.mrf.mxu0
  %v1066 = vadd.f32 %v681, %v1065
  %v1067 = vpop.f32.mrf.mxu0
  %1068 = vmatprep.mubr.f32.mxu0 %v322
  %1069 = vmatmul.mubr.f32.gmra.mxu0 %v258
  %v1070 = vpop.f32.mrf.mxu0
  %v1071 = vadd.f32 %v686, %v1070
  %v1072 = vpop.f32.mrf.mxu0
  %1073 = vmatprep.mubr.f32.mxu0 %v323
  %1074 = vmatmul.mubr.f32.gmra.mxu0 %v259
  %v1075 = vpop.f32.mrf.mxu0
  %v1076 = vadd.f32 %v691, %v1075
  %v1077 = vpop.f32.mrf.mxu0
  %1078 = vmatprep.mubr.f32.mxu0 %v324
  %1079 = vmatmul.mubr.f32.gmra.mxu0 %v260
  %v1080 = vpop.f32.mrf.mxu0
  %v1081 = vadd.f32 %v696, %v1080
  %v1082 = vpop.f32.mrf.mxu0
  %1083 = vmatprep.mubr.f32.mxu0 %v325
  %1084 = vmatmul.mubr.f32.gmra.mxu0 %v261
  %v1085 = vpop.f32.mrf.mxu0
  %v1086 = vadd.f32 %v701, %v1085
  %v1087 = vpop.f32.mrf.mxu0
  %1088 = vmatprep.mubr.f32.mxu0 %v326
  %1089 = vmatmul.mubr.f32.gmra.mxu0 %v262
  %v1090 = vpop.f32.mrf.mxu0
  %v1091 = vadd.f32 %v706, %v1090
  %v1092 = vpop.f32.mrf.mxu0
  %1093 = vmatprep.mubr.f32.mxu0 %v327
  %1094 = vmatmul.mubr.f32.gmra.mxu0 %v263
  %v1095 = vpop.f32.mrf.mxu0
  %v1096 = vadd.f32 %v711, %v1095
  %v1097 = vpop.f32.mrf.mxu0
  %1098 = vmatprep.mubr.f32.mxu0 %v328
  %1099 = vmatmul.mubr.f32.gmra.mxu0 %v264
  %v1100 = vpop.f32.mrf.mxu0
  %v1101 = vadd.f32 %v716, %v1100
  %v1102 = vpop.f32.mrf.mxu0
  %1103 = vmatprep.mubr.f32.mxu0 %v329
  %1104 = vmatmul.mubr.f32.gmra.mxu0 %v265
  %v1105 = vpop.f32.mrf.mxu0
  %v1106 = vadd.f32 %v721, %v1105
  %v1107 = vpop.f32.mrf.mxu0
  %1108 = vmatprep.mubr.f32.mxu0 %v330
  %1109 = vmatmul.mubr.f32.gmra.mxu0 %v266
  %v1110 = vpop.f32.mrf.mxu0
  %v1111 = vadd.f32 %v726, %v1110
  %v1112 = vpop.f32.mrf.mxu0
  %1113 = vmatprep.mubr.f32.mxu0 %v331
  %1114 = vmatmul.mubr.f32.gmra.mxu0 %v267
  %v1115 = vpop.f32.mrf.mxu0
  %v1116 = vadd.f32 %v731, %v1115
  %v1117 = vpop.f32.mrf.mxu0
  %1118 = vmatprep.mubr.f32.mxu0 %v332
  %1119 = vmatmul.mubr.f32.gmra.mxu0 %v268
  %v1120 = vpop.f32.mrf.mxu0
  %v1121 = vadd.f32 %v736, %v1120
  %v1122 = vpop.f32.mrf.mxu0
  %1123 = vmatprep.mubr.f32.mxu0 %v333
  %1124 = vmatmul.mubr.f32.gmra.mxu0 %v269
  %v1125 = vpop.f32.mrf.mxu0
  %v1126 = vadd.f32 %v741, %v1125
  %v1127 = vpop.f32.mrf.mxu0
  %1128 = vmatprep.mubr.f32.mxu0 %v334
  %1129 = vmatmul.mubr.f32.gmra.mxu0 %v270
  %v1130 = vpop.f32.mrf.mxu0
  %v1131 = vadd.f32 %v746, %v1130
  %v1132 = vpop.f32.mrf.mxu0
  %1133 = vmatprep.mubr.f32.mxu0 %v335
  %1134 = vmatmul.mubr.f32.gmra.mxu0 %v271
  %v1135 = vpop.f32.mrf.mxu0
  %v1136 = vadd.f32 %v751, %v1135
  %v1137 = vpop.f32.mrf.mxu0
  %1138 = vmatprep.mubr.f32.mxu0 %v336
  %1139 = vmatmul.mubr.f32.gmra.mxu0 %v272
  %v1140 = vpop.f32.mrf.mxu0
  %v1141 = vadd.f32 %v756, %v1140
  %v1142 = vpop.f32.mrf.mxu0
  %1143 = vmatprep.mubr.f32.mxu0 %v337
  %1144 = vmatmul.mubr.f32.gmra.mxu0 %v273
  %v1145 = vpop.f32.mrf.mxu0
  %v1146 = vadd.f32 %v761, %v1145
  %v1147 = vpop.f32.mrf.mxu0
  %1148 = vmatprep.mubr.f32.mxu0 %v338
  %1149 = vmatmul.mubr.f32.gmra.mxu0 %v274
  %v1150 = vpop.f32.mrf.mxu0
  %v1151 = vadd.f32 %v766, %v1150
  %v1152 = vpop.f32.mrf.mxu0
  %1153 = vmatprep.mubr.f32.mxu0 %v339
  %1154 = vmatmul.mubr.f32.gmra.mxu0 %v275
  %v1155 = vpop.f32.mrf.mxu0
  %v1156 = vadd.f32 %v771, %v1155
  %v1157 = vpop.f32.mrf.mxu0
  %1158 = vmatprep.mubr.f32.mxu0 %v340
  %1159 = vmatmul.mubr.f32.gmra.mxu0 %v276
  %v1160 = vpop.f32.mrf.mxu0
  %v1161 = vadd.f32 %v776, %v1160
  %v1162 = vpop.f32.mrf.mxu0
  %1163 = vmatprep.mubr.f32.mxu0 %v341
  %1164 = vmatmul.mubr.f32.gmra.mxu0 %v277
  %v1165 = vpop.f32.mrf.mxu0
  %v1166 = vadd.f32 %v781, %v1165
  %v1167 = vpop.f32.mrf.mxu0
  %1168 = vmatprep.mubr.f32.mxu0 %v342
  %1169 = vmatmul.mubr.f32.gmra.mxu0 %v278
  %v1170 = vpop.f32.mrf.mxu0
  %v1171 = vadd.f32 %v786, %v1170
  %v1172 = vpop.f32.mrf.mxu0
  %1173 = vmatprep.mubr.f32.mxu0 %v343
  %1174 = vmatmul.mubr.f32.gmra.mxu0 %v279
  %v1175 = vpop.f32.mrf.mxu0
  %v1176 = vadd.f32 %v791, %v1175
  %v1177 = vpop.f32.mrf.mxu0
  %1178 = vmatprep.mubr.f32.mxu0 %v344
  %1179 = vmatmul.mubr.f32.gmra.mxu0 %v280
  %v1180 = vpop.f32.mrf.mxu0
  %v1181 = vadd.f32 %v796, %v1180
  %v1182 = vpop.f32.mrf.mxu0
  %1183 = vmatprep.mubr.f32.mxu0 %v345
  %1184 = vmatmul.mubr.f32.gmra.mxu0 %v281
  %v1185 = vpop.f32.mrf.mxu0
  %v1186 = vadd.f32 %v801, %v1185
  %v1187 = vpop.f32.mrf.mxu0
  %1188 = vmatprep.mubr.f32.mxu0 %v346
  %1189 = vmatmul.mubr.f32.gmra.mxu0 %v282
  %v1190 = vpop.f32.mrf.mxu0
  %v1191 = vadd.f32 %v806, %v1190
  %v1192 = vpop.f32.mrf.mxu0
  %1193 = vmatprep.mubr.f32.mxu0 %v347
  %1194 = vmatmul.mubr.f32.gmra.mxu0 %v283
  %v1195 = vpop.f32.mrf.mxu0
  %v1196 = vadd.f32 %v811, %v1195
  %v1197 = vpop.f32.mrf.mxu0
  %1198 = vmatprep.mubr.f32.mxu0 %v348
  %1199 = vmatmul.mubr.f32.gmra.mxu0 %v284
  %v1200 = vpop.f32.mrf.mxu0
  %v1201 = vadd.f32 %v816, %v1200
  %v1202 = vpop.f32.mrf.mxu0
  %1203 = vmatprep.mubr.f32.mxu0 %v349
  %1204 = vmatmul.mubr.f32.gmra.mxu0 %v285
  %v1205 = vpop.f32.mrf.mxu0
  %v1206 = vadd.f32 %v821, %v1205
  %v1207 = vpop.f32.mrf.mxu0
  %1208 = vmatprep.mubr.f32.mxu0 %v350
  %1209 = vmatmul.mubr.f32.gmra.mxu0 %v286
  %v1210 = vpop.f32.mrf.mxu0
  %v1211 = vadd.f32 %v826, %v1210
  %v1212 = vpop.f32.mrf.mxu0
  %1213 = vmatprep.mubr.f32.mxu0 %v351
  %1214 = vmatmul.mubr.f32.gmra.mxu0 %v287
  %v1215 = vpop.f32.mrf.mxu0
  %v1216 = vadd.f32 %v831, %v1215
  %v1217 = vpop.f32.mrf.mxu0
  %1218 = vmatprep.mubr.f32.mxu0 %v352
  %1219 = vmatmul.mubr.f32.gmra.mxu0 %v288
  %v1220 = vpop.f32.mrf.mxu0
  %v1221 = vadd.f32 %v836, %v1220
  %v1222 = vpop.f32.mrf.mxu0
  %1223 = vmatprep.mubr.f32.mxu0 %v353
  %1224 = vmatmul.mubr.f32.gmra.mxu0 %v289
  %v1225 = vpop.f32.mrf.mxu0
  %v1226 = vadd.f32 %v841, %v1225
  %v1227 = vpop.f32.mrf.mxu0
  %1228 = vmatprep.mubr.f32.mxu0 %v354
  %1229 = vmatmul.mubr.f32.gmra.mxu0 %v290
  %v1230 = vpop.f32.mrf.mxu0
  %v1231 = vadd.f32 %v846, %v1230
  %v1232 = vpop.f32.mrf.mxu0
  %1233 = vmatprep.mubr.f32.mxu0 %v355
  %1234 = vmatmul.mubr.f32.gmra.mxu0 %v291
  %v1235 = vpop.f32.mrf.mxu0
  %v1236 = vadd.f32 %v851, %v1235
  %v1237 = vpop.f32.mrf.mxu0
  %1238 = vmatprep.mubr.f32.mxu0 %v356
  %1239 = vmatmul.mubr.f32.gmra.mxu0 %v292
  %v1240 = vpop.f32.mrf.mxu0
  %v1241 = vadd.f32 %v856, %v1240
  %v1242 = vpop.f32.mrf.mxu0
  %1243 = vmatprep.mubr.f32.mxu0 %v357
  %1244 = vmatmul.mubr.f32.gmra.mxu0 %v293
  %v1245 = vpop.f32.mrf.mxu0
  %v1246 = vadd.f32 %v861, %v1245
  %v1247 = vpop.f32.mrf.mxu0
  %1248 = vmatprep.mubr.f32.mxu0 %v358
  %1249 = vmatmul.mubr.f32.gmra.mxu0 %v294
  %v1250 = vpop.f32.mrf.mxu0
  %v1251 = vadd.f32 %v866, %v1250
  %v1252 = vpop.f32.mrf.mxu0
  %1253 = vmatprep.mubr.f32.mxu0 %v359
  %1254 = vmatmul.mubr.f32.gmra.mxu0 %v295
  %v1255 = vpop.f32.mrf.mxu0
  %v1256 = vadd.f32 %v871, %v1255
  %v1257 = vpop.f32.mrf.mxu0
  %1258 = vmatprep.mubr.f32.mxu0 %v360
  %1259 = vmatmul.mubr.f32.gmra.mxu0 %v296
  %v1260 = vpop.f32.mrf.mxu0
  %v1261 = vadd.f32 %v876, %v1260
  %v1262 = vpop.f32.mrf.mxu0
  %1263 = vmatprep.mubr.f32.mxu0 %v361
  %1264 = vmatmul.mubr.f32.gmra.mxu0 %v297
  %v1265 = vpop.f32.mrf.mxu0
  %v1266 = vadd.f32 %v881, %v1265
  %v1267 = vpop.f32.mrf.mxu0
  %1268 = vmatprep.mubr.f32.mxu0 %v362
  %1269 = vmatmul.mubr.f32.gmra.mxu0 %v298
  %v1270 = vpop.f32.mrf.mxu0
  %v1271 = vadd.f32 %v886, %v1270
  %v1272 = vpop.f32.mrf.mxu0
  %1273 = vmatprep.mubr.f32.mxu0 %v363
  %1274 = vmatmul.mubr.f32.gmra.mxu0 %v299
  %v1275 = vpop.f32.mrf.mxu0
  %v1276 = vadd.f32 %v891, %v1275
  %v1277 = vpop.f32.mrf.mxu0
  %1278 = vmatprep.mubr.f32.mxu0 %v364
  %1279 = vmatmul.mubr.f32.gmra.mxu0 %v300
  %v1280 = vpop.f32.mrf.mxu0
  %v1281 = vadd.f32 %v896, %v1280
  %v1282 = vpop.f32.mrf.mxu0
  %1283 = vmatprep.mubr.f32.mxu0 %v365
  %1284 = vmatmul.mubr.f32.gmra.mxu0 %v301
  %v1285 = vpop.f32.mrf.mxu0
  %v1286 = vadd.f32 %v901, %v1285
  %v1287 = vpop.f32.mrf.mxu0
  %1288 = vmatprep.mubr.f32.mxu0 %v366
  %1289 = vmatmul.mubr.f32.gmra.mxu0 %v302
  %v1290 = vpop.f32.mrf.mxu0
  %v1291 = vadd.f32 %v906, %v1290
  %v1292 = vpop.f32.mrf.mxu0
  %1293 = vmatprep.mubr.f32.mxu0 %v367
  %1294 = vmatmul.mubr.f32.gmra.mxu0 %v303
  %v1295 = vpop.f32.mrf.mxu0
  %v1296 = vadd.f32 %v911, %v1295
  %v1297 = vpop.f32.mrf.mxu0
  %1298 = vmatprep.mubr.f32.mxu0 %v368
  %1299 = vmatmul.mubr.f32.gmra.mxu0 %v304
  %v1300 = vpop.f32.mrf.mxu0
  %v1301 = vadd.f32 %v916, %v1300
  %v1302 = vpop.f32.mrf.mxu0
  %1303 = vmatprep.mubr.f32.mxu0 %v369
  %1304 = vmatmul.mubr.f32.gmra.mxu0 %v305
  %v1305 = vpop.f32.mrf.mxu0
  %v1306 = vadd.f32 %v921, %v1305
  %v1307 = vpop.f32.mrf.mxu0
  %1308 = vmatprep.mubr.f32.mxu0 %v370
  %1309 = vmatmul.mubr.f32.gmra.mxu0 %v306
  %v1310 = vpop.f32.mrf.mxu0
  %v1311 = vadd.f32 %v926, %v1310
  %v1312 = vpop.f32.mrf.mxu0
  %1313 = vmatprep.mubr.f32.mxu0 %v371
  %1314 = vmatmul.mubr.f32.gmra.mxu0 %v307
  %v1315 = vpop.f32.mrf.mxu0
  %v1316 = vadd.f32 %v931, %v1315
  %v1317 = vpop.f32.mrf.mxu0
  %1318 = vmatprep.mubr.f32.mxu0 %v372
  %1319 = vmatmul.mubr.f32.gmra.mxu0 %v308
  %v1320 = vpop.f32.mrf.mxu0
  %v1321 = vadd.f32 %v936, %v1320
  %v1322 = vpop.f32.mrf.mxu0
  %1323 = vmatprep.mubr.f32.mxu0 %v373
  %1324 = vmatmul.mubr.f32.gmra.mxu0 %v309
  %v1325 = vpop.f32.mrf.mxu0
  %v1326 = vadd.f32 %v941, %v1325
  %v1327 = vpop.f32.mrf.mxu0
  %1328 = vmatprep.mubr.f32.mxu0 %v374
  %1329 = vmatmul.mubr.f32.gmra.mxu0 %v310
  %v1330 = vpop.f32.mrf.mxu0
  %v1331 = vadd.f32 %v946, %v1330
  %v1332 = vpop.f32.mrf.mxu0
  %1333 = vmatprep.mubr.f32.mxu0 %v375
  %1334 = vmatmul.mubr.f32.gmra.mxu0 %v311
  %v1335 = vpop.f32.mrf.mxu0
  %v1336 = vadd.f32 %v951, %v1335
  %v1337 = vpop.f32.mrf.mxu0
  %1338 = vdwg.mxu0
  %v1339 = vld [vmem:[%s119 + $0x8] sm:$0xff]
  %v1340 = vld [vmem:[%s119 + $0x10] sm:$0xff]
  %v1341 = vld [vmem:[%s119 + $0x28] sm:$0xff]
  %v1342 = vld [vmem:[%s119 + $0x30] sm:$0xff]
  %v1343 = vld [vmem:[%s119 + $0x48] sm:$0xff]
  %v1344 = vld [vmem:[%s119 + $0x50] sm:$0xff]
  %v1345 = vld [vmem:[%s119 + $0x68] sm:$0xff]
  %v1346 = vld [vmem:[%s119 + $0x70] sm:$0xff]
  %v1347 = vld [vmem:[%s119 + $0x88] sm:$0xff]
  %v1348 = vld [vmem:[%s119 + $0x90] sm:$0xff]
  %v1349 = vld [vmem:[%s119 + $0xa8] sm:$0xff]
  %v1350 = vld [vmem:[%s119 + $0xb0] sm:$0xff]
  %v1351 = vld [vmem:[%s119 + $0xc8] sm:$0xff]
  %v1352 = vld [vmem:[%s119 + $0xd0] sm:$0xff]
  %v1353 = vld [vmem:[%s119 + $0xe8] sm:$0xff]
  %v1354 = vld [vmem:[%s119 + $0xf0] sm:$0xff]
  %v1355 = vld [vmem:[%s119 + $0x108] sm:$0xff]
  %v1356 = vld [vmem:[%s119 + $0x110] sm:$0xff]
  %v1357 = vld [vmem:[%s119 + $0x128] sm:$0xff]
  %v1358 = vld [vmem:[%s119 + $0x130] sm:$0xff]
  %v1359 = vld [vmem:[%s119 + $0x148] sm:$0xff]
  %v1360 = vld [vmem:[%s119 + $0x150] sm:$0xff]
  %v1361 = vld [vmem:[%s119 + $0x168] sm:$0xff]
  %v1362 = vld [vmem:[%s119 + $0x170] sm:$0xff]
  %v1363 = vld [vmem:[%s119 + $0x188] sm:$0xff]
  %v1364 = vld [vmem:[%s119 + $0x190] sm:$0xff]
  %v1365 = vld [vmem:[%s119 + $0x1a8] sm:$0xff]
  %v1366 = vld [vmem:[%s119 + $0x1b0] sm:$0xff]
  %v1367 = vld [vmem:[%s119 + $0x1c8] sm:$0xff]
  %v1368 = vld [vmem:[%s119 + $0x1d0] sm:$0xff]
  %v1369 = vld [vmem:[%s119 + $0x1e8] sm:$0xff]
  %v1370 = vld [vmem:[%s119 + $0x1f0] sm:$0xff]
  %v1371 = vld [vmem:[%s119 + $0x248] sm:$0xff]
  %v1372 = vld [vmem:[%s119 + $0x250] sm:$0xff]
  %v1373 = vld [vmem:[%s119 + $0x268] sm:$0xff]
  %v1374 = vld [vmem:[%s119 + $0x270] sm:$0xff]
  %v1375 = vld [vmem:[%s119 + $0x288] sm:$0xff]
  %v1376 = vld [vmem:[%s119 + $0x290] sm:$0xff]
  %v1377 = vld [vmem:[%s119 + $0x2a8] sm:$0xff]
  %v1378 = vld [vmem:[%s119 + $0x2b0] sm:$0xff]
  %v1379 = vld [vmem:[%s119 + $0x2c8] sm:$0xff]
  %v1380 = vld [vmem:[%s119 + $0x2d0] sm:$0xff]
  %v1381 = vld [vmem:[%s119 + $0x2e8] sm:$0xff]
  %v1382 = vld [vmem:[%s119 + $0x2f0] sm:$0xff]
  %v1383 = vld [vmem:[%s119 + $0x308] sm:$0xff]
  %v1384 = vld [vmem:[%s119 + $0x310] sm:$0xff]
  %v1385 = vld [vmem:[%s119 + $0x328] sm:$0xff]
  %v1386 = vld [vmem:[%s119 + $0x330] sm:$0xff]
  %v1387 = vld [vmem:[%s119 + $0x348] sm:$0xff]
  %v1388 = vld [vmem:[%s119 + $0x350] sm:$0xff]
  %v1389 = vld [vmem:[%s119 + $0x368] sm:$0xff]
  %v1390 = vld [vmem:[%s119 + $0x370] sm:$0xff]
  %v1391 = vld [vmem:[%s119 + $0x388] sm:$0xff]
  %v1392 = vld [vmem:[%s119 + $0x390] sm:$0xff]
  %v1393 = vld [vmem:[%s119 + $0x3a8] sm:$0xff]
  %v1394 = vld [vmem:[%s119 + $0x3b0] sm:$0xff]
  %v1395 = vld [vmem:[%s119 + $0x3c8] sm:$0xff]
  %v1396 = vld [vmem:[%s119 + $0x3d0] sm:$0xff]
  %v1397 = vld [vmem:[%s119 + $0x3e8] sm:$0xff]
  %v1398 = vld [vmem:[%s119 + $0x3f0] sm:$0xff]
  %v1399 = vld [vmem:[%s119 + $0x408] sm:$0xff]
  %v1400 = vld [vmem:[%s119 + $0x410] sm:$0xff]
  %v1401 = vld [vmem:[%s119 + $0x428] sm:$0xff]
  %v1402 = vld [vmem:[%s119 + $0x430] sm:$0xff]
  %v1403 = vld [vmem:[%s119 + $0x9] sm:$0xff]
  %v1404 = vld [vmem:[%s119 + $0x11] sm:$0xff]
  %v1405 = vld [vmem:[%s119 + $0x29] sm:$0xff]
  %v1406 = vld [vmem:[%s119 + $0x31] sm:$0xff]
  %v1407 = vld [vmem:[%s119 + $0x49] sm:$0xff]
  %v1408 = vld [vmem:[%s119 + $0x51] sm:$0xff]
  %v1409 = vld [vmem:[%s119 + $0x69] sm:$0xff]
  %v1410 = vld [vmem:[%s119 + $0x71] sm:$0xff]
  %v1411 = vld [vmem:[%s119 + $0x89] sm:$0xff]
  %v1412 = vld [vmem:[%s119 + $0x91] sm:$0xff]
  %v1413 = vld [vmem:[%s119 + $0xa9] sm:$0xff]
  %v1414 = vld [vmem:[%s119 + $0xb1] sm:$0xff]
  %v1415 = vld [vmem:[%s119 + $0xc9] sm:$0xff]
  %v1416 = vld [vmem:[%s119 + $0xd1] sm:$0xff]
  %v1417 = vld [vmem:[%s119 + $0xe9] sm:$0xff]
  %v1418 = vld [vmem:[%s119 + $0xf1] sm:$0xff]
  %v1419 = vld [vmem:[%s119 + $0x109] sm:$0xff]
  %v1420 = vld [vmem:[%s119 + $0x111] sm:$0xff]
  %v1421 = vld [vmem:[%s119 + $0x129] sm:$0xff]
  %v1422 = vld [vmem:[%s119 + $0x131] sm:$0xff]
  %v1423 = vld [vmem:[%s119 + $0x149] sm:$0xff]
  %v1424 = vld [vmem:[%s119 + $0x151] sm:$0xff]
  %v1425 = vld [vmem:[%s119 + $0x169] sm:$0xff]
  %v1426 = vld [vmem:[%s119 + $0x171] sm:$0xff]
  %v1427 = vld [vmem:[%s119 + $0x189] sm:$0xff]
  %v1428 = vld [vmem:[%s119 + $0x191] sm:$0xff]
  %v1429 = vld [vmem:[%s119 + $0x1a9] sm:$0xff]
  %v1430 = vld [vmem:[%s119 + $0x1b1] sm:$0xff]
  %v1431 = vld [vmem:[%s119 + $0x1c9] sm:$0xff]
  %v1432 = vld [vmem:[%s119 + $0x1d1] sm:$0xff]
  %v1433 = vld [vmem:[%s119 + $0x1e9] sm:$0xff]
  %v1434 = vld [vmem:[%s119 + $0x1f1] sm:$0xff]
  %v1435 = vld [vmem:[%s119 + $0x249] sm:$0xff]
  %v1436 = vld [vmem:[%s119 + $0x251] sm:$0xff]
  %v1437 = vld [vmem:[%s119 + $0x269] sm:$0xff]
  %v1438 = vld [vmem:[%s119 + $0x271] sm:$0xff]
  %v1439 = vld [vmem:[%s119 + $0x289] sm:$0xff]
  %v1440 = vld [vmem:[%s119 + $0x291] sm:$0xff]
  %v1441 = vld [vmem:[%s119 + $0x2a9] sm:$0xff]
  %v1442 = vld [vmem:[%s119 + $0x2b1] sm:$0xff]
  %v1443 = vld [vmem:[%s119 + $0x2c9] sm:$0xff]
  %v1444 = vld [vmem:[%s119 + $0x2d1] sm:$0xff]
  %v1445 = vld [vmem:[%s119 + $0x2e9] sm:$0xff]
  %v1446 = vld [vmem:[%s119 + $0x2f1] sm:$0xff]
  %v1447 = vld [vmem:[%s119 + $0x309] sm:$0xff]
  %v1448 = vld [vmem:[%s119 + $0x311] sm:$0xff]
  %v1449 = vld [vmem:[%s119 + $0x329] sm:$0xff]
  %v1450 = vld [vmem:[%s119 + $0x331] sm:$0xff]
  %v1451 = vld [vmem:[%s119 + $0x349] sm:$0xff]
  %v1452 = vld [vmem:[%s119 + $0x351] sm:$0xff]
  %v1453 = vld [vmem:[%s119 + $0x369] sm:$0xff]
  %v1454 = vld [vmem:[%s119 + $0x371] sm:$0xff]
  %v1455 = vld [vmem:[%s119 + $0x389] sm:$0xff]
  %v1456 = vld [vmem:[%s119 + $0x391] sm:$0xff]
  %v1457 = vld [vmem:[%s119 + $0x3a9] sm:$0xff]
  %v1458 = vld [vmem:[%s119 + $0x3b1] sm:$0xff]
  %v1459 = vld [vmem:[%s119 + $0x3c9] sm:$0xff]
  %v1460 = vld [vmem:[%s119 + $0x3d1] sm:$0xff]
  %v1461 = vld [vmem:[%s119 + $0x3e9] sm:$0xff]
  %v1462 = vld [vmem:[%s119 + $0x3f1] sm:$0xff]
  %v1463 = vld [vmem:[%s119 + $0x409] sm:$0xff]
  %v1464 = vld [vmem:[%s119 + $0x411] sm:$0xff]
  %v1465 = vld [vmem:[%s119 + $0x429] sm:$0xff]
  %v1466 = vld [vmem:[%s119 + $0x431] sm:$0xff]
  %s1467 = scalar_lea.vmem %s2, 512
  %v1468 = vld [vmem:[%s1467] sm:$0xff]
  %v1469 = vld [vmem:[%s1467 + $0x8] sm:$0xff]
  %v1470 = vld [vmem:[%s1467 + $0x10] sm:$0xff]
  %v1471 = vld [vmem:[%s1467 + $0x18] sm:$0xff]
  %v1472 = vld [vmem:[%s1467 + $0x20] sm:$0xff]
  %v1473 = vld [vmem:[%s1467 + $0x28] sm:$0xff]
  %v1474 = vld [vmem:[%s1467 + $0x30] sm:$0xff]
  %v1475 = vld [vmem:[%s1467 + $0x38] sm:$0xff]
  %v1476 = vld [vmem:[%s1467 + $0x40] sm:$0xff]
  %v1477 = vld [vmem:[%s1467 + $0x48] sm:$0xff]
  %v1478 = vld [vmem:[%s1467 + $0x50] sm:$0xff]
  %v1479 = vld [vmem:[%s1467 + $0x58] sm:$0xff]
  %v1480 = vld [vmem:[%s1467 + $0x60] sm:$0xff]
  %v1481 = vld [vmem:[%s1467 + $0x68] sm:$0xff]
  %v1482 = vld [vmem:[%s1467 + $0x70] sm:$0xff]
  %v1483 = vld [vmem:[%s1467 + $0x78] sm:$0xff]
  %v1484 = vld [vmem:[%s1467 + $0x80] sm:$0xff]
  %v1485 = vld [vmem:[%s1467 + $0x88] sm:$0xff]
  %v1486 = vld [vmem:[%s1467 + $0x90] sm:$0xff]
  %v1487 = vld [vmem:[%s1467 + $0x98] sm:$0xff]
  %v1488 = vld [vmem:[%s1467 + $0xa0] sm:$0xff]
  %v1489 = vld [vmem:[%s1467 + $0xa8] sm:$0xff]
  %v1490 = vld [vmem:[%s1467 + $0xb0] sm:$0xff]
  %v1491 = vld [vmem:[%s1467 + $0xb8] sm:$0xff]
  %v1492 = vld [vmem:[%s1467 + $0xc0] sm:$0xff]
  %v1493 = vld [vmem:[%s1467 + $0xc8] sm:$0xff]
  %v1494 = vld [vmem:[%s1467 + $0xd0] sm:$0xff]
  %v1495 = vld [vmem:[%s1467 + $0xd8] sm:$0xff]
  %v1496 = vld [vmem:[%s1467 + $0xe0] sm:$0xff]
  %v1497 = vld [vmem:[%s1467 + $0xe8] sm:$0xff]
  %v1498 = vld [vmem:[%s1467 + $0xf0] sm:$0xff]
  %v1499 = vld [vmem:[%s1467 + $0xf8] sm:$0xff]
  %1500 = vmatprep.subr.mxu0 0.0
  %1501 = vmatpush1.msra.mxu0 %v1483
  %1502 = vmatprep.subr.mxu0 0.0
  %1503 = vmatpush1.msra.mxu0 %v1482
  %1504 = vmatprep.subr.mxu0 0.0
  %1505 = vmatpush1.msra.mxu0 %v1481
  %1506 = vmatprep.subr.mxu0 0.0
  %1507 = vmatpush1.msra.mxu0 %v1480
  %1508 = vmatprep.subr.mxu0 0.0
  %1509 = vmatpush1.msra.mxu0 %v1479
  %1510 = vmatprep.subr.mxu0 0.0
  %1511 = vmatpush1.msra.mxu0 %v1478
  %1512 = vmatprep.subr.mxu0 0.0
  %1513 = vmatpush1.msra.mxu0 %v1477
  %1514 = vmatprep.subr.mxu0 0.0
  %1515 = vmatpush1.msra.mxu0 %v1476
  %1516 = vmatprep.subr.mxu0 0.0
  %1517 = vmatpush1.msra.mxu0 %v1475
  %1518 = vmatprep.subr.mxu0 0.0
  %1519 = vmatpush1.msra.mxu0 %v1474
  %1520 = vmatprep.subr.mxu0 0.0
  %1521 = vmatpush1.msra.mxu0 %v1473
  %1522 = vmatprep.subr.mxu0 0.0
  %1523 = vmatpush1.msra.mxu0 %v1472
  %1524 = vmatprep.subr.mxu0 0.0
  %1525 = vmatpush1.msra.mxu0 %v1471
  %1526 = vmatprep.subr.mxu0 0.0
  %1527 = vmatpush1.msra.mxu0 %v1470
  %1528 = vmatprep.subr.mxu0 0.0
  %1529 = vmatpush1.msra.mxu0 %v1469
  %1530 = vmatprep.subr.mxu0 0.0
  %1531 = vmatpush1.msra.mxu0 %v1468
  %1532 = vmatprep.subr.mxu0 0.0
  %1533 = vmatpush2.msra.mxu0 %v1499
  %1534 = vmatprep.subr.mxu0 0.0
  %1535 = vmatpush2.msra.mxu0 %v1498
  %1536 = vmatprep.subr.mxu0 0.0
  %1537 = vmatpush2.msra.mxu0 %v1497
  %1538 = vmatprep.subr.mxu0 0.0
  %1539 = vmatpush2.msra.mxu0 %v1496
  %1540 = vmatprep.subr.mxu0 0.0
  %1541 = vmatpush2.msra.mxu0 %v1495
  %1542 = vmatprep.subr.mxu0 0.0
  %1543 = vmatpush2.msra.mxu0 %v1494
  %1544 = vmatprep.subr.mxu0 0.0
  %1545 = vmatpush2.msra.mxu0 %v1493
  %1546 = vmatprep.subr.mxu0 0.0
  %1547 = vmatpush2.msra.mxu0 %v1492
  %1548 = vmatprep.subr.mxu0 0.0
  %1549 = vmatpush2.msra.mxu0 %v1491
  %1550 = vmatprep.subr.mxu0 0.0
  %1551 = vmatpush2.msra.mxu0 %v1490
  %1552 = vmatprep.subr.mxu0 0.0
  %1553 = vmatpush2.msra.mxu0 %v1489
  %1554 = vmatprep.subr.mxu0 0.0
  %1555 = vmatpush2.msra.mxu0 %v1488
  %1556 = vmatprep.subr.mxu0 0.0
  %1557 = vmatpush2.msra.mxu0 %v1487
  %1558 = vmatprep.subr.mxu0 0.0
  %1559 = vmatpush2.msra.mxu0 %v1486
  %1560 = vmatprep.subr.mxu0 0.0
  %1561 = vmatpush2.msra.mxu0 %v1485
  %1562 = vmatprep.subr.mxu0 0.0
  %1563 = vmatpush2.msra.mxu0 %v1484
  %1564 = vmatprep.mubr.f32.mxu0 %v1403
  %1565 = vmatmul.mubr.f32.gmra.mxu0 %v1339
  %v1566 = vpop.f32.mrf.mxu0
  %v1567 = vadd.f32 0.0, %v1566
  %v1568 = vpop.f32.mrf.mxu0
  %1569 = vmatprep.mubr.f32.mxu0 %v1404
  %1570 = vmatmul.mubr.f32.gmra.mxu0 %v1340
  %v1571 = vpop.f32.mrf.mxu0
  %v1572 = vadd.f32 0.0, %v1571
  %v1573 = vpop.f32.mrf.mxu0
  %1574 = vmatprep.mubr.f32.mxu0 %v1405
  %1575 = vmatmul.mubr.f32.gmra.mxu0 %v1341
  %v1576 = vpop.f32.mrf.mxu0
  %v1577 = vadd.f32 0.0, %v1576
  %v1578 = vpop.f32.mrf.mxu0
  %1579 = vmatprep.mubr.f32.mxu0 %v1406
  %1580 = vmatmul.mubr.f32.gmra.mxu0 %v1342
  %v1581 = vpop.f32.mrf.mxu0
  %v1582 = vadd.f32 0.0, %v1581
  %v1583 = vpop.f32.mrf.mxu0
  %1584 = vmatprep.mubr.f32.mxu0 %v1407
  %1585 = vmatmul.mubr.f32.gmra.mxu0 %v1343
  %v1586 = vpop.f32.mrf.mxu0
  %v1587 = vadd.f32 0.0, %v1586
  %v1588 = vpop.f32.mrf.mxu0
  %1589 = vmatprep.mubr.f32.mxu0 %v1408
  %1590 = vmatmul.mubr.f32.gmra.mxu0 %v1344
  %v1591 = vpop.f32.mrf.mxu0
  %v1592 = vadd.f32 0.0, %v1591
  %v1593 = vpop.f32.mrf.mxu0
  %1594 = vmatprep.mubr.f32.mxu0 %v1409
  %1595 = vmatmul.mubr.f32.gmra.mxu0 %v1345
  %v1596 = vpop.f32.mrf.mxu0
  %v1597 = vadd.f32 0.0, %v1596
  %v1598 = vpop.f32.mrf.mxu0
  %1599 = vmatprep.mubr.f32.mxu0 %v1410
  %1600 = vmatmul.mubr.f32.gmra.mxu0 %v1346
  %v1601 = vpop.f32.mrf.mxu0
  %v1602 = vadd.f32 0.0, %v1601
  %v1603 = vpop.f32.mrf.mxu0
  %1604 = vmatprep.mubr.f32.mxu0 %v1411
  %1605 = vmatmul.mubr.f32.gmra.mxu0 %v1347
  %v1606 = vpop.f32.mrf.mxu0
  %v1607 = vadd.f32 0.0, %v1606
  %v1608 = vpop.f32.mrf.mxu0
  %1609 = vmatprep.mubr.f32.mxu0 %v1412
  %1610 = vmatmul.mubr.f32.gmra.mxu0 %v1348
  %v1611 = vpop.f32.mrf.mxu0
  %v1612 = vadd.f32 0.0, %v1611
  %v1613 = vpop.f32.mrf.mxu0
  %1614 = vmatprep.mubr.f32.mxu0 %v1413
  %1615 = vmatmul.mubr.f32.gmra.mxu0 %v1349
  %v1616 = vpop.f32.mrf.mxu0
  %v1617 = vadd.f32 0.0, %v1616
  %v1618 = vpop.f32.mrf.mxu0
  %1619 = vmatprep.mubr.f32.mxu0 %v1414
  %1620 = vmatmul.mubr.f32.gmra.mxu0 %v1350
  %v1621 = vpop.f32.mrf.mxu0
  %v1622 = vadd.f32 0.0, %v1621
  %v1623 = vpop.f32.mrf.mxu0
  %1624 = vmatprep.mubr.f32.mxu0 %v1415
  %1625 = vmatmul.mubr.f32.gmra.mxu0 %v1351
  %v1626 = vpop.f32.mrf.mxu0
  %v1627 = vadd.f32 0.0, %v1626
  %v1628 = vpop.f32.mrf.mxu0
  %1629 = vmatprep.mubr.f32.mxu0 %v1416
  %1630 = vmatmul.mubr.f32.gmra.mxu0 %v1352
  %v1631 = vpop.f32.mrf.mxu0
  %v1632 = vadd.f32 0.0, %v1631
  %v1633 = vpop.f32.mrf.mxu0
  %1634 = vmatprep.mubr.f32.mxu0 %v1417
  %1635 = vmatmul.mubr.f32.gmra.mxu0 %v1353
  %v1636 = vpop.f32.mrf.mxu0
  %v1637 = vadd.f32 0.0, %v1636
  %v1638 = vpop.f32.mrf.mxu0
  %1639 = vmatprep.mubr.f32.mxu0 %v1418
  %1640 = vmatmul.mubr.f32.gmra.mxu0 %v1354
  %v1641 = vpop.f32.mrf.mxu0
  %v1642 = vadd.f32 0.0, %v1641
  %v1643 = vpop.f32.mrf.mxu0
  %1644 = vmatprep.mubr.f32.mxu0 %v1419
  %1645 = vmatmul.mubr.f32.gmra.mxu0 %v1355
  %v1646 = vpop.f32.mrf.mxu0
  %v1647 = vadd.f32 0.0, %v1646
  %v1648 = vpop.f32.mrf.mxu0
  %1649 = vmatprep.mubr.f32.mxu0 %v1420
  %1650 = vmatmul.mubr.f32.gmra.mxu0 %v1356
  %v1651 = vpop.f32.mrf.mxu0
  %v1652 = vadd.f32 0.0, %v1651
  %v1653 = vpop.f32.mrf.mxu0
  %1654 = vmatprep.mubr.f32.mxu0 %v1421
  %1655 = vmatmul.mubr.f32.gmra.mxu0 %v1357
  %v1656 = vpop.f32.mrf.mxu0
  %v1657 = vadd.f32 0.0, %v1656
  %v1658 = vpop.f32.mrf.mxu0
  %1659 = vmatprep.mubr.f32.mxu0 %v1422
  %1660 = vmatmul.mubr.f32.gmra.mxu0 %v1358
  %v1661 = vpop.f32.mrf.mxu0
  %v1662 = vadd.f32 0.0, %v1661
  %v1663 = vpop.f32.mrf.mxu0
  %1664 = vmatprep.mubr.f32.mxu0 %v1423
  %1665 = vmatmul.mubr.f32.gmra.mxu0 %v1359
  %v1666 = vpop.f32.mrf.mxu0
  %v1667 = vadd.f32 0.0, %v1666
  %v1668 = vpop.f32.mrf.mxu0
  %1669 = vmatprep.mubr.f32.mxu0 %v1424
  %1670 = vmatmul.mubr.f32.gmra.mxu0 %v1360
  %v1671 = vpop.f32.mrf.mxu0
  %v1672 = vadd.f32 0.0, %v1671
  %v1673 = vpop.f32.mrf.mxu0
  %1674 = vmatprep.mubr.f32.mxu0 %v1425
  %1675 = vmatmul.mubr.f32.gmra.mxu0 %v1361
  %v1676 = vpop.f32.mrf.mxu0
  %v1677 = vadd.f32 0.0, %v1676
  %v1678 = vpop.f32.mrf.mxu0
  %1679 = vmatprep.mubr.f32.mxu0 %v1426
  %1680 = vmatmul.mubr.f32.gmra.mxu0 %v1362
  %v1681 = vpop.f32.mrf.mxu0
  %v1682 = vadd.f32 0.0, %v1681
  %v1683 = vpop.f32.mrf.mxu0
  %1684 = vmatprep.mubr.f32.mxu0 %v1427
  %1685 = vmatmul.mubr.f32.gmra.mxu0 %v1363
  %v1686 = vpop.f32.mrf.mxu0
  %v1687 = vadd.f32 0.0, %v1686
  %v1688 = vpop.f32.mrf.mxu0
  %1689 = vmatprep.mubr.f32.mxu0 %v1428
  %1690 = vmatmul.mubr.f32.gmra.mxu0 %v1364
  %v1691 = vpop.f32.mrf.mxu0
  %v1692 = vadd.f32 0.0, %v1691
  %v1693 = vpop.f32.mrf.mxu0
  %1694 = vmatprep.mubr.f32.mxu0 %v1429
  %1695 = vmatmul.mubr.f32.gmra.mxu0 %v1365
  %v1696 = vpop.f32.mrf.mxu0
  %v1697 = vadd.f32 0.0, %v1696
  %v1698 = vpop.f32.mrf.mxu0
  %1699 = vmatprep.mubr.f32.mxu0 %v1430
  %1700 = vmatmul.mubr.f32.gmra.mxu0 %v1366
  %v1701 = vpop.f32.mrf.mxu0
  %v1702 = vadd.f32 0.0, %v1701
  %v1703 = vpop.f32.mrf.mxu0
  %1704 = vmatprep.mubr.f32.mxu0 %v1431
  %1705 = vmatmul.mubr.f32.gmra.mxu0 %v1367
  %v1706 = vpop.f32.mrf.mxu0
  %v1707 = vadd.f32 0.0, %v1706
  %v1708 = vpop.f32.mrf.mxu0
  %1709 = vmatprep.mubr.f32.mxu0 %v1432
  %1710 = vmatmul.mubr.f32.gmra.mxu0 %v1368
  %v1711 = vpop.f32.mrf.mxu0
  %v1712 = vadd.f32 0.0, %v1711
  %v1713 = vpop.f32.mrf.mxu0
  %1714 = vmatprep.mubr.f32.mxu0 %v1433
  %1715 = vmatmul.mubr.f32.gmra.mxu0 %v1369
  %v1716 = vpop.f32.mrf.mxu0
  %v1717 = vadd.f32 0.0, %v1716
  %v1718 = vpop.f32.mrf.mxu0
  %1719 = vmatprep.mubr.f32.mxu0 %v1434
  %1720 = vmatmul.mubr.f32.gmra.mxu0 %v1370
  %v1721 = vpop.f32.mrf.mxu0
  %v1722 = vadd.f32 0.0, %v1721
  %v1723 = vpop.f32.mrf.mxu0
  %1724 = vmatprep.mubr.f32.mxu0 %v1435
  %1725 = vmatmul.mubr.f32.gmra.mxu0 %v1371
  %v1726 = vpop.f32.mrf.mxu0
  %v1727 = vadd.f32 0.0, %v1726
  %v1728 = vpop.f32.mrf.mxu0
  %1729 = vmatprep.mubr.f32.mxu0 %v1436
  %1730 = vmatmul.mubr.f32.gmra.mxu0 %v1372
  %v1731 = vpop.f32.mrf.mxu0
  %v1732 = vadd.f32 0.0, %v1731
  %v1733 = vpop.f32.mrf.mxu0
  %1734 = vmatprep.mubr.f32.mxu0 %v1437
  %1735 = vmatmul.mubr.f32.gmra.mxu0 %v1373
  %v1736 = vpop.f32.mrf.mxu0
  %v1737 = vadd.f32 0.0, %v1736
  %v1738 = vpop.f32.mrf.mxu0
  %1739 = vmatprep.mubr.f32.mxu0 %v1438
  %1740 = vmatmul.mubr.f32.gmra.mxu0 %v1374
  %v1741 = vpop.f32.mrf.mxu0
  %v1742 = vadd.f32 0.0, %v1741
  %v1743 = vpop.f32.mrf.mxu0
  %1744 = vmatprep.mubr.f32.mxu0 %v1439
  %1745 = vmatmul.mubr.f32.gmra.mxu0 %v1375
  %v1746 = vpop.f32.mrf.mxu0
  %v1747 = vadd.f32 0.0, %v1746
  %v1748 = vpop.f32.mrf.mxu0
  %1749 = vmatprep.mubr.f32.mxu0 %v1440
  %1750 = vmatmul.mubr.f32.gmra.mxu0 %v1376
  %v1751 = vpop.f32.mrf.mxu0
  %v1752 = vadd.f32 0.0, %v1751
  %v1753 = vpop.f32.mrf.mxu0
  %1754 = vmatprep.mubr.f32.mxu0 %v1441
  %1755 = vmatmul.mubr.f32.gmra.mxu0 %v1377
  %v1756 = vpop.f32.mrf.mxu0
  %v1757 = vadd.f32 0.0, %v1756
  %v1758 = vpop.f32.mrf.mxu0
  %1759 = vmatprep.mubr.f32.mxu0 %v1442
  %1760 = vmatmul.mubr.f32.gmra.mxu0 %v1378
  %v1761 = vpop.f32.mrf.mxu0
  %v1762 = vadd.f32 0.0, %v1761
  %v1763 = vpop.f32.mrf.mxu0
  %1764 = vmatprep.mubr.f32.mxu0 %v1443
  %1765 = vmatmul.mubr.f32.gmra.mxu0 %v1379
  %v1766 = vpop.f32.mrf.mxu0
  %v1767 = vadd.f32 0.0, %v1766
  %v1768 = vpop.f32.mrf.mxu0
  %1769 = vmatprep.mubr.f32.mxu0 %v1444
  %1770 = vmatmul.mubr.f32.gmra.mxu0 %v1380
  %v1771 = vpop.f32.mrf.mxu0
  %v1772 = vadd.f32 0.0, %v1771
  %v1773 = vpop.f32.mrf.mxu0
  %1774 = vmatprep.mubr.f32.mxu0 %v1445
  %1775 = vmatmul.mubr.f32.gmra.mxu0 %v1381
  %v1776 = vpop.f32.mrf.mxu0
  %v1777 = vadd.f32 0.0, %v1776
  %v1778 = vpop.f32.mrf.mxu0
  %1779 = vmatprep.mubr.f32.mxu0 %v1446
  %1780 = vmatmul.mubr.f32.gmra.mxu0 %v1382
  %v1781 = vpop.f32.mrf.mxu0
  %v1782 = vadd.f32 0.0, %v1781
  %v1783 = vpop.f32.mrf.mxu0
  %1784 = vmatprep.mubr.f32.mxu0 %v1447
  %1785 = vmatmul.mubr.f32.gmra.mxu0 %v1383
  %v1786 = vpop.f32.mrf.mxu0
  %v1787 = vadd.f32 0.0, %v1786
  %v1788 = vpop.f32.mrf.mxu0
  %1789 = vmatprep.mubr.f32.mxu0 %v1448
  %1790 = vmatmul.mubr.f32.gmra.mxu0 %v1384
  %v1791 = vpop.f32.mrf.mxu0
  %v1792 = vadd.f32 0.0, %v1791
  %v1793 = vpop.f32.mrf.mxu0
  %1794 = vmatprep.mubr.f32.mxu0 %v1449
  %1795 = vmatmul.mubr.f32.gmra.mxu0 %v1385
  %v1796 = vpop.f32.mrf.mxu0
  %v1797 = vadd.f32 0.0, %v1796
  %v1798 = vpop.f32.mrf.mxu0
  %1799 = vmatprep.mubr.f32.mxu0 %v1450
  %1800 = vmatmul.mubr.f32.gmra.mxu0 %v1386
  %v1801 = vpop.f32.mrf.mxu0
  %v1802 = vadd.f32 0.0, %v1801
  %v1803 = vpop.f32.mrf.mxu0
  %1804 = vmatprep.mubr.f32.mxu0 %v1451
  %1805 = vmatmul.mubr.f32.gmra.mxu0 %v1387
  %v1806 = vpop.f32.mrf.mxu0
  %v1807 = vadd.f32 0.0, %v1806
  %v1808 = vpop.f32.mrf.mxu0
  %1809 = vmatprep.mubr.f32.mxu0 %v1452
  %1810 = vmatmul.mubr.f32.gmra.mxu0 %v1388
  %v1811 = vpop.f32.mrf.mxu0
  %v1812 = vadd.f32 0.0, %v1811
  %v1813 = vpop.f32.mrf.mxu0
  %1814 = vmatprep.mubr.f32.mxu0 %v1453
  %1815 = vmatmul.mubr.f32.gmra.mxu0 %v1389
  %v1816 = vpop.f32.mrf.mxu0
  %v1817 = vadd.f32 0.0, %v1816
  %v1818 = vpop.f32.mrf.mxu0
  %1819 = vmatprep.mubr.f32.mxu0 %v1454
  %1820 = vmatmul.mubr.f32.gmra.mxu0 %v1390
  %v1821 = vpop.f32.mrf.mxu0
  %v1822 = vadd.f32 0.0, %v1821
  %v1823 = vpop.f32.mrf.mxu0
  %1824 = vmatprep.mubr.f32.mxu0 %v1455
  %1825 = vmatmul.mubr.f32.gmra.mxu0 %v1391
  %v1826 = vpop.f32.mrf.mxu0
  %v1827 = vadd.f32 0.0, %v1826
  %v1828 = vpop.f32.mrf.mxu0
  %1829 = vmatprep.mubr.f32.mxu0 %v1456
  %1830 = vmatmul.mubr.f32.gmra.mxu0 %v1392
  %v1831 = vpop.f32.mrf.mxu0
  %v1832 = vadd.f32 0.0, %v1831
  %v1833 = vpop.f32.mrf.mxu0
  %1834 = vmatprep.mubr.f32.mxu0 %v1457
  %1835 = vmatmul.mubr.f32.gmra.mxu0 %v1393
  %v1836 = vpop.f32.mrf.mxu0
  %v1837 = vadd.f32 0.0, %v1836
  %v1838 = vpop.f32.mrf.mxu0
  %1839 = vmatprep.mubr.f32.mxu0 %v1458
  %1840 = vmatmul.mubr.f32.gmra.mxu0 %v1394
  %v1841 = vpop.f32.mrf.mxu0
  %v1842 = vadd.f32 0.0, %v1841
  %v1843 = vpop.f32.mrf.mxu0
  %1844 = vmatprep.mubr.f32.mxu0 %v1459
  %1845 = vmatmul.mubr.f32.gmra.mxu0 %v1395
  %v1846 = vpop.f32.mrf.mxu0
  %v1847 = vadd.f32 0.0, %v1846
  %v1848 = vpop.f32.mrf.mxu0
  %1849 = vmatprep.mubr.f32.mxu0 %v1460
  %1850 = vmatmul.mubr.f32.gmra.mxu0 %v1396
  %v1851 = vpop.f32.mrf.mxu0
  %v1852 = vadd.f32 0.0, %v1851
  %v1853 = vpop.f32.mrf.mxu0
  %1854 = vmatprep.mubr.f32.mxu0 %v1461
  %1855 = vmatmul.mubr.f32.gmra.mxu0 %v1397
  %v1856 = vpop.f32.mrf.mxu0
  %v1857 = vadd.f32 0.0, %v1856
  %v1858 = vpop.f32.mrf.mxu0
  %1859 = vmatprep.mubr.f32.mxu0 %v1462
  %1860 = vmatmul.mubr.f32.gmra.mxu0 %v1398
  %v1861 = vpop.f32.mrf.mxu0
  %v1862 = vadd.f32 0.0, %v1861
  %v1863 = vpop.f32.mrf.mxu0
  %1864 = vmatprep.mubr.f32.mxu0 %v1463
  %1865 = vmatmul.mubr.f32.gmra.mxu0 %v1399
  %v1866 = vpop.f32.mrf.mxu0
  %v1867 = vadd.f32 0.0, %v1866
  %v1868 = vpop.f32.mrf.mxu0
  %1869 = vmatprep.mubr.f32.mxu0 %v1464
  %1870 = vmatmul.mubr.f32.gmra.mxu0 %v1400
  %v1871 = vpop.f32.mrf.mxu0
  %v1872 = vadd.f32 0.0, %v1871
  %v1873 = vpop.f32.mrf.mxu0
  %1874 = vmatprep.mubr.f32.mxu0 %v1465
  %1875 = vmatmul.mubr.f32.gmra.mxu0 %v1401
  %v1876 = vpop.f32.mrf.mxu0
  %v1877 = vadd.f32 0.0, %v1876
  %v1878 = vpop.f32.mrf.mxu0
  %1879 = vmatprep.mubr.f32.mxu0 %v1466
  %1880 = vmatmul.mubr.f32.gmra.mxu0 %v1402
  %v1881 = vpop.f32.mrf.mxu0
  %v1882 = vadd.f32 0.0, %v1881
  %v1883 = vpop.f32.mrf.mxu0
  %1884 = vdwg.mxu0
  %v1885 = vadd.f32 %v1021, %v1567
  %v1886 = vadd.f32 %v1026, %v1572
  %v1887 = vadd.f32 %v1031, %v1577
  %v1888 = vadd.f32 %v1036, %v1582
  %v1889 = vadd.f32 %v1041, %v1587
  %v1890 = vadd.f32 %v1046, %v1592
  %v1891 = vadd.f32 %v1051, %v1597
  %v1892 = vadd.f32 %v1056, %v1602
  %v1893 = vadd.f32 %v1061, %v1607
  %v1894 = vadd.f32 %v1066, %v1612
  %v1895 = vadd.f32 %v1071, %v1617
  %v1896 = vadd.f32 %v1076, %v1622
  %v1897 = vadd.f32 %v1081, %v1627
  %v1898 = vadd.f32 %v1086, %v1632
  %v1899 = vadd.f32 %v1091, %v1637
  %v1900 = vadd.f32 %v1096, %v1642
  %v1901 = vadd.f32 %v1101, %v1647
  %v1902 = vadd.f32 %v1106, %v1652
  %v1903 = vadd.f32 %v1111, %v1657
  %v1904 = vadd.f32 %v1116, %v1662
  %v1905 = vadd.f32 %v1121, %v1667
  %v1906 = vadd.f32 %v1126, %v1672
  %v1907 = vadd.f32 %v1131, %v1677
  %v1908 = vadd.f32 %v1136, %v1682
  %v1909 = vadd.f32 %v1141, %v1687
  %v1910 = vadd.f32 %v1146, %v1692
  %v1911 = vadd.f32 %v1151, %v1697
  %v1912 = vadd.f32 %v1156, %v1702
  %v1913 = vadd.f32 %v1161, %v1707
  %v1914 = vadd.f32 %v1166, %v1712
  %v1915 = vadd.f32 %v1171, %v1717
  %v1916 = vadd.f32 %v1176, %v1722
  %v1917 = vadd.f32 %v1181, %v1727
  %v1918 = vadd.f32 %v1186, %v1732
  %v1919 = vadd.f32 %v1191, %v1737
  %v1920 = vadd.f32 %v1196, %v1742
  %v1921 = vadd.f32 %v1201, %v1747
  %v1922 = vadd.f32 %v1206, %v1752
  %v1923 = vadd.f32 %v1211, %v1757
  %v1924 = vadd.f32 %v1216, %v1762
  %v1925 = vadd.f32 %v1221, %v1767
  %v1926 = vadd.f32 %v1226, %v1772
  %v1927 = vadd.f32 %v1231, %v1777
  %v1928 = vadd.f32 %v1236, %v1782
  %v1929 = vadd.f32 %v1241, %v1787
  %v1930 = vadd.f32 %v1246, %v1792
  %v1931 = vadd.f32 %v1251, %v1797
  %v1932 = vadd.f32 %v1256, %v1802
  %v1933 = vadd.f32 %v1261, %v1807
  %v1934 = vadd.f32 %v1266, %v1812
  %v1935 = vadd.f32 %v1271, %v1817
  %v1936 = vadd.f32 %v1276, %v1822
  %v1937 = vadd.f32 %v1281, %v1827
  %v1938 = vadd.f32 %v1286, %v1832
  %v1939 = vadd.f32 %v1291, %v1837
  %v1940 = vadd.f32 %v1296, %v1842
  %v1941 = vadd.f32 %v1301, %v1847
  %v1942 = vadd.f32 %v1306, %v1852
  %v1943 = vadd.f32 %v1311, %v1857
  %v1944 = vadd.f32 %v1316, %v1862
  %v1945 = vadd.f32 %v1321, %v1867
  %v1946 = vadd.f32 %v1326, %v1872
  %v1947 = vadd.f32 %v1331, %v1877
  %v1948 = vadd.f32 %v1336, %v1882
  %s1949 = scalar_lea.vmem [#allocation2], 64
  %v1950 = vld [vmem:[%s1949 + $0x7] sm:$0xff]
  %v1951 = vld [vmem:[%s1949 + $0xf] sm:$0xff]
  %v1952 = vld [vmem:[%s1949 + $0x27] sm:$0xff]
  %v1953 = vld [vmem:[%s1949 + $0x2f] sm:$0xff]
  %v1954 = vld [vmem:[%s1949 + $0x47] sm:$0xff]
  %v1955 = vld [vmem:[%s1949 + $0x4f] sm:$0xff]
  %v1956 = vld [vmem:[%s1949 + $0x67] sm:$0xff]
  %v1957 = vld [vmem:[%s1949 + $0x6f] sm:$0xff]
  %v1958 = vld [vmem:[%s1949 + $0x87] sm:$0xff]
  %v1959 = vld [vmem:[%s1949 + $0x8f] sm:$0xff]
  %v1960 = vld [vmem:[%s1949 + $0xa7] sm:$0xff]
  %v1961 = vld [vmem:[%s1949 + $0xaf] sm:$0xff]
  %v1962 = vld [vmem:[%s1949 + $0xc7] sm:$0xff]
  %v1963 = vld [vmem:[%s1949 + $0xcf] sm:$0xff]
  %v1964 = vld [vmem:[%s1949 + $0xe7] sm:$0xff]
  %v1965 = vld [vmem:[%s1949 + $0xef] sm:$0xff]
  %v1966 = vld [vmem:[%s1949 + $0x107] sm:$0xff]
  %v1967 = vld [vmem:[%s1949 + $0x10f] sm:$0xff]
  %v1968 = vld [vmem:[%s1949 + $0x127] sm:$0xff]
  %v1969 = vld [vmem:[%s1949 + $0x12f] sm:$0xff]
  %v1970 = vld [vmem:[%s1949 + $0x147] sm:$0xff]
  %v1971 = vld [vmem:[%s1949 + $0x14f] sm:$0xff]
  %v1972 = vld [vmem:[%s1949 + $0x167] sm:$0xff]
  %v1973 = vld [vmem:[%s1949 + $0x16f] sm:$0xff]
  %v1974 = vld [vmem:[%s1949 + $0x187] sm:$0xff]
  %v1975 = vld [vmem:[%s1949 + $0x18f] sm:$0xff]
  %v1976 = vld [vmem:[%s1949 + $0x1a7] sm:$0xff]
  %v1977 = vld [vmem:[%s1949 + $0x1af] sm:$0xff]
  %v1978 = vld [vmem:[%s1949 + $0x1c7] sm:$0xff]
  %v1979 = vld [vmem:[%s1949 + $0x1cf] sm:$0xff]
  %v1980 = vld [vmem:[%s1949 + $0x1e7] sm:$0xff]
  %v1981 = vld [vmem:[%s1949 + $0x1ef] sm:$0xff]
  %v1982 = vld [vmem:[%s1949 + $0x247] sm:$0xff]
  %v1983 = vld [vmem:[%s1949 + $0x24f] sm:$0xff]
  %v1984 = vld [vmem:[%s1949 + $0x267] sm:$0xff]
  %v1985 = vld [vmem:[%s1949 + $0x26f] sm:$0xff]
  %v1986 = vld [vmem:[%s1949 + $0x287] sm:$0xff]
  %v1987 = vld [vmem:[%s1949 + $0x28f] sm:$0xff]
  %v1988 = vld [vmem:[%s1949 + $0x2a7] sm:$0xff]
  %v1989 = vld [vmem:[%s1949 + $0x2af] sm:$0xff]
  %v1990 = vld [vmem:[%s1949 + $0x2c7] sm:$0xff]
  %v1991 = vld [vmem:[%s1949 + $0x2cf] sm:$0xff]
  %v1992 = vld [vmem:[%s1949 + $0x2e7] sm:$0xff]
  %v1993 = vld [vmem:[%s1949 + $0x2ef] sm:$0xff]
  %v1994 = vld [vmem:[%s1949 + $0x307] sm:$0xff]
  %v1995 = vld [vmem:[%s1949 + $0x30f] sm:$0xff]
  %v1996 = vld [vmem:[%s1949 + $0x327] sm:$0xff]
  %v1997 = vld [vmem:[%s1949 + $0x32f] sm:$0xff]
  %v1998 = vld [vmem:[%s1949 + $0x347] sm:$0xff]
  %v1999 = vld [vmem:[%s1949 + $0x34f] sm:$0xff]
  %v2000 = vld [vmem:[%s1949 + $0x367] sm:$0xff]
  %v2001 = vld [vmem:[%s1949 + $0x36f] sm:$0xff]
  %v2002 = vld [vmem:[%s1949 + $0x387] sm:$0xff]
  %v2003 = vld [vmem:[%s1949 + $0x38f] sm:$0xff]
  %v2004 = vld [vmem:[%s1949 + $0x3a7] sm:$0xff]
  %v2005 = vld [vmem:[%s1949 + $0x3af] sm:$0xff]
  %v2006 = vld [vmem:[%s1949 + $0x3c7] sm:$0xff]
  %v2007 = vld [vmem:[%s1949 + $0x3cf] sm:$0xff]
  %v2008 = vld [vmem:[%s1949 + $0x3e7] sm:$0xff]
  %v2009 = vld [vmem:[%s1949 + $0x3ef] sm:$0xff]
  %v2010 = vld [vmem:[%s1949 + $0x407] sm:$0xff]
  %v2011 = vld [vmem:[%s1949 + $0x40f] sm:$0xff]
  %v2012 = vld [vmem:[%s1949 + $0x427] sm:$0xff]
  %v2013 = vld [vmem:[%s1949 + $0x42f] sm:$0xff]
  %v2014 = vld [vmem:[%s1949 + $0x8] sm:$0xff]
  %v2015 = vld [vmem:[%s1949 + $0x10] sm:$0xff]
  %v2016 = vld [vmem:[%s1949 + $0x28] sm:$0xff]
  %v2017 = vld [vmem:[%s1949 + $0x30] sm:$0xff]
  %v2018 = vld [vmem:[%s1949 + $0x48] sm:$0xff]
  %v2019 = vld [vmem:[%s1949 + $0x50] sm:$0xff]
  %v2020 = vld [vmem:[%s1949 + $0x68] sm:$0xff]
  %v2021 = vld [vmem:[%s1949 + $0x70] sm:$0xff]
  %v2022 = vld [vmem:[%s1949 + $0x88] sm:$0xff]
  %v2023 = vld [vmem:[%s1949 + $0x90] sm:$0xff]
  %v2024 = vld [vmem:[%s1949 + $0xa8] sm:$0xff]
  %v2025 = vld [vmem:[%s1949 + $0xb0] sm:$0xff]
  %v2026 = vld [vmem:[%s1949 + $0xc8] sm:$0xff]
  %v2027 = vld [vmem:[%s1949 + $0xd0] sm:$0xff]
  %v2028 = vld [vmem:[%s1949 + $0xe8] sm:$0xff]
  %v2029 = vld [vmem:[%s1949 + $0xf0] sm:$0xff]
  %v2030 = vld [vmem:[%s1949 + $0x108] sm:$0xff]
  %v2031 = vld [vmem:[%s1949 + $0x110] sm:$0xff]
  %v2032 = vld [vmem:[%s1949 + $0x128] sm:$0xff]
  %v2033 = vld [vmem:[%s1949 + $0x130] sm:$0xff]
  %v2034 = vld [vmem:[%s1949 + $0x148] sm:$0xff]
  %v2035 = vld [vmem:[%s1949 + $0x150] sm:$0xff]
  %v2036 = vld [vmem:[%s1949 + $0x168] sm:$0xff]
  %v2037 = vld [vmem:[%s1949 + $0x170] sm:$0xff]
  %v2038 = vld [vmem:[%s1949 + $0x188] sm:$0xff]
  %v2039 = vld [vmem:[%s1949 + $0x190] sm:$0xff]
  %v2040 = vld [vmem:[%s1949 + $0x1a8] sm:$0xff]
  %v2041 = vld [vmem:[%s1949 + $0x1b0] sm:$0xff]
  %v2042 = vld [vmem:[%s1949 + $0x1c8] sm:$0xff]
  %v2043 = vld [vmem:[%s1949 + $0x1d0] sm:$0xff]
  %v2044 = vld [vmem:[%s1949 + $0x1e8] sm:$0xff]
  %v2045 = vld [vmem:[%s1949 + $0x1f0] sm:$0xff]
  %v2046 = vld [vmem:[%s1949 + $0x248] sm:$0xff]
  %v2047 = vld [vmem:[%s1949 + $0x250] sm:$0xff]
  %v2048 = vld [vmem:[%s1949 + $0x268] sm:$0xff]
  %v2049 = vld [vmem:[%s1949 + $0x270] sm:$0xff]
  %v2050 = vld [vmem:[%s1949 + $0x288] sm:$0xff]
  %v2051 = vld [vmem:[%s1949 + $0x290] sm:$0xff]
  %v2052 = vld [vmem:[%s1949 + $0x2a8] sm:$0xff]
  %v2053 = vld [vmem:[%s1949 + $0x2b0] sm:$0xff]
  %v2054 = vld [vmem:[%s1949 + $0x2c8] sm:$0xff]
  %v2055 = vld [vmem:[%s1949 + $0x2d0] sm:$0xff]
  %v2056 = vld [vmem:[%s1949 + $0x2e8] sm:$0xff]
  %v2057 = vld [vmem:[%s1949 + $0x2f0] sm:$0xff]
  %v2058 = vld [vmem:[%s1949 + $0x308] sm:$0xff]
  %v2059 = vld [vmem:[%s1949 + $0x310] sm:$0xff]
  %v2060 = vld [vmem:[%s1949 + $0x328] sm:$0xff]
  %v2061 = vld [vmem:[%s1949 + $0x330] sm:$0xff]
  %v2062 = vld [vmem:[%s1949 + $0x348] sm:$0xff]
  %v2063 = vld [vmem:[%s1949 + $0x350] sm:$0xff]
  %v2064 = vld [vmem:[%s1949 + $0x368] sm:$0xff]
  %v2065 = vld [vmem:[%s1949 + $0x370] sm:$0xff]
  %v2066 = vld [vmem:[%s1949 + $0x388] sm:$0xff]
  %v2067 = vld [vmem:[%s1949 + $0x390] sm:$0xff]
  %v2068 = vld [vmem:[%s1949 + $0x3a8] sm:$0xff]
  %v2069 = vld [vmem:[%s1949 + $0x3b0] sm:$0xff]
  %v2070 = vld [vmem:[%s1949 + $0x3c8] sm:$0xff]
  %v2071 = vld [vmem:[%s1949 + $0x3d0] sm:$0xff]
  %v2072 = vld [vmem:[%s1949 + $0x3e8] sm:$0xff]
  %v2073 = vld [vmem:[%s1949 + $0x3f0] sm:$0xff]
  %v2074 = vld [vmem:[%s1949 + $0x408] sm:$0xff]
  %v2075 = vld [vmem:[%s1949 + $0x410] sm:$0xff]
  %v2076 = vld [vmem:[%s1949 + $0x428] sm:$0xff]
  %v2077 = vld [vmem:[%s1949 + $0x430] sm:$0xff]
  %s2078 = scalar_lea.vmem %s2, 768
  %v2079 = vld [vmem:[%s2078] sm:$0xff]
  %v2080 = vld [vmem:[%s2078 + $0x8] sm:$0xff]
  %v2081 = vld [vmem:[%s2078 + $0x10] sm:$0xff]
  %v2082 = vld [vmem:[%s2078 + $0x18] sm:$0xff]
  %v2083 = vld [vmem:[%s2078 + $0x20] sm:$0xff]
  %v2084 = vld [vmem:[%s2078 + $0x28] sm:$0xff]
  %v2085 = vld [vmem:[%s2078 + $0x30] sm:$0xff]
  %v2086 = vld [vmem:[%s2078 + $0x38] sm:$0xff]
  %v2087 = vld [vmem:[%s2078 + $0x40] sm:$0xff]
  %v2088 = vld [vmem:[%s2078 + $0x48] sm:$0xff]
  %v2089 = vld [vmem:[%s2078 + $0x50] sm:$0xff]
  %v2090 = vld [vmem:[%s2078 + $0x58] sm:$0xff]
  %v2091 = vld [vmem:[%s2078 + $0x60] sm:$0xff]
  %v2092 = vld [vmem:[%s2078 + $0x68] sm:$0xff]
  %v2093 = vld [vmem:[%s2078 + $0x70] sm:$0xff]
  %v2094 = vld [vmem:[%s2078 + $0x78] sm:$0xff]
  %v2095 = vld [vmem:[%s2078 + $0x80] sm:$0xff]
  %v2096 = vld [vmem:[%s2078 + $0x88] sm:$0xff]
  %v2097 = vld [vmem:[%s2078 + $0x90] sm:$0xff]
  %v2098 = vld [vmem:[%s2078 + $0x98] sm:$0xff]
  %v2099 = vld [vmem:[%s2078 + $0xa0] sm:$0xff]
  %v2100 = vld [vmem:[%s2078 + $0xa8] sm:$0xff]
  %v2101 = vld [vmem:[%s2078 + $0xb0] sm:$0xff]
  %v2102 = vld [vmem:[%s2078 + $0xb8] sm:$0xff]
  %v2103 = vld [vmem:[%s2078 + $0xc0] sm:$0xff]
  %v2104 = vld [vmem:[%s2078 + $0xc8] sm:$0xff]
  %v2105 = vld [vmem:[%s2078 + $0xd0] sm:$0xff]
  %v2106 = vld [vmem:[%s2078 + $0xd8] sm:$0xff]
  %v2107 = vld [vmem:[%s2078 + $0xe0] sm:$0xff]
  %v2108 = vld [vmem:[%s2078 + $0xe8] sm:$0xff]
  %v2109 = vld [vmem:[%s2078 + $0xf0] sm:$0xff]
  %v2110 = vld [vmem:[%s2078 + $0xf8] sm:$0xff]
  %2111 = vmatprep.subr.mxu0 0.0
  %2112 = vmatpush1.msra.mxu0 %v2094
  %2113 = vmatprep.subr.mxu0 0.0
  %2114 = vmatpush1.msra.mxu0 %v2093
  %2115 = vmatprep.subr.mxu0 0.0
  %2116 = vmatpush1.msra.mxu0 %v2092
  %2117 = vmatprep.subr.mxu0 0.0
  %2118 = vmatpush1.msra.mxu0 %v2091
  %2119 = vmatprep.subr.mxu0 0.0
  %2120 = vmatpush1.msra.mxu0 %v2090
  %2121 = vmatprep.subr.mxu0 0.0
  %2122 = vmatpush1.msra.mxu0 %v2089
  %2123 = vmatprep.subr.mxu0 0.0
  %2124 = vmatpush1.msra.mxu0 %v2088
  %2125 = vmatprep.subr.mxu0 0.0
  %2126 = vmatpush1.msra.mxu0 %v2087
  %2127 = vmatprep.subr.mxu0 0.0
  %2128 = vmatpush1.msra.mxu0 %v2086
  %2129 = vmatprep.subr.mxu0 0.0
  %2130 = vmatpush1.msra.mxu0 %v2085
  %2131 = vmatprep.subr.mxu0 0.0
  %2132 = vmatpush1.msra.mxu0 %v2084
  %2133 = vmatprep.subr.mxu0 0.0
  %2134 = vmatpush1.msra.mxu0 %v2083
  %2135 = vmatprep.subr.mxu0 0.0
  %2136 = vmatpush1.msra.mxu0 %v2082
  %2137 = vmatprep.subr.mxu0 0.0
  %2138 = vmatpush1.msra.mxu0 %v2081
  %2139 = vmatprep.subr.mxu0 0.0
  %2140 = vmatpush1.msra.mxu0 %v2080
  %2141 = vmatprep.subr.mxu0 0.0
  %2142 = vmatpush1.msra.mxu0 %v2079
  %2143 = vmatprep.subr.mxu0 0.0
  %2144 = vmatpush2.msra.mxu0 %v2110
  %2145 = vmatprep.subr.mxu0 0.0
  %2146 = vmatpush2.msra.mxu0 %v2109
  %2147 = vmatprep.subr.mxu0 0.0
  %2148 = vmatpush2.msra.mxu0 %v2108
  %2149 = vmatprep.subr.mxu0 0.0
  %2150 = vmatpush2.msra.mxu0 %v2107
  %2151 = vmatprep.subr.mxu0 0.0
  %2152 = vmatpush2.msra.mxu0 %v2106
  %2153 = vmatprep.subr.mxu0 0.0
  %2154 = vmatpush2.msra.mxu0 %v2105
  %2155 = vmatprep.subr.mxu0 0.0
  %2156 = vmatpush2.msra.mxu0 %v2104
  %2157 = vmatprep.subr.mxu0 0.0
  %2158 = vmatpush2.msra.mxu0 %v2103
  %2159 = vmatprep.subr.mxu0 0.0
  %2160 = vmatpush2.msra.mxu0 %v2102
  %2161 = vmatprep.subr.mxu0 0.0
  %2162 = vmatpush2.msra.mxu0 %v2101
  %2163 = vmatprep.subr.mxu0 0.0
  %2164 = vmatpush2.msra.mxu0 %v2100
  %2165 = vmatprep.subr.mxu0 0.0
  %2166 = vmatpush2.msra.mxu0 %v2099
  %2167 = vmatprep.subr.mxu0 0.0
  %2168 = vmatpush2.msra.mxu0 %v2098
  %2169 = vmatprep.subr.mxu0 0.0
  %2170 = vmatpush2.msra.mxu0 %v2097
  %2171 = vmatprep.subr.mxu0 0.0
  %2172 = vmatpush2.msra.mxu0 %v2096
  %2173 = vmatprep.subr.mxu0 0.0
  %2174 = vmatpush2.msra.mxu0 %v2095
  %2175 = vmatprep.mubr.f32.mxu0 %v2014
  %2176 = vmatmul.mubr.f32.gmra.mxu0 %v1950
  %v2177 = vpop.f32.mrf.mxu0
  %v2178 = vadd.f32 0.0, %v2177
  %v2179 = vpop.f32.mrf.mxu0
  %2180 = vmatprep.mubr.f32.mxu0 %v2015
  %2181 = vmatmul.mubr.f32.gmra.mxu0 %v1951
  %v2182 = vpop.f32.mrf.mxu0
  %v2183 = vadd.f32 0.0, %v2182
  %v2184 = vpop.f32.mrf.mxu0
  %2185 = vmatprep.mubr.f32.mxu0 %v2016
  %2186 = vmatmul.mubr.f32.gmra.mxu0 %v1952
  %v2187 = vpop.f32.mrf.mxu0
  %v2188 = vadd.f32 0.0, %v2187
  %v2189 = vpop.f32.mrf.mxu0
  %2190 = vmatprep.mubr.f32.mxu0 %v2017
  %2191 = vmatmul.mubr.f32.gmra.mxu0 %v1953
  %v2192 = vpop.f32.mrf.mxu0
  %v2193 = vadd.f32 0.0, %v2192
  %v2194 = vpop.f32.mrf.mxu0
  %2195 = vmatprep.mubr.f32.mxu0 %v2018
  %2196 = vmatmul.mubr.f32.gmra.mxu0 %v1954
  %v2197 = vpop.f32.mrf.mxu0
  %v2198 = vadd.f32 0.0, %v2197
  %v2199 = vpop.f32.mrf.mxu0
  %2200 = vmatprep.mubr.f32.mxu0 %v2019
  %2201 = vmatmul.mubr.f32.gmra.mxu0 %v1955
  %v2202 = vpop.f32.mrf.mxu0
  %v2203 = vadd.f32 0.0, %v2202
  %v2204 = vpop.f32.mrf.mxu0
  %2205 = vmatprep.mubr.f32.mxu0 %v2020
  %2206 = vmatmul.mubr.f32.gmra.mxu0 %v1956
  %v2207 = vpop.f32.mrf.mxu0
  %v2208 = vadd.f32 0.0, %v2207
  %v2209 = vpop.f32.mrf.mxu0
  %2210 = vmatprep.mubr.f32.mxu0 %v2021
  %2211 = vmatmul.mubr.f32.gmra.mxu0 %v1957
  %v2212 = vpop.f32.mrf.mxu0
  %v2213 = vadd.f32 0.0, %v2212
  %v2214 = vpop.f32.mrf.mxu0
  %2215 = vmatprep.mubr.f32.mxu0 %v2022
  %2216 = vmatmul.mubr.f32.gmra.mxu0 %v1958
  %v2217 = vpop.f32.mrf.mxu0
  %v2218 = vadd.f32 0.0, %v2217
  %v2219 = vpop.f32.mrf.mxu0
  %2220 = vmatprep.mubr.f32.mxu0 %v2023
  %2221 = vmatmul.mubr.f32.gmra.mxu0 %v1959
  %v2222 = vpop.f32.mrf.mxu0
  %v2223 = vadd.f32 0.0, %v2222
  %v2224 = vpop.f32.mrf.mxu0
  %2225 = vmatprep.mubr.f32.mxu0 %v2024
  %2226 = vmatmul.mubr.f32.gmra.mxu0 %v1960
  %v2227 = vpop.f32.mrf.mxu0
  %v2228 = vadd.f32 0.0, %v2227
  %v2229 = vpop.f32.mrf.mxu0
  %2230 = vmatprep.mubr.f32.mxu0 %v2025
  %2231 = vmatmul.mubr.f32.gmra.mxu0 %v1961
  %v2232 = vpop.f32.mrf.mxu0
  %v2233 = vadd.f32 0.0, %v2232
  %v2234 = vpop.f32.mrf.mxu0
  %2235 = vmatprep.mubr.f32.mxu0 %v2026
  %2236 = vmatmul.mubr.f32.gmra.mxu0 %v1962
  %v2237 = vpop.f32.mrf.mxu0
  %v2238 = vadd.f32 0.0, %v2237
  %v2239 = vpop.f32.mrf.mxu0
  %2240 = vmatprep.mubr.f32.mxu0 %v2027
  %2241 = vmatmul.mubr.f32.gmra.mxu0 %v1963
  %v2242 = vpop.f32.mrf.mxu0
  %v2243 = vadd.f32 0.0, %v2242
  %v2244 = vpop.f32.mrf.mxu0
  %2245 = vmatprep.mubr.f32.mxu0 %v2028
  %2246 = vmatmul.mubr.f32.gmra.mxu0 %v1964
  %v2247 = vpop.f32.mrf.mxu0
  %v2248 = vadd.f32 0.0, %v2247
  %v2249 = vpop.f32.mrf.mxu0
  %2250 = vmatprep.mubr.f32.mxu0 %v2029
  %2251 = vmatmul.mubr.f32.gmra.mxu0 %v1965
  %v2252 = vpop.f32.mrf.mxu0
  %v2253 = vadd.f32 0.0, %v2252
  %v2254 = vpop.f32.mrf.mxu0
  %2255 = vmatprep.mubr.f32.mxu0 %v2030
  %2256 = vmatmul.mubr.f32.gmra.mxu0 %v1966
  %v2257 = vpop.f32.mrf.mxu0
  %v2258 = vadd.f32 0.0, %v2257
  %v2259 = vpop.f32.mrf.mxu0
  %2260 = vmatprep.mubr.f32.mxu0 %v2031
  %2261 = vmatmul.mubr.f32.gmra.mxu0 %v1967
  %v2262 = vpop.f32.mrf.mxu0
  %v2263 = vadd.f32 0.0, %v2262
  %v2264 = vpop.f32.mrf.mxu0
  %2265 = vmatprep.mubr.f32.mxu0 %v2032
  %2266 = vmatmul.mubr.f32.gmra.mxu0 %v1968
  %v2267 = vpop.f32.mrf.mxu0
  %v2268 = vadd.f32 0.0, %v2267
  %v2269 = vpop.f32.mrf.mxu0
  %2270 = vmatprep.mubr.f32.mxu0 %v2033
  %2271 = vmatmul.mubr.f32.gmra.mxu0 %v1969
  %v2272 = vpop.f32.mrf.mxu0
  %v2273 = vadd.f32 0.0, %v2272
  %v2274 = vpop.f32.mrf.mxu0
  %2275 = vmatprep.mubr.f32.mxu0 %v2034
  %2276 = vmatmul.mubr.f32.gmra.mxu0 %v1970
  %v2277 = vpop.f32.mrf.mxu0
  %v2278 = vadd.f32 0.0, %v2277
  %v2279 = vpop.f32.mrf.mxu0
  %2280 = vmatprep.mubr.f32.mxu0 %v2035
  %2281 = vmatmul.mubr.f32.gmra.mxu0 %v1971
  %v2282 = vpop.f32.mrf.mxu0
  %v2283 = vadd.f32 0.0, %v2282
  %v2284 = vpop.f32.mrf.mxu0
  %2285 = vmatprep.mubr.f32.mxu0 %v2036
  %2286 = vmatmul.mubr.f32.gmra.mxu0 %v1972
  %v2287 = vpop.f32.mrf.mxu0
  %v2288 = vadd.f32 0.0, %v2287
  %v2289 = vpop.f32.mrf.mxu0
  %2290 = vmatprep.mubr.f32.mxu0 %v2037
  %2291 = vmatmul.mubr.f32.gmra.mxu0 %v1973
  %v2292 = vpop.f32.mrf.mxu0
  %v2293 = vadd.f32 0.0, %v2292
  %v2294 = vpop.f32.mrf.mxu0
  %2295 = vmatprep.mubr.f32.mxu0 %v2038
  %2296 = vmatmul.mubr.f32.gmra.mxu0 %v1974
  %v2297 = vpop.f32.mrf.mxu0
  %v2298 = vadd.f32 0.0, %v2297
  %v2299 = vpop.f32.mrf.mxu0
  %2300 = vmatprep.mubr.f32.mxu0 %v2039
  %2301 = vmatmul.mubr.f32.gmra.mxu0 %v1975
  %v2302 = vpop.f32.mrf.mxu0
  %v2303 = vadd.f32 0.0, %v2302
  %v2304 = vpop.f32.mrf.mxu0
  %2305 = vmatprep.mubr.f32.mxu0 %v2040
  %2306 = vmatmul.mubr.f32.gmra.mxu0 %v1976
  %v2307 = vpop.f32.mrf.mxu0
  %v2308 = vadd.f32 0.0, %v2307
  %v2309 = vpop.f32.mrf.mxu0
  %2310 = vmatprep.mubr.f32.mxu0 %v2041
  %2311 = vmatmul.mubr.f32.gmra.mxu0 %v1977
  %v2312 = vpop.f32.mrf.mxu0
  %v2313 = vadd.f32 0.0, %v2312
  %v2314 = vpop.f32.mrf.mxu0
  %2315 = vmatprep.mubr.f32.mxu0 %v2042
  %2316 = vmatmul.mubr.f32.gmra.mxu0 %v1978
  %v2317 = vpop.f32.mrf.mxu0
  %v2318 = vadd.f32 0.0, %v2317
  %v2319 = vpop.f32.mrf.mxu0
  %2320 = vmatprep.mubr.f32.mxu0 %v2043
  %2321 = vmatmul.mubr.f32.gmra.mxu0 %v1979
  %v2322 = vpop.f32.mrf.mxu0
  %v2323 = vadd.f32 0.0, %v2322
  %v2324 = vpop.f32.mrf.mxu0
  %2325 = vmatprep.mubr.f32.mxu0 %v2044
  %2326 = vmatmul.mubr.f32.gmra.mxu0 %v1980
  %v2327 = vpop.f32.mrf.mxu0
  %v2328 = vadd.f32 0.0, %v2327
  %v2329 = vpop.f32.mrf.mxu0
  %2330 = vmatprep.mubr.f32.mxu0 %v2045
  %2331 = vmatmul.mubr.f32.gmra.mxu0 %v1981
  %v2332 = vpop.f32.mrf.mxu0
  %v2333 = vadd.f32 0.0, %v2332
  %v2334 = vpop.f32.mrf.mxu0
  %2335 = vmatprep.mubr.f32.mxu0 %v2046
  %2336 = vmatmul.mubr.f32.gmra.mxu0 %v1982
  %v2337 = vpop.f32.mrf.mxu0
  %v2338 = vadd.f32 0.0, %v2337
  %v2339 = vpop.f32.mrf.mxu0
  %2340 = vmatprep.mubr.f32.mxu0 %v2047
  %2341 = vmatmul.mubr.f32.gmra.mxu0 %v1983
  %v2342 = vpop.f32.mrf.mxu0
  %v2343 = vadd.f32 0.0, %v2342
  %v2344 = vpop.f32.mrf.mxu0
  %2345 = vmatprep.mubr.f32.mxu0 %v2048
  %2346 = vmatmul.mubr.f32.gmra.mxu0 %v1984
  %v2347 = vpop.f32.mrf.mxu0
  %v2348 = vadd.f32 0.0, %v2347
  %v2349 = vpop.f32.mrf.mxu0
  %2350 = vmatprep.mubr.f32.mxu0 %v2049
  %2351 = vmatmul.mubr.f32.gmra.mxu0 %v1985
  %v2352 = vpop.f32.mrf.mxu0
  %v2353 = vadd.f32 0.0, %v2352
  %v2354 = vpop.f32.mrf.mxu0
  %2355 = vmatprep.mubr.f32.mxu0 %v2050
  %2356 = vmatmul.mubr.f32.gmra.mxu0 %v1986
  %v2357 = vpop.f32.mrf.mxu0
  %v2358 = vadd.f32 0.0, %v2357
  %v2359 = vpop.f32.mrf.mxu0
  %2360 = vmatprep.mubr.f32.mxu0 %v2051
  %2361 = vmatmul.mubr.f32.gmra.mxu0 %v1987
  %v2362 = vpop.f32.mrf.mxu0
  %v2363 = vadd.f32 0.0, %v2362
  %v2364 = vpop.f32.mrf.mxu0
  %2365 = vmatprep.mubr.f32.mxu0 %v2052
  %2366 = vmatmul.mubr.f32.gmra.mxu0 %v1988
  %v2367 = vpop.f32.mrf.mxu0
  %v2368 = vadd.f32 0.0, %v2367
  %v2369 = vpop.f32.mrf.mxu0
  %2370 = vmatprep.mubr.f32.mxu0 %v2053
  %2371 = vmatmul.mubr.f32.gmra.mxu0 %v1989
  %v2372 = vpop.f32.mrf.mxu0
  %v2373 = vadd.f32 0.0, %v2372
  %v2374 = vpop.f32.mrf.mxu0
  %2375 = vmatprep.mubr.f32.mxu0 %v2054
  %2376 = vmatmul.mubr.f32.gmra.mxu0 %v1990
  %v2377 = vpop.f32.mrf.mxu0
  %v2378 = vadd.f32 0.0, %v2377
  %v2379 = vpop.f32.mrf.mxu0
  %2380 = vmatprep.mubr.f32.mxu0 %v2055
  %2381 = vmatmul.mubr.f32.gmra.mxu0 %v1991
  %v2382 = vpop.f32.mrf.mxu0
  %v2383 = vadd.f32 0.0, %v2382
  %v2384 = vpop.f32.mrf.mxu0
  %2385 = vmatprep.mubr.f32.mxu0 %v2056
  %2386 = vmatmul.mubr.f32.gmra.mxu0 %v1992
  %v2387 = vpop.f32.mrf.mxu0
  %v2388 = vadd.f32 0.0, %v2387
  %v2389 = vpop.f32.mrf.mxu0
  %2390 = vmatprep.mubr.f32.mxu0 %v2057
  %2391 = vmatmul.mubr.f32.gmra.mxu0 %v1993
  %v2392 = vpop.f32.mrf.mxu0
  %v2393 = vadd.f32 0.0, %v2392
  %v2394 = vpop.f32.mrf.mxu0
  %2395 = vmatprep.mubr.f32.mxu0 %v2058
  %2396 = vmatmul.mubr.f32.gmra.mxu0 %v1994
  %v2397 = vpop.f32.mrf.mxu0
  %v2398 = vadd.f32 0.0, %v2397
  %v2399 = vpop.f32.mrf.mxu0
  %2400 = vmatprep.mubr.f32.mxu0 %v2059
  %2401 = vmatmul.mubr.f32.gmra.mxu0 %v1995
  %v2402 = vpop.f32.mrf.mxu0
  %v2403 = vadd.f32 0.0, %v2402
  %v2404 = vpop.f32.mrf.mxu0
  %2405 = vmatprep.mubr.f32.mxu0 %v2060
  %2406 = vmatmul.mubr.f32.gmra.mxu0 %v1996
  %v2407 = vpop.f32.mrf.mxu0
  %v2408 = vadd.f32 0.0, %v2407
  %v2409 = vpop.f32.mrf.mxu0
  %2410 = vmatprep.mubr.f32.mxu0 %v2061
  %2411 = vmatmul.mubr.f32.gmra.mxu0 %v1997
  %v2412 = vpop.f32.mrf.mxu0
  %v2413 = vadd.f32 0.0, %v2412
  %v2414 = vpop.f32.mrf.mxu0
  %2415 = vmatprep.mubr.f32.mxu0 %v2062
  %2416 = vmatmul.mubr.f32.gmra.mxu0 %v1998
  %v2417 = vpop.f32.mrf.mxu0
  %v2418 = vadd.f32 0.0, %v2417
  %v2419 = vpop.f32.mrf.mxu0
  %2420 = vmatprep.mubr.f32.mxu0 %v2063
  %2421 = vmatmul.mubr.f32.gmra.mxu0 %v1999
  %v2422 = vpop.f32.mrf.mxu0
  %v2423 = vadd.f32 0.0, %v2422
  %v2424 = vpop.f32.mrf.mxu0
  %2425 = vmatprep.mubr.f32.mxu0 %v2064
  %2426 = vmatmul.mubr.f32.gmra.mxu0 %v2000
  %v2427 = vpop.f32.mrf.mxu0
  %v2428 = vadd.f32 0.0, %v2427
  %v2429 = vpop.f32.mrf.mxu0
  %2430 = vmatprep.mubr.f32.mxu0 %v2065
  %2431 = vmatmul.mubr.f32.gmra.mxu0 %v2001
  %v2432 = vpop.f32.mrf.mxu0
  %v2433 = vadd.f32 0.0, %v2432
  %v2434 = vpop.f32.mrf.mxu0
  %2435 = vmatprep.mubr.f32.mxu0 %v2066
  %2436 = vmatmul.mubr.f32.gmra.mxu0 %v2002
  %v2437 = vpop.f32.mrf.mxu0
  %v2438 = vadd.f32 0.0, %v2437
  %v2439 = vpop.f32.mrf.mxu0
  %2440 = vmatprep.mubr.f32.mxu0 %v2067
  %2441 = vmatmul.mubr.f32.gmra.mxu0 %v2003
  %v2442 = vpop.f32.mrf.mxu0
  %v2443 = vadd.f32 0.0, %v2442
  %v2444 = vpop.f32.mrf.mxu0
  %2445 = vmatprep.mubr.f32.mxu0 %v2068
  %2446 = vmatmul.mubr.f32.gmra.mxu0 %v2004
  %v2447 = vpop.f32.mrf.mxu0
  %v2448 = vadd.f32 0.0, %v2447
  %v2449 = vpop.f32.mrf.mxu0
  %2450 = vmatprep.mubr.f32.mxu0 %v2069
  %2451 = vmatmul.mubr.f32.gmra.mxu0 %v2005
  %v2452 = vpop.f32.mrf.mxu0
  %v2453 = vadd.f32 0.0, %v2452
  %v2454 = vpop.f32.mrf.mxu0
  %2455 = vmatprep.mubr.f32.mxu0 %v2070
  %2456 = vmatmul.mubr.f32.gmra.mxu0 %v2006
  %v2457 = vpop.f32.mrf.mxu0
  %v2458 = vadd.f32 0.0, %v2457
  %v2459 = vpop.f32.mrf.mxu0
  %2460 = vmatprep.mubr.f32.mxu0 %v2071
  %2461 = vmatmul.mubr.f32.gmra.mxu0 %v2007
  %v2462 = vpop.f32.mrf.mxu0
  %v2463 = vadd.f32 0.0, %v2462
  %v2464 = vpop.f32.mrf.mxu0
  %2465 = vmatprep.mubr.f32.mxu0 %v2072
  %2466 = vmatmul.mubr.f32.gmra.mxu0 %v2008
  %v2467 = vpop.f32.mrf.mxu0
  %v2468 = vadd.f32 0.0, %v2467
  %v2469 = vpop.f32.mrf.mxu0
  %2470 = vmatprep.mubr.f32.mxu0 %v2073
  %2471 = vmatmul.mubr.f32.gmra.mxu0 %v2009
  %v2472 = vpop.f32.mrf.mxu0
  %v2473 = vadd.f32 0.0, %v2472
  %v2474 = vpop.f32.mrf.mxu0
  %2475 = vmatprep.mubr.f32.mxu0 %v2074
  %2476 = vmatmul.mubr.f32.gmra.mxu0 %v2010
  %v2477 = vpop.f32.mrf.mxu0
  %v2478 = vadd.f32 0.0, %v2477
  %v2479 = vpop.f32.mrf.mxu0
  %2480 = vmatprep.mubr.f32.mxu0 %v2075
  %2481 = vmatmul.mubr.f32.gmra.mxu0 %v2011
  %v2482 = vpop.f32.mrf.mxu0
  %v2483 = vadd.f32 0.0, %v2482
  %v2484 = vpop.f32.mrf.mxu0
  %2485 = vmatprep.mubr.f32.mxu0 %v2076
  %2486 = vmatmul.mubr.f32.gmra.mxu0 %v2012
  %v2487 = vpop.f32.mrf.mxu0
  %v2488 = vadd.f32 0.0, %v2487
  %v2489 = vpop.f32.mrf.mxu0
  %2490 = vmatprep.mubr.f32.mxu0 %v2077
  %2491 = vmatmul.mubr.f32.gmra.mxu0 %v2013
  %v2492 = vpop.f32.mrf.mxu0
  %v2493 = vadd.f32 0.0, %v2492
  %v2494 = vpop.f32.mrf.mxu0
  %2495 = vdwg.mxu0
  %v2496 = vadd.f32 %v1885, %v2178
  %v2497 = vadd.f32 %v1886, %v2183
  %v2498 = vadd.f32 %v1887, %v2188
  %v2499 = vadd.f32 %v1888, %v2193
  %v2500 = vadd.f32 %v1889, %v2198
  %v2501 = vadd.f32 %v1890, %v2203
  %v2502 = vadd.f32 %v1891, %v2208
  %v2503 = vadd.f32 %v1892, %v2213
  %v2504 = vadd.f32 %v1893, %v2218
  %v2505 = vadd.f32 %v1894, %v2223
  %v2506 = vadd.f32 %v1895, %v2228
  %v2507 = vadd.f32 %v1896, %v2233
  %v2508 = vadd.f32 %v1897, %v2238
  %v2509 = vadd.f32 %v1898, %v2243
  %v2510 = vadd.f32 %v1899, %v2248
  %v2511 = vadd.f32 %v1900, %v2253
  %v2512 = vadd.f32 %v1901, %v2258
  %v2513 = vadd.f32 %v1902, %v2263
  %v2514 = vadd.f32 %v1903, %v2268
  %v2515 = vadd.f32 %v1904, %v2273
  %v2516 = vadd.f32 %v1905, %v2278
  %v2517 = vadd.f32 %v1906, %v2283
  %v2518 = vadd.f32 %v1907, %v2288
  %v2519 = vadd.f32 %v1908, %v2293
  %v2520 = vadd.f32 %v1909, %v2298
  %v2521 = vadd.f32 %v1910, %v2303
  %v2522 = vadd.f32 %v1911, %v2308
  %v2523 = vadd.f32 %v1912, %v2313
  %v2524 = vadd.f32 %v1913, %v2318
  %v2525 = vadd.f32 %v1914, %v2323
  %v2526 = vadd.f32 %v1915, %v2328
  %v2527 = vadd.f32 %v1916, %v2333
  %v2528 = vadd.f32 %v1917, %v2338
  %v2529 = vadd.f32 %v1918, %v2343
  %v2530 = vadd.f32 %v1919, %v2348
  %v2531 = vadd.f32 %v1920, %v2353
  %v2532 = vadd.f32 %v1921, %v2358
  %v2533 = vadd.f32 %v1922, %v2363
  %v2534 = vadd.f32 %v1923, %v2368
  %v2535 = vadd.f32 %v1924, %v2373
  %v2536 = vadd.f32 %v1925, %v2378
  %v2537 = vadd.f32 %v1926, %v2383
  %v2538 = vadd.f32 %v1927, %v2388
  %v2539 = vadd.f32 %v1928, %v2393
  %v2540 = vadd.f32 %v1929, %v2398
  %v2541 = vadd.f32 %v1930, %v2403
  %v2542 = vadd.f32 %v1931, %v2408
  %v2543 = vadd.f32 %v1932, %v2413
  %v2544 = vadd.f32 %v1933, %v2418
  %v2545 = vadd.f32 %v1934, %v2423
  %v2546 = vadd.f32 %v1935, %v2428
  %v2547 = vadd.f32 %v1936, %v2433
  %v2548 = vadd.f32 %v1937, %v2438
  %v2549 = vadd.f32 %v1938, %v2443
  %v2550 = vadd.f32 %v1939, %v2448
  %v2551 = vadd.f32 %v1940, %v2453
  %v2552 = vadd.f32 %v1941, %v2458
  %v2553 = vadd.f32 %v1942, %v2463
  %v2554 = vadd.f32 %v1943, %v2468
  %v2555 = vadd.f32 %v1944, %v2473
  %v2556 = vadd.f32 %v1945, %v2478
  %v2557 = vadd.f32 %v1946, %v2483
  %v2558 = vadd.f32 %v1947, %v2488
  %v2559 = vadd.f32 %v1948, %v2493
  %v2560 = vld [vmem:[%s1949 + $0x9] sm:$0xff]
  %v2561 = vld [vmem:[%s1949 + $0x11] sm:$0xff]
  %v2562 = vld [vmem:[%s1949 + $0x29] sm:$0xff]
  %v2563 = vld [vmem:[%s1949 + $0x31] sm:$0xff]
  %v2564 = vld [vmem:[%s1949 + $0x49] sm:$0xff]
  %v2565 = vld [vmem:[%s1949 + $0x51] sm:$0xff]
  %v2566 = vld [vmem:[%s1949 + $0x69] sm:$0xff]
  %v2567 = vld [vmem:[%s1949 + $0x71] sm:$0xff]
  %v2568 = vld [vmem:[%s1949 + $0x89] sm:$0xff]
  %v2569 = vld [vmem:[%s1949 + $0x91] sm:$0xff]
  %v2570 = vld [vmem:[%s1949 + $0xa9] sm:$0xff]
  %v2571 = vld [vmem:[%s1949 + $0xb1] sm:$0xff]
  %v2572 = vld [vmem:[%s1949 + $0xc9] sm:$0xff]
  %v2573 = vld [vmem:[%s1949 + $0xd1] sm:$0xff]
  %v2574 = vld [vmem:[%s1949 + $0xe9] sm:$0xff]
  %v2575 = vld [vmem:[%s1949 + $0xf1] sm:$0xff]
  %v2576 = vld [vmem:[%s1949 + $0x109] sm:$0xff]
  %v2577 = vld [vmem:[%s1949 + $0x111] sm:$0xff]
  %v2578 = vld [vmem:[%s1949 + $0x129] sm:$0xff]
  %v2579 = vld [vmem:[%s1949 + $0x131] sm:$0xff]
  %v2580 = vld [vmem:[%s1949 + $0x149] sm:$0xff]
  %v2581 = vld [vmem:[%s1949 + $0x151] sm:$0xff]
  %v2582 = vld [vmem:[%s1949 + $0x169] sm:$0xff]
  %v2583 = vld [vmem:[%s1949 + $0x171] sm:$0xff]
  %v2584 = vld [vmem:[%s1949 + $0x189] sm:$0xff]
  %v2585 = vld [vmem:[%s1949 + $0x191] sm:$0xff]
  %v2586 = vld [vmem:[%s1949 + $0x1a9] sm:$0xff]
  %v2587 = vld [vmem:[%s1949 + $0x1b1] sm:$0xff]
  %v2588 = vld [vmem:[%s1949 + $0x1c9] sm:$0xff]
  %v2589 = vld [vmem:[%s1949 + $0x1d1] sm:$0xff]
  %v2590 = vld [vmem:[%s1949 + $0x1e9] sm:$0xff]
  %v2591 = vld [vmem:[%s1949 + $0x1f1] sm:$0xff]
  %v2592 = vld [vmem:[%s1949 + $0x249] sm:$0xff]
  %v2593 = vld [vmem:[%s1949 + $0x251] sm:$0xff]
  %v2594 = vld [vmem:[%s1949 + $0x269] sm:$0xff]
  %v2595 = vld [vmem:[%s1949 + $0x271] sm:$0xff]
  %v2596 = vld [vmem:[%s1949 + $0x289] sm:$0xff]
  %v2597 = vld [vmem:[%s1949 + $0x291] sm:$0xff]
  %v2598 = vld [vmem:[%s1949 + $0x2a9] sm:$0xff]
  %v2599 = vld [vmem:[%s1949 + $0x2b1] sm:$0xff]
  %v2600 = vld [vmem:[%s1949 + $0x2c9] sm:$0xff]
  %v2601 = vld [vmem:[%s1949 + $0x2d1] sm:$0xff]
  %v2602 = vld [vmem:[%s1949 + $0x2e9] sm:$0xff]
  %v2603 = vld [vmem:[%s1949 + $0x2f1] sm:$0xff]
  %v2604 = vld [vmem:[%s1949 + $0x309] sm:$0xff]
  %v2605 = vld [vmem:[%s1949 + $0x311] sm:$0xff]
  %v2606 = vld [vmem:[%s1949 + $0x329] sm:$0xff]
  %v2607 = vld [vmem:[%s1949 + $0x331] sm:$0xff]
  %v2608 = vld [vmem:[%s1949 + $0x349] sm:$0xff]
  %v2609 = vld [vmem:[%s1949 + $0x351] sm:$0xff]
  %v2610 = vld [vmem:[%s1949 + $0x369] sm:$0xff]
  %v2611 = vld [vmem:[%s1949 + $0x371] sm:$0xff]
  %v2612 = vld [vmem:[%s1949 + $0x389] sm:$0xff]
  %v2613 = vld [vmem:[%s1949 + $0x391] sm:$0xff]
  %v2614 = vld [vmem:[%s1949 + $0x3a9] sm:$0xff]
  %v2615 = vld [vmem:[%s1949 + $0x3b1] sm:$0xff]
  %v2616 = vld [vmem:[%s1949 + $0x3c9] sm:$0xff]
  %v2617 = vld [vmem:[%s1949 + $0x3d1] sm:$0xff]
  %v2618 = vld [vmem:[%s1949 + $0x3e9] sm:$0xff]
  %v2619 = vld [vmem:[%s1949 + $0x3f1] sm:$0xff]
  %v2620 = vld [vmem:[%s1949 + $0x409] sm:$0xff]
  %v2621 = vld [vmem:[%s1949 + $0x411] sm:$0xff]
  %v2622 = vld [vmem:[%s1949 + $0x429] sm:$0xff]
  %v2623 = vld [vmem:[%s1949 + $0x431] sm:$0xff]
  %v2624 = vld [vmem:[%s3] sm:$0xff]
  %v2625 = vld [vmem:[%s3 + $0x8] sm:$0xff]
  %v2626 = vld [vmem:[%s3 + $0x10] sm:$0xff]
  %v2627 = vld [vmem:[%s3 + $0x18] sm:$0xff]
  %v2628 = vld [vmem:[%s3 + $0x20] sm:$0xff]
  %v2629 = vld [vmem:[%s3 + $0x28] sm:$0xff]
  %v2630 = vld [vmem:[%s3 + $0x30] sm:$0xff]
  %v2631 = vld [vmem:[%s3 + $0x38] sm:$0xff]
  %v2632 = vld [vmem:[%s3 + $0x40] sm:$0xff]
  %v2633 = vld [vmem:[%s3 + $0x48] sm:$0xff]
  %v2634 = vld [vmem:[%s3 + $0x50] sm:$0xff]
  %v2635 = vld [vmem:[%s3 + $0x58] sm:$0xff]
  %v2636 = vld [vmem:[%s3 + $0x60] sm:$0xff]
  %v2637 = vld [vmem:[%s3 + $0x68] sm:$0xff]
  %v2638 = vld [vmem:[%s3 + $0x70] sm:$0xff]
  %v2639 = vld [vmem:[%s3 + $0x78] sm:$0xff]
  %2640 = vmatprep.subr.mxu0 0.0
  %2641 = vmatpush1.msra.mxu0 %v2639
  %2642 = vmatprep.subr.mxu0 0.0
  %2643 = vmatpush1.msra.mxu0 %v2638
  %2644 = vmatprep.subr.mxu0 0.0
  %2645 = vmatpush1.msra.mxu0 %v2637
  %2646 = vmatprep.subr.mxu0 0.0
  %2647 = vmatpush1.msra.mxu0 %v2636
  %2648 = vmatprep.subr.mxu0 0.0
  %2649 = vmatpush1.msra.mxu0 %v2635
  %2650 = vmatprep.subr.mxu0 0.0
  %2651 = vmatpush1.msra.mxu0 %v2634
  %2652 = vmatprep.subr.mxu0 0.0
  %2653 = vmatpush1.msra.mxu0 %v2633
  %2654 = vmatprep.subr.mxu0 0.0
  %2655 = vmatpush1.msra.mxu0 %v2632
  %2656 = vmatprep.subr.mxu0 0.0
  %2657 = vmatpush1.msra.mxu0 %v2631
  %2658 = vmatprep.subr.mxu0 0.0
  %2659 = vmatpush1.msra.mxu0 %v2630
  %2660 = vmatprep.subr.mxu0 0.0
  %2661 = vmatpush1.msra.mxu0 %v2629
  %2662 = vmatprep.subr.mxu0 0.0
  %2663 = vmatpush1.msra.mxu0 %v2628
  %2664 = vmatprep.subr.mxu0 0.0
  %2665 = vmatpush1.msra.mxu0 %v2627
  %2666 = vmatprep.subr.mxu0 0.0
  %2667 = vmatpush1.msra.mxu0 %v2626
  %2668 = vmatprep.subr.mxu0 0.0
  %2669 = vmatpush1.msra.mxu0 %v2625
  %2670 = vmatprep.subr.mxu0 0.0
  %2671 = vmatpush1.msra.mxu0 %v2624
  %2672 = vmatprep.subr.mxu0 0.0
  %2673 = vmatpush2.msra.mxu0 0.0
  %2674 = vmatprep.subr.mxu0 0.0
  %2675 = vmatpush2.msra.mxu0 0.0
  %2676 = vmatprep.subr.mxu0 0.0
  %2677 = vmatpush2.msra.mxu0 0.0
  %2678 = vmatprep.subr.mxu0 0.0
  %2679 = vmatpush2.msra.mxu0 0.0
  %2680 = vmatprep.subr.mxu0 0.0
  %2681 = vmatpush2.msra.mxu0 0.0
  %2682 = vmatprep.subr.mxu0 0.0
  %2683 = vmatpush2.msra.mxu0 0.0
  %2684 = vmatprep.subr.mxu0 0.0
  %2685 = vmatpush2.msra.mxu0 0.0
  %2686 = vmatprep.subr.mxu0 0.0
  %2687 = vmatpush2.msra.mxu0 0.0
  %2688 = vmatprep.subr.mxu0 0.0
  %2689 = vmatpush2.msra.mxu0 0.0
  %2690 = vmatprep.subr.mxu0 0.0
  %2691 = vmatpush2.msra.mxu0 0.0
  %2692 = vmatprep.subr.mxu0 0.0
  %2693 = vmatpush2.msra.mxu0 0.0
  %2694 = vmatprep.subr.mxu0 0.0
  %2695 = vmatpush2.msra.mxu0 0.0
  %2696 = vmatprep.subr.mxu0 0.0
  %2697 = vmatpush2.msra.mxu0 0.0
  %2698 = vmatprep.subr.mxu0 0.0
  %2699 = vmatpush2.msra.mxu0 0.0
  %2700 = vmatprep.subr.mxu0 0.0
  %2701 = vmatpush2.msra.mxu0 0.0
  %2702 = vmatprep.subr.mxu0 0.0
  %2703 = vmatpush2.msra.mxu0 0.0
  %2704 = vmatprep.mubr.f32.mxu0 0.0
  %2705 = vmatmul.mubr.f32.gmra.mxu0 %v2560
  %v2706 = vpop.f32.mrf.mxu0
  %v2707 = vadd.f32 0.0, %v2706
  %v2708 = vpop.f32.mrf.mxu0
  %2709 = vmatprep.mubr.f32.mxu0 0.0
  %2710 = vmatmul.mubr.f32.gmra.mxu0 %v2561
  %v2711 = vpop.f32.mrf.mxu0
  %v2712 = vadd.f32 0.0, %v2711
  %v2713 = vpop.f32.mrf.mxu0
  %2714 = vmatprep.mubr.f32.mxu0 0.0
  %2715 = vmatmul.mubr.f32.gmra.mxu0 %v2562
  %v2716 = vpop.f32.mrf.mxu0
  %v2717 = vadd.f32 0.0, %v2716
  %v2718 = vpop.f32.mrf.mxu0
  %2719 = vmatprep.mubr.f32.mxu0 0.0
  %2720 = vmatmul.mubr.f32.gmra.mxu0 %v2563
  %v2721 = vpop.f32.mrf.mxu0
  %v2722 = vadd.f32 0.0, %v2721
  %v2723 = vpop.f32.mrf.mxu0
  %2724 = vmatprep.mubr.f32.mxu0 0.0
  %2725 = vmatmul.mubr.f32.gmra.mxu0 %v2564
  %v2726 = vpop.f32.mrf.mxu0
  %v2727 = vadd.f32 0.0, %v2726
  %v2728 = vpop.f32.mrf.mxu0
  %2729 = vmatprep.mubr.f32.mxu0 0.0
  %2730 = vmatmul.mubr.f32.gmra.mxu0 %v2565
  %v2731 = vpop.f32.mrf.mxu0
  %v2732 = vadd.f32 0.0, %v2731
  %v2733 = vpop.f32.mrf.mxu0
  %2734 = vmatprep.mubr.f32.mxu0 0.0
  %2735 = vmatmul.mubr.f32.gmra.mxu0 %v2566
  %v2736 = vpop.f32.mrf.mxu0
  %v2737 = vadd.f32 0.0, %v2736
  %v2738 = vpop.f32.mrf.mxu0
  %2739 = vmatprep.mubr.f32.mxu0 0.0
  %2740 = vmatmul.mubr.f32.gmra.mxu0 %v2567
  %v2741 = vpop.f32.mrf.mxu0
  %v2742 = vadd.f32 0.0, %v2741
  %v2743 = vpop.f32.mrf.mxu0
  %2744 = vmatprep.mubr.f32.mxu0 0.0
  %2745 = vmatmul.mubr.f32.gmra.mxu0 %v2568
  %v2746 = vpop.f32.mrf.mxu0
  %v2747 = vadd.f32 0.0, %v2746
  %v2748 = vpop.f32.mrf.mxu0
  %2749 = vmatprep.mubr.f32.mxu0 0.0
  %2750 = vmatmul.mubr.f32.gmra.mxu0 %v2569
  %v2751 = vpop.f32.mrf.mxu0
  %v2752 = vadd.f32 0.0, %v2751
  %v2753 = vpop.f32.mrf.mxu0
  %2754 = vmatprep.mubr.f32.mxu0 0.0
  %2755 = vmatmul.mubr.f32.gmra.mxu0 %v2570
  %v2756 = vpop.f32.mrf.mxu0
  %v2757 = vadd.f32 0.0, %v2756
  %v2758 = vpop.f32.mrf.mxu0
  %2759 = vmatprep.mubr.f32.mxu0 0.0
  %2760 = vmatmul.mubr.f32.gmra.mxu0 %v2571
  %v2761 = vpop.f32.mrf.mxu0
  %v2762 = vadd.f32 0.0, %v2761
  %v2763 = vpop.f32.mrf.mxu0
  %2764 = vmatprep.mubr.f32.mxu0 0.0
  %2765 = vmatmul.mubr.f32.gmra.mxu0 %v2572
  %v2766 = vpop.f32.mrf.mxu0
  %v2767 = vadd.f32 0.0, %v2766
  %v2768 = vpop.f32.mrf.mxu0
  %2769 = vmatprep.mubr.f32.mxu0 0.0
  %2770 = vmatmul.mubr.f32.gmra.mxu0 %v2573
  %v2771 = vpop.f32.mrf.mxu0
  %v2772 = vadd.f32 0.0, %v2771
  %v2773 = vpop.f32.mrf.mxu0
  %2774 = vmatprep.mubr.f32.mxu0 0.0
  %2775 = vmatmul.mubr.f32.gmra.mxu0 %v2574
  %v2776 = vpop.f32.mrf.mxu0
  %v2777 = vadd.f32 0.0, %v2776
  %v2778 = vpop.f32.mrf.mxu0
  %2779 = vmatprep.mubr.f32.mxu0 0.0
  %2780 = vmatmul.mubr.f32.gmra.mxu0 %v2575
  %v2781 = vpop.f32.mrf.mxu0
  %v2782 = vadd.f32 0.0, %v2781
  %v2783 = vpop.f32.mrf.mxu0
  %2784 = vmatprep.mubr.f32.mxu0 0.0
  %2785 = vmatmul.mubr.f32.gmra.mxu0 %v2576
  %v2786 = vpop.f32.mrf.mxu0
  %v2787 = vadd.f32 0.0, %v2786
  %v2788 = vpop.f32.mrf.mxu0
  %2789 = vmatprep.mubr.f32.mxu0 0.0
  %2790 = vmatmul.mubr.f32.gmra.mxu0 %v2577
  %v2791 = vpop.f32.mrf.mxu0
  %v2792 = vadd.f32 0.0, %v2791
  %v2793 = vpop.f32.mrf.mxu0
  %2794 = vmatprep.mubr.f32.mxu0 0.0
  %2795 = vmatmul.mubr.f32.gmra.mxu0 %v2578
  %v2796 = vpop.f32.mrf.mxu0
  %v2797 = vadd.f32 0.0, %v2796
  %v2798 = vpop.f32.mrf.mxu0
  %2799 = vmatprep.mubr.f32.mxu0 0.0
  %2800 = vmatmul.mubr.f32.gmra.mxu0 %v2579
  %v2801 = vpop.f32.mrf.mxu0
  %v2802 = vadd.f32 0.0, %v2801
  %v2803 = vpop.f32.mrf.mxu0
  %2804 = vmatprep.mubr.f32.mxu0 0.0
  %2805 = vmatmul.mubr.f32.gmra.mxu0 %v2580
  %v2806 = vpop.f32.mrf.mxu0
  %v2807 = vadd.f32 0.0, %v2806
  %v2808 = vpop.f32.mrf.mxu0
  %2809 = vmatprep.mubr.f32.mxu0 0.0
  %2810 = vmatmul.mubr.f32.gmra.mxu0 %v2581
  %v2811 = vpop.f32.mrf.mxu0
  %v2812 = vadd.f32 0.0, %v2811
  %v2813 = vpop.f32.mrf.mxu0
  %2814 = vmatprep.mubr.f32.mxu0 0.0
  %2815 = vmatmul.mubr.f32.gmra.mxu0 %v2582
  %v2816 = vpop.f32.mrf.mxu0
  %v2817 = vadd.f32 0.0, %v2816
  %v2818 = vpop.f32.mrf.mxu0
  %2819 = vmatprep.mubr.f32.mxu0 0.0
  %2820 = vmatmul.mubr.f32.gmra.mxu0 %v2583
  %v2821 = vpop.f32.mrf.mxu0
  %v2822 = vadd.f32 0.0, %v2821
  %v2823 = vpop.f32.mrf.mxu0
  %2824 = vmatprep.mubr.f32.mxu0 0.0
  %2825 = vmatmul.mubr.f32.gmra.mxu0 %v2584
  %v2826 = vpop.f32.mrf.mxu0
  %v2827 = vadd.f32 0.0, %v2826
  %v2828 = vpop.f32.mrf.mxu0
  %2829 = vmatprep.mubr.f32.mxu0 0.0
  %2830 = vmatmul.mubr.f32.gmra.mxu0 %v2585
  %v2831 = vpop.f32.mrf.mxu0
  %v2832 = vadd.f32 0.0, %v2831
  %v2833 = vpop.f32.mrf.mxu0
  %2834 = vmatprep.mubr.f32.mxu0 0.0
  %2835 = vmatmul.mubr.f32.gmra.mxu0 %v2586
  %v2836 = vpop.f32.mrf.mxu0
  %v2837 = vadd.f32 0.0, %v2836
  %v2838 = vpop.f32.mrf.mxu0
  %2839 = vmatprep.mubr.f32.mxu0 0.0
  %2840 = vmatmul.mubr.f32.gmra.mxu0 %v2587
  %v2841 = vpop.f32.mrf.mxu0
  %v2842 = vadd.f32 0.0, %v2841
  %v2843 = vpop.f32.mrf.mxu0
  %2844 = vmatprep.mubr.f32.mxu0 0.0
  %2845 = vmatmul.mubr.f32.gmra.mxu0 %v2588
  %v2846 = vpop.f32.mrf.mxu0
  %v2847 = vadd.f32 0.0, %v2846
  %v2848 = vpop.f32.mrf.mxu0
  %2849 = vmatprep.mubr.f32.mxu0 0.0
  %2850 = vmatmul.mubr.f32.gmra.mxu0 %v2589
  %v2851 = vpop.f32.mrf.mxu0
  %v2852 = vadd.f32 0.0, %v2851
  %v2853 = vpop.f32.mrf.mxu0
  %2854 = vmatprep.mubr.f32.mxu0 0.0
  %2855 = vmatmul.mubr.f32.gmra.mxu0 %v2590
  %v2856 = vpop.f32.mrf.mxu0
  %v2857 = vadd.f32 0.0, %v2856
  %v2858 = vpop.f32.mrf.mxu0
  %2859 = vmatprep.mubr.f32.mxu0 0.0
  %2860 = vmatmul.mubr.f32.gmra.mxu0 %v2591
  %v2861 = vpop.f32.mrf.mxu0
  %v2862 = vadd.f32 0.0, %v2861
  %v2863 = vpop.f32.mrf.mxu0
  %2864 = vmatprep.mubr.f32.mxu0 0.0
  %2865 = vmatmul.mubr.f32.gmra.mxu0 %v2592
  %v2866 = vpop.f32.mrf.mxu0
  %v2867 = vadd.f32 0.0, %v2866
  %v2868 = vpop.f32.mrf.mxu0
  %2869 = vmatprep.mubr.f32.mxu0 0.0
  %2870 = vmatmul.mubr.f32.gmra.mxu0 %v2593
  %v2871 = vpop.f32.mrf.mxu0
  %v2872 = vadd.f32 0.0, %v2871
  %v2873 = vpop.f32.mrf.mxu0
  %2874 = vmatprep.mubr.f32.mxu0 0.0
  %2875 = vmatmul.mubr.f32.gmra.mxu0 %v2594
  %v2876 = vpop.f32.mrf.mxu0
  %v2877 = vadd.f32 0.0, %v2876
  %v2878 = vpop.f32.mrf.mxu0
  %2879 = vmatprep.mubr.f32.mxu0 0.0
  %2880 = vmatmul.mubr.f32.gmra.mxu0 %v2595
  %v2881 = vpop.f32.mrf.mxu0
  %v2882 = vadd.f32 0.0, %v2881
  %v2883 = vpop.f32.mrf.mxu0
  %2884 = vmatprep.mubr.f32.mxu0 0.0
  %2885 = vmatmul.mubr.f32.gmra.mxu0 %v2596
  %v2886 = vpop.f32.mrf.mxu0
  %v2887 = vadd.f32 0.0, %v2886
  %v2888 = vpop.f32.mrf.mxu0
  %2889 = vmatprep.mubr.f32.mxu0 0.0
  %2890 = vmatmul.mubr.f32.gmra.mxu0 %v2597
  %v2891 = vpop.f32.mrf.mxu0
  %v2892 = vadd.f32 0.0, %v2891
  %v2893 = vpop.f32.mrf.mxu0
  %2894 = vmatprep.mubr.f32.mxu0 0.0
  %2895 = vmatmul.mubr.f32.gmra.mxu0 %v2598
  %v2896 = vpop.f32.mrf.mxu0
  %v2897 = vadd.f32 0.0, %v2896
  %v2898 = vpop.f32.mrf.mxu0
  %2899 = vmatprep.mubr.f32.mxu0 0.0
  %2900 = vmatmul.mubr.f32.gmra.mxu0 %v2599
  %v2901 = vpop.f32.mrf.mxu0
  %v2902 = vadd.f32 0.0, %v2901
  %v2903 = vpop.f32.mrf.mxu0
  %2904 = vmatprep.mubr.f32.mxu0 0.0
  %2905 = vmatmul.mubr.f32.gmra.mxu0 %v2600
  %v2906 = vpop.f32.mrf.mxu0
  %v2907 = vadd.f32 0.0, %v2906
  %v2908 = vpop.f32.mrf.mxu0
  %2909 = vmatprep.mubr.f32.mxu0 0.0
  %2910 = vmatmul.mubr.f32.gmra.mxu0 %v2601
  %v2911 = vpop.f32.mrf.mxu0
  %v2912 = vadd.f32 0.0, %v2911
  %v2913 = vpop.f32.mrf.mxu0
  %2914 = vmatprep.mubr.f32.mxu0 0.0
  %2915 = vmatmul.mubr.f32.gmra.mxu0 %v2602
  %v2916 = vpop.f32.mrf.mxu0
  %v2917 = vadd.f32 0.0, %v2916
  %v2918 = vpop.f32.mrf.mxu0
  %2919 = vmatprep.mubr.f32.mxu0 0.0
  %2920 = vmatmul.mubr.f32.gmra.mxu0 %v2603
  %v2921 = vpop.f32.mrf.mxu0
  %v2922 = vadd.f32 0.0, %v2921
  %v2923 = vpop.f32.mrf.mxu0
  %2924 = vmatprep.mubr.f32.mxu0 0.0
  %2925 = vmatmul.mubr.f32.gmra.mxu0 %v2604
  %v2926 = vpop.f32.mrf.mxu0
  %v2927 = vadd.f32 0.0, %v2926
  %v2928 = vpop.f32.mrf.mxu0
  %2929 = vmatprep.mubr.f32.mxu0 0.0
  %2930 = vmatmul.mubr.f32.gmra.mxu0 %v2605
  %v2931 = vpop.f32.mrf.mxu0
  %v2932 = vadd.f32 0.0, %v2931
  %v2933 = vpop.f32.mrf.mxu0
  %2934 = vmatprep.mubr.f32.mxu0 0.0
  %2935 = vmatmul.mubr.f32.gmra.mxu0 %v2606
  %v2936 = vpop.f32.mrf.mxu0
  %v2937 = vadd.f32 0.0, %v2936
  %v2938 = vpop.f32.mrf.mxu0
  %2939 = vmatprep.mubr.f32.mxu0 0.0
  %2940 = vmatmul.mubr.f32.gmra.mxu0 %v2607
  %v2941 = vpop.f32.mrf.mxu0
  %v2942 = vadd.f32 0.0, %v2941
  %v2943 = vpop.f32.mrf.mxu0
  %2944 = vmatprep.mubr.f32.mxu0 0.0
  %2945 = vmatmul.mubr.f32.gmra.mxu0 %v2608
  %v2946 = vpop.f32.mrf.mxu0
  %v2947 = vadd.f32 0.0, %v2946
  %v2948 = vpop.f32.mrf.mxu0
  %2949 = vmatprep.mubr.f32.mxu0 0.0
  %2950 = vmatmul.mubr.f32.gmra.mxu0 %v2609
  %v2951 = vpop.f32.mrf.mxu0
  %v2952 = vadd.f32 0.0, %v2951
  %v2953 = vpop.f32.mrf.mxu0
  %2954 = vmatprep.mubr.f32.mxu0 0.0
  %2955 = vmatmul.mubr.f32.gmra.mxu0 %v2610
  %v2956 = vpop.f32.mrf.mxu0
  %v2957 = vadd.f32 0.0, %v2956
  %v2958 = vpop.f32.mrf.mxu0
  %2959 = vmatprep.mubr.f32.mxu0 0.0
  %2960 = vmatmul.mubr.f32.gmra.mxu0 %v2611
  %v2961 = vpop.f32.mrf.mxu0
  %v2962 = vadd.f32 0.0, %v2961
  %v2963 = vpop.f32.mrf.mxu0
  %2964 = vmatprep.mubr.f32.mxu0 0.0
  %2965 = vmatmul.mubr.f32.gmra.mxu0 %v2612
  %v2966 = vpop.f32.mrf.mxu0
  %v2967 = vadd.f32 0.0, %v2966
  %v2968 = vpop.f32.mrf.mxu0
  %2969 = vmatprep.mubr.f32.mxu0 0.0
  %2970 = vmatmul.mubr.f32.gmra.mxu0 %v2613
  %v2971 = vpop.f32.mrf.mxu0
  %v2972 = vadd.f32 0.0, %v2971
  %v2973 = vpop.f32.mrf.mxu0
  %2974 = vmatprep.mubr.f32.mxu0 0.0
  %2975 = vmatmul.mubr.f32.gmra.mxu0 %v2614
  %v2976 = vpop.f32.mrf.mxu0
  %v2977 = vadd.f32 0.0, %v2976
  %v2978 = vpop.f32.mrf.mxu0
  %2979 = vmatprep.mubr.f32.mxu0 0.0
  %2980 = vmatmul.mubr.f32.gmra.mxu0 %v2615
  %v2981 = vpop.f32.mrf.mxu0
  %v2982 = vadd.f32 0.0, %v2981
  %v2983 = vpop.f32.mrf.mxu0
  %2984 = vmatprep.mubr.f32.mxu0 0.0
  %2985 = vmatmul.mubr.f32.gmra.mxu0 %v2616
  %v2986 = vpop.f32.mrf.mxu0
  %v2987 = vadd.f32 0.0, %v2986
  %v2988 = vpop.f32.mrf.mxu0
  %2989 = vmatprep.mubr.f32.mxu0 0.0
  %2990 = vmatmul.mubr.f32.gmra.mxu0 %v2617
  %v2991 = vpop.f32.mrf.mxu0
  %v2992 = vadd.f32 0.0, %v2991
  %v2993 = vpop.f32.mrf.mxu0
  %2994 = vmatprep.mubr.f32.mxu0 0.0
  %2995 = vmatmul.mubr.f32.gmra.mxu0 %v2618
  %v2996 = vpop.f32.mrf.mxu0
  %v2997 = vadd.f32 0.0, %v2996
  %v2998 = vpop.f32.mrf.mxu0
  %2999 = vmatprep.mubr.f32.mxu0 0.0
  %3000 = vmatmul.mubr.f32.gmra.mxu0 %v2619
  %v3001 = vpop.f32.mrf.mxu0
  %v3002 = vadd.f32 0.0, %v3001
  %v3003 = vpop.f32.mrf.mxu0
  %3004 = vmatprep.mubr.f32.mxu0 0.0
  %3005 = vmatmul.mubr.f32.gmra.mxu0 %v2620
  %v3006 = vpop.f32.mrf.mxu0
  %v3007 = vadd.f32 0.0, %v3006
  %v3008 = vpop.f32.mrf.mxu0
  %3009 = vmatprep.mubr.f32.mxu0 0.0
  %3010 = vmatmul.mubr.f32.gmra.mxu0 %v2621
  %v3011 = vpop.f32.mrf.mxu0
  %v3012 = vadd.f32 0.0, %v3011
  %v3013 = vpop.f32.mrf.mxu0
  %3014 = vmatprep.mubr.f32.mxu0 0.0
  %3015 = vmatmul.mubr.f32.gmra.mxu0 %v2622
  %v3016 = vpop.f32.mrf.mxu0
  %v3017 = vadd.f32 0.0, %v3016
  %v3018 = vpop.f32.mrf.mxu0
  %3019 = vmatprep.mubr.f32.mxu0 0.0
  %3020 = vmatmul.mubr.f32.gmra.mxu0 %v2623
  %v3021 = vpop.f32.mrf.mxu0
  %v3022 = vadd.f32 0.0, %v3021
  %v3023 = vpop.f32.mrf.mxu0
  %3024 = vdwg.mxu0
  %v3025 = vadd.f32 %v2496, %v2707
  %v3026 = vadd.f32 %v2497, %v2712
  %v3027 = vadd.f32 %v2498, %v2717
  %v3028 = vadd.f32 %v2499, %v2722
  %v3029 = vadd.f32 %v2500, %v2727
  %v3030 = vadd.f32 %v2501, %v2732
  %v3031 = vadd.f32 %v2502, %v2737
  %v3032 = vadd.f32 %v2503, %v2742
  %v3033 = vadd.f32 %v2504, %v2747
  %v3034 = vadd.f32 %v2505, %v2752
  %v3035 = vadd.f32 %v2506, %v2757
  %v3036 = vadd.f32 %v2507, %v2762
  %v3037 = vadd.f32 %v2508, %v2767
  %v3038 = vadd.f32 %v2509, %v2772
  %v3039 = vadd.f32 %v2510, %v2777
  %v3040 = vadd.f32 %v2511, %v2782
  %v3041 = vadd.f32 %v2512, %v2787
  %v3042 = vadd.f32 %v2513, %v2792
  %v3043 = vadd.f32 %v2514, %v2797
  %v3044 = vadd.f32 %v2515, %v2802
  %v3045 = vadd.f32 %v2516, %v2807
  %v3046 = vadd.f32 %v2517, %v2812
  %v3047 = vadd.f32 %v2518, %v2817
  %v3048 = vadd.f32 %v2519, %v2822
  %v3049 = vadd.f32 %v2520, %v2827
  %v3050 = vadd.f32 %v2521, %v2832
  %v3051 = vadd.f32 %v2522, %v2837
  %v3052 = vadd.f32 %v2523, %v2842
  %v3053 = vadd.f32 %v2524, %v2847
  %v3054 = vadd.f32 %v2525, %v2852
  %v3055 = vadd.f32 %v2526, %v2857
  %v3056 = vadd.f32 %v2527, %v2862
  %v3057 = vadd.f32 %v2528, %v2867
  %v3058 = vadd.f32 %v2529, %v2872
  %v3059 = vadd.f32 %v2530, %v2877
  %v3060 = vadd.f32 %v2531, %v2882
  %v3061 = vadd.f32 %v2532, %v2887
  %v3062 = vadd.f32 %v2533, %v2892
  %v3063 = vadd.f32 %v2534, %v2897
  %v3064 = vadd.f32 %v2535, %v2902
  %v3065 = vadd.f32 %v2536, %v2907
  %v3066 = vadd.f32 %v2537, %v2912
  %v3067 = vadd.f32 %v2538, %v2917
  %v3068 = vadd.f32 %v2539, %v2922
  %v3069 = vadd.f32 %v2540, %v2927
  %v3070 = vadd.f32 %v2541, %v2932
  %v3071 = vadd.f32 %v2542, %v2937
  %v3072 = vadd.f32 %v2543, %v2942
  %v3073 = vadd.f32 %v2544, %v2947
  %v3074 = vadd.f32 %v2545, %v2952
  %v3075 = vadd.f32 %v2546, %v2957
  %v3076 = vadd.f32 %v2547, %v2962
  %v3077 = vadd.f32 %v2548, %v2967
  %v3078 = vadd.f32 %v2549, %v2972
  %v3079 = vadd.f32 %v2550, %v2977
  %v3080 = vadd.f32 %v2551, %v2982
  %v3081 = vadd.f32 %v2552, %v2987
  %v3082 = vadd.f32 %v2553, %v2992
  %v3083 = vadd.f32 %v2554, %v2997
  %v3084 = vadd.f32 %v2555, %v3002
  %v3085 = vadd.f32 %v2556, %v3007
  %v3086 = vadd.f32 %v2557, %v3012
  %v3087 = vadd.f32 %v2558, %v3017
  %v3088 = vadd.f32 %v2559, %v3022
  %v3089 = vadd.f32 %v3025, %v3026
  %v3090 = vadd.f32 %v3089, %v3027
  %v3091 = vadd.f32 %v3090, %v3028
  %v3092 = vadd.f32 %v3091, %v3029
  %v3093 = vadd.f32 %v3092, %v3030
  %v3094 = vadd.f32 %v3093, %v3031
  %v3095 = vadd.f32 %v3094, %v3032
  %v3096 = vadd.f32 %v3095, %v3033
  %v3097 = vadd.f32 %v3096, %v3034
  %v3098 = vadd.f32 %v3097, %v3035
  %v3099 = vadd.f32 %v3098, %v3036
  %v3100 = vadd.f32 %v3099, %v3037
  %v3101 = vadd.f32 %v3100, %v3038
  %v3102 = vadd.f32 %v3101, %v3039
  %v3103 = vadd.f32 %v3102, %v3040
  %v3104 = vadd.f32 %v3103, %v3041
  %v3105 = vadd.f32 %v3104, %v3042
  %v3106 = vadd.f32 %v3105, %v3043
  %v3107 = vadd.f32 %v3106, %v3044
  %v3108 = vadd.f32 %v3107, %v3045
  %v3109 = vadd.f32 %v3108, %v3046
  %v3110 = vadd.f32 %v3109, %v3047
  %v3111 = vadd.f32 %v3110, %v3048
  %v3112 = vadd.f32 %v3111, %v3049
  %v3113 = vadd.f32 %v3112, %v3050
  %v3114 = vadd.f32 %v3113, %v3051
  %v3115 = vadd.f32 %v3114, %v3052
  %v3116 = vadd.f32 %v3115, %v3053
  %v3117 = vadd.f32 %v3116, %v3054
  %v3118 = vadd.f32 %v3117, %v3055
  %v3119 = vadd.f32 %v3118, %v3056
  %v3120 = vadd.f32 %v3119, %v3057
  %v3121 = vadd.f32 %v3120, %v3058
  %v3122 = vadd.f32 %v3121, %v3059
  %v3123 = vadd.f32 %v3122, %v3060
  %v3124 = vadd.f32 %v3123, %v3061
  %v3125 = vadd.f32 %v3124, %v3062
  %v3126 = vadd.f32 %v3125, %v3063
  %v3127 = vadd.f32 %v3126, %v3064
  %v3128 = vadd.f32 %v3127, %v3065
  %v3129 = vadd.f32 %v3128, %v3066
  %v3130 = vadd.f32 %v3129, %v3067
  %v3131 = vadd.f32 %v3130, %v3068
  %v3132 = vadd.f32 %v3131, %v3069
  %v3133 = vadd.f32 %v3132, %v3070
  %v3134 = vadd.f32 %v3133, %v3071
  %v3135 = vadd.f32 %v3134, %v3072
  %v3136 = vadd.f32 %v3135, %v3073
  %v3137 = vadd.f32 %v3136, %v3074
  %v3138 = vadd.f32 %v3137, %v3075
  %v3139 = vadd.f32 %v3138, %v3076
  %v3140 = vadd.f32 %v3139, %v3077
  %v3141 = vadd.f32 %v3140, %v3078
  %v3142 = vadd.f32 %v3141, %v3079
  %v3143 = vadd.f32 %v3142, %v3080
  %v3144 = vadd.f32 %v3143, %v3081
  %v3145 = vadd.f32 %v3144, %v3082
  %v3146 = vadd.f32 %v3145, %v3083
  %v3147 = vadd.f32 %v3146, %v3084
  %v3148 = vadd.f32 %v3147, %v3085
  %v3149 = vadd.f32 %v3148, %v3086
  %v3150 = vadd.f32 %v3149, %v3087
  %v3151 = vadd.f32 %v3150, %v3088
  %v3152 = vrot.slane %v3151, 4
  %v3153 = vadd.f32 %v3151, %v3152
  %v3154 = vrot.slane %v3153, 2
  %v3155 = vadd.f32 %v3153, %v3154
  %v3156 = vrot.slane %v3155, 1
  %v3157 = vadd.f32 %v3155, %v3156
  %v3158 = vrcp.pop 512.0
  %v3159 = vmul.f32 %v3157, %v3158
  %v3160 = vsub.f32 %v3025, %v3159
  %v3161 = vsub.f32 %v3026, %v3159
  %v3162 = vsub.f32 %v3027, %v3159
  %v3163 = vsub.f32 %v3028, %v3159
  %v3164 = vsub.f32 %v3029, %v3159
  %v3165 = vsub.f32 %v3030, %v3159
  %v3166 = vsub.f32 %v3031, %v3159
  %v3167 = vsub.f32 %v3032, %v3159
  %v3168 = vsub.f32 %v3033, %v3159
  %v3169 = vsub.f32 %v3034, %v3159
  %v3170 = vsub.f32 %v3035, %v3159
  %v3171 = vsub.f32 %v3036, %v3159
  %v3172 = vsub.f32 %v3037, %v3159
  %v3173 = vsub.f32 %v3038, %v3159
  %v3174 = vsub.f32 %v3039, %v3159
  %v3175 = vsub.f32 %v3040, %v3159
  %v3176 = vsub.f32 %v3041, %v3159
  %v3177 = vsub.f32 %v3042, %v3159
  %v3178 = vsub.f32 %v3043, %v3159
  %v3179 = vsub.f32 %v3044, %v3159
  %v3180 = vsub.f32 %v3045, %v3159
  %v3181 = vsub.f32 %v3046, %v3159
  %v3182 = vsub.f32 %v3047, %v3159
  %v3183 = vsub.f32 %v3048, %v3159
  %v3184 = vsub.f32 %v3049, %v3159
  %v3185 = vsub.f32 %v3050, %v3159
  %v3186 = vsub.f32 %v3051, %v3159
  %v3187 = vsub.f32 %v3052, %v3159
  %v3188 = vsub.f32 %v3053, %v3159
  %v3189 = vsub.f32 %v3054, %v3159
  %v3190 = vsub.f32 %v3055, %v3159
  %v3191 = vsub.f32 %v3056, %v3159
  %v3192 = vsub.f32 %v3057, %v3159
  %v3193 = vsub.f32 %v3058, %v3159
  %v3194 = vsub.f32 %v3059, %v3159
  %v3195 = vsub.f32 %v3060, %v3159
  %v3196 = vsub.f32 %v3061, %v3159
  %v3197 = vsub.f32 %v3062, %v3159
  %v3198 = vsub.f32 %v3063, %v3159
  %v3199 = vsub.f32 %v3064, %v3159
  %v3200 = vsub.f32 %v3065, %v3159
  %v3201 = vsub.f32 %v3066, %v3159
  %v3202 = vsub.f32 %v3067, %v3159
  %v3203 = vsub.f32 %v3068, %v3159
  %v3204 = vsub.f32 %v3069, %v3159
  %v3205 = vsub.f32 %v3070, %v3159
  %v3206 = vsub.f32 %v3071, %v3159
  %v3207 = vsub.f32 %v3072, %v3159
  %v3208 = vsub.f32 %v3073, %v3159
  %v3209 = vsub.f32 %v3074, %v3159
  %v3210 = vsub.f32 %v3075, %v3159
  %v3211 = vsub.f32 %v3076, %v3159
  %v3212 = vsub.f32 %v3077, %v3159
  %v3213 = vsub.f32 %v3078, %v3159
  %v3214 = vsub.f32 %v3079, %v3159
  %v3215 = vsub.f32 %v3080, %v3159
  %v3216 = vsub.f32 %v3081, %v3159
  %v3217 = vsub.f32 %v3082, %v3159
  %v3218 = vsub.f32 %v3083, %v3159
  %v3219 = vsub.f32 %v3084, %v3159
  %v3220 = vsub.f32 %v3085, %v3159
  %v3221 = vsub.f32 %v3086, %v3159
  %v3222 = vsub.f32 %v3087, %v3159
  %v3223 = vsub.f32 %v3088, %v3159
  %v3224 = vmul.f32 %v3160, %v3160
  %v3225 = vmul.f32 %v3161, %v3161
  %v3226 = vmul.f32 %v3162, %v3162
  %v3227 = vmul.f32 %v3163, %v3163
  %v3228 = vmul.f32 %v3164, %v3164
  %v3229 = vmul.f32 %v3165, %v3165
  %v3230 = vmul.f32 %v3166, %v3166
  %v3231 = vmul.f32 %v3167, %v3167
  %v3232 = vmul.f32 %v3168, %v3168
  %v3233 = vmul.f32 %v3169, %v3169
  %v3234 = vmul.f32 %v3170, %v3170
  %v3235 = vmul.f32 %v3171, %v3171
  %v3236 = vmul.f32 %v3172, %v3172
  %v3237 = vmul.f32 %v3173, %v3173
  %v3238 = vmul.f32 %v3174, %v3174
  %v3239 = vmul.f32 %v3175, %v3175
  %v3240 = vmul.f32 %v3176, %v3176
  %v3241 = vmul.f32 %v3177, %v3177
  %v3242 = vmul.f32 %v3178, %v3178
  %v3243 = vmul.f32 %v3179, %v3179
  %v3244 = vmul.f32 %v3180, %v3180
  %v3245 = vmul.f32 %v3181, %v3181
  %v3246 = vmul.f32 %v3182, %v3182
  %v3247 = vmul.f32 %v3183, %v3183
  %v3248 = vmul.f32 %v3184, %v3184
  %v3249 = vmul.f32 %v3185, %v3185
  %v3250 = vmul.f32 %v3186, %v3186
  %v3251 = vmul.f32 %v3187, %v3187
  %v3252 = vmul.f32 %v3188, %v3188
  %v3253 = vmul.f32 %v3189, %v3189
  %v3254 = vmul.f32 %v3190, %v3190
  %v3255 = vmul.f32 %v3191, %v3191
  %v3256 = vmul.f32 %v3192, %v3192
  %v3257 = vmul.f32 %v3193, %v3193
  %v3258 = vmul.f32 %v3194, %v3194
  %v3259 = vmul.f32 %v3195, %v3195
  %v3260 = vmul.f32 %v3196, %v3196
  %v3261 = vmul.f32 %v3197, %v3197
  %v3262 = vmul.f32 %v3198, %v3198
  %v3263 = vmul.f32 %v3199, %v3199
  %v3264 = vmul.f32 %v3200, %v3200
  %v3265 = vmul.f32 %v3201, %v3201
  %v3266 = vmul.f32 %v3202, %v3202
  %v3267 = vmul.f32 %v3203, %v3203
  %v3268 = vmul.f32 %v3204, %v3204
  %v3269 = vmul.f32 %v3205, %v3205
  %v3270 = vmul.f32 %v3206, %v3206
  %v3271 = vmul.f32 %v3207, %v3207
  %v3272 = vmul.f32 %v3208, %v3208
  %v3273 = vmul.f32 %v3209, %v3209
  %v3274 = vmul.f32 %v3210, %v3210
  %v3275 = vmul.f32 %v3211, %v3211
  %v3276 = vmul.f32 %v3212, %v3212
  %v3277 = vmul.f32 %v3213, %v3213
  %v3278 = vmul.f32 %v3214, %v3214
  %v3279 = vmul.f32 %v3215, %v3215
  %v3280 = vmul.f32 %v3216, %v3216
  %v3281 = vmul.f32 %v3217, %v3217
  %v3282 = vmul.f32 %v3218, %v3218
  %v3283 = vmul.f32 %v3219, %v3219
  %v3284 = vmul.f32 %v3220, %v3220
  %v3285 = vmul.f32 %v3221, %v3221
  %v3286 = vmul.f32 %v3222, %v3222
  %v3287 = vmul.f32 %v3223, %v3223
  %v3288 = vadd.f32 %v3224, %v3225
  %v3289 = vadd.f32 %v3288, %v3226
  %v3290 = vadd.f32 %v3289, %v3227
  %v3291 = vadd.f32 %v3290, %v3228
  %v3292 = vadd.f32 %v3291, %v3229
  %v3293 = vadd.f32 %v3292, %v3230
  %v3294 = vadd.f32 %v3293, %v3231
  %v3295 = vadd.f32 %v3294, %v3232
  %v3296 = vadd.f32 %v3295, %v3233
  %v3297 = vadd.f32 %v3296, %v3234
  %v3298 = vadd.f32 %v3297, %v3235
  %v3299 = vadd.f32 %v3298, %v3236
  %v3300 = vadd.f32 %v3299, %v3237
  %v3301 = vadd.f32 %v3300, %v3238
  %v3302 = vadd.f32 %v3301, %v3239
  %v3303 = vadd.f32 %v3302, %v3240
  %v3304 = vadd.f32 %v3303, %v3241
  %v3305 = vadd.f32 %v3304, %v3242
  %v3306 = vadd.f32 %v3305, %v3243
  %v3307 = vadd.f32 %v3306, %v3244
  %v3308 = vadd.f32 %v3307, %v3245
  %v3309 = vadd.f32 %v3308, %v3246
  %v3310 = vadd.f32 %v3309, %v3247
  %v3311 = vadd.f32 %v3310, %v3248
  %v3312 = vadd.f32 %v3311, %v3249
  %v3313 = vadd.f32 %v3312, %v3250
  %v3314 = vadd.f32 %v3313, %v3251
  %v3315 = vadd.f32 %v3314, %v3252
  %v3316 = vadd.f32 %v3315, %v3253
  %v3317 = vadd.f32 %v3316, %v3254
  %v3318 = vadd.f32 %v3317, %v3255
  %v3319 = vadd.f32 %v3318, %v3256
  %v3320 = vadd.f32 %v3319, %v3257
  %v3321 = vadd.f32 %v3320, %v3258
  %v3322 = vadd.f32 %v3321, %v3259
  %v3323 = vadd.f32 %v3322, %v3260
  %v3324 = vadd.f32 %v3323, %v3261
  %v3325 = vadd.f32 %v3324, %v3262
  %v3326 = vadd.f32 %v3325, %v3263
  %v3327 = vadd.f32 %v3326, %v3264
  %v3328 = vadd.f32 %v3327, %v3265
  %v3329 = vadd.f32 %v3328, %v3266
  %v3330 = vadd.f32 %v3329, %v3267
  %v3331 = vadd.f32 %v3330, %v3268
  %v3332 = vadd.f32 %v3331, %v3269
  %v3333 = vadd.f32 %v3332, %v3270
  %v3334 = vadd.f32 %v3333, %v3271
  %v3335 = vadd.f32 %v3334, %v3272
  %v3336 = vadd.f32 %v3335, %v3273
  %v3337 = vadd.f32 %v3336, %v3274
  %v3338 = vadd.f32 %v3337, %v3275
  %v3339 = vadd.f32 %v3338, %v3276
  %v3340 = vadd.f32 %v3339, %v3277
  %v3341 = vadd.f32 %v3340, %v3278
  %v3342 = vadd.f32 %v3341, %v3279
  %v3343 = vadd.f32 %v3342, %v3280
  %v3344 = vadd.f32 %v3343, %v3281
  %v3345 = vadd.f32 %v3344, %v3282
  %v3346 = vadd.f32 %v3345, %v3283
  %v3347 = vadd.f32 %v3346, %v3284
  %v3348 = vadd.f32 %v3347, %v3285
  %v3349 = vadd.f32 %v3348, %v3286
  %v3350 = vadd.f32 %v3349, %v3287
  %v3351 = vrot.slane %v3350, 4
  %v3352 = vadd.f32 %v3350, %v3351
  %v3353 = vrot.slane %v3352, 2
  %v3354 = vadd.f32 %v3352, %v3353
  %v3355 = vrot.slane %v3354, 1
  %v3356 = vadd.f32 %v3354, %v3355
  %v3357 = vmul.f32 %v3356, %v3158
  %v3358 = vadd.f32 %v3357, 1e-05
  %v3359 = vrsqrt.pop %v3358
  %v3360 = vmul.f32 %v3359, %v32
  %v3361 = vlaneseq
  %v3362 = vshrl.u32 %v3361, 7
  %v3363 = vsub.s32 0, %v3362
  %v3364 = vrot.slane %v3360, %v3363
  %v3365 = vmul.f32 %v3160, %v3364
  %v3366 = vmul.f32 %v3161, %v3364
  %v3367 = vmul.f32 %v3162, %v3364
  %v3368 = vmul.f32 %v3163, %v3364
  %v3369 = vmul.f32 %v3164, %v3364
  %v3370 = vmul.f32 %v3165, %v3364
  %v3371 = vmul.f32 %v3166, %v3364
  %v3372 = vmul.f32 %v3167, %v3364
  %v3373 = vmul.f32 %v3168, %v3364
  %v3374 = vmul.f32 %v3169, %v3364
  %v3375 = vmul.f32 %v3170, %v3364
  %v3376 = vmul.f32 %v3171, %v3364
  %v3377 = vmul.f32 %v3172, %v3364
  %v3378 = vmul.f32 %v3173, %v3364
  %v3379 = vmul.f32 %v3174, %v3364
  %v3380 = vmul.f32 %v3175, %v3364
  %v3381 = vmul.f32 %v3176, %v3364
  %v3382 = vmul.f32 %v3177, %v3364
  %v3383 = vmul.f32 %v3178, %v3364
  %v3384 = vmul.f32 %v3179, %v3364
  %v3385 = vmul.f32 %v3180, %v3364
  %v3386 = vmul.f32 %v3181, %v3364
  %v3387 = vmul.f32 %v3182, %v3364
  %v3388 = vmul.f32 %v3183, %v3364
  %v3389 = vmul.f32 %v3184, %v3364
  %v3390 = vmul.f32 %v3185, %v3364
  %v3391 = vmul.f32 %v3186, %v3364
  %v3392 = vmul.f32 %v3187, %v3364
  %v3393 = vmul.f32 %v3188, %v3364
  %v3394 = vmul.f32 %v3189, %v3364
  %v3395 = vmul.f32 %v3190, %v3364
  %v3396 = vmul.f32 %v3191, %v3364
  %v3397 = vmul.f32 %v3192, %v3364
  %v3398 = vmul.f32 %v3193, %v3364
  %v3399 = vmul.f32 %v3194, %v3364
  %v3400 = vmul.f32 %v3195, %v3364
  %v3401 = vmul.f32 %v3196, %v3364
  %v3402 = vmul.f32 %v3197, %v3364
  %v3403 = vmul.f32 %v3198, %v3364
  %v3404 = vmul.f32 %v3199, %v3364
  %v3405 = vmul.f32 %v3200, %v3364
  %v3406 = vmul.f32 %v3201, %v3364
  %v3407 = vmul.f32 %v3202, %v3364
  %v3408 = vmul.f32 %v3203, %v3364
  %v3409 = vmul.f32 %v3204, %v3364
  %v3410 = vmul.f32 %v3205, %v3364
  %v3411 = vmul.f32 %v3206, %v3364
  %v3412 = vmul.f32 %v3207, %v3364
  %v3413 = vmul.f32 %v3208, %v3364
  %v3414 = vmul.f32 %v3209, %v3364
  %v3415 = vmul.f32 %v3210, %v3364
  %v3416 = vmul.f32 %v3211, %v3364
  %v3417 = vmul.f32 %v3212, %v3364
  %v3418 = vmul.f32 %v3213, %v3364
  %v3419 = vmul.f32 %v3214, %v3364
  %v3420 = vmul.f32 %v3215, %v3364
  %v3421 = vmul.f32 %v3216, %v3364
  %v3422 = vmul.f32 %v3217, %v3364
  %v3423 = vmul.f32 %v3218, %v3364
  %v3424 = vmul.f32 %v3219, %v3364
  %v3425 = vmul.f32 %v3220, %v3364
  %v3426 = vmul.f32 %v3221, %v3364
  %v3427 = vmul.f32 %v3222, %v3364
  %v3428 = vmul.f32 %v3223, %v3364
  %v3429 = vlaneseq
  %v3430 = vshrl.u32 %v3429, 7
  %v3431 = vsub.s32 0, %v3430
  %v3432 = vrot.slane %v33, %v3431
  %v3433 = vadd.f32 %v3365, %v3432
  %v3434 = vadd.f32 %v3366, %v3432
  %v3435 = vadd.f32 %v3367, %v3432
  %v3436 = vadd.f32 %v3368, %v3432
  %v3437 = vadd.f32 %v3369, %v3432
  %v3438 = vadd.f32 %v3370, %v3432
  %v3439 = vadd.f32 %v3371, %v3432
  %v3440 = vadd.f32 %v3372, %v3432
  %v3441 = vadd.f32 %v3373, %v3432
  %v3442 = vadd.f32 %v3374, %v3432
  %v3443 = vadd.f32 %v3375, %v3432
  %v3444 = vadd.f32 %v3376, %v3432
  %v3445 = vadd.f32 %v3377, %v3432
  %v3446 = vadd.f32 %v3378, %v3432
  %v3447 = vadd.f32 %v3379, %v3432
  %v3448 = vadd.f32 %v3380, %v3432
  %v3449 = vadd.f32 %v3381, %v3432
  %v3450 = vadd.f32 %v3382, %v3432
  %v3451 = vadd.f32 %v3383, %v3432
  %v3452 = vadd.f32 %v3384, %v3432
  %v3453 = vadd.f32 %v3385, %v3432
  %v3454 = vadd.f32 %v3386, %v3432
  %v3455 = vadd.f32 %v3387, %v3432
  %v3456 = vadd.f32 %v3388, %v3432
  %v3457 = vadd.f32 %v3389, %v3432
  %v3458 = vadd.f32 %v3390, %v3432
  %v3459 = vadd.f32 %v3391, %v3432
  %v3460 = vadd.f32 %v3392, %v3432
  %v3461 = vadd.f32 %v3393, %v3432
  %v3462 = vadd.f32 %v3394, %v3432
  %v3463 = vadd.f32 %v3395, %v3432
  %v3464 = vadd.f32 %v3396, %v3432
  %v3465 = vadd.f32 %v3397, %v3432
  %v3466 = vadd.f32 %v3398, %v3432
  %v3467 = vadd.f32 %v3399, %v3432
  %v3468 = vadd.f32 %v3400, %v3432
  %v3469 = vadd.f32 %v3401, %v3432
  %v3470 = vadd.f32 %v3402, %v3432
  %v3471 = vadd.f32 %v3403, %v3432
  %v3472 = vadd.f32 %v3404, %v3432
  %v3473 = vadd.f32 %v3405, %v3432
  %v3474 = vadd.f32 %v3406, %v3432
  %v3475 = vadd.f32 %v3407, %v3432
  %v3476 = vadd.f32 %v3408, %v3432
  %v3477 = vadd.f32 %v3409, %v3432
  %v3478 = vadd.f32 %v3410, %v3432
  %v3479 = vadd.f32 %v3411, %v3432
  %v3480 = vadd.f32 %v3412, %v3432
  %v3481 = vadd.f32 %v3413, %v3432
  %v3482 = vadd.f32 %v3414, %v3432
  %v3483 = vadd.f32 %v3415, %v3432
  %v3484 = vadd.f32 %v3416, %v3432
  %v3485 = vadd.f32 %v3417, %v3432
  %v3486 = vadd.f32 %v3418, %v3432
  %v3487 = vadd.f32 %v3419, %v3432
  %v3488 = vadd.f32 %v3420, %v3432
  %v3489 = vadd.f32 %v3421, %v3432
  %v3490 = vadd.f32 %v3422, %v3432
  %v3491 = vadd.f32 %v3423, %v3432
  %v3492 = vadd.f32 %v3424, %v3432
  %v3493 = vadd.f32 %v3425, %v3432
  %v3494 = vadd.f32 %v3426, %v3432
  %v3495 = vadd.f32 %v3427, %v3432
  %v3496 = vadd.f32 %v3428, %v3432
  %v3497 = vxor.u32 %v3433, 2147483648
  %v3498 = vxor.u32 %v3434, 2147483648
  %v3499 = vxor.u32 %v3435, 2147483648
  %v3500 = vxor.u32 %v3436, 2147483648
  %v3501 = vxor.u32 %v3437, 2147483648
  %v3502 = vxor.u32 %v3438, 2147483648
  %v3503 = vxor.u32 %v3439, 2147483648
  %v3504 = vxor.u32 %v3440, 2147483648
  %v3505 = vxor.u32 %v3441, 2147483648
  %v3506 = vxor.u32 %v3442, 2147483648
  %v3507 = vxor.u32 %v3443, 2147483648
  %v3508 = vxor.u32 %v3444, 2147483648
  %v3509 = vxor.u32 %v3445, 2147483648
  %v3510 = vxor.u32 %v3446, 2147483648
  %v3511 = vxor.u32 %v3447, 2147483648
  %v3512 = vxor.u32 %v3448, 2147483648
  %v3513 = vxor.u32 %v3449, 2147483648
  %v3514 = vxor.u32 %v3450, 2147483648
  %v3515 = vxor.u32 %v3451, 2147483648
  %v3516 = vxor.u32 %v3452, 2147483648
  %v3517 = vxor.u32 %v3453, 2147483648
  %v3518 = vxor.u32 %v3454, 2147483648
  %v3519 = vxor.u32 %v3455, 2147483648
  %v3520 = vxor.u32 %v3456, 2147483648
  %v3521 = vxor.u32 %v3457, 2147483648
  %v3522 = vxor.u32 %v3458, 2147483648
  %v3523 = vxor.u32 %v3459, 2147483648
  %v3524 = vxor.u32 %v3460, 2147483648
  %v3525 = vxor.u32 %v3461, 2147483648
  %v3526 = vxor.u32 %v3462, 2147483648
  %v3527 = vxor.u32 %v3463, 2147483648
  %v3528 = vxor.u32 %v3464, 2147483648
  %v3529 = vxor.u32 %v3465, 2147483648
  %v3530 = vxor.u32 %v3466, 2147483648
  %v3531 = vxor.u32 %v3467, 2147483648
  %v3532 = vxor.u32 %v3468, 2147483648
  %v3533 = vxor.u32 %v3469, 2147483648
  %v3534 = vxor.u32 %v3470, 2147483648
  %v3535 = vxor.u32 %v3471, 2147483648
  %v3536 = vxor.u32 %v3472, 2147483648
  %v3537 = vxor.u32 %v3473, 2147483648
  %v3538 = vxor.u32 %v3474, 2147483648
  %v3539 = vxor.u32 %v3475, 2147483648
  %v3540 = vxor.u32 %v3476, 2147483648
  %v3541 = vxor.u32 %v3477, 2147483648
  %v3542 = vxor.u32 %v3478, 2147483648
  %v3543 = vxor.u32 %v3479, 2147483648
  %v3544 = vxor.u32 %v3480, 2147483648
  %v3545 = vxor.u32 %v3481, 2147483648
  %v3546 = vxor.u32 %v3482, 2147483648
  %v3547 = vxor.u32 %v3483, 2147483648
  %v3548 = vxor.u32 %v3484, 2147483648
  %v3549 = vxor.u32 %v3485, 2147483648
  %v3550 = vxor.u32 %v3486, 2147483648
  %v3551 = vxor.u32 %v3487, 2147483648
  %v3552 = vxor.u32 %v3488, 2147483648
  %v3553 = vxor.u32 %v3489, 2147483648
  %v3554 = vxor.u32 %v3490, 2147483648
  %v3555 = vxor.u32 %v3491, 2147483648
  %v3556 = vxor.u32 %v3492, 2147483648
  %v3557 = vxor.u32 %v3493, 2147483648
  %v3558 = vxor.u32 %v3494, 2147483648
  %v3559 = vxor.u32 %v3495, 2147483648
  %v3560 = vxor.u32 %v3496, 2147483648
  %v3561 = vmul.f32 %v3497, 1.442695
  %v3562 = vpow.pop %v3561
  %v3563 = vmul.f32 %v3498, 1.442695
  %v3564 = vpow.pop %v3563
  %v3565 = vmul.f32 %v3499, 1.442695
  %v3566 = vpow.pop %v3565
  %v3567 = vmul.f32 %v3500, 1.442695
  %v3568 = vpow.pop %v3567
  %v3569 = vmul.f32 %v3501, 1.442695
  %v3570 = vpow.pop %v3569
  %v3571 = vmul.f32 %v3502, 1.442695
  %v3572 = vpow.pop %v3571
  %v3573 = vmul.f32 %v3503, 1.442695
  %v3574 = vpow.pop %v3573
  %v3575 = vmul.f32 %v3504, 1.442695
  %v3576 = vpow.pop %v3575
  %v3577 = vmul.f32 %v3505, 1.442695
  %v3578 = vpow.pop %v3577
  %v3579 = vmul.f32 %v3506, 1.442695
  %v3580 = vpow.pop %v3579
  %v3581 = vmul.f32 %v3507, 1.442695
  %v3582 = vpow.pop %v3581
  %v3583 = vmul.f32 %v3508, 1.442695
  %v3584 = vpow.pop %v3583
  %v3585 = vmul.f32 %v3509, 1.442695
  %v3586 = vpow.pop %v3585
  %v3587 = vmul.f32 %v3510, 1.442695
  %v3588 = vpow.pop %v3587
  %v3589 = vmul.f32 %v3511, 1.442695
  %v3590 = vpow.pop %v3589
  %v3591 = vmul.f32 %v3512, 1.442695
  %v3592 = vpow.pop %v3591
  %v3593 = vmul.f32 %v3513, 1.442695
  %v3594 = vpow.pop %v3593
  %v3595 = vmul.f32 %v3514, 1.442695
  %v3596 = vpow.pop %v3595
  %v3597 = vmul.f32 %v3515, 1.442695
  %v3598 = vpow.pop %v3597
  %v3599 = vmul.f32 %v3516, 1.442695
  %v3600 = vpow.pop %v3599
  %v3601 = vmul.f32 %v3517, 1.442695
  %v3602 = vpow.pop %v3601
  %v3603 = vmul.f32 %v3518, 1.442695
  %v3604 = vpow.pop %v3603
  %v3605 = vmul.f32 %v3519, 1.442695
  %v3606 = vpow.pop %v3605
  %v3607 = vmul.f32 %v3520, 1.442695
  %v3608 = vpow.pop %v3607
  %v3609 = vmul.f32 %v3521, 1.442695
  %v3610 = vpow.pop %v3609
  %v3611 = vmul.f32 %v3522, 1.442695
  %v3612 = vpow.pop %v3611
  %v3613 = vmul.f32 %v3523, 1.442695
  %v3614 = vpow.pop %v3613
  %v3615 = vmul.f32 %v3524, 1.442695
  %v3616 = vpow.pop %v3615
  %v3617 = vmul.f32 %v3525, 1.442695
  %v3618 = vpow.pop %v3617
  %v3619 = vmul.f32 %v3526, 1.442695
  %v3620 = vpow.pop %v3619
  %v3621 = vmul.f32 %v3527, 1.442695
  %v3622 = vpow.pop %v3621
  %v3623 = vmul.f32 %v3528, 1.442695
  %v3624 = vpow.pop %v3623
  %v3625 = vmul.f32 %v3529, 1.442695
  %v3626 = vpow.pop %v3625
  %v3627 = vmul.f32 %v3530, 1.442695
  %v3628 = vpow.pop %v3627
  %v3629 = vmul.f32 %v3531, 1.442695
  %v3630 = vpow.pop %v3629
  %v3631 = vmul.f32 %v3532, 1.442695
  %v3632 = vpow.pop %v3631
  %v3633 = vmul.f32 %v3533, 1.442695
  %v3634 = vpow.pop %v3633
  %v3635 = vmul.f32 %v3534, 1.442695
  %v3636 = vpow.pop %v3635
  %v3637 = vmul.f32 %v3535, 1.442695
  %v3638 = vpow.pop %v3637
  %v3639 = vmul.f32 %v3536, 1.442695
  %v3640 = vpow.pop %v3639
  %v3641 = vmul.f32 %v3537, 1.442695
  %v3642 = vpow.pop %v3641
  %v3643 = vmul.f32 %v3538, 1.442695
  %v3644 = vpow.pop %v3643
  %v3645 = vmul.f32 %v3539, 1.442695
  %v3646 = vpow.pop %v3645
  %v3647 = vmul.f32 %v3540, 1.442695
  %v3648 = vpow.pop %v3647
  %v3649 = vmul.f32 %v3541, 1.442695
  %v3650 = vpow.pop %v3649
  %v3651 = vmul.f32 %v3542, 1.442695
  %v3652 = vpow.pop %v3651
  %v3653 = vmul.f32 %v3543, 1.442695
  %v3654 = vpow.pop %v3653
  %v3655 = vmul.f32 %v3544, 1.442695
  %v3656 = vpow.pop %v3655
  %v3657 = vmul.f32 %v3545, 1.442695
  %v3658 = vpow.pop %v3657
  %v3659 = vmul.f32 %v3546, 1.442695
  %v3660 = vpow.pop %v3659
  %v3661 = vmul.f32 %v3547, 1.442695
  %v3662 = vpow.pop %v3661
  %v3663 = vmul.f32 %v3548, 1.442695
  %v3664 = vpow.pop %v3663
  %v3665 = vmul.f32 %v3549, 1.442695
  %v3666 = vpow.pop %v3665
  %v3667 = vmul.f32 %v3550, 1.442695
  %v3668 = vpow.pop %v3667
  %v3669 = vmul.f32 %v3551, 1.442695
  %v3670 = vpow.pop %v3669
  %v3671 = vmul.f32 %v3552, 1.442695
  %v3672 = vpow.pop %v3671
  %v3673 = vmul.f32 %v3553, 1.442695
  %v3674 = vpow.pop %v3673
  %v3675 = vmul.f32 %v3554, 1.442695
  %v3676 = vpow.pop %v3675
  %v3677 = vmul.f32 %v3555, 1.442695
  %v3678 = vpow.pop %v3677
  %v3679 = vmul.f32 %v3556, 1.442695
  %v3680 = vpow.pop %v3679
  %v3681 = vmul.f32 %v3557, 1.442695
  %v3682 = vpow.pop %v3681
  %v3683 = vmul.f32 %v3558, 1.442695
  %v3684 = vpow.pop %v3683
  %v3685 = vmul.f32 %v3559, 1.442695
  %v3686 = vpow.pop %v3685
  %v3687 = vmul.f32 %v3560, 1.442695
  %v3688 = vpow.pop %v3687
  %v3689 = vadd.f32 %v3562, 1.0
  %v3690 = vadd.f32 %v3564, 1.0
  %v3691 = vadd.f32 %v3566, 1.0
  %v3692 = vadd.f32 %v3568, 1.0
  %v3693 = vadd.f32 %v3570, 1.0
  %v3694 = vadd.f32 %v3572, 1.0
  %v3695 = vadd.f32 %v3574, 1.0
  %v3696 = vadd.f32 %v3576, 1.0
  %v3697 = vadd.f32 %v3578, 1.0
  %v3698 = vadd.f32 %v3580, 1.0
  %v3699 = vadd.f32 %v3582, 1.0
  %v3700 = vadd.f32 %v3584, 1.0
  %v3701 = vadd.f32 %v3586, 1.0
  %v3702 = vadd.f32 %v3588, 1.0
  %v3703 = vadd.f32 %v3590, 1.0
  %v3704 = vadd.f32 %v3592, 1.0
  %v3705 = vadd.f32 %v3594, 1.0
  %v3706 = vadd.f32 %v3596, 1.0
  %v3707 = vadd.f32 %v3598, 1.0
  %v3708 = vadd.f32 %v3600, 1.0
  %v3709 = vadd.f32 %v3602, 1.0
  %v3710 = vadd.f32 %v3604, 1.0
  %v3711 = vadd.f32 %v3606, 1.0
  %v3712 = vadd.f32 %v3608, 1.0
  %v3713 = vadd.f32 %v3610, 1.0
  %v3714 = vadd.f32 %v3612, 1.0
  %v3715 = vadd.f32 %v3614, 1.0
  %v3716 = vadd.f32 %v3616, 1.0
  %v3717 = vadd.f32 %v3618, 1.0
  %v3718 = vadd.f32 %v3620, 1.0
  %v3719 = vadd.f32 %v3622, 1.0
  %v3720 = vadd.f32 %v3624, 1.0
  %v3721 = vadd.f32 %v3626, 1.0
  %v3722 = vadd.f32 %v3628, 1.0
  %v3723 = vadd.f32 %v3630, 1.0
  %v3724 = vadd.f32 %v3632, 1.0
  %v3725 = vadd.f32 %v3634, 1.0
  %v3726 = vadd.f32 %v3636, 1.0
  %v3727 = vadd.f32 %v3638, 1.0
  %v3728 = vadd.f32 %v3640, 1.0
  %v3729 = vadd.f32 %v3642, 1.0
  %v3730 = vadd.f32 %v3644, 1.0
  %v3731 = vadd.f32 %v3646, 1.0
  %v3732 = vadd.f32 %v3648, 1.0
  %v3733 = vadd.f32 %v3650, 1.0
  %v3734 = vadd.f32 %v3652, 1.0
  %v3735 = vadd.f32 %v3654, 1.0
  %v3736 = vadd.f32 %v3656, 1.0
  %v3737 = vadd.f32 %v3658, 1.0
  %v3738 = vadd.f32 %v3660, 1.0
  %v3739 = vadd.f32 %v3662, 1.0
  %v3740 = vadd.f32 %v3664, 1.0
  %v3741 = vadd.f32 %v3666, 1.0
  %v3742 = vadd.f32 %v3668, 1.0
  %v3743 = vadd.f32 %v3670, 1.0
  %v3744 = vadd.f32 %v3672, 1.0
  %v3745 = vadd.f32 %v3674, 1.0
  %v3746 = vadd.f32 %v3676, 1.0
  %v3747 = vadd.f32 %v3678, 1.0
  %v3748 = vadd.f32 %v3680, 1.0
  %v3749 = vadd.f32 %v3682, 1.0
  %v3750 = vadd.f32 %v3684, 1.0
  %v3751 = vadd.f32 %v3686, 1.0
  %v3752 = vadd.f32 %v3688, 1.0
  %v3753 = vrcp.pop %v3689
  %v3754 = vmul.f32 1.0, %v3753
  %v3755 = vrcp.pop %v3690
  %v3756 = vmul.f32 1.0, %v3755
  %v3757 = vrcp.pop %v3691
  %v3758 = vmul.f32 1.0, %v3757
  %v3759 = vrcp.pop %v3692
  %v3760 = vmul.f32 1.0, %v3759
  %v3761 = vrcp.pop %v3693
  %v3762 = vmul.f32 1.0, %v3761
  %v3763 = vrcp.pop %v3694
  %v3764 = vmul.f32 1.0, %v3763
  %v3765 = vrcp.pop %v3695
  %v3766 = vmul.f32 1.0, %v3765
  %v3767 = vrcp.pop %v3696
  %v3768 = vmul.f32 1.0, %v3767
  %v3769 = vrcp.pop %v3697
  %v3770 = vmul.f32 1.0, %v3769
  %v3771 = vrcp.pop %v3698
  %v3772 = vmul.f32 1.0, %v3771
  %v3773 = vrcp.pop %v3699
  %v3774 = vmul.f32 1.0, %v3773
  %v3775 = vrcp.pop %v3700
  %v3776 = vmul.f32 1.0, %v3775
  %v3777 = vrcp.pop %v3701
  %v3778 = vmul.f32 1.0, %v3777
  %v3779 = vrcp.pop %v3702
  %v3780 = vmul.f32 1.0, %v3779
  %v3781 = vrcp.pop %v3703
  %v3782 = vmul.f32 1.0, %v3781
  %v3783 = vrcp.pop %v3704
  %v3784 = vmul.f32 1.0, %v3783
  %v3785 = vrcp.pop %v3705
  %v3786 = vmul.f32 1.0, %v3785
  %v3787 = vrcp.pop %v3706
  %v3788 = vmul.f32 1.0, %v3787
  %v3789 = vrcp.pop %v3707
  %v3790 = vmul.f32 1.0, %v3789
  %v3791 = vrcp.pop %v3708
  %v3792 = vmul.f32 1.0, %v3791
  %v3793 = vrcp.pop %v3709
  %v3794 = vmul.f32 1.0, %v3793
  %v3795 = vrcp.pop %v3710
  %v3796 = vmul.f32 1.0, %v3795
  %v3797 = vrcp.pop %v3711
  %v3798 = vmul.f32 1.0, %v3797
  %v3799 = vrcp.pop %v3712
  %v3800 = vmul.f32 1.0, %v3799
  %v3801 = vrcp.pop %v3713
  %v3802 = vmul.f32 1.0, %v3801
  %v3803 = vrcp.pop %v3714
  %v3804 = vmul.f32 1.0, %v3803
  %v3805 = vrcp.pop %v3715
  %v3806 = vmul.f32 1.0, %v3805
  %v3807 = vrcp.pop %v3716
  %v3808 = vmul.f32 1.0, %v3807
  %v3809 = vrcp.pop %v3717
  %v3810 = vmul.f32 1.0, %v3809
  %v3811 = vrcp.pop %v3718
  %v3812 = vmul.f32 1.0, %v3811
  %v3813 = vrcp.pop %v3719
  %v3814 = vmul.f32 1.0, %v3813
  %v3815 = vrcp.pop %v3720
  %v3816 = vmul.f32 1.0, %v3815
  %v3817 = vrcp.pop %v3721
  %v3818 = vmul.f32 1.0, %v3817
  %v3819 = vrcp.pop %v3722
  %v3820 = vmul.f32 1.0, %v3819
  %v3821 = vrcp.pop %v3723
  %v3822 = vmul.f32 1.0, %v3821
  %v3823 = vrcp.pop %v3724
  %v3824 = vmul.f32 1.0, %v3823
  %v3825 = vrcp.pop %v3725
  %v3826 = vmul.f32 1.0, %v3825
  %v3827 = vrcp.pop %v3726
  %v3828 = vmul.f32 1.0, %v3827
  %v3829 = vrcp.pop %v3727
  %v3830 = vmul.f32 1.0, %v3829
  %v3831 = vrcp.pop %v3728
  %v3832 = vmul.f32 1.0, %v3831
  %v3833 = vrcp.pop %v3729
  %v3834 = vmul.f32 1.0, %v3833
  %v3835 = vrcp.pop %v3730
  %v3836 = vmul.f32 1.0, %v3835
  %v3837 = vrcp.pop %v3731
  %v3838 = vmul.f32 1.0, %v3837
  %v3839 = vrcp.pop %v3732
  %v3840 = vmul.f32 1.0, %v3839
  %v3841 = vrcp.pop %v3733
  %v3842 = vmul.f32 1.0, %v3841
  %v3843 = vrcp.pop %v3734
  %v3844 = vmul.f32 1.0, %v3843
  %v3845 = vrcp.pop %v3735
  %v3846 = vmul.f32 1.0, %v3845
  %v3847 = vrcp.pop %v3736
  %v3848 = vmul.f32 1.0, %v3847
  %v3849 = vrcp.pop %v3737
  %v3850 = vmul.f32 1.0, %v3849
  %v3851 = vrcp.pop %v3738
  %v3852 = vmul.f32 1.0, %v3851
  %v3853 = vrcp.pop %v3739
  %v3854 = vmul.f32 1.0, %v3853
  %v3855 = vrcp.pop %v3740
  %v3856 = vmul.f32 1.0, %v3855
  %v3857 = vrcp.pop %v3741
  %v3858 = vmul.f32 1.0, %v3857
  %v3859 = vrcp.pop %v3742
  %v3860 = vmul.f32 1.0, %v3859
  %v3861 = vrcp.pop %v3743
  %v3862 = vmul.f32 1.0, %v3861
  %v3863 = vrcp.pop %v3744
  %v3864 = vmul.f32 1.0, %v3863
  %v3865 = vrcp.pop %v3745
  %v3866 = vmul.f32 1.0, %v3865
  %v3867 = vrcp.pop %v3746
  %v3868 = vmul.f32 1.0, %v3867
  %v3869 = vrcp.pop %v3747
  %v3870 = vmul.f32 1.0, %v3869
  %v3871 = vrcp.pop %v3748
  %v3872 = vmul.f32 1.0, %v3871
  %v3873 = vrcp.pop %v3749
  %v3874 = vmul.f32 1.0, %v3873
  %v3875 = vrcp.pop %v3750
  %v3876 = vmul.f32 1.0, %v3875
  %v3877 = vrcp.pop %v3751
  %v3878 = vmul.f32 1.0, %v3877
  %v3879 = vrcp.pop %v3752
  %v3880 = vmul.f32 1.0, %v3879
  %v3881 = vmul.f32 %v3433, %v3754
  %v3882 = vmul.f32 %v3434, %v3756
  %v3883 = vmul.f32 %v3435, %v3758
  %v3884 = vmul.f32 %v3436, %v3760
  %v3885 = vmul.f32 %v3437, %v3762
  %v3886 = vmul.f32 %v3438, %v3764
  %v3887 = vmul.f32 %v3439, %v3766
  %v3888 = vmul.f32 %v3440, %v3768
  %v3889 = vmul.f32 %v3441, %v3770
  %v3890 = vmul.f32 %v3442, %v3772
  %v3891 = vmul.f32 %v3443, %v3774
  %v3892 = vmul.f32 %v3444, %v3776
  %v3893 = vmul.f32 %v3445, %v3778
  %v3894 = vmul.f32 %v3446, %v3780
  %v3895 = vmul.f32 %v3447, %v3782
  %v3896 = vmul.f32 %v3448, %v3784
  %v3897 = vmul.f32 %v3449, %v3786
  %v3898 = vmul.f32 %v3450, %v3788
  %v3899 = vmul.f32 %v3451, %v3790
  %v3900 = vmul.f32 %v3452, %v3792
  %v3901 = vmul.f32 %v3453, %v3794
  %v3902 = vmul.f32 %v3454, %v3796
  %v3903 = vmul.f32 %v3455, %v3798
  %v3904 = vmul.f32 %v3456, %v3800
  %v3905 = vmul.f32 %v3457, %v3802
  %v3906 = vmul.f32 %v3458, %v3804
  %v3907 = vmul.f32 %v3459, %v3806
  %v3908 = vmul.f32 %v3460, %v3808
  %v3909 = vmul.f32 %v3461, %v3810
  %v3910 = vmul.f32 %v3462, %v3812
  %v3911 = vmul.f32 %v3463, %v3814
  %v3912 = vmul.f32 %v3464, %v3816
  %v3913 = vmul.f32 %v3465, %v3818
  %v3914 = vmul.f32 %v3466, %v3820
  %v3915 = vmul.f32 %v3467, %v3822
  %v3916 = vmul.f32 %v3468, %v3824
  %v3917 = vmul.f32 %v3469, %v3826
  %v3918 = vmul.f32 %v3470, %v3828
  %v3919 = vmul.f32 %v3471, %v3830
  %v3920 = vmul.f32 %v3472, %v3832
  %v3921 = vmul.f32 %v3473, %v3834
  %v3922 = vmul.f32 %v3474, %v3836
  %v3923 = vmul.f32 %v3475, %v3838
  %v3924 = vmul.f32 %v3476, %v3840
  %v3925 = vmul.f32 %v3477, %v3842
  %v3926 = vmul.f32 %v3478, %v3844
  %v3927 = vmul.f32 %v3479, %v3846
  %v3928 = vmul.f32 %v3480, %v3848
  %v3929 = vmul.f32 %v3481, %v3850
  %v3930 = vmul.f32 %v3482, %v3852
  %v3931 = vmul.f32 %v3483, %v3854
  %v3932 = vmul.f32 %v3484, %v3856
  %v3933 = vmul.f32 %v3485, %v3858
  %v3934 = vmul.f32 %v3486, %v3860
  %v3935 = vmul.f32 %v3487, %v3862
  %v3936 = vmul.f32 %v3488, %v3864
  %v3937 = vmul.f32 %v3489, %v3866
  %v3938 = vmul.f32 %v3490, %v3868
  %v3939 = vmul.f32 %v3491, %v3870
  %v3940 = vmul.f32 %v3492, %v3872
  %v3941 = vmul.f32 %v3493, %v3874
  %v3942 = vmul.f32 %v3494, %v3876
  %v3943 = vmul.f32 %v3495, %v3878
  %v3944 = vmul.f32 %v3496, %v3880
  %v3945 = vld [vmem:[%s1] sm:$0x3]
  %v3946 = vld [vmem:[%s6] sm:$0xff]
  %v3947 = vld [vmem:[%s6 + $0x8] sm:$0xff]
  %v3948 = vld [vmem:[%s6 + $0x10] sm:$0xff]
  %v3949 = vld [vmem:[%s6 + $0x18] sm:$0xff]
  %v3950 = vld [vmem:[%s6 + $0x20] sm:$0xff]
  %v3951 = vld [vmem:[%s6 + $0x28] sm:$0xff]
  %v3952 = vld [vmem:[%s6 + $0x30] sm:$0xff]
  %v3953 = vld [vmem:[%s6 + $0x38] sm:$0xff]
  %v3954 = vld [vmem:[%s6 + $0x40] sm:$0xff]
  %v3955 = vld [vmem:[%s6 + $0x48] sm:$0xff]
  %v3956 = vld [vmem:[%s6 + $0x50] sm:$0xff]
  %v3957 = vld [vmem:[%s6 + $0x58] sm:$0xff]
  %v3958 = vld [vmem:[%s6 + $0x60] sm:$0xff]
  %v3959 = vld [vmem:[%s6 + $0x68] sm:$0xff]
  %v3960 = vld [vmem:[%s6 + $0x70] sm:$0xff]
  %v3961 = vld [vmem:[%s6 + $0x78] sm:$0xff]
  %v3962 = vlaneseq
  %v3963 = vshrl.u32 %v3962, 7
  %v3964 = vsub.s32 0, %v3963
  %v3965 = vrot.slane %v36, %v3964
  %3966 = vmatprep.subr.mxu0 0.0
  %3967 = vmatpush1.msra.mxu0 %v3961
  %3968 = vmatprep.subr.mxu0 0.0
  %3969 = vmatpush1.msra.mxu0 %v3960
  %3970 = vmatprep.subr.mxu0 0.0
  %3971 = vmatpush1.msra.mxu0 %v3959
  %3972 = vmatprep.subr.mxu0 0.0
  %3973 = vmatpush1.msra.mxu0 %v3958
  %3974 = vmatprep.subr.mxu0 0.0
  %3975 = vmatpush1.msra.mxu0 %v3957
  %3976 = vmatprep.subr.mxu0 0.0
  %3977 = vmatpush1.msra.mxu0 %v3956
  %3978 = vmatprep.subr.mxu0 0.0
  %3979 = vmatpush1.msra.mxu0 %v3955
  %3980 = vmatprep.subr.mxu0 0.0
  %3981 = vmatpush1.msra.mxu0 %v3954
  %3982 = vmatprep.subr.mxu0 0.0
  %3983 = vmatpush1.msra.mxu0 %v3953
  %3984 = vmatprep.subr.mxu0 0.0
  %3985 = vmatpush1.msra.mxu0 %v3952
  %3986 = vmatprep.subr.mxu0 0.0
  %3987 = vmatpush1.msra.mxu0 %v3951
  %3988 = vmatprep.subr.mxu0 0.0
  %3989 = vmatpush1.msra.mxu0 %v3950
  %3990 = vmatprep.subr.mxu0 0.0
  %3991 = vmatpush1.msra.mxu0 %v3949
  %3992 = vmatprep.subr.mxu0 0.0
  %3993 = vmatpush1.msra.mxu0 %v3948
  %3994 = vmatprep.subr.mxu0 0.0
  %3995 = vmatpush1.msra.mxu0 %v3947
  %3996 = vmatprep.subr.mxu0 0.0
  %3997 = vmatpush1.msra.mxu0 %v3946
  %3998 = vmatprep.subr.mxu0 0.0
  %3999 = vmatpush2.msra.mxu0 0.0
  %4000 = vmatprep.subr.mxu0 0.0
  %4001 = vmatpush2.msra.mxu0 0.0
  %4002 = vmatprep.subr.mxu0 0.0
  %4003 = vmatpush2.msra.mxu0 0.0
  %4004 = vmatprep.subr.mxu0 0.0
  %4005 = vmatpush2.msra.mxu0 0.0
  %4006 = vmatprep.subr.mxu0 0.0
  %4007 = vmatpush2.msra.mxu0 0.0
  %4008 = vmatprep.subr.mxu0 0.0
  %4009 = vmatpush2.msra.mxu0 0.0
  %4010 = vmatprep.subr.mxu0 0.0
  %4011 = vmatpush2.msra.mxu0 0.0
  %4012 = vmatprep.subr.mxu0 0.0
  %4013 = vmatpush2.msra.mxu0 0.0
  %4014 = vmatprep.subr.mxu0 0.0
  %4015 = vmatpush2.msra.mxu0 0.0
  %4016 = vmatprep.subr.mxu0 0.0
  %4017 = vmatpush2.msra.mxu0 0.0
  %4018 = vmatprep.subr.mxu0 0.0
  %4019 = vmatpush2.msra.mxu0 0.0
  %4020 = vmatprep.subr.mxu0 0.0
  %4021 = vmatpush2.msra.mxu0 0.0
  %4022 = vmatprep.subr.mxu0 0.0
  %4023 = vmatpush2.msra.mxu0 0.0
  %4024 = vmatprep.subr.mxu0 0.0
  %4025 = vmatpush2.msra.mxu0 0.0
  %4026 = vmatprep.subr.mxu0 0.0
  %4027 = vmatpush2.msra.mxu0 0.0
  %4028 = vmatprep.subr.mxu0 0.0
  %4029 = vmatpush2.msra.mxu0 0.0
  %4030 = vmatprep.mubr.f32.mxu0 0.0
  %4031 = vmatmul.mubr.f32.gmra.mxu0 %v3945
  %v4032 = vpop.f32.mrf.mxu0
  %v4033 = vadd.f32 %v3965, %v4032
  %v4034 = vpop.f32.mrf.mxu0
  %4035 = vdwg.mxu0
  %v4038 = vunpack.c.l.s4 1966171168
  %v4039 = vunpack.c.0.s8 %v4038
  %v4040 = vlaneseq
  %v4041 = vshrl.u32 %v4040, 7
  %v4042 = vsub.s32 %v4039, %v4041
  %v4043 = vrot.slane %v4033, %v4042
  %v4044 = vcombine.high %v4043, %v4043
  %v4046 = vunpack.c.l.s4 1966171168
  %v4047 = vunpack.c.0.s8 %v4046
  %v4048 = vlaneseq
  %v4049 = vshrl.u32 %v4048, 7
  %v4050 = vsub.s32 %v4047, %v4049
  %v4051 = vrot.slane %v4043, %v4050
  %v4053 = vunpack.c.l.s4 1966171168
  %v4054 = vunpack.c.0.s8 %v4053
  %v4055 = vlaneseq
  %v4056 = vshrl.u32 %v4055, 7
  %v4057 = vsub.s32 %v4054, %v4056
  %v4058 = vrot.slane %v4044, %v4057
  %v4059 = vlaneseq
  %v4060 = vshrl.u32 %v4059, 7
  %v4061 = vsub.s32 0, %v4060
  %v4062 = vrot.slane %v4051, %v4061
  %v4063 = vlaneseq
  %v4064 = vshrl.u32 %v4063, 7
  %v4065 = vsub.s32 0, %v4064
  %v4066 = vrot.slane %v4058, %v4065
  %v4069 = vadd.f32 %v3881, %v4062
  %v4070 = vadd.f32 %v3882, %v4062
  %v4071 = vadd.f32 %v3883, %v4062
  %v4072 = vadd.f32 %v3884, %v4062
  %v4073 = vadd.f32 %v3885, %v4062
  %v4074 = vadd.f32 %v3886, %v4062
  %v4075 = vadd.f32 %v3887, %v4062
  %v4076 = vadd.f32 %v3888, %v4062
  %v4077 = vadd.f32 %v3889, %v4062
  %v4078 = vadd.f32 %v3890, %v4062
  %v4079 = vadd.f32 %v3891, %v4062
  %v4080 = vadd.f32 %v3892, %v4062
  %v4081 = vadd.f32 %v3893, %v4062
  %v4082 = vadd.f32 %v3894, %v4062
  %v4083 = vadd.f32 %v3895, %v4062
  %v4084 = vadd.f32 %v3896, %v4062
  %v4085 = vadd.f32 %v3897, %v4062
  %v4086 = vadd.f32 %v3898, %v4062
  %v4087 = vadd.f32 %v3899, %v4062
  %v4088 = vadd.f32 %v3900, %v4062
  %v4089 = vadd.f32 %v3901, %v4062
  %v4090 = vadd.f32 %v3902, %v4062
  %v4091 = vadd.f32 %v3903, %v4062
  %v4092 = vadd.f32 %v3904, %v4062
  %v4093 = vadd.f32 %v3905, %v4062
  %v4094 = vadd.f32 %v3906, %v4062
  %v4095 = vadd.f32 %v3907, %v4062
  %v4096 = vadd.f32 %v3908, %v4062
  %v4097 = vadd.f32 %v3909, %v4062
  %v4098 = vadd.f32 %v3910, %v4062
  %v4099 = vadd.f32 %v3911, %v4062
  %v4100 = vadd.f32 %v3912, %v4062
  %v4101 = vadd.f32 %v3913, %v4066
  %v4102 = vadd.f32 %v3914, %v4066
  %v4103 = vadd.f32 %v3915, %v4066
  %v4104 = vadd.f32 %v3916, %v4066
  %v4105 = vadd.f32 %v3917, %v4066
  %v4106 = vadd.f32 %v3918, %v4066
  %v4107 = vadd.f32 %v3919, %v4066
  %v4108 = vadd.f32 %v3920, %v4066
  %v4109 = vadd.f32 %v3921, %v4066
  %v4110 = vadd.f32 %v3922, %v4066
  %v4111 = vadd.f32 %v3923, %v4066
  %v4112 = vadd.f32 %v3924, %v4066
  %v4113 = vadd.f32 %v3925, %v4066
  %v4114 = vadd.f32 %v3926, %v4066
  %v4115 = vadd.f32 %v3927, %v4066
  %v4116 = vadd.f32 %v3928, %v4066
  %v4117 = vadd.f32 %v3929, %v4066
  %v4118 = vadd.f32 %v3930, %v4066
  %v4119 = vadd.f32 %v3931, %v4066
  %v4120 = vadd.f32 %v3932, %v4066
  %v4121 = vadd.f32 %v3933, %v4066
  %v4122 = vadd.f32 %v3934, %v4066
  %v4123 = vadd.f32 %v3935, %v4066
  %v4124 = vadd.f32 %v3936, %v4066
  %v4125 = vadd.f32 %v3937, %v4066
  %v4126 = vadd.f32 %v3938, %v4066
  %v4127 = vadd.f32 %v3939, %v4066
  %v4128 = vadd.f32 %v3940, %v4066
  %v4129 = vadd.f32 %v3941, %v4066
  %v4130 = vadd.f32 %v3942, %v4066
  %v4131 = vadd.f32 %v3943, %v4066
  %v4132 = vadd.f32 %v3944, %v4066
  %4133 = vst [vmem:[#allocation3] sm:$0xff] 0.0
  %4134 = vst [vmem:[#allocation3 + $0x8] sm:$0xff] 0.0
  %4135 = vst [vmem:[#allocation3 + $0x10] sm:$0xff] 0.0
  %4136 = vst [vmem:[#allocation3 + $0x18] sm:$0xff] 0.0
  %4137 = vst [vmem:[#allocation3 + $0x240] sm:$0xff] 0.0
  %4138 = vst [vmem:[#allocation3 + $0x248] sm:$0xff] 0.0
  %4139 = vst [vmem:[#allocation3 + $0x250] sm:$0xff] 0.0
  %4140 = vst [vmem:[#allocation3 + $0x258] sm:$0xff] 0.0
  %s4141 = scalar_lea.vmem [#allocation3], 544
  %4142 = vst [vmem:[%s4141] sm:$0xff] 0.0
  %4143 = vst [vmem:[%s4141 + $0x8] sm:$0xff] 0.0
  %4144 = vst [vmem:[%s4141 + $0x10] sm:$0xff] 0.0
  %4145 = vst [vmem:[%s4141 + $0x18] sm:$0xff] 0.0
  %4146 = vst [vmem:[%s4141 + $0x240] sm:$0xff] 0.0
  %4147 = vst [vmem:[%s4141 + $0x248] sm:$0xff] 0.0
  %4148 = vst [vmem:[%s4141 + $0x250] sm:$0xff] 0.0
  %4149 = vst [vmem:[%s4141 + $0x258] sm:$0xff] 0.0
  %s4150 = scalar_lea.vmem [#allocation3], 32
  %4151 = vst [vmem:[%s4150] sm:$0xff] 0.0
  %4152 = vst [vmem:[%s4150 + $0x20] sm:$0xff] 0.0
  %4153 = vst [vmem:[%s4150 + $0x40] sm:$0xff] 0.0
  %4154 = vst [vmem:[%s4150 + $0x60] sm:$0xff] 0.0
  %4155 = vst [vmem:[%s4150 + $0x80] sm:$0xff] 0.0
  %4156 = vst [vmem:[%s4150 + $0xa0] sm:$0xff] 0.0
  %4157 = vst [vmem:[%s4150 + $0xc0] sm:$0xff] 0.0
  %4158 = vst [vmem:[%s4150 + $0xe0] sm:$0xff] 0.0
  %4159 = vst [vmem:[%s4150 + $0x100] sm:$0xff] 0.0
  %4160 = vst [vmem:[%s4150 + $0x120] sm:$0xff] 0.0
  %4161 = vst [vmem:[%s4150 + $0x140] sm:$0xff] 0.0
  %4162 = vst [vmem:[%s4150 + $0x160] sm:$0xff] 0.0
  %4163 = vst [vmem:[%s4150 + $0x180] sm:$0xff] 0.0
  %4164 = vst [vmem:[%s4150 + $0x1a0] sm:$0xff] 0.0
  %4165 = vst [vmem:[%s4150 + $0x1c0] sm:$0xff] 0.0
  %4166 = vst [vmem:[%s4150 + $0x1e0] sm:$0xff] 0.0
  %4167 = vst [vmem:[%s4150 + $0x240] sm:$0xff] 0.0
  %4168 = vst [vmem:[%s4150 + $0x260] sm:$0xff] 0.0
  %4169 = vst [vmem:[%s4150 + $0x280] sm:$0xff] 0.0
  %4170 = vst [vmem:[%s4150 + $0x2a0] sm:$0xff] 0.0
  %4171 = vst [vmem:[%s4150 + $0x2c0] sm:$0xff] 0.0
  %4172 = vst [vmem:[%s4150 + $0x2e0] sm:$0xff] 0.0
  %4173 = vst [vmem:[%s4150 + $0x300] sm:$0xff] 0.0
  %4174 = vst [vmem:[%s4150 + $0x320] sm:$0xff] 0.0
  %4175 = vst [vmem:[%s4150 + $0x340] sm:$0xff] 0.0
  %4176 = vst [vmem:[%s4150 + $0x360] sm:$0xff] 0.0
  %4177 = vst [vmem:[%s4150 + $0x380] sm:$0xff] 0.0
  %4178 = vst [vmem:[%s4150 + $0x3a0] sm:$0xff] 0.0
  %4179 = vst [vmem:[%s4150 + $0x3c0] sm:$0xff] 0.0
  %4180 = vst [vmem:[%s4150 + $0x3e0] sm:$0xff] 0.0
  %4181 = vst [vmem:[%s4150 + $0x400] sm:$0xff] 0.0
  %4182 = vst [vmem:[%s4150 + $0x420] sm:$0xff] 0.0
  %4183 = vst [vmem:[%s4150 + $0x18] sm:$0xff] 0.0
  %4184 = vst [vmem:[%s4150 + $0x38] sm:$0xff] 0.0
  %4185 = vst [vmem:[%s4150 + $0x58] sm:$0xff] 0.0
  %4186 = vst [vmem:[%s4150 + $0x78] sm:$0xff] 0.0
  %4187 = vst [vmem:[%s4150 + $0x98] sm:$0xff] 0.0
  %4188 = vst [vmem:[%s4150 + $0xb8] sm:$0xff] 0.0
  %4189 = vst [vmem:[%s4150 + $0xd8] sm:$0xff] 0.0
  %4190 = vst [vmem:[%s4150 + $0xf8] sm:$0xff] 0.0
  %4191 = vst [vmem:[%s4150 + $0x118] sm:$0xff] 0.0
  %4192 = vst [vmem:[%s4150 + $0x138] sm:$0xff] 0.0
  %4193 = vst [vmem:[%s4150 + $0x158] sm:$0xff] 0.0
  %4194 = vst [vmem:[%s4150 + $0x178] sm:$0xff] 0.0
  %4195 = vst [vmem:[%s4150 + $0x198] sm:$0xff] 0.0
  %4196 = vst [vmem:[%s4150 + $0x1b8] sm:$0xff] 0.0
  %4197 = vst [vmem:[%s4150 + $0x1d8] sm:$0xff] 0.0
  %4198 = vst [vmem:[%s4150 + $0x1f8] sm:$0xff] 0.0
  %4199 = vst [vmem:[%s4150 + $0x258] sm:$0xff] 0.0
  %4200 = vst [vmem:[%s4150 + $0x278] sm:$0xff] 0.0
  %4201 = vst [vmem:[%s4150 + $0x298] sm:$0xff] 0.0
  %4202 = vst [vmem:[%s4150 + $0x2b8] sm:$0xff] 0.0
  %4203 = vst [vmem:[%s4150 + $0x2d8] sm:$0xff] 0.0
  %4204 = vst [vmem:[%s4150 + $0x2f8] sm:$0xff] 0.0
  %4205 = vst [vmem:[%s4150 + $0x318] sm:$0xff] 0.0
  %4206 = vst [vmem:[%s4150 + $0x338] sm:$0xff] 0.0
  %4207 = vst [vmem:[%s4150 + $0x358] sm:$0xff] 0.0
  %4208 = vst [vmem:[%s4150 + $0x378] sm:$0xff] 0.0
  %4209 = vst [vmem:[%s4150 + $0x398] sm:$0xff] 0.0
  %4210 = vst [vmem:[%s4150 + $0x3b8] sm:$0xff] 0.0
  %4211 = vst [vmem:[%s4150 + $0x3d8] sm:$0xff] 0.0
  %4212 = vst [vmem:[%s4150 + $0x3f8] sm:$0xff] 0.0
  %4213 = vst [vmem:[%s4150 + $0x418] sm:$0xff] 0.0
  %4214 = vst [vmem:[%s4150 + $0x438] sm:$0xff] 0.0
  %4215 = vst [vmem:[%s4150 + $0x8] sm:$0xff] %v4069
  %4216 = vst [vmem:[%s4150 + $0x10] sm:$0xff] %v4070
  %4217 = vst [vmem:[%s4150 + $0x28] sm:$0xff] %v4071
  %4218 = vst [vmem:[%s4150 + $0x30] sm:$0xff] %v4072
  %4219 = vst [vmem:[%s4150 + $0x48] sm:$0xff] %v4073
  %4220 = vst [vmem:[%s4150 + $0x50] sm:$0xff] %v4074
  %4221 = vst [vmem:[%s4150 + $0x68] sm:$0xff] %v4075
  %4222 = vst [vmem:[%s4150 + $0x70] sm:$0xff] %v4076
  %4223 = vst [vmem:[%s4150 + $0x88] sm:$0xff] %v4077
  %4224 = vst [vmem:[%s4150 + $0x90] sm:$0xff] %v4078
  %4225 = vst [vmem:[%s4150 + $0xa8] sm:$0xff] %v4079
  %4226 = vst [vmem:[%s4150 + $0xb0] sm:$0xff] %v4080
  %4227 = vst [vmem:[%s4150 + $0xc8] sm:$0xff] %v4081
  %4228 = vst [vmem:[%s4150 + $0xd0] sm:$0xff] %v4082
  %4229 = vst [vmem:[%s4150 + $0xe8] sm:$0xff] %v4083
  %4230 = vst [vmem:[%s4150 + $0xf0] sm:$0xff] %v4084
  %4231 = vst [vmem:[%s4150 + $0x108] sm:$0xff] %v4085
  %4232 = vst [vmem:[%s4150 + $0x110] sm:$0xff] %v4086
  %4233 = vst [vmem:[%s4150 + $0x128] sm:$0xff] %v4087
  %4234 = vst [vmem:[%s4150 + $0x130] sm:$0xff] %v4088
  %4235 = vst [vmem:[%s4150 + $0x148] sm:$0xff] %v4089
  %4236 = vst [vmem:[%s4150 + $0x150] sm:$0xff] %v4090
  %4237 = vst [vmem:[%s4150 + $0x168] sm:$0xff] %v4091
  %4238 = vst [vmem:[%s4150 + $0x170] sm:$0xff] %v4092
  %4239 = vst [vmem:[%s4150 + $0x188] sm:$0xff] %v4093
  %4240 = vst [vmem:[%s4150 + $0x190] sm:$0xff] %v4094
  %4241 = vst [vmem:[%s4150 + $0x1a8] sm:$0xff] %v4095
  %4242 = vst [vmem:[%s4150 + $0x1b0] sm:$0xff] %v4096
  %4243 = vst [vmem:[%s4150 + $0x1c8] sm:$0xff] %v4097
  %4244 = vst [vmem:[%s4150 + $0x1d0] sm:$0xff] %v4098
  %4245 = vst [vmem:[%s4150 + $0x1e8] sm:$0xff] %v4099
  %4246 = vst [vmem:[%s4150 + $0x1f0] sm:$0xff] %v4100
  %4247 = vst [vmem:[%s4150 + $0x248] sm:$0xff] %v4101
  %4248 = vst [vmem:[%s4150 + $0x250] sm:$0xff] %v4102
  %4249 = vst [vmem:[%s4150 + $0x268] sm:$0xff] %v4103
  %4250 = vst [vmem:[%s4150 + $0x270] sm:$0xff] %v4104
  %4251 = vst [vmem:[%s4150 + $0x288] sm:$0xff] %v4105
  %4252 = vst [vmem:[%s4150 + $0x290] sm:$0xff] %v4106
  %4253 = vst [vmem:[%s4150 + $0x2a8] sm:$0xff] %v4107
  %4254 = vst [vmem:[%s4150 + $0x2b0] sm:$0xff] %v4108
  %4255 = vst [vmem:[%s4150 + $0x2c8] sm:$0xff] %v4109
  %4256 = vst [vmem:[%s4150 + $0x2d0] sm:$0xff] %v4110
  %4257 = vst [vmem:[%s4150 + $0x2e8] sm:$0xff] %v4111
  %4258 = vst [vmem:[%s4150 + $0x2f0] sm:$0xff] %v4112
  %4259 = vst [vmem:[%s4150 + $0x308] sm:$0xff] %v4113
  %4260 = vst [vmem:[%s4150 + $0x310] sm:$0xff] %v4114
  %4261 = vst [vmem:[%s4150 + $0x328] sm:$0xff] %v4115
  %4262 = vst [vmem:[%s4150 + $0x330] sm:$0xff] %v4116
  %4263 = vst [vmem:[%s4150 + $0x348] sm:$0xff] %v4117
  %4264 = vst [vmem:[%s4150 + $0x350] sm:$0xff] %v4118
  %4265 = vst [vmem:[%s4150 + $0x368] sm:$0xff] %v4119
  %4266 = vst [vmem:[%s4150 + $0x370] sm:$0xff] %v4120
  %4267 = vst [vmem:[%s4150 + $0x388] sm:$0xff] %v4121
  %4268 = vst [vmem:[%s4150 + $0x390] sm:$0xff] %v4122
  %4269 = vst [vmem:[%s4150 + $0x3a8] sm:$0xff] %v4123
  %4270 = vst [vmem:[%s4150 + $0x3b0] sm:$0xff] %v4124
  %4271 = vst [vmem:[%s4150 + $0x3c8] sm:$0xff] %v4125
  %4272 = vst [vmem:[%s4150 + $0x3d0] sm:$0xff] %v4126
  %4273 = vst [vmem:[%s4150 + $0x3e8] sm:$0xff] %v4127
  %4274 = vst [vmem:[%s4150 + $0x3f0] sm:$0xff] %v4128
  %4275 = vst [vmem:[%s4150 + $0x408] sm:$0xff] %v4129
  %4276 = vst [vmem:[%s4150 + $0x410] sm:$0xff] %v4130
  %4277 = vst [vmem:[%s4150 + $0x428] sm:$0xff] %v4131
  %4278 = vst [vmem:[%s4150 + $0x430] sm:$0xff] %v4132
  %v4279 = vld [vmem:[#allocation3 + $0x7] sm:$0xff]
  %v4280 = vld [vmem:[#allocation3 + $0xf] sm:$0xff]
  %v4281 = vld [vmem:[#allocation3 + $0x27] sm:$0xff]
  %v4282 = vld [vmem:[#allocation3 + $0x2f] sm:$0xff]
  %v4283 = vld [vmem:[#allocation3 + $0x47] sm:$0xff]
  %v4284 = vld [vmem:[#allocation3 + $0x4f] sm:$0xff]
  %v4285 = vld [vmem:[#allocation3 + $0x67] sm:$0xff]
  %v4286 = vld [vmem:[#allocation3 + $0x6f] sm:$0xff]
  %v4287 = vld [vmem:[#allocation3 + $0x87] sm:$0xff]
  %v4288 = vld [vmem:[#allocation3 + $0x8f] sm:$0xff]
  %v4289 = vld [vmem:[#allocation3 + $0xa7] sm:$0xff]
  %v4290 = vld [vmem:[#allocation3 + $0xaf] sm:$0xff]
  %v4291 = vld [vmem:[#allocation3 + $0xc7] sm:$0xff]
  %v4292 = vld [vmem:[#allocation3 + $0xcf] sm:$0xff]
  %v4293 = vld [vmem:[#allocation3 + $0xe7] sm:$0xff]
  %v4294 = vld [vmem:[#allocation3 + $0xef] sm:$0xff]
  %v4295 = vld [vmem:[#allocation3 + $0x107] sm:$0xff]
  %v4296 = vld [vmem:[#allocation3 + $0x10f] sm:$0xff]
  %v4297 = vld [vmem:[#allocation3 + $0x127] sm:$0xff]
  %v4298 = vld [vmem:[#allocation3 + $0x12f] sm:$0xff]
  %v4299 = vld [vmem:[#allocation3 + $0x147] sm:$0xff]
  %v4300 = vld [vmem:[#allocation3 + $0x14f] sm:$0xff]
  %v4301 = vld [vmem:[#allocation3 + $0x167] sm:$0xff]
  %v4302 = vld [vmem:[#allocation3 + $0x16f] sm:$0xff]
  %v4303 = vld [vmem:[#allocation3 + $0x187] sm:$0xff]
  %v4304 = vld [vmem:[#allocation3 + $0x18f] sm:$0xff]
  %v4305 = vld [vmem:[#allocation3 + $0x1a7] sm:$0xff]
  %v4306 = vld [vmem:[#allocation3 + $0x1af] sm:$0xff]
  %v4307 = vld [vmem:[#allocation3 + $0x1c7] sm:$0xff]
  %v4308 = vld [vmem:[#allocation3 + $0x1cf] sm:$0xff]
  %v4309 = vld [vmem:[#allocation3 + $0x1e7] sm:$0xff]
  %v4310 = vld [vmem:[#allocation3 + $0x1ef] sm:$0xff]
  %v4311 = vld [vmem:[#allocation3 + $0x247] sm:$0xff]
  %v4312 = vld [vmem:[#allocation3 + $0x24f] sm:$0xff]
  %v4313 = vld [vmem:[#allocation3 + $0x267] sm:$0xff]
  %v4314 = vld [vmem:[#allocation3 + $0x26f] sm:$0xff]
  %v4315 = vld [vmem:[#allocation3 + $0x287] sm:$0xff]
  %v4316 = vld [vmem:[#allocation3 + $0x28f] sm:$0xff]
  %v4317 = vld [vmem:[#allocation3 + $0x2a7] sm:$0xff]
  %v4318 = vld [vmem:[#allocation3 + $0x2af] sm:$0xff]
  %v4319 = vld [vmem:[#allocation3 + $0x2c7] sm:$0xff]
  %v4320 = vld [vmem:[#allocation3 + $0x2cf] sm:$0xff]
  %v4321 = vld [vmem:[#allocation3 + $0x2e7] sm:$0xff]
  %v4322 = vld [vmem:[#allocation3 + $0x2ef] sm:$0xff]
  %v4323 = vld [vmem:[#allocation3 + $0x307] sm:$0xff]
  %v4324 = vld [vmem:[#allocation3 + $0x30f] sm:$0xff]
  %v4325 = vld [vmem:[#allocation3 + $0x327] sm:$0xff]
  %v4326 = vld [vmem:[#allocation3 + $0x32f] sm:$0xff]
  %v4327 = vld [vmem:[#allocation3 + $0x347] sm:$0xff]
  %v4328 = vld [vmem:[#allocation3 + $0x34f] sm:$0xff]
  %v4329 = vld [vmem:[#allocation3 + $0x367] sm:$0xff]
  %v4330 = vld [vmem:[#allocation3 + $0x36f] sm:$0xff]
  %v4331 = vld [vmem:[#allocation3 + $0x387] sm:$0xff]
  %v4332 = vld [vmem:[#allocation3 + $0x38f] sm:$0xff]
  %v4333 = vld [vmem:[#allocation3 + $0x3a7] sm:$0xff]
  %v4334 = vld [vmem:[#allocation3 + $0x3af] sm:$0xff]
  %v4335 = vld [vmem:[#allocation3 + $0x3c7] sm:$0xff]
  %v4336 = vld [vmem:[#allocation3 + $0x3cf] sm:$0xff]
  %v4337 = vld [vmem:[#allocation3 + $0x3e7] sm:$0xff]
  %v4338 = vld [vmem:[#allocation3 + $0x3ef] sm:$0xff]
  %v4339 = vld [vmem:[#allocation3 + $0x407] sm:$0xff]
  %v4340 = vld [vmem:[#allocation3 + $0x40f] sm:$0xff]
  %v4341 = vld [vmem:[#allocation3 + $0x427] sm:$0xff]
  %v4342 = vld [vmem:[#allocation3 + $0x42f] sm:$0xff]
  %v4343 = vld [vmem:[#allocation3 + $0x8] sm:$0xff]
  %v4344 = vld [vmem:[#allocation3 + $0x10] sm:$0xff]
  %v4345 = vld [vmem:[#allocation3 + $0x28] sm:$0xff]
  %v4346 = vld [vmem:[#allocation3 + $0x30] sm:$0xff]
  %v4347 = vld [vmem:[#allocation3 + $0x48] sm:$0xff]
  %v4348 = vld [vmem:[#allocation3 + $0x50] sm:$0xff]
  %v4349 = vld [vmem:[#allocation3 + $0x68] sm:$0xff]
  %v4350 = vld [vmem:[#allocation3 + $0x70] sm:$0xff]
  %v4351 = vld [vmem:[#allocation3 + $0x88] sm:$0xff]
  %v4352 = vld [vmem:[#allocation3 + $0x90] sm:$0xff]
  %v4353 = vld [vmem:[#allocation3 + $0xa8] sm:$0xff]
  %v4354 = vld [vmem:[#allocation3 + $0xb0] sm:$0xff]
  %v4355 = vld [vmem:[#allocation3 + $0xc8] sm:$0xff]
  %v4356 = vld [vmem:[#allocation3 + $0xd0] sm:$0xff]
  %v4357 = vld [vmem:[#allocation3 + $0xe8] sm:$0xff]
  %v4358 = vld [vmem:[#allocation3 + $0xf0] sm:$0xff]
  %v4359 = vld [vmem:[#allocation3 + $0x108] sm:$0xff]
  %v4360 = vld [vmem:[#allocation3 + $0x110] sm:$0xff]
  %v4361 = vld [vmem:[#allocation3 + $0x128] sm:$0xff]
  %v4362 = vld [vmem:[#allocation3 + $0x130] sm:$0xff]
  %v4363 = vld [vmem:[#allocation3 + $0x148] sm:$0xff]
  %v4364 = vld [vmem:[#allocation3 + $0x150] sm:$0xff]
  %v4365 = vld [vmem:[#allocation3 + $0x168] sm:$0xff]
  %v4366 = vld [vmem:[#allocation3 + $0x170] sm:$0xff]
  %v4367 = vld [vmem:[#allocation3 + $0x188] sm:$0xff]
  %v4368 = vld [vmem:[#allocation3 + $0x190] sm:$0xff]
  %v4369 = vld [vmem:[#allocation3 + $0x1a8] sm:$0xff]
  %v4370 = vld [vmem:[#allocation3 + $0x1b0] sm:$0xff]
  %v4371 = vld [vmem:[#allocation3 + $0x1c8] sm:$0xff]
  %v4372 = vld [vmem:[#allocation3 + $0x1d0] sm:$0xff]
  %v4373 = vld [vmem:[#allocation3 + $0x1e8] sm:$0xff]
  %v4374 = vld [vmem:[#allocation3 + $0x1f0] sm:$0xff]
  %v4375 = vld [vmem:[#allocation3 + $0x248] sm:$0xff]
  %v4376 = vld [vmem:[#allocation3 + $0x250] sm:$0xff]
  %v4377 = vld [vmem:[#allocation3 + $0x268] sm:$0xff]
  %v4378 = vld [vmem:[#allocation3 + $0x270] sm:$0xff]
  %v4379 = vld [vmem:[#allocation3 + $0x288] sm:$0xff]
  %v4380 = vld [vmem:[#allocation3 + $0x290] sm:$0xff]
  %v4381 = vld [vmem:[#allocation3 + $0x2a8] sm:$0xff]
  %v4382 = vld [vmem:[#allocation3 + $0x2b0] sm:$0xff]
  %v4383 = vld [vmem:[#allocation3 + $0x2c8] sm:$0xff]
  %v4384 = vld [vmem:[#allocation3 + $0x2d0] sm:$0xff]
  %v4385 = vld [vmem:[#allocation3 + $0x2e8] sm:$0xff]
  %v4386 = vld [vmem:[#allocation3 + $0x2f0] sm:$0xff]
  %v4387 = vld [vmem:[#allocation3 + $0x308] sm:$0xff]
  %v4388 = vld [vmem:[#allocation3 + $0x310] sm:$0xff]
  %v4389 = vld [vmem:[#allocation3 + $0x328] sm:$0xff]
  %v4390 = vld [vmem:[#allocation3 + $0x330] sm:$0xff]
  %v4391 = vld [vmem:[#allocation3 + $0x348] sm:$0xff]
  %v4392 = vld [vmem:[#allocation3 + $0x350] sm:$0xff]
  %v4393 = vld [vmem:[#allocation3 + $0x368] sm:$0xff]
  %v4394 = vld [vmem:[#allocation3 + $0x370] sm:$0xff]
  %v4395 = vld [vmem:[#allocation3 + $0x388] sm:$0xff]
  %v4396 = vld [vmem:[#allocation3 + $0x390] sm:$0xff]
  %v4397 = vld [vmem:[#allocation3 + $0x3a8] sm:$0xff]
  %v4398 = vld [vmem:[#allocation3 + $0x3b0] sm:$0xff]
  %v4399 = vld [vmem:[#allocation3 + $0x3c8] sm:$0xff]
  %v4400 = vld [vmem:[#allocation3 + $0x3d0] sm:$0xff]
  %v4401 = vld [vmem:[#allocation3 + $0x3e8] sm:$0xff]
  %v4402 = vld [vmem:[#allocation3 + $0x3f0] sm:$0xff]
  %v4403 = vld [vmem:[#allocation3 + $0x408] sm:$0xff]
  %v4404 = vld [vmem:[#allocation3 + $0x410] sm:$0xff]
  %v4405 = vld [vmem:[#allocation3 + $0x428] sm:$0xff]
  %v4406 = vld [vmem:[#allocation3 + $0x430] sm:$0xff]
  %v4407 = vld [vmem:[%s4] sm:$0xff]
  %v4408 = vld [vmem:[%s4 + $0x8] sm:$0xff]
  %v4409 = vld [vmem:[%s4 + $0x10] sm:$0xff]
  %v4410 = vld [vmem:[%s4 + $0x18] sm:$0xff]
  %v4411 = vld [vmem:[%s4 + $0x20] sm:$0xff]
  %v4412 = vld [vmem:[%s4 + $0x28] sm:$0xff]
  %v4413 = vld [vmem:[%s4 + $0x30] sm:$0xff]
  %v4414 = vld [vmem:[%s4 + $0x38] sm:$0xff]
  %v4415 = vld [vmem:[%s4 + $0x40] sm:$0xff]
  %v4416 = vld [vmem:[%s4 + $0x48] sm:$0xff]
  %v4417 = vld [vmem:[%s4 + $0x50] sm:$0xff]
  %v4418 = vld [vmem:[%s4 + $0x58] sm:$0xff]
  %v4419 = vld [vmem:[%s4 + $0x60] sm:$0xff]
  %v4420 = vld [vmem:[%s4 + $0x68] sm:$0xff]
  %v4421 = vld [vmem:[%s4 + $0x70] sm:$0xff]
  %v4422 = vld [vmem:[%s4 + $0x78] sm:$0xff]
  %v4423 = vld [vmem:[%s4 + $0x80] sm:$0xff]
  %v4424 = vld [vmem:[%s4 + $0x88] sm:$0xff]
  %v4425 = vld [vmem:[%s4 + $0x90] sm:$0xff]
  %v4426 = vld [vmem:[%s4 + $0x98] sm:$0xff]
  %v4427 = vld [vmem:[%s4 + $0xa0] sm:$0xff]
  %v4428 = vld [vmem:[%s4 + $0xa8] sm:$0xff]
  %v4429 = vld [vmem:[%s4 + $0xb0] sm:$0xff]
  %v4430 = vld [vmem:[%s4 + $0xb8] sm:$0xff]
  %v4431 = vld [vmem:[%s4 + $0xc0] sm:$0xff]
  %v4432 = vld [vmem:[%s4 + $0xc8] sm:$0xff]
  %v4433 = vld [vmem:[%s4 + $0xd0] sm:$0xff]
  %v4434 = vld [vmem:[%s4 + $0xd8] sm:$0xff]
  %v4435 = vld [vmem:[%s4 + $0xe0] sm:$0xff]
  %v4436 = vld [vmem:[%s4 + $0xe8] sm:$0xff]
  %v4437 = vld [vmem:[%s4 + $0xf0] sm:$0xff]
  %v4438 = vld [vmem:[%s4 + $0xf8] sm:$0xff]
  %v4439 = vld [vmem:[#allocation3 + $0x9] sm:$0xff]
  %v4440 = vld [vmem:[#allocation3 + $0x11] sm:$0xff]
  %v4441 = vld [vmem:[#allocation3 + $0x29] sm:$0xff]
  %v4442 = vld [vmem:[#allocation3 + $0x31] sm:$0xff]
  %v4443 = vld [vmem:[#allocation3 + $0x49] sm:$0xff]
  %v4444 = vld [vmem:[#allocation3 + $0x51] sm:$0xff]
  %v4445 = vld [vmem:[#allocation3 + $0x69] sm:$0xff]
  %v4446 = vld [vmem:[#allocation3 + $0x71] sm:$0xff]
  %v4447 = vld [vmem:[#allocation3 + $0x89] sm:$0xff]
  %v4448 = vld [vmem:[#allocation3 + $0x91] sm:$0xff]
  %v4449 = vld [vmem:[#allocation3 + $0xa9] sm:$0xff]
  %v4450 = vld [vmem:[#allocation3 + $0xb1] sm:$0xff]
  %v4451 = vld [vmem:[#allocation3 + $0xc9] sm:$0xff]
  %v4452 = vld [vmem:[#allocation3 + $0xd1] sm:$0xff]
  %v4453 = vld [vmem:[#allocation3 + $0xe9] sm:$0xff]
  %v4454 = vld [vmem:[#allocation3 + $0xf1] sm:$0xff]
  %v4455 = vld [vmem:[#allocation3 + $0x109] sm:$0xff]
  %v4456 = vld [vmem:[#allocation3 + $0x111] sm:$0xff]
  %v4457 = vld [vmem:[#allocation3 + $0x129] sm:$0xff]
  %v4458 = vld [vmem:[#allocation3 + $0x131] sm:$0xff]
  %v4459 = vld [vmem:[#allocation3 + $0x149] sm:$0xff]
  %v4460 = vld [vmem:[#allocation3 + $0x151] sm:$0xff]
  %v4461 = vld [vmem:[#allocation3 + $0x169] sm:$0xff]
  %v4462 = vld [vmem:[#allocation3 + $0x171] sm:$0xff]
  %v4463 = vld [vmem:[#allocation3 + $0x189] sm:$0xff]
  %v4464 = vld [vmem:[#allocation3 + $0x191] sm:$0xff]
  %v4465 = vld [vmem:[#allocation3 + $0x1a9] sm:$0xff]
  %v4466 = vld [vmem:[#allocation3 + $0x1b1] sm:$0xff]
  %v4467 = vld [vmem:[#allocation3 + $0x1c9] sm:$0xff]
  %v4468 = vld [vmem:[#allocation3 + $0x1d1] sm:$0xff]
  %v4469 = vld [vmem:[#allocation3 + $0x1e9] sm:$0xff]
  %v4470 = vld [vmem:[#allocation3 + $0x1f1] sm:$0xff]
  %v4471 = vld [vmem:[#allocation3 + $0x249] sm:$0xff]
  %v4472 = vld [vmem:[#allocation3 + $0x251] sm:$0xff]
  %v4473 = vld [vmem:[#allocation3 + $0x269] sm:$0xff]
  %v4474 = vld [vmem:[#allocation3 + $0x271] sm:$0xff]
  %v4475 = vld [vmem:[#allocation3 + $0x289] sm:$0xff]
  %v4476 = vld [vmem:[#allocation3 + $0x291] sm:$0xff]
  %v4477 = vld [vmem:[#allocation3 + $0x2a9] sm:$0xff]
  %v4478 = vld [vmem:[#allocation3 + $0x2b1] sm:$0xff]
  %v4479 = vld [vmem:[#allocation3 + $0x2c9] sm:$0xff]
  %v4480 = vld [vmem:[#allocation3 + $0x2d1] sm:$0xff]
  %v4481 = vld [vmem:[#allocation3 + $0x2e9] sm:$0xff]
  %v4482 = vld [vmem:[#allocation3 + $0x2f1] sm:$0xff]
  %v4483 = vld [vmem:[#allocation3 + $0x309] sm:$0xff]
  %v4484 = vld [vmem:[#allocation3 + $0x311] sm:$0xff]
  %v4485 = vld [vmem:[#allocation3 + $0x329] sm:$0xff]
  %v4486 = vld [vmem:[#allocation3 + $0x331] sm:$0xff]
  %v4487 = vld [vmem:[#allocation3 + $0x349] sm:$0xff]
  %v4488 = vld [vmem:[#allocation3 + $0x351] sm:$0xff]
  %v4489 = vld [vmem:[#allocation3 + $0x369] sm:$0xff]
  %v4490 = vld [vmem:[#allocation3 + $0x371] sm:$0xff]
  %v4491 = vld [vmem:[#allocation3 + $0x389] sm:$0xff]
  %v4492 = vld [vmem:[#allocation3 + $0x391] sm:$0xff]
  %v4493 = vld [vmem:[#allocation3 + $0x3a9] sm:$0xff]
  %v4494 = vld [vmem:[#allocation3 + $0x3b1] sm:$0xff]
  %v4495 = vld [vmem:[#allocation3 + $0x3c9] sm:$0xff]
  %v4496 = vld [vmem:[#allocation3 + $0x3d1] sm:$0xff]
  %v4497 = vld [vmem:[#allocation3 + $0x3e9] sm:$0xff]
  %v4498 = vld [vmem:[#allocation3 + $0x3f1] sm:$0xff]
  %v4499 = vld [vmem:[#allocation3 + $0x409] sm:$0xff]
  %v4500 = vld [vmem:[#allocation3 + $0x411] sm:$0xff]
  %v4501 = vld [vmem:[#allocation3 + $0x429] sm:$0xff]
  %v4502 = vld [vmem:[#allocation3 + $0x431] sm:$0xff]
  %v4503 = vld [vmem:[%s4150 + $0x7] sm:$0xff]
  %v4504 = vld [vmem:[%s4150 + $0xf] sm:$0xff]
  %v4505 = vld [vmem:[%s4150 + $0x27] sm:$0xff]
  %v4506 = vld [vmem:[%s4150 + $0x2f] sm:$0xff]
  %v4507 = vld [vmem:[%s4150 + $0x47] sm:$0xff]
  %v4508 = vld [vmem:[%s4150 + $0x4f] sm:$0xff]
  %v4509 = vld [vmem:[%s4150 + $0x67] sm:$0xff]
  %v4510 = vld [vmem:[%s4150 + $0x6f] sm:$0xff]
  %v4511 = vld [vmem:[%s4150 + $0x87] sm:$0xff]
  %v4512 = vld [vmem:[%s4150 + $0x8f] sm:$0xff]
  %v4513 = vld [vmem:[%s4150 + $0xa7] sm:$0xff]
  %v4514 = vld [vmem:[%s4150 + $0xaf] sm:$0xff]
  %v4515 = vld [vmem:[%s4150 + $0xc7] sm:$0xff]
  %v4516 = vld [vmem:[%s4150 + $0xcf] sm:$0xff]
  %v4517 = vld [vmem:[%s4150 + $0xe7] sm:$0xff]
  %v4518 = vld [vmem:[%s4150 + $0xef] sm:$0xff]
  %v4519 = vld [vmem:[%s4150 + $0x107] sm:$0xff]
  %v4520 = vld [vmem:[%s4150 + $0x10f] sm:$0xff]
  %v4521 = vld [vmem:[%s4150 + $0x127] sm:$0xff]
  %v4522 = vld [vmem:[%s4150 + $0x12f] sm:$0xff]
  %v4523 = vld [vmem:[%s4150 + $0x147] sm:$0xff]
  %v4524 = vld [vmem:[%s4150 + $0x14f] sm:$0xff]
  %v4525 = vld [vmem:[%s4150 + $0x167] sm:$0xff]
  %v4526 = vld [vmem:[%s4150 + $0x16f] sm:$0xff]
  %v4527 = vld [vmem:[%s4150 + $0x187] sm:$0xff]
  %v4528 = vld [vmem:[%s4150 + $0x18f] sm:$0xff]
  %v4529 = vld [vmem:[%s4150 + $0x1a7] sm:$0xff]
  %v4530 = vld [vmem:[%s4150 + $0x1af] sm:$0xff]
  %v4531 = vld [vmem:[%s4150 + $0x1c7] sm:$0xff]
  %v4532 = vld [vmem:[%s4150 + $0x1cf] sm:$0xff]
  %v4533 = vld [vmem:[%s4150 + $0x1e7] sm:$0xff]
  %v4534 = vld [vmem:[%s4150 + $0x1ef] sm:$0xff]
  %v4535 = vld [vmem:[%s4150 + $0x247] sm:$0xff]
  %v4536 = vld [vmem:[%s4150 + $0x24f] sm:$0xff]
  %v4537 = vld [vmem:[%s4150 + $0x267] sm:$0xff]
  %v4538 = vld [vmem:[%s4150 + $0x26f] sm:$0xff]
  %v4539 = vld [vmem:[%s4150 + $0x287] sm:$0xff]
  %v4540 = vld [vmem:[%s4150 + $0x28f] sm:$0xff]
  %v4541 = vld [vmem:[%s4150 + $0x2a7] sm:$0xff]
  %v4542 = vld [vmem:[%s4150 + $0x2af] sm:$0xff]
  %v4543 = vld [vmem:[%s4150 + $0x2c7] sm:$0xff]
  %v4544 = vld [vmem:[%s4150 + $0x2cf] sm:$0xff]
  %v4545 = vld [vmem:[%s4150 + $0x2e7] sm:$0xff]
  %v4546 = vld [vmem:[%s4150 + $0x2ef] sm:$0xff]
  %v4547 = vld [vmem:[%s4150 + $0x307] sm:$0xff]
  %v4548 = vld [vmem:[%s4150 + $0x30f] sm:$0xff]
  %v4549 = vld [vmem:[%s4150 + $0x327] sm:$0xff]
  %v4550 = vld [vmem:[%s4150 + $0x32f] sm:$0xff]
  %v4551 = vld [vmem:[%s4150 + $0x347] sm:$0xff]
  %v4552 = vld [vmem:[%s4150 + $0x34f] sm:$0xff]
  %v4553 = vld [vmem:[%s4150 + $0x367] sm:$0xff]
  %v4554 = vld [vmem:[%s4150 + $0x36f] sm:$0xff]
  %v4555 = vld [vmem:[%s4150 + $0x387] sm:$0xff]
  %v4556 = vld [vmem:[%s4150 + $0x38f] sm:$0xff]
  %v4557 = vld [vmem:[%s4150 + $0x3a7] sm:$0xff]
  %v4558 = vld [vmem:[%s4150 + $0x3af] sm:$0xff]
  %v4559 = vld [vmem:[%s4150 + $0x3c7] sm:$0xff]
  %v4560 = vld [vmem:[%s4150 + $0x3cf] sm:$0xff]
  %v4561 = vld [vmem:[%s4150 + $0x3e7] sm:$0xff]
  %v4562 = vld [vmem:[%s4150 + $0x3ef] sm:$0xff]
  %v4563 = vld [vmem:[%s4150 + $0x407] sm:$0xff]
  %v4564 = vld [vmem:[%s4150 + $0x40f] sm:$0xff]
  %v4565 = vld [vmem:[%s4150 + $0x427] sm:$0xff]
  %v4566 = vld [vmem:[%s4150 + $0x42f] sm:$0xff]
  %s4567 = scalar_lea.vmem %s4, 256
  %v4568 = vld [vmem:[%s4567] sm:$0xff]
  %v4569 = vld [vmem:[%s4567 + $0x8] sm:$0xff]
  %v4570 = vld [vmem:[%s4567 + $0x10] sm:$0xff]
  %v4571 = vld [vmem:[%s4567 + $0x18] sm:$0xff]
  %v4572 = vld [vmem:[%s4567 + $0x20] sm:$0xff]
  %v4573 = vld [vmem:[%s4567 + $0x28] sm:$0xff]
  %v4574 = vld [vmem:[%s4567 + $0x30] sm:$0xff]
  %v4575 = vld [vmem:[%s4567 + $0x38] sm:$0xff]
  %v4576 = vld [vmem:[%s4567 + $0x40] sm:$0xff]
  %v4577 = vld [vmem:[%s4567 + $0x48] sm:$0xff]
  %v4578 = vld [vmem:[%s4567 + $0x50] sm:$0xff]
  %v4579 = vld [vmem:[%s4567 + $0x58] sm:$0xff]
  %v4580 = vld [vmem:[%s4567 + $0x60] sm:$0xff]
  %v4581 = vld [vmem:[%s4567 + $0x68] sm:$0xff]
  %v4582 = vld [vmem:[%s4567 + $0x70] sm:$0xff]
  %v4583 = vld [vmem:[%s4567 + $0x78] sm:$0xff]
  %v4584 = vld [vmem:[%s4567 + $0x80] sm:$0xff]
  %v4585 = vld [vmem:[%s4567 + $0x88] sm:$0xff]
  %v4586 = vld [vmem:[%s4567 + $0x90] sm:$0xff]
  %v4587 = vld [vmem:[%s4567 + $0x98] sm:$0xff]
  %v4588 = vld [vmem:[%s4567 + $0xa0] sm:$0xff]
  %v4589 = vld [vmem:[%s4567 + $0xa8] sm:$0xff]
  %v4590 = vld [vmem:[%s4567 + $0xb0] sm:$0xff]
  %v4591 = vld [vmem:[%s4567 + $0xb8] sm:$0xff]
  %v4592 = vld [vmem:[%s4567 + $0xc0] sm:$0xff]
  %v4593 = vld [vmem:[%s4567 + $0xc8] sm:$0xff]
  %v4594 = vld [vmem:[%s4567 + $0xd0] sm:$0xff]
  %v4595 = vld [vmem:[%s4567 + $0xd8] sm:$0xff]
  %v4596 = vld [vmem:[%s4567 + $0xe0] sm:$0xff]
  %v4597 = vld [vmem:[%s4567 + $0xe8] sm:$0xff]
  %v4598 = vld [vmem:[%s4567 + $0xf0] sm:$0xff]
  %v4599 = vld [vmem:[%s4567 + $0xf8] sm:$0xff]
  %4600 = vmatprep.subr.mxu0 0.0
  %4601 = vmatpush1.msra.mxu0 %v4583
  %4602 = vmatprep.subr.mxu0 0.0
  %4603 = vmatpush1.msra.mxu0 %v4582
  %4604 = vmatprep.subr.mxu0 0.0
  %4605 = vmatpush1.msra.mxu0 %v4581
  %4606 = vmatprep.subr.mxu0 0.0
  %4607 = vmatpush1.msra.mxu0 %v4580
  %4608 = vmatprep.subr.mxu0 0.0
  %4609 = vmatpush1.msra.mxu0 %v4579
  %4610 = vmatprep.subr.mxu0 0.0
  %4611 = vmatpush1.msra.mxu0 %v4578
  %4612 = vmatprep.subr.mxu0 0.0
  %4613 = vmatpush1.msra.mxu0 %v4577
  %4614 = vmatprep.subr.mxu0 0.0
  %4615 = vmatpush1.msra.mxu0 %v4576
  %4616 = vmatprep.subr.mxu0 0.0
  %4617 = vmatpush1.msra.mxu0 %v4575
  %4618 = vmatprep.subr.mxu0 0.0
  %4619 = vmatpush1.msra.mxu0 %v4574
  %4620 = vmatprep.subr.mxu0 0.0
  %4621 = vmatpush1.msra.mxu0 %v4573
  %4622 = vmatprep.subr.mxu0 0.0
  %4623 = vmatpush1.msra.mxu0 %v4572
  %4624 = vmatprep.subr.mxu0 0.0
  %4625 = vmatpush1.msra.mxu0 %v4571
  %4626 = vmatprep.subr.mxu0 0.0
  %4627 = vmatpush1.msra.mxu0 %v4570
  %4628 = vmatprep.subr.mxu0 0.0
  %4629 = vmatpush1.msra.mxu0 %v4569
  %4630 = vmatprep.subr.mxu0 0.0
  %4631 = vmatpush1.msra.mxu0 %v4568
  %4632 = vmatprep.subr.mxu0 0.0
  %4633 = vmatpush2.msra.mxu0 %v4599
  %4634 = vmatprep.subr.mxu0 0.0
  %4635 = vmatpush2.msra.mxu0 %v4598
  %4636 = vmatprep.subr.mxu0 0.0
  %4637 = vmatpush2.msra.mxu0 %v4597
  %4638 = vmatprep.subr.mxu0 0.0
  %4639 = vmatpush2.msra.mxu0 %v4596
  %4640 = vmatprep.subr.mxu0 0.0
  %4641 = vmatpush2.msra.mxu0 %v4595
  %4642 = vmatprep.subr.mxu0 0.0
  %4643 = vmatpush2.msra.mxu0 %v4594
  %4644 = vmatprep.subr.mxu0 0.0
  %4645 = vmatpush2.msra.mxu0 %v4593
  %4646 = vmatprep.subr.mxu0 0.0
  %4647 = vmatpush2.msra.mxu0 %v4592
  %4648 = vmatprep.subr.mxu0 0.0
  %4649 = vmatpush2.msra.mxu0 %v4591
  %4650 = vmatprep.subr.mxu0 0.0
  %4651 = vmatpush2.msra.mxu0 %v4590
  %4652 = vmatprep.subr.mxu0 0.0
  %4653 = vmatpush2.msra.mxu0 %v4589
  %4654 = vmatprep.subr.mxu0 0.0
  %4655 = vmatpush2.msra.mxu0 %v4588
  %4656 = vmatprep.subr.mxu0 0.0
  %4657 = vmatpush2.msra.mxu0 %v4587
  %4658 = vmatprep.subr.mxu0 0.0
  %4659 = vmatpush2.msra.mxu0 %v4586
  %4660 = vmatprep.subr.mxu0 0.0
  %4661 = vmatpush2.msra.mxu0 %v4585
  %4662 = vmatprep.subr.mxu0 0.0
  %4663 = vmatpush2.msra.mxu0 %v4584
  %4664 = vmatprep.mubr.f32.mxu0 %v4503
  %4665 = vmatmul.mubr.f32.gmra.mxu0 %v4439
  %v4666 = vpop.f32.mrf.mxu0
  %v4667 = vadd.f32 0.0, %v4666
  %v4668 = vpop.f32.mrf.mxu0
  %4669 = vmatprep.mubr.f32.mxu0 %v4504
  %4670 = vmatmul.mubr.f32.gmra.mxu0 %v4440
  %v4671 = vpop.f32.mrf.mxu0
  %v4672 = vadd.f32 0.0, %v4671
  %v4673 = vpop.f32.mrf.mxu0
  %4674 = vmatprep.mubr.f32.mxu0 %v4505
  %4675 = vmatmul.mubr.f32.gmra.mxu0 %v4441
  %v4676 = vpop.f32.mrf.mxu0
  %v4677 = vadd.f32 0.0, %v4676
  %v4678 = vpop.f32.mrf.mxu0
  %4679 = vmatprep.mubr.f32.mxu0 %v4506
  %4680 = vmatmul.mubr.f32.gmra.mxu0 %v4442
  %v4681 = vpop.f32.mrf.mxu0
  %v4682 = vadd.f32 0.0, %v4681
  %v4683 = vpop.f32.mrf.mxu0
  %4684 = vmatprep.mubr.f32.mxu0 %v4507
  %4685 = vmatmul.mubr.f32.gmra.mxu0 %v4443
  %v4686 = vpop.f32.mrf.mxu0
  %v4687 = vadd.f32 0.0, %v4686
  %v4688 = vpop.f32.mrf.mxu0
  %4689 = vmatprep.mubr.f32.mxu0 %v4508
  %4690 = vmatmul.mubr.f32.gmra.mxu0 %v4444
  %v4691 = vpop.f32.mrf.mxu0
  %v4692 = vadd.f32 0.0, %v4691
  %v4693 = vpop.f32.mrf.mxu0
  %4694 = vmatprep.mubr.f32.mxu0 %v4509
  %4695 = vmatmul.mubr.f32.gmra.mxu0 %v4445
  %v4696 = vpop.f32.mrf.mxu0
  %v4697 = vadd.f32 0.0, %v4696
  %v4698 = vpop.f32.mrf.mxu0
  %4699 = vmatprep.mubr.f32.mxu0 %v4510
  %4700 = vmatmul.mubr.f32.gmra.mxu0 %v4446
  %v4701 = vpop.f32.mrf.mxu0
  %v4702 = vadd.f32 0.0, %v4701
  %v4703 = vpop.f32.mrf.mxu0
  %4704 = vmatprep.mubr.f32.mxu0 %v4511
  %4705 = vmatmul.mubr.f32.gmra.mxu0 %v4447
  %v4706 = vpop.f32.mrf.mxu0
  %v4707 = vadd.f32 0.0, %v4706
  %v4708 = vpop.f32.mrf.mxu0
  %4709 = vmatprep.mubr.f32.mxu0 %v4512
  %4710 = vmatmul.mubr.f32.gmra.mxu0 %v4448
  %v4711 = vpop.f32.mrf.mxu0
  %v4712 = vadd.f32 0.0, %v4711
  %v4713 = vpop.f32.mrf.mxu0
  %4714 = vmatprep.mubr.f32.mxu0 %v4513
  %4715 = vmatmul.mubr.f32.gmra.mxu0 %v4449
  %v4716 = vpop.f32.mrf.mxu0
  %v4717 = vadd.f32 0.0, %v4716
  %v4718 = vpop.f32.mrf.mxu0
  %4719 = vmatprep.mubr.f32.mxu0 %v4514
  %4720 = vmatmul.mubr.f32.gmra.mxu0 %v4450
  %v4721 = vpop.f32.mrf.mxu0
  %v4722 = vadd.f32 0.0, %v4721
  %v4723 = vpop.f32.mrf.mxu0
  %4724 = vmatprep.mubr.f32.mxu0 %v4515
  %4725 = vmatmul.mubr.f32.gmra.mxu0 %v4451
  %v4726 = vpop.f32.mrf.mxu0
  %v4727 = vadd.f32 0.0, %v4726
  %v4728 = vpop.f32.mrf.mxu0
  %4729 = vmatprep.mubr.f32.mxu0 %v4516
  %4730 = vmatmul.mubr.f32.gmra.mxu0 %v4452
  %v4731 = vpop.f32.mrf.mxu0
  %v4732 = vadd.f32 0.0, %v4731
  %v4733 = vpop.f32.mrf.mxu0
  %4734 = vmatprep.mubr.f32.mxu0 %v4517
  %4735 = vmatmul.mubr.f32.gmra.mxu0 %v4453
  %v4736 = vpop.f32.mrf.mxu0
  %v4737 = vadd.f32 0.0, %v4736
  %v4738 = vpop.f32.mrf.mxu0
  %4739 = vmatprep.mubr.f32.mxu0 %v4518
  %4740 = vmatmul.mubr.f32.gmra.mxu0 %v4454
  %v4741 = vpop.f32.mrf.mxu0
  %v4742 = vadd.f32 0.0, %v4741
  %v4743 = vpop.f32.mrf.mxu0
  %4744 = vmatprep.mubr.f32.mxu0 %v4519
  %4745 = vmatmul.mubr.f32.gmra.mxu0 %v4455
  %v4746 = vpop.f32.mrf.mxu0
  %v4747 = vadd.f32 0.0, %v4746
  %v4748 = vpop.f32.mrf.mxu0
  %4749 = vmatprep.mubr.f32.mxu0 %v4520
  %4750 = vmatmul.mubr.f32.gmra.mxu0 %v4456
  %v4751 = vpop.f32.mrf.mxu0
  %v4752 = vadd.f32 0.0, %v4751
  %v4753 = vpop.f32.mrf.mxu0
  %4754 = vmatprep.mubr.f32.mxu0 %v4521
  %4755 = vmatmul.mubr.f32.gmra.mxu0 %v4457
  %v4756 = vpop.f32.mrf.mxu0
  %v4757 = vadd.f32 0.0, %v4756
  %v4758 = vpop.f32.mrf.mxu0
  %4759 = vmatprep.mubr.f32.mxu0 %v4522
  %4760 = vmatmul.mubr.f32.gmra.mxu0 %v4458
  %v4761 = vpop.f32.mrf.mxu0
  %v4762 = vadd.f32 0.0, %v4761
  %v4763 = vpop.f32.mrf.mxu0
  %4764 = vmatprep.mubr.f32.mxu0 %v4523
  %4765 = vmatmul.mubr.f32.gmra.mxu0 %v4459
  %v4766 = vpop.f32.mrf.mxu0
  %v4767 = vadd.f32 0.0, %v4766
  %v4768 = vpop.f32.mrf.mxu0
  %4769 = vmatprep.mubr.f32.mxu0 %v4524
  %4770 = vmatmul.mubr.f32.gmra.mxu0 %v4460
  %v4771 = vpop.f32.mrf.mxu0
  %v4772 = vadd.f32 0.0, %v4771
  %v4773 = vpop.f32.mrf.mxu0
  %4774 = vmatprep.mubr.f32.mxu0 %v4525
  %4775 = vmatmul.mubr.f32.gmra.mxu0 %v4461
  %v4776 = vpop.f32.mrf.mxu0
  %v4777 = vadd.f32 0.0, %v4776
  %v4778 = vpop.f32.mrf.mxu0
  %4779 = vmatprep.mubr.f32.mxu0 %v4526
  %4780 = vmatmul.mubr.f32.gmra.mxu0 %v4462
  %v4781 = vpop.f32.mrf.mxu0
  %v4782 = vadd.f32 0.0, %v4781
  %v4783 = vpop.f32.mrf.mxu0
  %4784 = vmatprep.mubr.f32.mxu0 %v4527
  %4785 = vmatmul.mubr.f32.gmra.mxu0 %v4463
  %v4786 = vpop.f32.mrf.mxu0
  %v4787 = vadd.f32 0.0, %v4786
  %v4788 = vpop.f32.mrf.mxu0
  %4789 = vmatprep.mubr.f32.mxu0 %v4528
  %4790 = vmatmul.mubr.f32.gmra.mxu0 %v4464
  %v4791 = vpop.f32.mrf.mxu0
  %v4792 = vadd.f32 0.0, %v4791
  %v4793 = vpop.f32.mrf.mxu0
  %4794 = vmatprep.mubr.f32.mxu0 %v4529
  %4795 = vmatmul.mubr.f32.gmra.mxu0 %v4465
  %v4796 = vpop.f32.mrf.mxu0
  %v4797 = vadd.f32 0.0, %v4796
  %v4798 = vpop.f32.mrf.mxu0
  %4799 = vmatprep.mubr.f32.mxu0 %v4530
  %4800 = vmatmul.mubr.f32.gmra.mxu0 %v4466
  %v4801 = vpop.f32.mrf.mxu0
  %v4802 = vadd.f32 0.0, %v4801
  %v4803 = vpop.f32.mrf.mxu0
  %4804 = vmatprep.mubr.f32.mxu0 %v4531
  %4805 = vmatmul.mubr.f32.gmra.mxu0 %v4467
  %v4806 = vpop.f32.mrf.mxu0
  %v4807 = vadd.f32 0.0, %v4806
  %v4808 = vpop.f32.mrf.mxu0
  %4809 = vmatprep.mubr.f32.mxu0 %v4532
  %4810 = vmatmul.mubr.f32.gmra.mxu0 %v4468
  %v4811 = vpop.f32.mrf.mxu0
  %v4812 = vadd.f32 0.0, %v4811
  %v4813 = vpop.f32.mrf.mxu0
  %4814 = vmatprep.mubr.f32.mxu0 %v4533
  %4815 = vmatmul.mubr.f32.gmra.mxu0 %v4469
  %v4816 = vpop.f32.mrf.mxu0
  %v4817 = vadd.f32 0.0, %v4816
  %v4818 = vpop.f32.mrf.mxu0
  %4819 = vmatprep.mubr.f32.mxu0 %v4534
  %4820 = vmatmul.mubr.f32.gmra.mxu0 %v4470
  %v4821 = vpop.f32.mrf.mxu0
  %v4822 = vadd.f32 0.0, %v4821
  %v4823 = vpop.f32.mrf.mxu0
  %4824 = vmatprep.mubr.f32.mxu0 %v4535
  %4825 = vmatmul.mubr.f32.gmra.mxu0 %v4471
  %v4826 = vpop.f32.mrf.mxu0
  %v4827 = vadd.f32 0.0, %v4826
  %v4828 = vpop.f32.mrf.mxu0
  %4829 = vmatprep.mubr.f32.mxu0 %v4536
  %4830 = vmatmul.mubr.f32.gmra.mxu0 %v4472
  %v4831 = vpop.f32.mrf.mxu0
  %v4832 = vadd.f32 0.0, %v4831
  %v4833 = vpop.f32.mrf.mxu0
  %4834 = vmatprep.mubr.f32.mxu0 %v4537
  %4835 = vmatmul.mubr.f32.gmra.mxu0 %v4473
  %v4836 = vpop.f32.mrf.mxu0
  %v4837 = vadd.f32 0.0, %v4836
  %v4838 = vpop.f32.mrf.mxu0
  %4839 = vmatprep.mubr.f32.mxu0 %v4538
  %4840 = vmatmul.mubr.f32.gmra.mxu0 %v4474
  %v4841 = vpop.f32.mrf.mxu0
  %v4842 = vadd.f32 0.0, %v4841
  %v4843 = vpop.f32.mrf.mxu0
  %4844 = vmatprep.mubr.f32.mxu0 %v4539
  %4845 = vmatmul.mubr.f32.gmra.mxu0 %v4475
  %v4846 = vpop.f32.mrf.mxu0
  %v4847 = vadd.f32 0.0, %v4846
  %v4848 = vpop.f32.mrf.mxu0
  %4849 = vmatprep.mubr.f32.mxu0 %v4540
  %4850 = vmatmul.mubr.f32.gmra.mxu0 %v4476
  %v4851 = vpop.f32.mrf.mxu0
  %v4852 = vadd.f32 0.0, %v4851
  %v4853 = vpop.f32.mrf.mxu0
  %4854 = vmatprep.mubr.f32.mxu0 %v4541
  %4855 = vmatmul.mubr.f32.gmra.mxu0 %v4477
  %v4856 = vpop.f32.mrf.mxu0
  %v4857 = vadd.f32 0.0, %v4856
  %v4858 = vpop.f32.mrf.mxu0
  %4859 = vmatprep.mubr.f32.mxu0 %v4542
  %4860 = vmatmul.mubr.f32.gmra.mxu0 %v4478
  %v4861 = vpop.f32.mrf.mxu0
  %v4862 = vadd.f32 0.0, %v4861
  %v4863 = vpop.f32.mrf.mxu0
  %4864 = vmatprep.mubr.f32.mxu0 %v4543
  %4865 = vmatmul.mubr.f32.gmra.mxu0 %v4479
  %v4866 = vpop.f32.mrf.mxu0
  %v4867 = vadd.f32 0.0, %v4866
  %v4868 = vpop.f32.mrf.mxu0
  %4869 = vmatprep.mubr.f32.mxu0 %v4544
  %4870 = vmatmul.mubr.f32.gmra.mxu0 %v4480
  %v4871 = vpop.f32.mrf.mxu0
  %v4872 = vadd.f32 0.0, %v4871
  %v4873 = vpop.f32.mrf.mxu0
  %4874 = vmatprep.mubr.f32.mxu0 %v4545
  %4875 = vmatmul.mubr.f32.gmra.mxu0 %v4481
  %v4876 = vpop.f32.mrf.mxu0
  %v4877 = vadd.f32 0.0, %v4876
  %v4878 = vpop.f32.mrf.mxu0
  %4879 = vmatprep.mubr.f32.mxu0 %v4546
  %4880 = vmatmul.mubr.f32.gmra.mxu0 %v4482
  %v4881 = vpop.f32.mrf.mxu0
  %v4882 = vadd.f32 0.0, %v4881
  %v4883 = vpop.f32.mrf.mxu0
  %4884 = vmatprep.mubr.f32.mxu0 %v4547
  %4885 = vmatmul.mubr.f32.gmra.mxu0 %v4483
  %v4886 = vpop.f32.mrf.mxu0
  %v4887 = vadd.f32 0.0, %v4886
  %v4888 = vpop.f32.mrf.mxu0
  %4889 = vmatprep.mubr.f32.mxu0 %v4548
  %4890 = vmatmul.mubr.f32.gmra.mxu0 %v4484
  %v4891 = vpop.f32.mrf.mxu0
  %v4892 = vadd.f32 0.0, %v4891
  %v4893 = vpop.f32.mrf.mxu0
  %4894 = vmatprep.mubr.f32.mxu0 %v4549
  %4895 = vmatmul.mubr.f32.gmra.mxu0 %v4485
  %v4896 = vpop.f32.mrf.mxu0
  %v4897 = vadd.f32 0.0, %v4896
  %v4898 = vpop.f32.mrf.mxu0
  %4899 = vmatprep.mubr.f32.mxu0 %v4550
  %4900 = vmatmul.mubr.f32.gmra.mxu0 %v4486
  %v4901 = vpop.f32.mrf.mxu0
  %v4902 = vadd.f32 0.0, %v4901
  %v4903 = vpop.f32.mrf.mxu0
  %4904 = vmatprep.mubr.f32.mxu0 %v4551
  %4905 = vmatmul.mubr.f32.gmra.mxu0 %v4487
  %v4906 = vpop.f32.mrf.mxu0
  %v4907 = vadd.f32 0.0, %v4906
  %v4908 = vpop.f32.mrf.mxu0
  %4909 = vmatprep.mubr.f32.mxu0 %v4552
  %4910 = vmatmul.mubr.f32.gmra.mxu0 %v4488
  %v4911 = vpop.f32.mrf.mxu0
  %v4912 = vadd.f32 0.0, %v4911
  %v4913 = vpop.f32.mrf.mxu0
  %4914 = vmatprep.mubr.f32.mxu0 %v4553
  %4915 = vmatmul.mubr.f32.gmra.mxu0 %v4489
  %v4916 = vpop.f32.mrf.mxu0
  %v4917 = vadd.f32 0.0, %v4916
  %v4918 = vpop.f32.mrf.mxu0
  %4919 = vmatprep.mubr.f32.mxu0 %v4554
  %4920 = vmatmul.mubr.f32.gmra.mxu0 %v4490
  %v4921 = vpop.f32.mrf.mxu0
  %v4922 = vadd.f32 0.0, %v4921
  %v4923 = vpop.f32.mrf.mxu0
  %4924 = vmatprep.mubr.f32.mxu0 %v4555
  %4925 = vmatmul.mubr.f32.gmra.mxu0 %v4491
  %v4926 = vpop.f32.mrf.mxu0
  %v4927 = vadd.f32 0.0, %v4926
  %v4928 = vpop.f32.mrf.mxu0
  %4929 = vmatprep.mubr.f32.mxu0 %v4556
  %4930 = vmatmul.mubr.f32.gmra.mxu0 %v4492
  %v4931 = vpop.f32.mrf.mxu0
  %v4932 = vadd.f32 0.0, %v4931
  %v4933 = vpop.f32.mrf.mxu0
  %4934 = vmatprep.mubr.f32.mxu0 %v4557
  %4935 = vmatmul.mubr.f32.gmra.mxu0 %v4493
  %v4936 = vpop.f32.mrf.mxu0
  %v4937 = vadd.f32 0.0, %v4936
  %v4938 = vpop.f32.mrf.mxu0
  %4939 = vmatprep.mubr.f32.mxu0 %v4558
  %4940 = vmatmul.mubr.f32.gmra.mxu0 %v4494
  %v4941 = vpop.f32.mrf.mxu0
  %v4942 = vadd.f32 0.0, %v4941
  %v4943 = vpop.f32.mrf.mxu0
  %4944 = vmatprep.mubr.f32.mxu0 %v4559
  %4945 = vmatmul.mubr.f32.gmra.mxu0 %v4495
  %v4946 = vpop.f32.mrf.mxu0
  %v4947 = vadd.f32 0.0, %v4946
  %v4948 = vpop.f32.mrf.mxu0
  %4949 = vmatprep.mubr.f32.mxu0 %v4560
  %4950 = vmatmul.mubr.f32.gmra.mxu0 %v4496
  %v4951 = vpop.f32.mrf.mxu0
  %v4952 = vadd.f32 0.0, %v4951
  %v4953 = vpop.f32.mrf.mxu0
  %4954 = vmatprep.mubr.f32.mxu0 %v4561
  %4955 = vmatmul.mubr.f32.gmra.mxu0 %v4497
  %v4956 = vpop.f32.mrf.mxu0
  %v4957 = vadd.f32 0.0, %v4956
  %v4958 = vpop.f32.mrf.mxu0
  %4959 = vmatprep.mubr.f32.mxu0 %v4562
  %4960 = vmatmul.mubr.f32.gmra.mxu0 %v4498
  %v4961 = vpop.f32.mrf.mxu0
  %v4962 = vadd.f32 0.0, %v4961
  %v4963 = vpop.f32.mrf.mxu0
  %4964 = vmatprep.mubr.f32.mxu0 %v4563
  %4965 = vmatmul.mubr.f32.gmra.mxu0 %v4499
  %v4966 = vpop.f32.mrf.mxu0
  %v4967 = vadd.f32 0.0, %v4966
  %v4968 = vpop.f32.mrf.mxu0
  %4969 = vmatprep.mubr.f32.mxu0 %v4564
  %4970 = vmatmul.mubr.f32.gmra.mxu0 %v4500
  %v4971 = vpop.f32.mrf.mxu0
  %v4972 = vadd.f32 0.0, %v4971
  %v4973 = vpop.f32.mrf.mxu0
  %4974 = vmatprep.mubr.f32.mxu0 %v4565
  %4975 = vmatmul.mubr.f32.gmra.mxu0 %v4501
  %v4976 = vpop.f32.mrf.mxu0
  %v4977 = vadd.f32 0.0, %v4976
  %v4978 = vpop.f32.mrf.mxu0
  %4979 = vmatprep.mubr.f32.mxu0 %v4566
  %4980 = vmatmul.mubr.f32.gmra.mxu0 %v4502
  %v4981 = vpop.f32.mrf.mxu0
  %v4982 = vadd.f32 0.0, %v4981
  %v4983 = vpop.f32.mrf.mxu0
  %4984 = vdwg.mxu0
  %4985 = vmatprep.subr.mxu0 0.0
  %4986 = vmatpush1.msra.mxu0 %v4422
  %4987 = vmatprep.subr.mxu0 0.0
  %4988 = vmatpush1.msra.mxu0 %v4421
  %4989 = vmatprep.subr.mxu0 0.0
  %4990 = vmatpush1.msra.mxu0 %v4420
  %4991 = vmatprep.subr.mxu0 0.0
  %4992 = vmatpush1.msra.mxu0 %v4419
  %4993 = vmatprep.subr.mxu0 0.0
  %4994 = vmatpush1.msra.mxu0 %v4418
  %4995 = vmatprep.subr.mxu0 0.0
  %4996 = vmatpush1.msra.mxu0 %v4417
  %4997 = vmatprep.subr.mxu0 0.0
  %4998 = vmatpush1.msra.mxu0 %v4416
  %4999 = vmatprep.subr.mxu0 0.0
  %5000 = vmatpush1.msra.mxu0 %v4415
  %5001 = vmatprep.subr.mxu0 0.0
  %5002 = vmatpush1.msra.mxu0 %v4414
  %5003 = vmatprep.subr.mxu0 0.0
  %5004 = vmatpush1.msra.mxu0 %v4413
  %5005 = vmatprep.subr.mxu0 0.0
  %5006 = vmatpush1.msra.mxu0 %v4412
  %5007 = vmatprep.subr.mxu0 0.0
  %5008 = vmatpush1.msra.mxu0 %v4411
  %5009 = vmatprep.subr.mxu0 0.0
  %5010 = vmatpush1.msra.mxu0 %v4410
  %5011 = vmatprep.subr.mxu0 0.0
  %5012 = vmatpush1.msra.mxu0 %v4409
  %5013 = vmatprep.subr.mxu0 0.0
  %5014 = vmatpush1.msra.mxu0 %v4408
  %5015 = vmatprep.subr.mxu0 0.0
  %5016 = vmatpush1.msra.mxu0 %v4407
  %5017 = vmatprep.subr.mxu0 0.0
  %5018 = vmatpush2.msra.mxu0 %v4438
  %5019 = vmatprep.subr.mxu0 0.0
  %5020 = vmatpush2.msra.mxu0 %v4437
  %5021 = vmatprep.subr.mxu0 0.0
  %5022 = vmatpush2.msra.mxu0 %v4436
  %5023 = vmatprep.subr.mxu0 0.0
  %5024 = vmatpush2.msra.mxu0 %v4435
  %5025 = vmatprep.subr.mxu0 0.0
  %5026 = vmatpush2.msra.mxu0 %v4434
  %5027 = vmatprep.subr.mxu0 0.0
  %5028 = vmatpush2.msra.mxu0 %v4433
  %5029 = vmatprep.subr.mxu0 0.0
  %5030 = vmatpush2.msra.mxu0 %v4432
  %5031 = vmatprep.subr.mxu0 0.0
  %5032 = vmatpush2.msra.mxu0 %v4431
  %5033 = vmatprep.subr.mxu0 0.0
  %5034 = vmatpush2.msra.mxu0 %v4430
  %5035 = vmatprep.subr.mxu0 0.0
  %5036 = vmatpush2.msra.mxu0 %v4429
  %5037 = vmatprep.subr.mxu0 0.0
  %5038 = vmatpush2.msra.mxu0 %v4428
  %5039 = vmatprep.subr.mxu0 0.0
  %5040 = vmatpush2.msra.mxu0 %v4427
  %5041 = vmatprep.subr.mxu0 0.0
  %5042 = vmatpush2.msra.mxu0 %v4426
  %5043 = vmatprep.subr.mxu0 0.0
  %5044 = vmatpush2.msra.mxu0 %v4425
  %5045 = vmatprep.subr.mxu0 0.0
  %5046 = vmatpush2.msra.mxu0 %v4424
  %5047 = vmatprep.subr.mxu0 0.0
  %5048 = vmatpush2.msra.mxu0 %v4423
  %5049 = vmatprep.mubr.f32.mxu0 %v4343
  %5050 = vmatmul.mubr.f32.gmra.mxu0 %v4279
  %v5051 = vpop.f32.mrf.mxu0
  %v5052 = vadd.f32 %v4667, %v5051
  %v5053 = vpop.f32.mrf.mxu0
  %5054 = vmatprep.mubr.f32.mxu0 %v4344
  %5055 = vmatmul.mubr.f32.gmra.mxu0 %v4280
  %v5056 = vpop.f32.mrf.mxu0
  %v5057 = vadd.f32 %v4672, %v5056
  %v5058 = vpop.f32.mrf.mxu0
  %5059 = vmatprep.mubr.f32.mxu0 %v4345
  %5060 = vmatmul.mubr.f32.gmra.mxu0 %v4281
  %v5061 = vpop.f32.mrf.mxu0
  %v5062 = vadd.f32 %v4677, %v5061
  %v5063 = vpop.f32.mrf.mxu0
  %5064 = vmatprep.mubr.f32.mxu0 %v4346
  %5065 = vmatmul.mubr.f32.gmra.mxu0 %v4282
  %v5066 = vpop.f32.mrf.mxu0
  %v5067 = vadd.f32 %v4682, %v5066
  %v5068 = vpop.f32.mrf.mxu0
  %5069 = vmatprep.mubr.f32.mxu0 %v4347
  %5070 = vmatmul.mubr.f32.gmra.mxu0 %v4283
  %v5071 = vpop.f32.mrf.mxu0
  %v5072 = vadd.f32 %v4687, %v5071
  %v5073 = vpop.f32.mrf.mxu0
  %5074 = vmatprep.mubr.f32.mxu0 %v4348
  %5075 = vmatmul.mubr.f32.gmra.mxu0 %v4284
  %v5076 = vpop.f32.mrf.mxu0
  %v5077 = vadd.f32 %v4692, %v5076
  %v5078 = vpop.f32.mrf.mxu0
  %5079 = vmatprep.mubr.f32.mxu0 %v4349
  %5080 = vmatmul.mubr.f32.gmra.mxu0 %v4285
  %v5081 = vpop.f32.mrf.mxu0
  %v5082 = vadd.f32 %v4697, %v5081
  %v5083 = vpop.f32.mrf.mxu0
  %5084 = vmatprep.mubr.f32.mxu0 %v4350
  %5085 = vmatmul.mubr.f32.gmra.mxu0 %v4286
  %v5086 = vpop.f32.mrf.mxu0
  %v5087 = vadd.f32 %v4702, %v5086
  %v5088 = vpop.f32.mrf.mxu0
  %5089 = vmatprep.mubr.f32.mxu0 %v4351
  %5090 = vmatmul.mubr.f32.gmra.mxu0 %v4287
  %v5091 = vpop.f32.mrf.mxu0
  %v5092 = vadd.f32 %v4707, %v5091
  %v5093 = vpop.f32.mrf.mxu0
  %5094 = vmatprep.mubr.f32.mxu0 %v4352
  %5095 = vmatmul.mubr.f32.gmra.mxu0 %v4288
  %v5096 = vpop.f32.mrf.mxu0
  %v5097 = vadd.f32 %v4712, %v5096
  %v5098 = vpop.f32.mrf.mxu0
  %5099 = vmatprep.mubr.f32.mxu0 %v4353
  %5100 = vmatmul.mubr.f32.gmra.mxu0 %v4289
  %v5101 = vpop.f32.mrf.mxu0
  %v5102 = vadd.f32 %v4717, %v5101
  %v5103 = vpop.f32.mrf.mxu0
  %5104 = vmatprep.mubr.f32.mxu0 %v4354
  %5105 = vmatmul.mubr.f32.gmra.mxu0 %v4290
  %v5106 = vpop.f32.mrf.mxu0
  %v5107 = vadd.f32 %v4722, %v5106
  %v5108 = vpop.f32.mrf.mxu0
  %5109 = vmatprep.mubr.f32.mxu0 %v4355
  %5110 = vmatmul.mubr.f32.gmra.mxu0 %v4291
  %v5111 = vpop.f32.mrf.mxu0
  %v5112 = vadd.f32 %v4727, %v5111
  %v5113 = vpop.f32.mrf.mxu0
  %5114 = vmatprep.mubr.f32.mxu0 %v4356
  %5115 = vmatmul.mubr.f32.gmra.mxu0 %v4292
  %v5116 = vpop.f32.mrf.mxu0
  %v5117 = vadd.f32 %v4732, %v5116
  %v5118 = vpop.f32.mrf.mxu0
  %5119 = vmatprep.mubr.f32.mxu0 %v4357
  %5120 = vmatmul.mubr.f32.gmra.mxu0 %v4293
  %v5121 = vpop.f32.mrf.mxu0
  %v5122 = vadd.f32 %v4737, %v5121
  %v5123 = vpop.f32.mrf.mxu0
  %5124 = vmatprep.mubr.f32.mxu0 %v4358
  %5125 = vmatmul.mubr.f32.gmra.mxu0 %v4294
  %v5126 = vpop.f32.mrf.mxu0
  %v5127 = vadd.f32 %v4742, %v5126
  %v5128 = vpop.f32.mrf.mxu0
  %5129 = vmatprep.mubr.f32.mxu0 %v4359
  %5130 = vmatmul.mubr.f32.gmra.mxu0 %v4295
  %v5131 = vpop.f32.mrf.mxu0
  %v5132 = vadd.f32 %v4747, %v5131
  %v5133 = vpop.f32.mrf.mxu0
  %5134 = vmatprep.mubr.f32.mxu0 %v4360
  %5135 = vmatmul.mubr.f32.gmra.mxu0 %v4296
  %v5136 = vpop.f32.mrf.mxu0
  %v5137 = vadd.f32 %v4752, %v5136
  %v5138 = vpop.f32.mrf.mxu0
  %5139 = vmatprep.mubr.f32.mxu0 %v4361
  %5140 = vmatmul.mubr.f32.gmra.mxu0 %v4297
  %v5141 = vpop.f32.mrf.mxu0
  %v5142 = vadd.f32 %v4757, %v5141
  %v5143 = vpop.f32.mrf.mxu0
  %5144 = vmatprep.mubr.f32.mxu0 %v4362
  %5145 = vmatmul.mubr.f32.gmra.mxu0 %v4298
  %v5146 = vpop.f32.mrf.mxu0
  %v5147 = vadd.f32 %v4762, %v5146
  %v5148 = vpop.f32.mrf.mxu0
  %5149 = vmatprep.mubr.f32.mxu0 %v4363
  %5150 = vmatmul.mubr.f32.gmra.mxu0 %v4299
  %v5151 = vpop.f32.mrf.mxu0
  %v5152 = vadd.f32 %v4767, %v5151
  %v5153 = vpop.f32.mrf.mxu0
  %5154 = vmatprep.mubr.f32.mxu0 %v4364
  %5155 = vmatmul.mubr.f32.gmra.mxu0 %v4300
  %v5156 = vpop.f32.mrf.mxu0
  %v5157 = vadd.f32 %v4772, %v5156
  %v5158 = vpop.f32.mrf.mxu0
  %5159 = vmatprep.mubr.f32.mxu0 %v4365
  %5160 = vmatmul.mubr.f32.gmra.mxu0 %v4301
  %v5161 = vpop.f32.mrf.mxu0
  %v5162 = vadd.f32 %v4777, %v5161
  %v5163 = vpop.f32.mrf.mxu0
  %5164 = vmatprep.mubr.f32.mxu0 %v4366
  %5165 = vmatmul.mubr.f32.gmra.mxu0 %v4302
  %v5166 = vpop.f32.mrf.mxu0
  %v5167 = vadd.f32 %v4782, %v5166
  %v5168 = vpop.f32.mrf.mxu0
  %5169 = vmatprep.mubr.f32.mxu0 %v4367
  %5170 = vmatmul.mubr.f32.gmra.mxu0 %v4303
  %v5171 = vpop.f32.mrf.mxu0
  %v5172 = vadd.f32 %v4787, %v5171
  %v5173 = vpop.f32.mrf.mxu0
  %5174 = vmatprep.mubr.f32.mxu0 %v4368
  %5175 = vmatmul.mubr.f32.gmra.mxu0 %v4304
  %v5176 = vpop.f32.mrf.mxu0
  %v5177 = vadd.f32 %v4792, %v5176
  %v5178 = vpop.f32.mrf.mxu0
  %5179 = vmatprep.mubr.f32.mxu0 %v4369
  %5180 = vmatmul.mubr.f32.gmra.mxu0 %v4305
  %v5181 = vpop.f32.mrf.mxu0
  %v5182 = vadd.f32 %v4797, %v5181
  %v5183 = vpop.f32.mrf.mxu0
  %5184 = vmatprep.mubr.f32.mxu0 %v4370
  %5185 = vmatmul.mubr.f32.gmra.mxu0 %v4306
  %v5186 = vpop.f32.mrf.mxu0
  %v5187 = vadd.f32 %v4802, %v5186
  %v5188 = vpop.f32.mrf.mxu0
  %5189 = vmatprep.mubr.f32.mxu0 %v4371
  %5190 = vmatmul.mubr.f32.gmra.mxu0 %v4307
  %v5191 = vpop.f32.mrf.mxu0
  %v5192 = vadd.f32 %v4807, %v5191
  %v5193 = vpop.f32.mrf.mxu0
  %5194 = vmatprep.mubr.f32.mxu0 %v4372
  %5195 = vmatmul.mubr.f32.gmra.mxu0 %v4308
  %v5196 = vpop.f32.mrf.mxu0
  %v5197 = vadd.f32 %v4812, %v5196
  %v5198 = vpop.f32.mrf.mxu0
  %5199 = vmatprep.mubr.f32.mxu0 %v4373
  %5200 = vmatmul.mubr.f32.gmra.mxu0 %v4309
  %v5201 = vpop.f32.mrf.mxu0
  %v5202 = vadd.f32 %v4817, %v5201
  %v5203 = vpop.f32.mrf.mxu0
  %5204 = vmatprep.mubr.f32.mxu0 %v4374
  %5205 = vmatmul.mubr.f32.gmra.mxu0 %v4310
  %v5206 = vpop.f32.mrf.mxu0
  %v5207 = vadd.f32 %v4822, %v5206
  %v5208 = vpop.f32.mrf.mxu0
  %5209 = vmatprep.mubr.f32.mxu0 %v4375
  %5210 = vmatmul.mubr.f32.gmra.mxu0 %v4311
  %v5211 = vpop.f32.mrf.mxu0
  %v5212 = vadd.f32 %v4827, %v5211
  %v5213 = vpop.f32.mrf.mxu0
  %5214 = vmatprep.mubr.f32.mxu0 %v4376
  %5215 = vmatmul.mubr.f32.gmra.mxu0 %v4312
  %v5216 = vpop.f32.mrf.mxu0
  %v5217 = vadd.f32 %v4832, %v5216
  %v5218 = vpop.f32.mrf.mxu0
  %5219 = vmatprep.mubr.f32.mxu0 %v4377
  %5220 = vmatmul.mubr.f32.gmra.mxu0 %v4313
  %v5221 = vpop.f32.mrf.mxu0
  %v5222 = vadd.f32 %v4837, %v5221
  %v5223 = vpop.f32.mrf.mxu0
  %5224 = vmatprep.mubr.f32.mxu0 %v4378
  %5225 = vmatmul.mubr.f32.gmra.mxu0 %v4314
  %v5226 = vpop.f32.mrf.mxu0
  %v5227 = vadd.f32 %v4842, %v5226
  %v5228 = vpop.f32.mrf.mxu0
  %5229 = vmatprep.mubr.f32.mxu0 %v4379
  %5230 = vmatmul.mubr.f32.gmra.mxu0 %v4315
  %v5231 = vpop.f32.mrf.mxu0
  %v5232 = vadd.f32 %v4847, %v5231
  %v5233 = vpop.f32.mrf.mxu0
  %5234 = vmatprep.mubr.f32.mxu0 %v4380
  %5235 = vmatmul.mubr.f32.gmra.mxu0 %v4316
  %v5236 = vpop.f32.mrf.mxu0
  %v5237 = vadd.f32 %v4852, %v5236
  %v5238 = vpop.f32.mrf.mxu0
  %5239 = vmatprep.mubr.f32.mxu0 %v4381
  %5240 = vmatmul.mubr.f32.gmra.mxu0 %v4317
  %v5241 = vpop.f32.mrf.mxu0
  %v5242 = vadd.f32 %v4857, %v5241
  %v5243 = vpop.f32.mrf.mxu0
  %5244 = vmatprep.mubr.f32.mxu0 %v4382
  %5245 = vmatmul.mubr.f32.gmra.mxu0 %v4318
  %v5246 = vpop.f32.mrf.mxu0
  %v5247 = vadd.f32 %v4862, %v5246
  %v5248 = vpop.f32.mrf.mxu0
  %5249 = vmatprep.mubr.f32.mxu0 %v4383
  %5250 = vmatmul.mubr.f32.gmra.mxu0 %v4319
  %v5251 = vpop.f32.mrf.mxu0
  %v5252 = vadd.f32 %v4867, %v5251
  %v5253 = vpop.f32.mrf.mxu0
  %5254 = vmatprep.mubr.f32.mxu0 %v4384
  %5255 = vmatmul.mubr.f32.gmra.mxu0 %v4320
  %v5256 = vpop.f32.mrf.mxu0
  %v5257 = vadd.f32 %v4872, %v5256
  %v5258 = vpop.f32.mrf.mxu0
  %5259 = vmatprep.mubr.f32.mxu0 %v4385
  %5260 = vmatmul.mubr.f32.gmra.mxu0 %v4321
  %v5261 = vpop.f32.mrf.mxu0
  %v5262 = vadd.f32 %v4877, %v5261
  %v5263 = vpop.f32.mrf.mxu0
  %5264 = vmatprep.mubr.f32.mxu0 %v4386
  %5265 = vmatmul.mubr.f32.gmra.mxu0 %v4322
  %v5266 = vpop.f32.mrf.mxu0
  %v5267 = vadd.f32 %v4882, %v5266
  %v5268 = vpop.f32.mrf.mxu0
  %5269 = vmatprep.mubr.f32.mxu0 %v4387
  %5270 = vmatmul.mubr.f32.gmra.mxu0 %v4323
  %v5271 = vpop.f32.mrf.mxu0
  %v5272 = vadd.f32 %v4887, %v5271
  %v5273 = vpop.f32.mrf.mxu0
  %5274 = vmatprep.mubr.f32.mxu0 %v4388
  %5275 = vmatmul.mubr.f32.gmra.mxu0 %v4324
  %v5276 = vpop.f32.mrf.mxu0
  %v5277 = vadd.f32 %v4892, %v5276
  %v5278 = vpop.f32.mrf.mxu0
  %5279 = vmatprep.mubr.f32.mxu0 %v4389
  %5280 = vmatmul.mubr.f32.gmra.mxu0 %v4325
  %v5281 = vpop.f32.mrf.mxu0
  %v5282 = vadd.f32 %v4897, %v5281
  %v5283 = vpop.f32.mrf.mxu0
  %5284 = vmatprep.mubr.f32.mxu0 %v4390
  %5285 = vmatmul.mubr.f32.gmra.mxu0 %v4326
  %v5286 = vpop.f32.mrf.mxu0
  %v5287 = vadd.f32 %v4902, %v5286
  %v5288 = vpop.f32.mrf.mxu0
  %5289 = vmatprep.mubr.f32.mxu0 %v4391
  %5290 = vmatmul.mubr.f32.gmra.mxu0 %v4327
  %v5291 = vpop.f32.mrf.mxu0
  %v5292 = vadd.f32 %v4907, %v5291
  %v5293 = vpop.f32.mrf.mxu0
  %5294 = vmatprep.mubr.f32.mxu0 %v4392
  %5295 = vmatmul.mubr.f32.gmra.mxu0 %v4328
  %v5296 = vpop.f32.mrf.mxu0
  %v5297 = vadd.f32 %v4912, %v5296
  %v5298 = vpop.f32.mrf.mxu0
  %5299 = vmatprep.mubr.f32.mxu0 %v4393
  %5300 = vmatmul.mubr.f32.gmra.mxu0 %v4329
  %v5301 = vpop.f32.mrf.mxu0
  %v5302 = vadd.f32 %v4917, %v5301
  %v5303 = vpop.f32.mrf.mxu0
  %5304 = vmatprep.mubr.f32.mxu0 %v4394
  %5305 = vmatmul.mubr.f32.gmra.mxu0 %v4330
  %v5306 = vpop.f32.mrf.mxu0
  %v5307 = vadd.f32 %v4922, %v5306
  %v5308 = vpop.f32.mrf.mxu0
  %5309 = vmatprep.mubr.f32.mxu0 %v4395
  %5310 = vmatmul.mubr.f32.gmra.mxu0 %v4331
  %v5311 = vpop.f32.mrf.mxu0
  %v5312 = vadd.f32 %v4927, %v5311
  %v5313 = vpop.f32.mrf.mxu0
  %5314 = vmatprep.mubr.f32.mxu0 %v4396
  %5315 = vmatmul.mubr.f32.gmra.mxu0 %v4332
  %v5316 = vpop.f32.mrf.mxu0
  %v5317 = vadd.f32 %v4932, %v5316
  %v5318 = vpop.f32.mrf.mxu0
  %5319 = vmatprep.mubr.f32.mxu0 %v4397
  %5320 = vmatmul.mubr.f32.gmra.mxu0 %v4333
  %v5321 = vpop.f32.mrf.mxu0
  %v5322 = vadd.f32 %v4937, %v5321
  %v5323 = vpop.f32.mrf.mxu0
  %5324 = vmatprep.mubr.f32.mxu0 %v4398
  %5325 = vmatmul.mubr.f32.gmra.mxu0 %v4334
  %v5326 = vpop.f32.mrf.mxu0
  %v5327 = vadd.f32 %v4942, %v5326
  %v5328 = vpop.f32.mrf.mxu0
  %5329 = vmatprep.mubr.f32.mxu0 %v4399
  %5330 = vmatmul.mubr.f32.gmra.mxu0 %v4335
  %v5331 = vpop.f32.mrf.mxu0
  %v5332 = vadd.f32 %v4947, %v5331
  %v5333 = vpop.f32.mrf.mxu0
  %5334 = vmatprep.mubr.f32.mxu0 %v4400
  %5335 = vmatmul.mubr.f32.gmra.mxu0 %v4336
  %v5336 = vpop.f32.mrf.mxu0
  %v5337 = vadd.f32 %v4952, %v5336
  %v5338 = vpop.f32.mrf.mxu0
  %5339 = vmatprep.mubr.f32.mxu0 %v4401
  %5340 = vmatmul.mubr.f32.gmra.mxu0 %v4337
  %v5341 = vpop.f32.mrf.mxu0
  %v5342 = vadd.f32 %v4957, %v5341
  %v5343 = vpop.f32.mrf.mxu0
  %5344 = vmatprep.mubr.f32.mxu0 %v4402
  %5345 = vmatmul.mubr.f32.gmra.mxu0 %v4338
  %v5346 = vpop.f32.mrf.mxu0
  %v5347 = vadd.f32 %v4962, %v5346
  %v5348 = vpop.f32.mrf.mxu0
  %5349 = vmatprep.mubr.f32.mxu0 %v4403
  %5350 = vmatmul.mubr.f32.gmra.mxu0 %v4339
  %v5351 = vpop.f32.mrf.mxu0
  %v5352 = vadd.f32 %v4967, %v5351
  %v5353 = vpop.f32.mrf.mxu0
  %5354 = vmatprep.mubr.f32.mxu0 %v4404
  %5355 = vmatmul.mubr.f32.gmra.mxu0 %v4340
  %v5356 = vpop.f32.mrf.mxu0
  %v5357 = vadd.f32 %v4972, %v5356
  %v5358 = vpop.f32.mrf.mxu0
  %5359 = vmatprep.mubr.f32.mxu0 %v4405
  %5360 = vmatmul.mubr.f32.gmra.mxu0 %v4341
  %v5361 = vpop.f32.mrf.mxu0
  %v5362 = vadd.f32 %v4977, %v5361
  %v5363 = vpop.f32.mrf.mxu0
  %5364 = vmatprep.mubr.f32.mxu0 %v4406
  %5365 = vmatmul.mubr.f32.gmra.mxu0 %v4342
  %v5366 = vpop.f32.mrf.mxu0
  %v5367 = vadd.f32 %v4982, %v5366
  %v5368 = vpop.f32.mrf.mxu0
  %5369 = vdwg.mxu0
  %v5370 = vld [vmem:[%s4150 + $0x8] sm:$0xff]
  %v5371 = vld [vmem:[%s4150 + $0x10] sm:$0xff]
  %v5372 = vld [vmem:[%s4150 + $0x28] sm:$0xff]
  %v5373 = vld [vmem:[%s4150 + $0x30] sm:$0xff]
  %v5374 = vld [vmem:[%s4150 + $0x48] sm:$0xff]
  %v5375 = vld [vmem:[%s4150 + $0x50] sm:$0xff]
  %v5376 = vld [vmem:[%s4150 + $0x68] sm:$0xff]
  %v5377 = vld [vmem:[%s4150 + $0x70] sm:$0xff]
  %v5378 = vld [vmem:[%s4150 + $0x88] sm:$0xff]
  %v5379 = vld [vmem:[%s4150 + $0x90] sm:$0xff]
  %v5380 = vld [vmem:[%s4150 + $0xa8] sm:$0xff]
  %v5381 = vld [vmem:[%s4150 + $0xb0] sm:$0xff]
  %v5382 = vld [vmem:[%s4150 + $0xc8] sm:$0xff]
  %v5383 = vld [vmem:[%s4150 + $0xd0] sm:$0xff]
  %v5384 = vld [vmem:[%s4150 + $0xe8] sm:$0xff]
  %v5385 = vld [vmem:[%s4150 + $0xf0] sm:$0xff]
  %v5386 = vld [vmem:[%s4150 + $0x108] sm:$0xff]
  %v5387 = vld [vmem:[%s4150 + $0x110] sm:$0xff]
  %v5388 = vld [vmem:[%s4150 + $0x128] sm:$0xff]
  %v5389 = vld [vmem:[%s4150 + $0x130] sm:$0xff]
  %v5390 = vld [vmem:[%s4150 + $0x148] sm:$0xff]
  %v5391 = vld [vmem:[%s4150 + $0x150] sm:$0xff]
  %v5392 = vld [vmem:[%s4150 + $0x168] sm:$0xff]
  %v5393 = vld [vmem:[%s4150 + $0x170] sm:$0xff]
  %v5394 = vld [vmem:[%s4150 + $0x188] sm:$0xff]
  %v5395 = vld [vmem:[%s4150 + $0x190] sm:$0xff]
  %v5396 = vld [vmem:[%s4150 + $0x1a8] sm:$0xff]
  %v5397 = vld [vmem:[%s4150 + $0x1b0] sm:$0xff]
  %v5398 = vld [vmem:[%s4150 + $0x1c8] sm:$0xff]
  %v5399 = vld [vmem:[%s4150 + $0x1d0] sm:$0xff]
  %v5400 = vld [vmem:[%s4150 + $0x1e8] sm:$0xff]
  %v5401 = vld [vmem:[%s4150 + $0x1f0] sm:$0xff]
  %v5402 = vld [vmem:[%s4150 + $0x248] sm:$0xff]
  %v5403 = vld [vmem:[%s4150 + $0x250] sm:$0xff]
  %v5404 = vld [vmem:[%s4150 + $0x268] sm:$0xff]
  %v5405 = vld [vmem:[%s4150 + $0x270] sm:$0xff]
  %v5406 = vld [vmem:[%s4150 + $0x288] sm:$0xff]
  %v5407 = vld [vmem:[%s4150 + $0x290] sm:$0xff]
  %v5408 = vld [vmem:[%s4150 + $0x2a8] sm:$0xff]
  %v5409 = vld [vmem:[%s4150 + $0x2b0] sm:$0xff]
  %v5410 = vld [vmem:[%s4150 + $0x2c8] sm:$0xff]
  %v5411 = vld [vmem:[%s4150 + $0x2d0] sm:$0xff]
  %v5412 = vld [vmem:[%s4150 + $0x2e8] sm:$0xff]
  %v5413 = vld [vmem:[%s4150 + $0x2f0] sm:$0xff]
  %v5414 = vld [vmem:[%s4150 + $0x308] sm:$0xff]
  %v5415 = vld [vmem:[%s4150 + $0x310] sm:$0xff]
  %v5416 = vld [vmem:[%s4150 + $0x328] sm:$0xff]
  %v5417 = vld [vmem:[%s4150 + $0x330] sm:$0xff]
  %v5418 = vld [vmem:[%s4150 + $0x348] sm:$0xff]
  %v5419 = vld [vmem:[%s4150 + $0x350] sm:$0xff]
  %v5420 = vld [vmem:[%s4150 + $0x368] sm:$0xff]
  %v5421 = vld [vmem:[%s4150 + $0x370] sm:$0xff]
  %v5422 = vld [vmem:[%s4150 + $0x388] sm:$0xff]
  %v5423 = vld [vmem:[%s4150 + $0x390] sm:$0xff]
  %v5424 = vld [vmem:[%s4150 + $0x3a8] sm:$0xff]
  %v5425 = vld [vmem:[%s4150 + $0x3b0] sm:$0xff]
  %v5426 = vld [vmem:[%s4150 + $0x3c8] sm:$0xff]
  %v5427 = vld [vmem:[%s4150 + $0x3d0] sm:$0xff]
  %v5428 = vld [vmem:[%s4150 + $0x3e8] sm:$0xff]
  %v5429 = vld [vmem:[%s4150 + $0x3f0] sm:$0xff]
  %v5430 = vld [vmem:[%s4150 + $0x408] sm:$0xff]
  %v5431 = vld [vmem:[%s4150 + $0x410] sm:$0xff]
  %v5432 = vld [vmem:[%s4150 + $0x428] sm:$0xff]
  %v5433 = vld [vmem:[%s4150 + $0x430] sm:$0xff]
  %v5434 = vld [vmem:[%s4150 + $0x9] sm:$0xff]
  %v5435 = vld [vmem:[%s4150 + $0x11] sm:$0xff]
  %v5436 = vld [vmem:[%s4150 + $0x29] sm:$0xff]
  %v5437 = vld [vmem:[%s4150 + $0x31] sm:$0xff]
  %v5438 = vld [vmem:[%s4150 + $0x49] sm:$0xff]
  %v5439 = vld [vmem:[%s4150 + $0x51] sm:$0xff]
  %v5440 = vld [vmem:[%s4150 + $0x69] sm:$0xff]
  %v5441 = vld [vmem:[%s4150 + $0x71] sm:$0xff]
  %v5442 = vld [vmem:[%s4150 + $0x89] sm:$0xff]
  %v5443 = vld [vmem:[%s4150 + $0x91] sm:$0xff]
  %v5444 = vld [vmem:[%s4150 + $0xa9] sm:$0xff]
  %v5445 = vld [vmem:[%s4150 + $0xb1] sm:$0xff]
  %v5446 = vld [vmem:[%s4150 + $0xc9] sm:$0xff]
  %v5447 = vld [vmem:[%s4150 + $0xd1] sm:$0xff]
  %v5448 = vld [vmem:[%s4150 + $0xe9] sm:$0xff]
  %v5449 = vld [vmem:[%s4150 + $0xf1] sm:$0xff]
  %v5450 = vld [vmem:[%s4150 + $0x109] sm:$0xff]
  %v5451 = vld [vmem:[%s4150 + $0x111] sm:$0xff]
  %v5452 = vld [vmem:[%s4150 + $0x129] sm:$0xff]
  %v5453 = vld [vmem:[%s4150 + $0x131] sm:$0xff]
  %v5454 = vld [vmem:[%s4150 + $0x149] sm:$0xff]
  %v5455 = vld [vmem:[%s4150 + $0x151] sm:$0xff]
  %v5456 = vld [vmem:[%s4150 + $0x169] sm:$0xff]
  %v5457 = vld [vmem:[%s4150 + $0x171] sm:$0xff]
  %v5458 = vld [vmem:[%s4150 + $0x189] sm:$0xff]
  %v5459 = vld [vmem:[%s4150 + $0x191] sm:$0xff]
  %v5460 = vld [vmem:[%s4150 + $0x1a9] sm:$0xff]
  %v5461 = vld [vmem:[%s4150 + $0x1b1] sm:$0xff]
  %v5462 = vld [vmem:[%s4150 + $0x1c9] sm:$0xff]
  %v5463 = vld [vmem:[%s4150 + $0x1d1] sm:$0xff]
  %v5464 = vld [vmem:[%s4150 + $0x1e9] sm:$0xff]
  %v5465 = vld [vmem:[%s4150 + $0x1f1] sm:$0xff]
  %v5466 = vld [vmem:[%s4150 + $0x249] sm:$0xff]
  %v5467 = vld [vmem:[%s4150 + $0x251] sm:$0xff]
  %v5468 = vld [vmem:[%s4150 + $0x269] sm:$0xff]
  %v5469 = vld [vmem:[%s4150 + $0x271] sm:$0xff]
  %v5470 = vld [vmem:[%s4150 + $0x289] sm:$0xff]
  %v5471 = vld [vmem:[%s4150 + $0x291] sm:$0xff]
  %v5472 = vld [vmem:[%s4150 + $0x2a9] sm:$0xff]
  %v5473 = vld [vmem:[%s4150 + $0x2b1] sm:$0xff]
  %v5474 = vld [vmem:[%s4150 + $0x2c9] sm:$0xff]
  %v5475 = vld [vmem:[%s4150 + $0x2d1] sm:$0xff]
  %v5476 = vld [vmem:[%s4150 + $0x2e9] sm:$0xff]
  %v5477 = vld [vmem:[%s4150 + $0x2f1] sm:$0xff]
  %v5478 = vld [vmem:[%s4150 + $0x309] sm:$0xff]
  %v5479 = vld [vmem:[%s4150 + $0x311] sm:$0xff]
  %v5480 = vld [vmem:[%s4150 + $0x329] sm:$0xff]
  %v5481 = vld [vmem:[%s4150 + $0x331] sm:$0xff]
  %v5482 = vld [vmem:[%s4150 + $0x349] sm:$0xff]
  %v5483 = vld [vmem:[%s4150 + $0x351] sm:$0xff]
  %v5484 = vld [vmem:[%s4150 + $0x369] sm:$0xff]
  %v5485 = vld [vmem:[%s4150 + $0x371] sm:$0xff]
  %v5486 = vld [vmem:[%s4150 + $0x389] sm:$0xff]
  %v5487 = vld [vmem:[%s4150 + $0x391] sm:$0xff]
  %v5488 = vld [vmem:[%s4150 + $0x3a9] sm:$0xff]
  %v5489 = vld [vmem:[%s4150 + $0x3b1] sm:$0xff]
  %v5490 = vld [vmem:[%s4150 + $0x3c9] sm:$0xff]
  %v5491 = vld [vmem:[%s4150 + $0x3d1] sm:$0xff]
  %v5492 = vld [vmem:[%s4150 + $0x3e9] sm:$0xff]
  %v5493 = vld [vmem:[%s4150 + $0x3f1] sm:$0xff]
  %v5494 = vld [vmem:[%s4150 + $0x409] sm:$0xff]
  %v5495 = vld [vmem:[%s4150 + $0x411] sm:$0xff]
  %v5496 = vld [vmem:[%s4150 + $0x429] sm:$0xff]
  %v5497 = vld [vmem:[%s4150 + $0x431] sm:$0xff]
  %s5498 = scalar_lea.vmem %s4, 512
  %v5499 = vld [vmem:[%s5498] sm:$0xff]
  %v5500 = vld [vmem:[%s5498 + $0x8] sm:$0xff]
  %v5501 = vld [vmem:[%s5498 + $0x10] sm:$0xff]
  %v5502 = vld [vmem:[%s5498 + $0x18] sm:$0xff]
  %v5503 = vld [vmem:[%s5498 + $0x20] sm:$0xff]
  %v5504 = vld [vmem:[%s5498 + $0x28] sm:$0xff]
  %v5505 = vld [vmem:[%s5498 + $0x30] sm:$0xff]
  %v5506 = vld [vmem:[%s5498 + $0x38] sm:$0xff]
  %v5507 = vld [vmem:[%s5498 + $0x40] sm:$0xff]
  %v5508 = vld [vmem:[%s5498 + $0x48] sm:$0xff]
  %v5509 = vld [vmem:[%s5498 + $0x50] sm:$0xff]
  %v5510 = vld [vmem:[%s5498 + $0x58] sm:$0xff]
  %v5511 = vld [vmem:[%s5498 + $0x60] sm:$0xff]
  %v5512 = vld [vmem:[%s5498 + $0x68] sm:$0xff]
  %v5513 = vld [vmem:[%s5498 + $0x70] sm:$0xff]
  %v5514 = vld [vmem:[%s5498 + $0x78] sm:$0xff]
  %v5515 = vld [vmem:[%s5498 + $0x80] sm:$0xff]
  %v5516 = vld [vmem:[%s5498 + $0x88] sm:$0xff]
  %v5517 = vld [vmem:[%s5498 + $0x90] sm:$0xff]
  %v5518 = vld [vmem:[%s5498 + $0x98] sm:$0xff]
  %v5519 = vld [vmem:[%s5498 + $0xa0] sm:$0xff]
  %v5520 = vld [vmem:[%s5498 + $0xa8] sm:$0xff]
  %v5521 = vld [vmem:[%s5498 + $0xb0] sm:$0xff]
  %v5522 = vld [vmem:[%s5498 + $0xb8] sm:$0xff]
  %v5523 = vld [vmem:[%s5498 + $0xc0] sm:$0xff]
  %v5524 = vld [vmem:[%s5498 + $0xc8] sm:$0xff]
  %v5525 = vld [vmem:[%s5498 + $0xd0] sm:$0xff]
  %v5526 = vld [vmem:[%s5498 + $0xd8] sm:$0xff]
  %v5527 = vld [vmem:[%s5498 + $0xe0] sm:$0xff]
  %v5528 = vld [vmem:[%s5498 + $0xe8] sm:$0xff]
  %v5529 = vld [vmem:[%s5498 + $0xf0] sm:$0xff]
  %v5530 = vld [vmem:[%s5498 + $0xf8] sm:$0xff]
  %5531 = vmatprep.subr.mxu0 0.0
  %5532 = vmatpush1.msra.mxu0 %v5514
  %5533 = vmatprep.subr.mxu0 0.0
  %5534 = vmatpush1.msra.mxu0 %v5513
  %5535 = vmatprep.subr.mxu0 0.0
  %5536 = vmatpush1.msra.mxu0 %v5512
  %5537 = vmatprep.subr.mxu0 0.0
  %5538 = vmatpush1.msra.mxu0 %v5511
  %5539 = vmatprep.subr.mxu0 0.0
  %5540 = vmatpush1.msra.mxu0 %v5510
  %5541 = vmatprep.subr.mxu0 0.0
  %5542 = vmatpush1.msra.mxu0 %v5509
  %5543 = vmatprep.subr.mxu0 0.0
  %5544 = vmatpush1.msra.mxu0 %v5508
  %5545 = vmatprep.subr.mxu0 0.0
  %5546 = vmatpush1.msra.mxu0 %v5507
  %5547 = vmatprep.subr.mxu0 0.0
  %5548 = vmatpush1.msra.mxu0 %v5506
  %5549 = vmatprep.subr.mxu0 0.0
  %5550 = vmatpush1.msra.mxu0 %v5505
  %5551 = vmatprep.subr.mxu0 0.0
  %5552 = vmatpush1.msra.mxu0 %v5504
  %5553 = vmatprep.subr.mxu0 0.0
  %5554 = vmatpush1.msra.mxu0 %v5503
  %5555 = vmatprep.subr.mxu0 0.0
  %5556 = vmatpush1.msra.mxu0 %v5502
  %5557 = vmatprep.subr.mxu0 0.0
  %5558 = vmatpush1.msra.mxu0 %v5501
  %5559 = vmatprep.subr.mxu0 0.0
  %5560 = vmatpush1.msra.mxu0 %v5500
  %5561 = vmatprep.subr.mxu0 0.0
  %5562 = vmatpush1.msra.mxu0 %v5499
  %5563 = vmatprep.subr.mxu0 0.0
  %5564 = vmatpush2.msra.mxu0 %v5530
  %5565 = vmatprep.subr.mxu0 0.0
  %5566 = vmatpush2.msra.mxu0 %v5529
  %5567 = vmatprep.subr.mxu0 0.0
  %5568 = vmatpush2.msra.mxu0 %v5528
  %5569 = vmatprep.subr.mxu0 0.0
  %5570 = vmatpush2.msra.mxu0 %v5527
  %5571 = vmatprep.subr.mxu0 0.0
  %5572 = vmatpush2.msra.mxu0 %v5526
  %5573 = vmatprep.subr.mxu0 0.0
  %5574 = vmatpush2.msra.mxu0 %v5525
  %5575 = vmatprep.subr.mxu0 0.0
  %5576 = vmatpush2.msra.mxu0 %v5524
  %5577 = vmatprep.subr.mxu0 0.0
  %5578 = vmatpush2.msra.mxu0 %v5523
  %5579 = vmatprep.subr.mxu0 0.0
  %5580 = vmatpush2.msra.mxu0 %v5522
  %5581 = vmatprep.subr.mxu0 0.0
  %5582 = vmatpush2.msra.mxu0 %v5521
  %5583 = vmatprep.subr.mxu0 0.0
  %5584 = vmatpush2.msra.mxu0 %v5520
  %5585 = vmatprep.subr.mxu0 0.0
  %5586 = vmatpush2.msra.mxu0 %v5519
  %5587 = vmatprep.subr.mxu0 0.0
  %5588 = vmatpush2.msra.mxu0 %v5518
  %5589 = vmatprep.subr.mxu0 0.0
  %5590 = vmatpush2.msra.mxu0 %v5517
  %5591 = vmatprep.subr.mxu0 0.0
  %5592 = vmatpush2.msra.mxu0 %v5516
  %5593 = vmatprep.subr.mxu0 0.0
  %5594 = vmatpush2.msra.mxu0 %v5515
  %5595 = vmatprep.mubr.f32.mxu0 %v5434
  %5596 = vmatmul.mubr.f32.gmra.mxu0 %v5370
  %v5597 = vpop.f32.mrf.mxu0
  %v5598 = vadd.f32 0.0, %v5597
  %v5599 = vpop.f32.mrf.mxu0
  %5600 = vmatprep.mubr.f32.mxu0 %v5435
  %5601 = vmatmul.mubr.f32.gmra.mxu0 %v5371
  %v5602 = vpop.f32.mrf.mxu0
  %v5603 = vadd.f32 0.0, %v5602
  %v5604 = vpop.f32.mrf.mxu0
  %5605 = vmatprep.mubr.f32.mxu0 %v5436
  %5606 = vmatmul.mubr.f32.gmra.mxu0 %v5372
  %v5607 = vpop.f32.mrf.mxu0
  %v5608 = vadd.f32 0.0, %v5607
  %v5609 = vpop.f32.mrf.mxu0
  %5610 = vmatprep.mubr.f32.mxu0 %v5437
  %5611 = vmatmul.mubr.f32.gmra.mxu0 %v5373
  %v5612 = vpop.f32.mrf.mxu0
  %v5613 = vadd.f32 0.0, %v5612
  %v5614 = vpop.f32.mrf.mxu0
  %5615 = vmatprep.mubr.f32.mxu0 %v5438
  %5616 = vmatmul.mubr.f32.gmra.mxu0 %v5374
  %v5617 = vpop.f32.mrf.mxu0
  %v5618 = vadd.f32 0.0, %v5617
  %v5619 = vpop.f32.mrf.mxu0
  %5620 = vmatprep.mubr.f32.mxu0 %v5439
  %5621 = vmatmul.mubr.f32.gmra.mxu0 %v5375
  %v5622 = vpop.f32.mrf.mxu0
  %v5623 = vadd.f32 0.0, %v5622
  %v5624 = vpop.f32.mrf.mxu0
  %5625 = vmatprep.mubr.f32.mxu0 %v5440
  %5626 = vmatmul.mubr.f32.gmra.mxu0 %v5376
  %v5627 = vpop.f32.mrf.mxu0
  %v5628 = vadd.f32 0.0, %v5627
  %v5629 = vpop.f32.mrf.mxu0
  %5630 = vmatprep.mubr.f32.mxu0 %v5441
  %5631 = vmatmul.mubr.f32.gmra.mxu0 %v5377
  %v5632 = vpop.f32.mrf.mxu0
  %v5633 = vadd.f32 0.0, %v5632
  %v5634 = vpop.f32.mrf.mxu0
  %5635 = vmatprep.mubr.f32.mxu0 %v5442
  %5636 = vmatmul.mubr.f32.gmra.mxu0 %v5378
  %v5637 = vpop.f32.mrf.mxu0
  %v5638 = vadd.f32 0.0, %v5637
  %v5639 = vpop.f32.mrf.mxu0
  %5640 = vmatprep.mubr.f32.mxu0 %v5443
  %5641 = vmatmul.mubr.f32.gmra.mxu0 %v5379
  %v5642 = vpop.f32.mrf.mxu0
  %v5643 = vadd.f32 0.0, %v5642
  %v5644 = vpop.f32.mrf.mxu0
  %5645 = vmatprep.mubr.f32.mxu0 %v5444
  %5646 = vmatmul.mubr.f32.gmra.mxu0 %v5380
  %v5647 = vpop.f32.mrf.mxu0
  %v5648 = vadd.f32 0.0, %v5647
  %v5649 = vpop.f32.mrf.mxu0
  %5650 = vmatprep.mubr.f32.mxu0 %v5445
  %5651 = vmatmul.mubr.f32.gmra.mxu0 %v5381
  %v5652 = vpop.f32.mrf.mxu0
  %v5653 = vadd.f32 0.0, %v5652
  %v5654 = vpop.f32.mrf.mxu0
  %5655 = vmatprep.mubr.f32.mxu0 %v5446
  %5656 = vmatmul.mubr.f32.gmra.mxu0 %v5382
  %v5657 = vpop.f32.mrf.mxu0
  %v5658 = vadd.f32 0.0, %v5657
  %v5659 = vpop.f32.mrf.mxu0
  %5660 = vmatprep.mubr.f32.mxu0 %v5447
  %5661 = vmatmul.mubr.f32.gmra.mxu0 %v5383
  %v5662 = vpop.f32.mrf.mxu0
  %v5663 = vadd.f32 0.0, %v5662
  %v5664 = vpop.f32.mrf.mxu0
  %5665 = vmatprep.mubr.f32.mxu0 %v5448
  %5666 = vmatmul.mubr.f32.gmra.mxu0 %v5384
  %v5667 = vpop.f32.mrf.mxu0
  %v5668 = vadd.f32 0.0, %v5667
  %v5669 = vpop.f32.mrf.mxu0
  %5670 = vmatprep.mubr.f32.mxu0 %v5449
  %5671 = vmatmul.mubr.f32.gmra.mxu0 %v5385
  %v5672 = vpop.f32.mrf.mxu0
  %v5673 = vadd.f32 0.0, %v5672
  %v5674 = vpop.f32.mrf.mxu0
  %5675 = vmatprep.mubr.f32.mxu0 %v5450
  %5676 = vmatmul.mubr.f32.gmra.mxu0 %v5386
  %v5677 = vpop.f32.mrf.mxu0
  %v5678 = vadd.f32 0.0, %v5677
  %v5679 = vpop.f32.mrf.mxu0
  %5680 = vmatprep.mubr.f32.mxu0 %v5451
  %5681 = vmatmul.mubr.f32.gmra.mxu0 %v5387
  %v5682 = vpop.f32.mrf.mxu0
  %v5683 = vadd.f32 0.0, %v5682
  %v5684 = vpop.f32.mrf.mxu0
  %5685 = vmatprep.mubr.f32.mxu0 %v5452
  %5686 = vmatmul.mubr.f32.gmra.mxu0 %v5388
  %v5687 = vpop.f32.mrf.mxu0
  %v5688 = vadd.f32 0.0, %v5687
  %v5689 = vpop.f32.mrf.mxu0
  %5690 = vmatprep.mubr.f32.mxu0 %v5453
  %5691 = vmatmul.mubr.f32.gmra.mxu0 %v5389
  %v5692 = vpop.f32.mrf.mxu0
  %v5693 = vadd.f32 0.0, %v5692
  %v5694 = vpop.f32.mrf.mxu0
  %5695 = vmatprep.mubr.f32.mxu0 %v5454
  %5696 = vmatmul.mubr.f32.gmra.mxu0 %v5390
  %v5697 = vpop.f32.mrf.mxu0
  %v5698 = vadd.f32 0.0, %v5697
  %v5699 = vpop.f32.mrf.mxu0
  %5700 = vmatprep.mubr.f32.mxu0 %v5455
  %5701 = vmatmul.mubr.f32.gmra.mxu0 %v5391
  %v5702 = vpop.f32.mrf.mxu0
  %v5703 = vadd.f32 0.0, %v5702
  %v5704 = vpop.f32.mrf.mxu0
  %5705 = vmatprep.mubr.f32.mxu0 %v5456
  %5706 = vmatmul.mubr.f32.gmra.mxu0 %v5392
  %v5707 = vpop.f32.mrf.mxu0
  %v5708 = vadd.f32 0.0, %v5707
  %v5709 = vpop.f32.mrf.mxu0
  %5710 = vmatprep.mubr.f32.mxu0 %v5457
  %5711 = vmatmul.mubr.f32.gmra.mxu0 %v5393
  %v5712 = vpop.f32.mrf.mxu0
  %v5713 = vadd.f32 0.0, %v5712
  %v5714 = vpop.f32.mrf.mxu0
  %5715 = vmatprep.mubr.f32.mxu0 %v5458
  %5716 = vmatmul.mubr.f32.gmra.mxu0 %v5394
  %v5717 = vpop.f32.mrf.mxu0
  %v5718 = vadd.f32 0.0, %v5717
  %v5719 = vpop.f32.mrf.mxu0
  %5720 = vmatprep.mubr.f32.mxu0 %v5459
  %5721 = vmatmul.mubr.f32.gmra.mxu0 %v5395
  %v5722 = vpop.f32.mrf.mxu0
  %v5723 = vadd.f32 0.0, %v5722
  %v5724 = vpop.f32.mrf.mxu0
  %5725 = vmatprep.mubr.f32.mxu0 %v5460
  %5726 = vmatmul.mubr.f32.gmra.mxu0 %v5396
  %v5727 = vpop.f32.mrf.mxu0
  %v5728 = vadd.f32 0.0, %v5727
  %v5729 = vpop.f32.mrf.mxu0
  %5730 = vmatprep.mubr.f32.mxu0 %v5461
  %5731 = vmatmul.mubr.f32.gmra.mxu0 %v5397
  %v5732 = vpop.f32.mrf.mxu0
  %v5733 = vadd.f32 0.0, %v5732
  %v5734 = vpop.f32.mrf.mxu0
  %5735 = vmatprep.mubr.f32.mxu0 %v5462
  %5736 = vmatmul.mubr.f32.gmra.mxu0 %v5398
  %v5737 = vpop.f32.mrf.mxu0
  %v5738 = vadd.f32 0.0, %v5737
  %v5739 = vpop.f32.mrf.mxu0
  %5740 = vmatprep.mubr.f32.mxu0 %v5463
  %5741 = vmatmul.mubr.f32.gmra.mxu0 %v5399
  %v5742 = vpop.f32.mrf.mxu0
  %v5743 = vadd.f32 0.0, %v5742
  %v5744 = vpop.f32.mrf.mxu0
  %5745 = vmatprep.mubr.f32.mxu0 %v5464
  %5746 = vmatmul.mubr.f32.gmra.mxu0 %v5400
  %v5747 = vpop.f32.mrf.mxu0
  %v5748 = vadd.f32 0.0, %v5747
  %v5749 = vpop.f32.mrf.mxu0
  %5750 = vmatprep.mubr.f32.mxu0 %v5465
  %5751 = vmatmul.mubr.f32.gmra.mxu0 %v5401
  %v5752 = vpop.f32.mrf.mxu0
  %v5753 = vadd.f32 0.0, %v5752
  %v5754 = vpop.f32.mrf.mxu0
  %5755 = vmatprep.mubr.f32.mxu0 %v5466
  %5756 = vmatmul.mubr.f32.gmra.mxu0 %v5402
  %v5757 = vpop.f32.mrf.mxu0
  %v5758 = vadd.f32 0.0, %v5757
  %v5759 = vpop.f32.mrf.mxu0
  %5760 = vmatprep.mubr.f32.mxu0 %v5467
  %5761 = vmatmul.mubr.f32.gmra.mxu0 %v5403
  %v5762 = vpop.f32.mrf.mxu0
  %v5763 = vadd.f32 0.0, %v5762
  %v5764 = vpop.f32.mrf.mxu0
  %5765 = vmatprep.mubr.f32.mxu0 %v5468
  %5766 = vmatmul.mubr.f32.gmra.mxu0 %v5404
  %v5767 = vpop.f32.mrf.mxu0
  %v5768 = vadd.f32 0.0, %v5767
  %v5769 = vpop.f32.mrf.mxu0
  %5770 = vmatprep.mubr.f32.mxu0 %v5469
  %5771 = vmatmul.mubr.f32.gmra.mxu0 %v5405
  %v5772 = vpop.f32.mrf.mxu0
  %v5773 = vadd.f32 0.0, %v5772
  %v5774 = vpop.f32.mrf.mxu0
  %5775 = vmatprep.mubr.f32.mxu0 %v5470
  %5776 = vmatmul.mubr.f32.gmra.mxu0 %v5406
  %v5777 = vpop.f32.mrf.mxu0
  %v5778 = vadd.f32 0.0, %v5777
  %v5779 = vpop.f32.mrf.mxu0
  %5780 = vmatprep.mubr.f32.mxu0 %v5471
  %5781 = vmatmul.mubr.f32.gmra.mxu0 %v5407
  %v5782 = vpop.f32.mrf.mxu0
  %v5783 = vadd.f32 0.0, %v5782
  %v5784 = vpop.f32.mrf.mxu0
  %5785 = vmatprep.mubr.f32.mxu0 %v5472
  %5786 = vmatmul.mubr.f32.gmra.mxu0 %v5408
  %v5787 = vpop.f32.mrf.mxu0
  %v5788 = vadd.f32 0.0, %v5787
  %v5789 = vpop.f32.mrf.mxu0
  %5790 = vmatprep.mubr.f32.mxu0 %v5473
  %5791 = vmatmul.mubr.f32.gmra.mxu0 %v5409
  %v5792 = vpop.f32.mrf.mxu0
  %v5793 = vadd.f32 0.0, %v5792
  %v5794 = vpop.f32.mrf.mxu0
  %5795 = vmatprep.mubr.f32.mxu0 %v5474
  %5796 = vmatmul.mubr.f32.gmra.mxu0 %v5410
  %v5797 = vpop.f32.mrf.mxu0
  %v5798 = vadd.f32 0.0, %v5797
  %v5799 = vpop.f32.mrf.mxu0
  %5800 = vmatprep.mubr.f32.mxu0 %v5475
  %5801 = vmatmul.mubr.f32.gmra.mxu0 %v5411
  %v5802 = vpop.f32.mrf.mxu0
  %v5803 = vadd.f32 0.0, %v5802
  %v5804 = vpop.f32.mrf.mxu0
  %5805 = vmatprep.mubr.f32.mxu0 %v5476
  %5806 = vmatmul.mubr.f32.gmra.mxu0 %v5412
  %v5807 = vpop.f32.mrf.mxu0
  %v5808 = vadd.f32 0.0, %v5807
  %v5809 = vpop.f32.mrf.mxu0
  %5810 = vmatprep.mubr.f32.mxu0 %v5477
  %5811 = vmatmul.mubr.f32.gmra.mxu0 %v5413
  %v5812 = vpop.f32.mrf.mxu0
  %v5813 = vadd.f32 0.0, %v5812
  %v5814 = vpop.f32.mrf.mxu0
  %5815 = vmatprep.mubr.f32.mxu0 %v5478
  %5816 = vmatmul.mubr.f32.gmra.mxu0 %v5414
  %v5817 = vpop.f32.mrf.mxu0
  %v5818 = vadd.f32 0.0, %v5817
  %v5819 = vpop.f32.mrf.mxu0
  %5820 = vmatprep.mubr.f32.mxu0 %v5479
  %5821 = vmatmul.mubr.f32.gmra.mxu0 %v5415
  %v5822 = vpop.f32.mrf.mxu0
  %v5823 = vadd.f32 0.0, %v5822
  %v5824 = vpop.f32.mrf.mxu0
  %5825 = vmatprep.mubr.f32.mxu0 %v5480
  %5826 = vmatmul.mubr.f32.gmra.mxu0 %v5416
  %v5827 = vpop.f32.mrf.mxu0
  %v5828 = vadd.f32 0.0, %v5827
  %v5829 = vpop.f32.mrf.mxu0
  %5830 = vmatprep.mubr.f32.mxu0 %v5481
  %5831 = vmatmul.mubr.f32.gmra.mxu0 %v5417
  %v5832 = vpop.f32.mrf.mxu0
  %v5833 = vadd.f32 0.0, %v5832
  %v5834 = vpop.f32.mrf.mxu0
  %5835 = vmatprep.mubr.f32.mxu0 %v5482
  %5836 = vmatmul.mubr.f32.gmra.mxu0 %v5418
  %v5837 = vpop.f32.mrf.mxu0
  %v5838 = vadd.f32 0.0, %v5837
  %v5839 = vpop.f32.mrf.mxu0
  %5840 = vmatprep.mubr.f32.mxu0 %v5483
  %5841 = vmatmul.mubr.f32.gmra.mxu0 %v5419
  %v5842 = vpop.f32.mrf.mxu0
  %v5843 = vadd.f32 0.0, %v5842
  %v5844 = vpop.f32.mrf.mxu0
  %5845 = vmatprep.mubr.f32.mxu0 %v5484
  %5846 = vmatmul.mubr.f32.gmra.mxu0 %v5420
  %v5847 = vpop.f32.mrf.mxu0
  %v5848 = vadd.f32 0.0, %v5847
  %v5849 = vpop.f32.mrf.mxu0
  %5850 = vmatprep.mubr.f32.mxu0 %v5485
  %5851 = vmatmul.mubr.f32.gmra.mxu0 %v5421
  %v5852 = vpop.f32.mrf.mxu0
  %v5853 = vadd.f32 0.0, %v5852
  %v5854 = vpop.f32.mrf.mxu0
  %5855 = vmatprep.mubr.f32.mxu0 %v5486
  %5856 = vmatmul.mubr.f32.gmra.mxu0 %v5422
  %v5857 = vpop.f32.mrf.mxu0
  %v5858 = vadd.f32 0.0, %v5857
  %v5859 = vpop.f32.mrf.mxu0
  %5860 = vmatprep.mubr.f32.mxu0 %v5487
  %5861 = vmatmul.mubr.f32.gmra.mxu0 %v5423
  %v5862 = vpop.f32.mrf.mxu0
  %v5863 = vadd.f32 0.0, %v5862
  %v5864 = vpop.f32.mrf.mxu0
  %5865 = vmatprep.mubr.f32.mxu0 %v5488
  %5866 = vmatmul.mubr.f32.gmra.mxu0 %v5424
  %v5867 = vpop.f32.mrf.mxu0
  %v5868 = vadd.f32 0.0, %v5867
  %v5869 = vpop.f32.mrf.mxu0
  %5870 = vmatprep.mubr.f32.mxu0 %v5489
  %5871 = vmatmul.mubr.f32.gmra.mxu0 %v5425
  %v5872 = vpop.f32.mrf.mxu0
  %v5873 = vadd.f32 0.0, %v5872
  %v5874 = vpop.f32.mrf.mxu0
  %5875 = vmatprep.mubr.f32.mxu0 %v5490
  %5876 = vmatmul.mubr.f32.gmra.mxu0 %v5426
  %v5877 = vpop.f32.mrf.mxu0
  %v5878 = vadd.f32 0.0, %v5877
  %v5879 = vpop.f32.mrf.mxu0
  %5880 = vmatprep.mubr.f32.mxu0 %v5491
  %5881 = vmatmul.mubr.f32.gmra.mxu0 %v5427
  %v5882 = vpop.f32.mrf.mxu0
  %v5883 = vadd.f32 0.0, %v5882
  %v5884 = vpop.f32.mrf.mxu0
  %5885 = vmatprep.mubr.f32.mxu0 %v5492
  %5886 = vmatmul.mubr.f32.gmra.mxu0 %v5428
  %v5887 = vpop.f32.mrf.mxu0
  %v5888 = vadd.f32 0.0, %v5887
  %v5889 = vpop.f32.mrf.mxu0
  %5890 = vmatprep.mubr.f32.mxu0 %v5493
  %5891 = vmatmul.mubr.f32.gmra.mxu0 %v5429
  %v5892 = vpop.f32.mrf.mxu0
  %v5893 = vadd.f32 0.0, %v5892
  %v5894 = vpop.f32.mrf.mxu0
  %5895 = vmatprep.mubr.f32.mxu0 %v5494
  %5896 = vmatmul.mubr.f32.gmra.mxu0 %v5430
  %v5897 = vpop.f32.mrf.mxu0
  %v5898 = vadd.f32 0.0, %v5897
  %v5899 = vpop.f32.mrf.mxu0
  %5900 = vmatprep.mubr.f32.mxu0 %v5495
  %5901 = vmatmul.mubr.f32.gmra.mxu0 %v5431
  %v5902 = vpop.f32.mrf.mxu0
  %v5903 = vadd.f32 0.0, %v5902
  %v5904 = vpop.f32.mrf.mxu0
  %5905 = vmatprep.mubr.f32.mxu0 %v5496
  %5906 = vmatmul.mubr.f32.gmra.mxu0 %v5432
  %v5907 = vpop.f32.mrf.mxu0
  %v5908 = vadd.f32 0.0, %v5907
  %v5909 = vpop.f32.mrf.mxu0
  %5910 = vmatprep.mubr.f32.mxu0 %v5497
  %5911 = vmatmul.mubr.f32.gmra.mxu0 %v5433
  %v5912 = vpop.f32.mrf.mxu0
  %v5913 = vadd.f32 0.0, %v5912
  %v5914 = vpop.f32.mrf.mxu0
  %5915 = vdwg.mxu0
  %v5916 = vadd.f32 %v5052, %v5598
  %v5917 = vadd.f32 %v5057, %v5603
  %v5918 = vadd.f32 %v5062, %v5608
  %v5919 = vadd.f32 %v5067, %v5613
  %v5920 = vadd.f32 %v5072, %v5618
  %v5921 = vadd.f32 %v5077, %v5623
  %v5922 = vadd.f32 %v5082, %v5628
  %v5923 = vadd.f32 %v5087, %v5633
  %v5924 = vadd.f32 %v5092, %v5638
  %v5925 = vadd.f32 %v5097, %v5643
  %v5926 = vadd.f32 %v5102, %v5648
  %v5927 = vadd.f32 %v5107, %v5653
  %v5928 = vadd.f32 %v5112, %v5658
  %v5929 = vadd.f32 %v5117, %v5663
  %v5930 = vadd.f32 %v5122, %v5668
  %v5931 = vadd.f32 %v5127, %v5673
  %v5932 = vadd.f32 %v5132, %v5678
  %v5933 = vadd.f32 %v5137, %v5683
  %v5934 = vadd.f32 %v5142, %v5688
  %v5935 = vadd.f32 %v5147, %v5693
  %v5936 = vadd.f32 %v5152, %v5698
  %v5937 = vadd.f32 %v5157, %v5703
  %v5938 = vadd.f32 %v5162, %v5708
  %v5939 = vadd.f32 %v5167, %v5713
  %v5940 = vadd.f32 %v5172, %v5718
  %v5941 = vadd.f32 %v5177, %v5723
  %v5942 = vadd.f32 %v5182, %v5728
  %v5943 = vadd.f32 %v5187, %v5733
  %v5944 = vadd.f32 %v5192, %v5738
  %v5945 = vadd.f32 %v5197, %v5743
  %v5946 = vadd.f32 %v5202, %v5748
  %v5947 = vadd.f32 %v5207, %v5753
  %v5948 = vadd.f32 %v5212, %v5758
  %v5949 = vadd.f32 %v5217, %v5763
  %v5950 = vadd.f32 %v5222, %v5768
  %v5951 = vadd.f32 %v5227, %v5773
  %v5952 = vadd.f32 %v5232, %v5778
  %v5953 = vadd.f32 %v5237, %v5783
  %v5954 = vadd.f32 %v5242, %v5788
  %v5955 = vadd.f32 %v5247, %v5793
  %v5956 = vadd.f32 %v5252, %v5798
  %v5957 = vadd.f32 %v5257, %v5803
  %v5958 = vadd.f32 %v5262, %v5808
  %v5959 = vadd.f32 %v5267, %v5813
  %v5960 = vadd.f32 %v5272, %v5818
  %v5961 = vadd.f32 %v5277, %v5823
  %v5962 = vadd.f32 %v5282, %v5828
  %v5963 = vadd.f32 %v5287, %v5833
  %v5964 = vadd.f32 %v5292, %v5838
  %v5965 = vadd.f32 %v5297, %v5843
  %v5966 = vadd.f32 %v5302, %v5848
  %v5967 = vadd.f32 %v5307, %v5853
  %v5968 = vadd.f32 %v5312, %v5858
  %v5969 = vadd.f32 %v5317, %v5863
  %v5970 = vadd.f32 %v5322, %v5868
  %v5971 = vadd.f32 %v5327, %v5873
  %v5972 = vadd.f32 %v5332, %v5878
  %v5973 = vadd.f32 %v5337, %v5883
  %v5974 = vadd.f32 %v5342, %v5888
  %v5975 = vadd.f32 %v5347, %v5893
  %v5976 = vadd.f32 %v5352, %v5898
  %v5977 = vadd.f32 %v5357, %v5903
  %v5978 = vadd.f32 %v5362, %v5908
  %v5979 = vadd.f32 %v5367, %v5913
  %s5980 = scalar_lea.vmem [#allocation3], 64
  %v5981 = vld [vmem:[%s5980 + $0x7] sm:$0xff]
  %v5982 = vld [vmem:[%s5980 + $0xf] sm:$0xff]
  %v5983 = vld [vmem:[%s5980 + $0x27] sm:$0xff]
  %v5984 = vld [vmem:[%s5980 + $0x2f] sm:$0xff]
  %v5985 = vld [vmem:[%s5980 + $0x47] sm:$0xff]
  %v5986 = vld [vmem:[%s5980 + $0x4f] sm:$0xff]
  %v5987 = vld [vmem:[%s5980 + $0x67] sm:$0xff]
  %v5988 = vld [vmem:[%s5980 + $0x6f] sm:$0xff]
  %v5989 = vld [vmem:[%s5980 + $0x87] sm:$0xff]
  %v5990 = vld [vmem:[%s5980 + $0x8f] sm:$0xff]
  %v5991 = vld [vmem:[%s5980 + $0xa7] sm:$0xff]
  %v5992 = vld [vmem:[%s5980 + $0xaf] sm:$0xff]
  %v5993 = vld [vmem:[%s5980 + $0xc7] sm:$0xff]
  %v5994 = vld [vmem:[%s5980 + $0xcf] sm:$0xff]
  %v5995 = vld [vmem:[%s5980 + $0xe7] sm:$0xff]
  %v5996 = vld [vmem:[%s5980 + $0xef] sm:$0xff]
  %v5997 = vld [vmem:[%s5980 + $0x107] sm:$0xff]
  %v5998 = vld [vmem:[%s5980 + $0x10f] sm:$0xff]
  %v5999 = vld [vmem:[%s5980 + $0x127] sm:$0xff]
  %v6000 = vld [vmem:[%s5980 + $0x12f] sm:$0xff]
  %v6001 = vld [vmem:[%s5980 + $0x147] sm:$0xff]
  %v6002 = vld [vmem:[%s5980 + $0x14f] sm:$0xff]
  %v6003 = vld [vmem:[%s5980 + $0x167] sm:$0xff]
  %v6004 = vld [vmem:[%s5980 + $0x16f] sm:$0xff]
  %v6005 = vld [vmem:[%s5980 + $0x187] sm:$0xff]
  %v6006 = vld [vmem:[%s5980 + $0x18f] sm:$0xff]
  %v6007 = vld [vmem:[%s5980 + $0x1a7] sm:$0xff]
  %v6008 = vld [vmem:[%s5980 + $0x1af] sm:$0xff]
  %v6009 = vld [vmem:[%s5980 + $0x1c7] sm:$0xff]
  %v6010 = vld [vmem:[%s5980 + $0x1cf] sm:$0xff]
  %v6011 = vld [vmem:[%s5980 + $0x1e7] sm:$0xff]
  %v6012 = vld [vmem:[%s5980 + $0x1ef] sm:$0xff]
  %v6013 = vld [vmem:[%s5980 + $0x247] sm:$0xff]
  %v6014 = vld [vmem:[%s5980 + $0x24f] sm:$0xff]
  %v6015 = vld [vmem:[%s5980 + $0x267] sm:$0xff]
  %v6016 = vld [vmem:[%s5980 + $0x26f] sm:$0xff]
  %v6017 = vld [vmem:[%s5980 + $0x287] sm:$0xff]
  %v6018 = vld [vmem:[%s5980 + $0x28f] sm:$0xff]
  %v6019 = vld [vmem:[%s5980 + $0x2a7] sm:$0xff]
  %v6020 = vld [vmem:[%s5980 + $0x2af] sm:$0xff]
  %v6021 = vld [vmem:[%s5980 + $0x2c7] sm:$0xff]
  %v6022 = vld [vmem:[%s5980 + $0x2cf] sm:$0xff]
  %v6023 = vld [vmem:[%s5980 + $0x2e7] sm:$0xff]
  %v6024 = vld [vmem:[%s5980 + $0x2ef] sm:$0xff]
  %v6025 = vld [vmem:[%s5980 + $0x307] sm:$0xff]
  %v6026 = vld [vmem:[%s5980 + $0x30f] sm:$0xff]
  %v6027 = vld [vmem:[%s5980 + $0x327] sm:$0xff]
  %v6028 = vld [vmem:[%s5980 + $0x32f] sm:$0xff]
  %v6029 = vld [vmem:[%s5980 + $0x347] sm:$0xff]
  %v6030 = vld [vmem:[%s5980 + $0x34f] sm:$0xff]
  %v6031 = vld [vmem:[%s5980 + $0x367] sm:$0xff]
  %v6032 = vld [vmem:[%s5980 + $0x36f] sm:$0xff]
  %v6033 = vld [vmem:[%s5980 + $0x387] sm:$0xff]
  %v6034 = vld [vmem:[%s5980 + $0x38f] sm:$0xff]
  %v6035 = vld [vmem:[%s5980 + $0x3a7] sm:$0xff]
  %v6036 = vld [vmem:[%s5980 + $0x3af] sm:$0xff]
  %v6037 = vld [vmem:[%s5980 + $0x3c7] sm:$0xff]
  %v6038 = vld [vmem:[%s5980 + $0x3cf] sm:$0xff]
  %v6039 = vld [vmem:[%s5980 + $0x3e7] sm:$0xff]
  %v6040 = vld [vmem:[%s5980 + $0x3ef] sm:$0xff]
  %v6041 = vld [vmem:[%s5980 + $0x407] sm:$0xff]
  %v6042 = vld [vmem:[%s5980 + $0x40f] sm:$0xff]
  %v6043 = vld [vmem:[%s5980 + $0x427] sm:$0xff]
  %v6044 = vld [vmem:[%s5980 + $0x42f] sm:$0xff]
  %v6045 = vld [vmem:[%s5980 + $0x8] sm:$0xff]
  %v6046 = vld [vmem:[%s5980 + $0x10] sm:$0xff]
  %v6047 = vld [vmem:[%s5980 + $0x28] sm:$0xff]
  %v6048 = vld [vmem:[%s5980 + $0x30] sm:$0xff]
  %v6049 = vld [vmem:[%s5980 + $0x48] sm:$0xff]
  %v6050 = vld [vmem:[%s5980 + $0x50] sm:$0xff]
  %v6051 = vld [vmem:[%s5980 + $0x68] sm:$0xff]
  %v6052 = vld [vmem:[%s5980 + $0x70] sm:$0xff]
  %v6053 = vld [vmem:[%s5980 + $0x88] sm:$0xff]
  %v6054 = vld [vmem:[%s5980 + $0x90] sm:$0xff]
  %v6055 = vld [vmem:[%s5980 + $0xa8] sm:$0xff]
  %v6056 = vld [vmem:[%s5980 + $0xb0] sm:$0xff]
  %v6057 = vld [vmem:[%s5980 + $0xc8] sm:$0xff]
  %v6058 = vld [vmem:[%s5980 + $0xd0] sm:$0xff]
  %v6059 = vld [vmem:[%s5980 + $0xe8] sm:$0xff]
  %v6060 = vld [vmem:[%s5980 + $0xf0] sm:$0xff]
  %v6061 = vld [vmem:[%s5980 + $0x108] sm:$0xff]
  %v6062 = vld [vmem:[%s5980 + $0x110] sm:$0xff]
  %v6063 = vld [vmem:[%s5980 + $0x128] sm:$0xff]
  %v6064 = vld [vmem:[%s5980 + $0x130] sm:$0xff]
  %v6065 = vld [vmem:[%s5980 + $0x148] sm:$0xff]
  %v6066 = vld [vmem:[%s5980 + $0x150] sm:$0xff]
  %v6067 = vld [vmem:[%s5980 + $0x168] sm:$0xff]
  %v6068 = vld [vmem:[%s5980 + $0x170] sm:$0xff]
  %v6069 = vld [vmem:[%s5980 + $0x188] sm:$0xff]
  %v6070 = vld [vmem:[%s5980 + $0x190] sm:$0xff]
  %v6071 = vld [vmem:[%s5980 + $0x1a8] sm:$0xff]
  %v6072 = vld [vmem:[%s5980 + $0x1b0] sm:$0xff]
  %v6073 = vld [vmem:[%s5980 + $0x1c8] sm:$0xff]
  %v6074 = vld [vmem:[%s5980 + $0x1d0] sm:$0xff]
  %v6075 = vld [vmem:[%s5980 + $0x1e8] sm:$0xff]
  %v6076 = vld [vmem:[%s5980 + $0x1f0] sm:$0xff]
  %v6077 = vld [vmem:[%s5980 + $0x248] sm:$0xff]
  %v6078 = vld [vmem:[%s5980 + $0x250] sm:$0xff]
  %v6079 = vld [vmem:[%s5980 + $0x268] sm:$0xff]
  %v6080 = vld [vmem:[%s5980 + $0x270] sm:$0xff]
  %v6081 = vld [vmem:[%s5980 + $0x288] sm:$0xff]
  %v6082 = vld [vmem:[%s5980 + $0x290] sm:$0xff]
  %v6083 = vld [vmem:[%s5980 + $0x2a8] sm:$0xff]
  %v6084 = vld [vmem:[%s5980 + $0x2b0] sm:$0xff]
  %v6085 = vld [vmem:[%s5980 + $0x2c8] sm:$0xff]
  %v6086 = vld [vmem:[%s5980 + $0x2d0] sm:$0xff]
  %v6087 = vld [vmem:[%s5980 + $0x2e8] sm:$0xff]
  %v6088 = vld [vmem:[%s5980 + $0x2f0] sm:$0xff]
  %v6089 = vld [vmem:[%s5980 + $0x308] sm:$0xff]
  %v6090 = vld [vmem:[%s5980 + $0x310] sm:$0xff]
  %v6091 = vld [vmem:[%s5980 + $0x328] sm:$0xff]
  %v6092 = vld [vmem:[%s5980 + $0x330] sm:$0xff]
  %v6093 = vld [vmem:[%s5980 + $0x348] sm:$0xff]
  %v6094 = vld [vmem:[%s5980 + $0x350] sm:$0xff]
  %v6095 = vld [vmem:[%s5980 + $0x368] sm:$0xff]
  %v6096 = vld [vmem:[%s5980 + $0x370] sm:$0xff]
  %v6097 = vld [vmem:[%s5980 + $0x388] sm:$0xff]
  %v6098 = vld [vmem:[%s5980 + $0x390] sm:$0xff]
  %v6099 = vld [vmem:[%s5980 + $0x3a8] sm:$0xff]
  %v6100 = vld [vmem:[%s5980 + $0x3b0] sm:$0xff]
  %v6101 = vld [vmem:[%s5980 + $0x3c8] sm:$0xff]
  %v6102 = vld [vmem:[%s5980 + $0x3d0] sm:$0xff]
  %v6103 = vld [vmem:[%s5980 + $0x3e8] sm:$0xff]
  %v6104 = vld [vmem:[%s5980 + $0x3f0] sm:$0xff]
  %v6105 = vld [vmem:[%s5980 + $0x408] sm:$0xff]
  %v6106 = vld [vmem:[%s5980 + $0x410] sm:$0xff]
  %v6107 = vld [vmem:[%s5980 + $0x428] sm:$0xff]
  %v6108 = vld [vmem:[%s5980 + $0x430] sm:$0xff]
  %s6109 = scalar_lea.vmem %s4, 768
  %v6110 = vld [vmem:[%s6109] sm:$0xff]
  %v6111 = vld [vmem:[%s6109 + $0x8] sm:$0xff]
  %v6112 = vld [vmem:[%s6109 + $0x10] sm:$0xff]
  %v6113 = vld [vmem:[%s6109 + $0x18] sm:$0xff]
  %v6114 = vld [vmem:[%s6109 + $0x20] sm:$0xff]
  %v6115 = vld [vmem:[%s6109 + $0x28] sm:$0xff]
  %v6116 = vld [vmem:[%s6109 + $0x30] sm:$0xff]
  %v6117 = vld [vmem:[%s6109 + $0x38] sm:$0xff]
  %v6118 = vld [vmem:[%s6109 + $0x40] sm:$0xff]
  %v6119 = vld [vmem:[%s6109 + $0x48] sm:$0xff]
  %v6120 = vld [vmem:[%s6109 + $0x50] sm:$0xff]
  %v6121 = vld [vmem:[%s6109 + $0x58] sm:$0xff]
  %v6122 = vld [vmem:[%s6109 + $0x60] sm:$0xff]
  %v6123 = vld [vmem:[%s6109 + $0x68] sm:$0xff]
  %v6124 = vld [vmem:[%s6109 + $0x70] sm:$0xff]
  %v6125 = vld [vmem:[%s6109 + $0x78] sm:$0xff]
  %v6126 = vld [vmem:[%s6109 + $0x80] sm:$0xff]
  %v6127 = vld [vmem:[%s6109 + $0x88] sm:$0xff]
  %v6128 = vld [vmem:[%s6109 + $0x90] sm:$0xff]
  %v6129 = vld [vmem:[%s6109 + $0x98] sm:$0xff]
  %v6130 = vld [vmem:[%s6109 + $0xa0] sm:$0xff]
  %v6131 = vld [vmem:[%s6109 + $0xa8] sm:$0xff]
  %v6132 = vld [vmem:[%s6109 + $0xb0] sm:$0xff]
  %v6133 = vld [vmem:[%s6109 + $0xb8] sm:$0xff]
  %v6134 = vld [vmem:[%s6109 + $0xc0] sm:$0xff]
  %v6135 = vld [vmem:[%s6109 + $0xc8] sm:$0xff]
  %v6136 = vld [vmem:[%s6109 + $0xd0] sm:$0xff]
  %v6137 = vld [vmem:[%s6109 + $0xd8] sm:$0xff]
  %v6138 = vld [vmem:[%s6109 + $0xe0] sm:$0xff]
  %v6139 = vld [vmem:[%s6109 + $0xe8] sm:$0xff]
  %v6140 = vld [vmem:[%s6109 + $0xf0] sm:$0xff]
  %v6141 = vld [vmem:[%s6109 + $0xf8] sm:$0xff]
  %6142 = vmatprep.subr.mxu0 0.0
  %6143 = vmatpush1.msra.mxu0 %v6125
  %6144 = vmatprep.subr.mxu0 0.0
  %6145 = vmatpush1.msra.mxu0 %v6124
  %6146 = vmatprep.subr.mxu0 0.0
  %6147 = vmatpush1.msra.mxu0 %v6123
  %6148 = vmatprep.subr.mxu0 0.0
  %6149 = vmatpush1.msra.mxu0 %v6122
  %6150 = vmatprep.subr.mxu0 0.0
  %6151 = vmatpush1.msra.mxu0 %v6121
  %6152 = vmatprep.subr.mxu0 0.0
  %6153 = vmatpush1.msra.mxu0 %v6120
  %6154 = vmatprep.subr.mxu0 0.0
  %6155 = vmatpush1.msra.mxu0 %v6119
  %6156 = vmatprep.subr.mxu0 0.0
  %6157 = vmatpush1.msra.mxu0 %v6118
  %6158 = vmatprep.subr.mxu0 0.0
  %6159 = vmatpush1.msra.mxu0 %v6117
  %6160 = vmatprep.subr.mxu0 0.0
  %6161 = vmatpush1.msra.mxu0 %v6116
  %6162 = vmatprep.subr.mxu0 0.0
  %6163 = vmatpush1.msra.mxu0 %v6115
  %6164 = vmatprep.subr.mxu0 0.0
  %6165 = vmatpush1.msra.mxu0 %v6114
  %6166 = vmatprep.subr.mxu0 0.0
  %6167 = vmatpush1.msra.mxu0 %v6113
  %6168 = vmatprep.subr.mxu0 0.0
  %6169 = vmatpush1.msra.mxu0 %v6112
  %6170 = vmatprep.subr.mxu0 0.0
  %6171 = vmatpush1.msra.mxu0 %v6111
  %6172 = vmatprep.subr.mxu0 0.0
  %6173 = vmatpush1.msra.mxu0 %v6110
  %6174 = vmatprep.subr.mxu0 0.0
  %6175 = vmatpush2.msra.mxu0 %v6141
  %6176 = vmatprep.subr.mxu0 0.0
  %6177 = vmatpush2.msra.mxu0 %v6140
  %6178 = vmatprep.subr.mxu0 0.0
  %6179 = vmatpush2.msra.mxu0 %v6139
  %6180 = vmatprep.subr.mxu0 0.0
  %6181 = vmatpush2.msra.mxu0 %v6138
  %6182 = vmatprep.subr.mxu0 0.0
  %6183 = vmatpush2.msra.mxu0 %v6137
  %6184 = vmatprep.subr.mxu0 0.0
  %6185 = vmatpush2.msra.mxu0 %v6136
  %6186 = vmatprep.subr.mxu0 0.0
  %6187 = vmatpush2.msra.mxu0 %v6135
  %6188 = vmatprep.subr.mxu0 0.0
  %6189 = vmatpush2.msra.mxu0 %v6134
  %6190 = vmatprep.subr.mxu0 0.0
  %6191 = vmatpush2.msra.mxu0 %v6133
  %6192 = vmatprep.subr.mxu0 0.0
  %6193 = vmatpush2.msra.mxu0 %v6132
  %6194 = vmatprep.subr.mxu0 0.0
  %6195 = vmatpush2.msra.mxu0 %v6131
  %6196 = vmatprep.subr.mxu0 0.0
  %6197 = vmatpush2.msra.mxu0 %v6130
  %6198 = vmatprep.subr.mxu0 0.0
  %6199 = vmatpush2.msra.mxu0 %v6129
  %6200 = vmatprep.subr.mxu0 0.0
  %6201 = vmatpush2.msra.mxu0 %v6128
  %6202 = vmatprep.subr.mxu0 0.0
  %6203 = vmatpush2.msra.mxu0 %v6127
  %6204 = vmatprep.subr.mxu0 0.0
  %6205 = vmatpush2.msra.mxu0 %v6126
  %6206 = vmatprep.mubr.f32.mxu0 %v6045
  %6207 = vmatmul.mubr.f32.gmra.mxu0 %v5981
  %v6208 = vpop.f32.mrf.mxu0
  %v6209 = vadd.f32 0.0, %v6208
  %v6210 = vpop.f32.mrf.mxu0
  %6211 = vmatprep.mubr.f32.mxu0 %v6046
  %6212 = vmatmul.mubr.f32.gmra.mxu0 %v5982
  %v6213 = vpop.f32.mrf.mxu0
  %v6214 = vadd.f32 0.0, %v6213
  %v6215 = vpop.f32.mrf.mxu0
  %6216 = vmatprep.mubr.f32.mxu0 %v6047
  %6217 = vmatmul.mubr.f32.gmra.mxu0 %v5983
  %v6218 = vpop.f32.mrf.mxu0
  %v6219 = vadd.f32 0.0, %v6218
  %v6220 = vpop.f32.mrf.mxu0
  %6221 = vmatprep.mubr.f32.mxu0 %v6048
  %6222 = vmatmul.mubr.f32.gmra.mxu0 %v5984
  %v6223 = vpop.f32.mrf.mxu0
  %v6224 = vadd.f32 0.0, %v6223
  %v6225 = vpop.f32.mrf.mxu0
  %6226 = vmatprep.mubr.f32.mxu0 %v6049
  %6227 = vmatmul.mubr.f32.gmra.mxu0 %v5985
  %v6228 = vpop.f32.mrf.mxu0
  %v6229 = vadd.f32 0.0, %v6228
  %v6230 = vpop.f32.mrf.mxu0
  %6231 = vmatprep.mubr.f32.mxu0 %v6050
  %6232 = vmatmul.mubr.f32.gmra.mxu0 %v5986
  %v6233 = vpop.f32.mrf.mxu0
  %v6234 = vadd.f32 0.0, %v6233
  %v6235 = vpop.f32.mrf.mxu0
  %6236 = vmatprep.mubr.f32.mxu0 %v6051
  %6237 = vmatmul.mubr.f32.gmra.mxu0 %v5987
  %v6238 = vpop.f32.mrf.mxu0
  %v6239 = vadd.f32 0.0, %v6238
  %v6240 = vpop.f32.mrf.mxu0
  %6241 = vmatprep.mubr.f32.mxu0 %v6052
  %6242 = vmatmul.mubr.f32.gmra.mxu0 %v5988
  %v6243 = vpop.f32.mrf.mxu0
  %v6244 = vadd.f32 0.0, %v6243
  %v6245 = vpop.f32.mrf.mxu0
  %6246 = vmatprep.mubr.f32.mxu0 %v6053
  %6247 = vmatmul.mubr.f32.gmra.mxu0 %v5989
  %v6248 = vpop.f32.mrf.mxu0
  %v6249 = vadd.f32 0.0, %v6248
  %v6250 = vpop.f32.mrf.mxu0
  %6251 = vmatprep.mubr.f32.mxu0 %v6054
  %6252 = vmatmul.mubr.f32.gmra.mxu0 %v5990
  %v6253 = vpop.f32.mrf.mxu0
  %v6254 = vadd.f32 0.0, %v6253
  %v6255 = vpop.f32.mrf.mxu0
  %6256 = vmatprep.mubr.f32.mxu0 %v6055
  %6257 = vmatmul.mubr.f32.gmra.mxu0 %v5991
  %v6258 = vpop.f32.mrf.mxu0
  %v6259 = vadd.f32 0.0, %v6258
  %v6260 = vpop.f32.mrf.mxu0
  %6261 = vmatprep.mubr.f32.mxu0 %v6056
  %6262 = vmatmul.mubr.f32.gmra.mxu0 %v5992
  %v6263 = vpop.f32.mrf.mxu0
  %v6264 = vadd.f32 0.0, %v6263
  %v6265 = vpop.f32.mrf.mxu0
  %6266 = vmatprep.mubr.f32.mxu0 %v6057
  %6267 = vmatmul.mubr.f32.gmra.mxu0 %v5993
  %v6268 = vpop.f32.mrf.mxu0
  %v6269 = vadd.f32 0.0, %v6268
  %v6270 = vpop.f32.mrf.mxu0
  %6271 = vmatprep.mubr.f32.mxu0 %v6058
  %6272 = vmatmul.mubr.f32.gmra.mxu0 %v5994
  %v6273 = vpop.f32.mrf.mxu0
  %v6274 = vadd.f32 0.0, %v6273
  %v6275 = vpop.f32.mrf.mxu0
  %6276 = vmatprep.mubr.f32.mxu0 %v6059
  %6277 = vmatmul.mubr.f32.gmra.mxu0 %v5995
  %v6278 = vpop.f32.mrf.mxu0
  %v6279 = vadd.f32 0.0, %v6278
  %v6280 = vpop.f32.mrf.mxu0
  %6281 = vmatprep.mubr.f32.mxu0 %v6060
  %6282 = vmatmul.mubr.f32.gmra.mxu0 %v5996
  %v6283 = vpop.f32.mrf.mxu0
  %v6284 = vadd.f32 0.0, %v6283
  %v6285 = vpop.f32.mrf.mxu0
  %6286 = vmatprep.mubr.f32.mxu0 %v6061
  %6287 = vmatmul.mubr.f32.gmra.mxu0 %v5997
  %v6288 = vpop.f32.mrf.mxu0
  %v6289 = vadd.f32 0.0, %v6288
  %v6290 = vpop.f32.mrf.mxu0
  %6291 = vmatprep.mubr.f32.mxu0 %v6062
  %6292 = vmatmul.mubr.f32.gmra.mxu0 %v5998
  %v6293 = vpop.f32.mrf.mxu0
  %v6294 = vadd.f32 0.0, %v6293
  %v6295 = vpop.f32.mrf.mxu0
  %6296 = vmatprep.mubr.f32.mxu0 %v6063
  %6297 = vmatmul.mubr.f32.gmra.mxu0 %v5999
  %v6298 = vpop.f32.mrf.mxu0
  %v6299 = vadd.f32 0.0, %v6298
  %v6300 = vpop.f32.mrf.mxu0
  %6301 = vmatprep.mubr.f32.mxu0 %v6064
  %6302 = vmatmul.mubr.f32.gmra.mxu0 %v6000
  %v6303 = vpop.f32.mrf.mxu0
  %v6304 = vadd.f32 0.0, %v6303
  %v6305 = vpop.f32.mrf.mxu0
  %6306 = vmatprep.mubr.f32.mxu0 %v6065
  %6307 = vmatmul.mubr.f32.gmra.mxu0 %v6001
  %v6308 = vpop.f32.mrf.mxu0
  %v6309 = vadd.f32 0.0, %v6308
  %v6310 = vpop.f32.mrf.mxu0
  %6311 = vmatprep.mubr.f32.mxu0 %v6066
  %6312 = vmatmul.mubr.f32.gmra.mxu0 %v6002
  %v6313 = vpop.f32.mrf.mxu0
  %v6314 = vadd.f32 0.0, %v6313
  %v6315 = vpop.f32.mrf.mxu0
  %6316 = vmatprep.mubr.f32.mxu0 %v6067
  %6317 = vmatmul.mubr.f32.gmra.mxu0 %v6003
  %v6318 = vpop.f32.mrf.mxu0
  %v6319 = vadd.f32 0.0, %v6318
  %v6320 = vpop.f32.mrf.mxu0
  %6321 = vmatprep.mubr.f32.mxu0 %v6068
  %6322 = vmatmul.mubr.f32.gmra.mxu0 %v6004
  %v6323 = vpop.f32.mrf.mxu0
  %v6324 = vadd.f32 0.0, %v6323
  %v6325 = vpop.f32.mrf.mxu0
  %6326 = vmatprep.mubr.f32.mxu0 %v6069
  %6327 = vmatmul.mubr.f32.gmra.mxu0 %v6005
  %v6328 = vpop.f32.mrf.mxu0
  %v6329 = vadd.f32 0.0, %v6328
  %v6330 = vpop.f32.mrf.mxu0
  %6331 = vmatprep.mubr.f32.mxu0 %v6070
  %6332 = vmatmul.mubr.f32.gmra.mxu0 %v6006
  %v6333 = vpop.f32.mrf.mxu0
  %v6334 = vadd.f32 0.0, %v6333
  %v6335 = vpop.f32.mrf.mxu0
  %6336 = vmatprep.mubr.f32.mxu0 %v6071
  %6337 = vmatmul.mubr.f32.gmra.mxu0 %v6007
  %v6338 = vpop.f32.mrf.mxu0
  %v6339 = vadd.f32 0.0, %v6338
  %v6340 = vpop.f32.mrf.mxu0
  %6341 = vmatprep.mubr.f32.mxu0 %v6072
  %6342 = vmatmul.mubr.f32.gmra.mxu0 %v6008
  %v6343 = vpop.f32.mrf.mxu0
  %v6344 = vadd.f32 0.0, %v6343
  %v6345 = vpop.f32.mrf.mxu0
  %6346 = vmatprep.mubr.f32.mxu0 %v6073
  %6347 = vmatmul.mubr.f32.gmra.mxu0 %v6009
  %v6348 = vpop.f32.mrf.mxu0
  %v6349 = vadd.f32 0.0, %v6348
  %v6350 = vpop.f32.mrf.mxu0
  %6351 = vmatprep.mubr.f32.mxu0 %v6074
  %6352 = vmatmul.mubr.f32.gmra.mxu0 %v6010
  %v6353 = vpop.f32.mrf.mxu0
  %v6354 = vadd.f32 0.0, %v6353
  %v6355 = vpop.f32.mrf.mxu0
  %6356 = vmatprep.mubr.f32.mxu0 %v6075
  %6357 = vmatmul.mubr.f32.gmra.mxu0 %v6011
  %v6358 = vpop.f32.mrf.mxu0
  %v6359 = vadd.f32 0.0, %v6358
  %v6360 = vpop.f32.mrf.mxu0
  %6361 = vmatprep.mubr.f32.mxu0 %v6076
  %6362 = vmatmul.mubr.f32.gmra.mxu0 %v6012
  %v6363 = vpop.f32.mrf.mxu0
  %v6364 = vadd.f32 0.0, %v6363
  %v6365 = vpop.f32.mrf.mxu0
  %6366 = vmatprep.mubr.f32.mxu0 %v6077
  %6367 = vmatmul.mubr.f32.gmra.mxu0 %v6013
  %v6368 = vpop.f32.mrf.mxu0
  %v6369 = vadd.f32 0.0, %v6368
  %v6370 = vpop.f32.mrf.mxu0
  %6371 = vmatprep.mubr.f32.mxu0 %v6078
  %6372 = vmatmul.mubr.f32.gmra.mxu0 %v6014
  %v6373 = vpop.f32.mrf.mxu0
  %v6374 = vadd.f32 0.0, %v6373
  %v6375 = vpop.f32.mrf.mxu0
  %6376 = vmatprep.mubr.f32.mxu0 %v6079
  %6377 = vmatmul.mubr.f32.gmra.mxu0 %v6015
  %v6378 = vpop.f32.mrf.mxu0
  %v6379 = vadd.f32 0.0, %v6378
  %v6380 = vpop.f32.mrf.mxu0
  %6381 = vmatprep.mubr.f32.mxu0 %v6080
  %6382 = vmatmul.mubr.f32.gmra.mxu0 %v6016
  %v6383 = vpop.f32.mrf.mxu0
  %v6384 = vadd.f32 0.0, %v6383
  %v6385 = vpop.f32.mrf.mxu0
  %6386 = vmatprep.mubr.f32.mxu0 %v6081
  %6387 = vmatmul.mubr.f32.gmra.mxu0 %v6017
  %v6388 = vpop.f32.mrf.mxu0
  %v6389 = vadd.f32 0.0, %v6388
  %v6390 = vpop.f32.mrf.mxu0
  %6391 = vmatprep.mubr.f32.mxu0 %v6082
  %6392 = vmatmul.mubr.f32.gmra.mxu0 %v6018
  %v6393 = vpop.f32.mrf.mxu0
  %v6394 = vadd.f32 0.0, %v6393
  %v6395 = vpop.f32.mrf.mxu0
  %6396 = vmatprep.mubr.f32.mxu0 %v6083
  %6397 = vmatmul.mubr.f32.gmra.mxu0 %v6019
  %v6398 = vpop.f32.mrf.mxu0
  %v6399 = vadd.f32 0.0, %v6398
  %v6400 = vpop.f32.mrf.mxu0
  %6401 = vmatprep.mubr.f32.mxu0 %v6084
  %6402 = vmatmul.mubr.f32.gmra.mxu0 %v6020
  %v6403 = vpop.f32.mrf.mxu0
  %v6404 = vadd.f32 0.0, %v6403
  %v6405 = vpop.f32.mrf.mxu0
  %6406 = vmatprep.mubr.f32.mxu0 %v6085
  %6407 = vmatmul.mubr.f32.gmra.mxu0 %v6021
  %v6408 = vpop.f32.mrf.mxu0
  %v6409 = vadd.f32 0.0, %v6408
  %v6410 = vpop.f32.mrf.mxu0
  %6411 = vmatprep.mubr.f32.mxu0 %v6086
  %6412 = vmatmul.mubr.f32.gmra.mxu0 %v6022
  %v6413 = vpop.f32.mrf.mxu0
  %v6414 = vadd.f32 0.0, %v6413
  %v6415 = vpop.f32.mrf.mxu0
  %6416 = vmatprep.mubr.f32.mxu0 %v6087
  %6417 = vmatmul.mubr.f32.gmra.mxu0 %v6023
  %v6418 = vpop.f32.mrf.mxu0
  %v6419 = vadd.f32 0.0, %v6418
  %v6420 = vpop.f32.mrf.mxu0
  %6421 = vmatprep.mubr.f32.mxu0 %v6088
  %6422 = vmatmul.mubr.f32.gmra.mxu0 %v6024
  %v6423 = vpop.f32.mrf.mxu0
  %v6424 = vadd.f32 0.0, %v6423
  %v6425 = vpop.f32.mrf.mxu0
  %6426 = vmatprep.mubr.f32.mxu0 %v6089
  %6427 = vmatmul.mubr.f32.gmra.mxu0 %v6025
  %v6428 = vpop.f32.mrf.mxu0
  %v6429 = vadd.f32 0.0, %v6428
  %v6430 = vpop.f32.mrf.mxu0
  %6431 = vmatprep.mubr.f32.mxu0 %v6090
  %6432 = vmatmul.mubr.f32.gmra.mxu0 %v6026
  %v6433 = vpop.f32.mrf.mxu0
  %v6434 = vadd.f32 0.0, %v6433
  %v6435 = vpop.f32.mrf.mxu0
  %6436 = vmatprep.mubr.f32.mxu0 %v6091
  %6437 = vmatmul.mubr.f32.gmra.mxu0 %v6027
  %v6438 = vpop.f32.mrf.mxu0
  %v6439 = vadd.f32 0.0, %v6438
  %v6440 = vpop.f32.mrf.mxu0
  %6441 = vmatprep.mubr.f32.mxu0 %v6092
  %6442 = vmatmul.mubr.f32.gmra.mxu0 %v6028
  %v6443 = vpop.f32.mrf.mxu0
  %v6444 = vadd.f32 0.0, %v6443
  %v6445 = vpop.f32.mrf.mxu0
  %6446 = vmatprep.mubr.f32.mxu0 %v6093
  %6447 = vmatmul.mubr.f32.gmra.mxu0 %v6029
  %v6448 = vpop.f32.mrf.mxu0
  %v6449 = vadd.f32 0.0, %v6448
  %v6450 = vpop.f32.mrf.mxu0
  %6451 = vmatprep.mubr.f32.mxu0 %v6094
  %6452 = vmatmul.mubr.f32.gmra.mxu0 %v6030
  %v6453 = vpop.f32.mrf.mxu0
  %v6454 = vadd.f32 0.0, %v6453
  %v6455 = vpop.f32.mrf.mxu0
  %6456 = vmatprep.mubr.f32.mxu0 %v6095
  %6457 = vmatmul.mubr.f32.gmra.mxu0 %v6031
  %v6458 = vpop.f32.mrf.mxu0
  %v6459 = vadd.f32 0.0, %v6458
  %v6460 = vpop.f32.mrf.mxu0
  %6461 = vmatprep.mubr.f32.mxu0 %v6096
  %6462 = vmatmul.mubr.f32.gmra.mxu0 %v6032
  %v6463 = vpop.f32.mrf.mxu0
  %v6464 = vadd.f32 0.0, %v6463
  %v6465 = vpop.f32.mrf.mxu0
  %6466 = vmatprep.mubr.f32.mxu0 %v6097
  %6467 = vmatmul.mubr.f32.gmra.mxu0 %v6033
  %v6468 = vpop.f32.mrf.mxu0
  %v6469 = vadd.f32 0.0, %v6468
  %v6470 = vpop.f32.mrf.mxu0
  %6471 = vmatprep.mubr.f32.mxu0 %v6098
  %6472 = vmatmul.mubr.f32.gmra.mxu0 %v6034
  %v6473 = vpop.f32.mrf.mxu0
  %v6474 = vadd.f32 0.0, %v6473
  %v6475 = vpop.f32.mrf.mxu0
  %6476 = vmatprep.mubr.f32.mxu0 %v6099
  %6477 = vmatmul.mubr.f32.gmra.mxu0 %v6035
  %v6478 = vpop.f32.mrf.mxu0
  %v6479 = vadd.f32 0.0, %v6478
  %v6480 = vpop.f32.mrf.mxu0
  %6481 = vmatprep.mubr.f32.mxu0 %v6100
  %6482 = vmatmul.mubr.f32.gmra.mxu0 %v6036
  %v6483 = vpop.f32.mrf.mxu0
  %v6484 = vadd.f32 0.0, %v6483
  %v6485 = vpop.f32.mrf.mxu0
  %6486 = vmatprep.mubr.f32.mxu0 %v6101
  %6487 = vmatmul.mubr.f32.gmra.mxu0 %v6037
  %v6488 = vpop.f32.mrf.mxu0
  %v6489 = vadd.f32 0.0, %v6488
  %v6490 = vpop.f32.mrf.mxu0
  %6491 = vmatprep.mubr.f32.mxu0 %v6102
  %6492 = vmatmul.mubr.f32.gmra.mxu0 %v6038
  %v6493 = vpop.f32.mrf.mxu0
  %v6494 = vadd.f32 0.0, %v6493
  %v6495 = vpop.f32.mrf.mxu0
  %6496 = vmatprep.mubr.f32.mxu0 %v6103
  %6497 = vmatmul.mubr.f32.gmra.mxu0 %v6039
  %v6498 = vpop.f32.mrf.mxu0
  %v6499 = vadd.f32 0.0, %v6498
  %v6500 = vpop.f32.mrf.mxu0
  %6501 = vmatprep.mubr.f32.mxu0 %v6104
  %6502 = vmatmul.mubr.f32.gmra.mxu0 %v6040
  %v6503 = vpop.f32.mrf.mxu0
  %v6504 = vadd.f32 0.0, %v6503
  %v6505 = vpop.f32.mrf.mxu0
  %6506 = vmatprep.mubr.f32.mxu0 %v6105
  %6507 = vmatmul.mubr.f32.gmra.mxu0 %v6041
  %v6508 = vpop.f32.mrf.mxu0
  %v6509 = vadd.f32 0.0, %v6508
  %v6510 = vpop.f32.mrf.mxu0
  %6511 = vmatprep.mubr.f32.mxu0 %v6106
  %6512 = vmatmul.mubr.f32.gmra.mxu0 %v6042
  %v6513 = vpop.f32.mrf.mxu0
  %v6514 = vadd.f32 0.0, %v6513
  %v6515 = vpop.f32.mrf.mxu0
  %6516 = vmatprep.mubr.f32.mxu0 %v6107
  %6517 = vmatmul.mubr.f32.gmra.mxu0 %v6043
  %v6518 = vpop.f32.mrf.mxu0
  %v6519 = vadd.f32 0.0, %v6518
  %v6520 = vpop.f32.mrf.mxu0
  %6521 = vmatprep.mubr.f32.mxu0 %v6108
  %6522 = vmatmul.mubr.f32.gmra.mxu0 %v6044
  %v6523 = vpop.f32.mrf.mxu0
  %v6524 = vadd.f32 0.0, %v6523
  %v6525 = vpop.f32.mrf.mxu0
  %6526 = vdwg.mxu0
  %v6527 = vadd.f32 %v5916, %v6209
  %v6528 = vadd.f32 %v5917, %v6214
  %v6529 = vadd.f32 %v5918, %v6219
  %v6530 = vadd.f32 %v5919, %v6224
  %v6531 = vadd.f32 %v5920, %v6229
  %v6532 = vadd.f32 %v5921, %v6234
  %v6533 = vadd.f32 %v5922, %v6239
  %v6534 = vadd.f32 %v5923, %v6244
  %v6535 = vadd.f32 %v5924, %v6249
  %v6536 = vadd.f32 %v5925, %v6254
  %v6537 = vadd.f32 %v5926, %v6259
  %v6538 = vadd.f32 %v5927, %v6264
  %v6539 = vadd.f32 %v5928, %v6269
  %v6540 = vadd.f32 %v5929, %v6274
  %v6541 = vadd.f32 %v5930, %v6279
  %v6542 = vadd.f32 %v5931, %v6284
  %v6543 = vadd.f32 %v5932, %v6289
  %v6544 = vadd.f32 %v5933, %v6294
  %v6545 = vadd.f32 %v5934, %v6299
  %v6546 = vadd.f32 %v5935, %v6304
  %v6547 = vadd.f32 %v5936, %v6309
  %v6548 = vadd.f32 %v5937, %v6314
  %v6549 = vadd.f32 %v5938, %v6319
  %v6550 = vadd.f32 %v5939, %v6324
  %v6551 = vadd.f32 %v5940, %v6329
  %v6552 = vadd.f32 %v5941, %v6334
  %v6553 = vadd.f32 %v5942, %v6339
  %v6554 = vadd.f32 %v5943, %v6344
  %v6555 = vadd.f32 %v5944, %v6349
  %v6556 = vadd.f32 %v5945, %v6354
  %v6557 = vadd.f32 %v5946, %v6359
  %v6558 = vadd.f32 %v5947, %v6364
  %v6559 = vadd.f32 %v5948, %v6369
  %v6560 = vadd.f32 %v5949, %v6374
  %v6561 = vadd.f32 %v5950, %v6379
  %v6562 = vadd.f32 %v5951, %v6384
  %v6563 = vadd.f32 %v5952, %v6389
  %v6564 = vadd.f32 %v5953, %v6394
  %v6565 = vadd.f32 %v5954, %v6399
  %v6566 = vadd.f32 %v5955, %v6404
  %v6567 = vadd.f32 %v5956, %v6409
  %v6568 = vadd.f32 %v5957, %v6414
  %v6569 = vadd.f32 %v5958, %v6419
  %v6570 = vadd.f32 %v5959, %v6424
  %v6571 = vadd.f32 %v5960, %v6429
  %v6572 = vadd.f32 %v5961, %v6434
  %v6573 = vadd.f32 %v5962, %v6439
  %v6574 = vadd.f32 %v5963, %v6444
  %v6575 = vadd.f32 %v5964, %v6449
  %v6576 = vadd.f32 %v5965, %v6454
  %v6577 = vadd.f32 %v5966, %v6459
  %v6578 = vadd.f32 %v5967, %v6464
  %v6579 = vadd.f32 %v5968, %v6469
  %v6580 = vadd.f32 %v5969, %v6474
  %v6581 = vadd.f32 %v5970, %v6479
  %v6582 = vadd.f32 %v5971, %v6484
  %v6583 = vadd.f32 %v5972, %v6489
  %v6584 = vadd.f32 %v5973, %v6494
  %v6585 = vadd.f32 %v5974, %v6499
  %v6586 = vadd.f32 %v5975, %v6504
  %v6587 = vadd.f32 %v5976, %v6509
  %v6588 = vadd.f32 %v5977, %v6514
  %v6589 = vadd.f32 %v5978, %v6519
  %v6590 = vadd.f32 %v5979, %v6524
  %v6591 = vld [vmem:[%s5980 + $0x9] sm:$0xff]
  %v6592 = vld [vmem:[%s5980 + $0x11] sm:$0xff]
  %v6593 = vld [vmem:[%s5980 + $0x29] sm:$0xff]
  %v6594 = vld [vmem:[%s5980 + $0x31] sm:$0xff]
  %v6595 = vld [vmem:[%s5980 + $0x49] sm:$0xff]
  %v6596 = vld [vmem:[%s5980 + $0x51] sm:$0xff]
  %v6597 = vld [vmem:[%s5980 + $0x69] sm:$0xff]
  %v6598 = vld [vmem:[%s5980 + $0x71] sm:$0xff]
  %v6599 = vld [vmem:[%s5980 + $0x89] sm:$0xff]
  %v6600 = vld [vmem:[%s5980 + $0x91] sm:$0xff]
  %v6601 = vld [vmem:[%s5980 + $0xa9] sm:$0xff]
  %v6602 = vld [vmem:[%s5980 + $0xb1] sm:$0xff]
  %v6603 = vld [vmem:[%s5980 + $0xc9] sm:$0xff]
  %v6604 = vld [vmem:[%s5980 + $0xd1] sm:$0xff]
  %v6605 = vld [vmem:[%s5980 + $0xe9] sm:$0xff]
  %v6606 = vld [vmem:[%s5980 + $0xf1] sm:$0xff]
  %v6607 = vld [vmem:[%s5980 + $0x109] sm:$0xff]
  %v6608 = vld [vmem:[%s5980 + $0x111] sm:$0xff]
  %v6609 = vld [vmem:[%s5980 + $0x129] sm:$0xff]
  %v6610 = vld [vmem:[%s5980 + $0x131] sm:$0xff]
  %v6611 = vld [vmem:[%s5980 + $0x149] sm:$0xff]
  %v6612 = vld [vmem:[%s5980 + $0x151] sm:$0xff]
  %v6613 = vld [vmem:[%s5980 + $0x169] sm:$0xff]
  %v6614 = vld [vmem:[%s5980 + $0x171] sm:$0xff]
  %v6615 = vld [vmem:[%s5980 + $0x189] sm:$0xff]
  %v6616 = vld [vmem:[%s5980 + $0x191] sm:$0xff]
  %v6617 = vld [vmem:[%s5980 + $0x1a9] sm:$0xff]
  %v6618 = vld [vmem:[%s5980 + $0x1b1] sm:$0xff]
  %v6619 = vld [vmem:[%s5980 + $0x1c9] sm:$0xff]
  %v6620 = vld [vmem:[%s5980 + $0x1d1] sm:$0xff]
  %v6621 = vld [vmem:[%s5980 + $0x1e9] sm:$0xff]
  %v6622 = vld [vmem:[%s5980 + $0x1f1] sm:$0xff]
  %v6623 = vld [vmem:[%s5980 + $0x249] sm:$0xff]
  %v6624 = vld [vmem:[%s5980 + $0x251] sm:$0xff]
  %v6625 = vld [vmem:[%s5980 + $0x269] sm:$0xff]
  %v6626 = vld [vmem:[%s5980 + $0x271] sm:$0xff]
  %v6627 = vld [vmem:[%s5980 + $0x289] sm:$0xff]
  %v6628 = vld [vmem:[%s5980 + $0x291] sm:$0xff]
  %v6629 = vld [vmem:[%s5980 + $0x2a9] sm:$0xff]
  %v6630 = vld [vmem:[%s5980 + $0x2b1] sm:$0xff]
  %v6631 = vld [vmem:[%s5980 + $0x2c9] sm:$0xff]
  %v6632 = vld [vmem:[%s5980 + $0x2d1] sm:$0xff]
  %v6633 = vld [vmem:[%s5980 + $0x2e9] sm:$0xff]
  %v6634 = vld [vmem:[%s5980 + $0x2f1] sm:$0xff]
  %v6635 = vld [vmem:[%s5980 + $0x309] sm:$0xff]
  %v6636 = vld [vmem:[%s5980 + $0x311] sm:$0xff]
  %v6637 = vld [vmem:[%s5980 + $0x329] sm:$0xff]
  %v6638 = vld [vmem:[%s5980 + $0x331] sm:$0xff]
  %v6639 = vld [vmem:[%s5980 + $0x349] sm:$0xff]
  %v6640 = vld [vmem:[%s5980 + $0x351] sm:$0xff]
  %v6641 = vld [vmem:[%s5980 + $0x369] sm:$0xff]
  %v6642 = vld [vmem:[%s5980 + $0x371] sm:$0xff]
  %v6643 = vld [vmem:[%s5980 + $0x389] sm:$0xff]
  %v6644 = vld [vmem:[%s5980 + $0x391] sm:$0xff]
  %v6645 = vld [vmem:[%s5980 + $0x3a9] sm:$0xff]
  %v6646 = vld [vmem:[%s5980 + $0x3b1] sm:$0xff]
  %v6647 = vld [vmem:[%s5980 + $0x3c9] sm:$0xff]
  %v6648 = vld [vmem:[%s5980 + $0x3d1] sm:$0xff]
  %v6649 = vld [vmem:[%s5980 + $0x3e9] sm:$0xff]
  %v6650 = vld [vmem:[%s5980 + $0x3f1] sm:$0xff]
  %v6651 = vld [vmem:[%s5980 + $0x409] sm:$0xff]
  %v6652 = vld [vmem:[%s5980 + $0x411] sm:$0xff]
  %v6653 = vld [vmem:[%s5980 + $0x429] sm:$0xff]
  %v6654 = vld [vmem:[%s5980 + $0x431] sm:$0xff]
  %v6655 = vld [vmem:[%s5] sm:$0xff]
  %v6656 = vld [vmem:[%s5 + $0x8] sm:$0xff]
  %v6657 = vld [vmem:[%s5 + $0x10] sm:$0xff]
  %v6658 = vld [vmem:[%s5 + $0x18] sm:$0xff]
  %v6659 = vld [vmem:[%s5 + $0x20] sm:$0xff]
  %v6660 = vld [vmem:[%s5 + $0x28] sm:$0xff]
  %v6661 = vld [vmem:[%s5 + $0x30] sm:$0xff]
  %v6662 = vld [vmem:[%s5 + $0x38] sm:$0xff]
  %v6663 = vld [vmem:[%s5 + $0x40] sm:$0xff]
  %v6664 = vld [vmem:[%s5 + $0x48] sm:$0xff]
  %v6665 = vld [vmem:[%s5 + $0x50] sm:$0xff]
  %v6666 = vld [vmem:[%s5 + $0x58] sm:$0xff]
  %v6667 = vld [vmem:[%s5 + $0x60] sm:$0xff]
  %v6668 = vld [vmem:[%s5 + $0x68] sm:$0xff]
  %v6669 = vld [vmem:[%s5 + $0x70] sm:$0xff]
  %v6670 = vld [vmem:[%s5 + $0x78] sm:$0xff]
  %6671 = vmatprep.subr.mxu0 0.0
  %6672 = vmatpush1.msra.mxu0 %v6670
  %6673 = vmatprep.subr.mxu0 0.0
  %6674 = vmatpush1.msra.mxu0 %v6669
  %6675 = vmatprep.subr.mxu0 0.0
  %6676 = vmatpush1.msra.mxu0 %v6668
  %6677 = vmatprep.subr.mxu0 0.0
  %6678 = vmatpush1.msra.mxu0 %v6667
  %6679 = vmatprep.subr.mxu0 0.0
  %6680 = vmatpush1.msra.mxu0 %v6666
  %6681 = vmatprep.subr.mxu0 0.0
  %6682 = vmatpush1.msra.mxu0 %v6665
  %6683 = vmatprep.subr.mxu0 0.0
  %6684 = vmatpush1.msra.mxu0 %v6664
  %6685 = vmatprep.subr.mxu0 0.0
  %6686 = vmatpush1.msra.mxu0 %v6663
  %6687 = vmatprep.subr.mxu0 0.0
  %6688 = vmatpush1.msra.mxu0 %v6662
  %6689 = vmatprep.subr.mxu0 0.0
  %6690 = vmatpush1.msra.mxu0 %v6661
  %6691 = vmatprep.subr.mxu0 0.0
  %6692 = vmatpush1.msra.mxu0 %v6660
  %6693 = vmatprep.subr.mxu0 0.0
  %6694 = vmatpush1.msra.mxu0 %v6659
  %6695 = vmatprep.subr.mxu0 0.0
  %6696 = vmatpush1.msra.mxu0 %v6658
  %6697 = vmatprep.subr.mxu0 0.0
  %6698 = vmatpush1.msra.mxu0 %v6657
  %6699 = vmatprep.subr.mxu0 0.0
  %6700 = vmatpush1.msra.mxu0 %v6656
  %6701 = vmatprep.subr.mxu0 0.0
  %6702 = vmatpush1.msra.mxu0 %v6655
  %6703 = vmatprep.subr.mxu0 0.0
  %6704 = vmatpush2.msra.mxu0 0.0
  %6705 = vmatprep.subr.mxu0 0.0
  %6706 = vmatpush2.msra.mxu0 0.0
  %6707 = vmatprep.subr.mxu0 0.0
  %6708 = vmatpush2.msra.mxu0 0.0
  %6709 = vmatprep.subr.mxu0 0.0
  %6710 = vmatpush2.msra.mxu0 0.0
  %6711 = vmatprep.subr.mxu0 0.0
  %6712 = vmatpush2.msra.mxu0 0.0
  %6713 = vmatprep.subr.mxu0 0.0
  %6714 = vmatpush2.msra.mxu0 0.0
  %6715 = vmatprep.subr.mxu0 0.0
  %6716 = vmatpush2.msra.mxu0 0.0
  %6717 = vmatprep.subr.mxu0 0.0
  %6718 = vmatpush2.msra.mxu0 0.0
  %6719 = vmatprep.subr.mxu0 0.0
  %6720 = vmatpush2.msra.mxu0 0.0
  %6721 = vmatprep.subr.mxu0 0.0
  %6722 = vmatpush2.msra.mxu0 0.0
  %6723 = vmatprep.subr.mxu0 0.0
  %6724 = vmatpush2.msra.mxu0 0.0
  %6725 = vmatprep.subr.mxu0 0.0
  %6726 = vmatpush2.msra.mxu0 0.0
  %6727 = vmatprep.subr.mxu0 0.0
  %6728 = vmatpush2.msra.mxu0 0.0
  %6729 = vmatprep.subr.mxu0 0.0
  %6730 = vmatpush2.msra.mxu0 0.0
  %6731 = vmatprep.subr.mxu0 0.0
  %6732 = vmatpush2.msra.mxu0 0.0
  %6733 = vmatprep.subr.mxu0 0.0
  %6734 = vmatpush2.msra.mxu0 0.0
  %6735 = vmatprep.mubr.f32.mxu0 0.0
  %6736 = vmatmul.mubr.f32.gmra.mxu0 %v6591
  %v6737 = vpop.f32.mrf.mxu0
  %v6738 = vadd.f32 0.0, %v6737
  %v6739 = vpop.f32.mrf.mxu0
  %6740 = vmatprep.mubr.f32.mxu0 0.0
  %6741 = vmatmul.mubr.f32.gmra.mxu0 %v6592
  %v6742 = vpop.f32.mrf.mxu0
  %v6743 = vadd.f32 0.0, %v6742
  %v6744 = vpop.f32.mrf.mxu0
  %6745 = vmatprep.mubr.f32.mxu0 0.0
  %6746 = vmatmul.mubr.f32.gmra.mxu0 %v6593
  %v6747 = vpop.f32.mrf.mxu0
  %v6748 = vadd.f32 0.0, %v6747
  %v6749 = vpop.f32.mrf.mxu0
  %6750 = vmatprep.mubr.f32.mxu0 0.0
  %6751 = vmatmul.mubr.f32.gmra.mxu0 %v6594
  %v6752 = vpop.f32.mrf.mxu0
  %v6753 = vadd.f32 0.0, %v6752
  %v6754 = vpop.f32.mrf.mxu0
  %6755 = vmatprep.mubr.f32.mxu0 0.0
  %6756 = vmatmul.mubr.f32.gmra.mxu0 %v6595
  %v6757 = vpop.f32.mrf.mxu0
  %v6758 = vadd.f32 0.0, %v6757
  %v6759 = vpop.f32.mrf.mxu0
  %6760 = vmatprep.mubr.f32.mxu0 0.0
  %6761 = vmatmul.mubr.f32.gmra.mxu0 %v6596
  %v6762 = vpop.f32.mrf.mxu0
  %v6763 = vadd.f32 0.0, %v6762
  %v6764 = vpop.f32.mrf.mxu0
  %6765 = vmatprep.mubr.f32.mxu0 0.0
  %6766 = vmatmul.mubr.f32.gmra.mxu0 %v6597
  %v6767 = vpop.f32.mrf.mxu0
  %v6768 = vadd.f32 0.0, %v6767
  %v6769 = vpop.f32.mrf.mxu0
  %6770 = vmatprep.mubr.f32.mxu0 0.0
  %6771 = vmatmul.mubr.f32.gmra.mxu0 %v6598
  %v6772 = vpop.f32.mrf.mxu0
  %v6773 = vadd.f32 0.0, %v6772
  %v6774 = vpop.f32.mrf.mxu0
  %6775 = vmatprep.mubr.f32.mxu0 0.0
  %6776 = vmatmul.mubr.f32.gmra.mxu0 %v6599
  %v6777 = vpop.f32.mrf.mxu0
  %v6778 = vadd.f32 0.0, %v6777
  %v6779 = vpop.f32.mrf.mxu0
  %6780 = vmatprep.mubr.f32.mxu0 0.0
  %6781 = vmatmul.mubr.f32.gmra.mxu0 %v6600
  %v6782 = vpop.f32.mrf.mxu0
  %v6783 = vadd.f32 0.0, %v6782
  %v6784 = vpop.f32.mrf.mxu0
  %6785 = vmatprep.mubr.f32.mxu0 0.0
  %6786 = vmatmul.mubr.f32.gmra.mxu0 %v6601
  %v6787 = vpop.f32.mrf.mxu0
  %v6788 = vadd.f32 0.0, %v6787
  %v6789 = vpop.f32.mrf.mxu0
  %6790 = vmatprep.mubr.f32.mxu0 0.0
  %6791 = vmatmul.mubr.f32.gmra.mxu0 %v6602
  %v6792 = vpop.f32.mrf.mxu0
  %v6793 = vadd.f32 0.0, %v6792
  %v6794 = vpop.f32.mrf.mxu0
  %6795 = vmatprep.mubr.f32.mxu0 0.0
  %6796 = vmatmul.mubr.f32.gmra.mxu0 %v6603
  %v6797 = vpop.f32.mrf.mxu0
  %v6798 = vadd.f32 0.0, %v6797
  %v6799 = vpop.f32.mrf.mxu0
  %6800 = vmatprep.mubr.f32.mxu0 0.0
  %6801 = vmatmul.mubr.f32.gmra.mxu0 %v6604
  %v6802 = vpop.f32.mrf.mxu0
  %v6803 = vadd.f32 0.0, %v6802
  %v6804 = vpop.f32.mrf.mxu0
  %6805 = vmatprep.mubr.f32.mxu0 0.0
  %6806 = vmatmul.mubr.f32.gmra.mxu0 %v6605
  %v6807 = vpop.f32.mrf.mxu0
  %v6808 = vadd.f32 0.0, %v6807
  %v6809 = vpop.f32.mrf.mxu0
  %6810 = vmatprep.mubr.f32.mxu0 0.0
  %6811 = vmatmul.mubr.f32.gmra.mxu0 %v6606
  %v6812 = vpop.f32.mrf.mxu0
  %v6813 = vadd.f32 0.0, %v6812
  %v6814 = vpop.f32.mrf.mxu0
  %6815 = vmatprep.mubr.f32.mxu0 0.0
  %6816 = vmatmul.mubr.f32.gmra.mxu0 %v6607
  %v6817 = vpop.f32.mrf.mxu0
  %v6818 = vadd.f32 0.0, %v6817
  %v6819 = vpop.f32.mrf.mxu0
  %6820 = vmatprep.mubr.f32.mxu0 0.0
  %6821 = vmatmul.mubr.f32.gmra.mxu0 %v6608
  %v6822 = vpop.f32.mrf.mxu0
  %v6823 = vadd.f32 0.0, %v6822
  %v6824 = vpop.f32.mrf.mxu0
  %6825 = vmatprep.mubr.f32.mxu0 0.0
  %6826 = vmatmul.mubr.f32.gmra.mxu0 %v6609
  %v6827 = vpop.f32.mrf.mxu0
  %v6828 = vadd.f32 0.0, %v6827
  %v6829 = vpop.f32.mrf.mxu0
  %6830 = vmatprep.mubr.f32.mxu0 0.0
  %6831 = vmatmul.mubr.f32.gmra.mxu0 %v6610
  %v6832 = vpop.f32.mrf.mxu0
  %v6833 = vadd.f32 0.0, %v6832
  %v6834 = vpop.f32.mrf.mxu0
  %6835 = vmatprep.mubr.f32.mxu0 0.0
  %6836 = vmatmul.mubr.f32.gmra.mxu0 %v6611
  %v6837 = vpop.f32.mrf.mxu0
  %v6838 = vadd.f32 0.0, %v6837
  %v6839 = vpop.f32.mrf.mxu0
  %6840 = vmatprep.mubr.f32.mxu0 0.0
  %6841 = vmatmul.mubr.f32.gmra.mxu0 %v6612
  %v6842 = vpop.f32.mrf.mxu0
  %v6843 = vadd.f32 0.0, %v6842
  %v6844 = vpop.f32.mrf.mxu0
  %6845 = vmatprep.mubr.f32.mxu0 0.0
  %6846 = vmatmul.mubr.f32.gmra.mxu0 %v6613
  %v6847 = vpop.f32.mrf.mxu0
  %v6848 = vadd.f32 0.0, %v6847
  %v6849 = vpop.f32.mrf.mxu0
  %6850 = vmatprep.mubr.f32.mxu0 0.0
  %6851 = vmatmul.mubr.f32.gmra.mxu0 %v6614
  %v6852 = vpop.f32.mrf.mxu0
  %v6853 = vadd.f32 0.0, %v6852
  %v6854 = vpop.f32.mrf.mxu0
  %6855 = vmatprep.mubr.f32.mxu0 0.0
  %6856 = vmatmul.mubr.f32.gmra.mxu0 %v6615
  %v6857 = vpop.f32.mrf.mxu0
  %v6858 = vadd.f32 0.0, %v6857
  %v6859 = vpop.f32.mrf.mxu0
  %6860 = vmatprep.mubr.f32.mxu0 0.0
  %6861 = vmatmul.mubr.f32.gmra.mxu0 %v6616
  %v6862 = vpop.f32.mrf.mxu0
  %v6863 = vadd.f32 0.0, %v6862
  %v6864 = vpop.f32.mrf.mxu0
  %6865 = vmatprep.mubr.f32.mxu0 0.0
  %6866 = vmatmul.mubr.f32.gmra.mxu0 %v6617
  %v6867 = vpop.f32.mrf.mxu0
  %v6868 = vadd.f32 0.0, %v6867
  %v6869 = vpop.f32.mrf.mxu0
  %6870 = vmatprep.mubr.f32.mxu0 0.0
  %6871 = vmatmul.mubr.f32.gmra.mxu0 %v6618
  %v6872 = vpop.f32.mrf.mxu0
  %v6873 = vadd.f32 0.0, %v6872
  %v6874 = vpop.f32.mrf.mxu0
  %6875 = vmatprep.mubr.f32.mxu0 0.0
  %6876 = vmatmul.mubr.f32.gmra.mxu0 %v6619
  %v6877 = vpop.f32.mrf.mxu0
  %v6878 = vadd.f32 0.0, %v6877
  %v6879 = vpop.f32.mrf.mxu0
  %6880 = vmatprep.mubr.f32.mxu0 0.0
  %6881 = vmatmul.mubr.f32.gmra.mxu0 %v6620
  %v6882 = vpop.f32.mrf.mxu0
  %v6883 = vadd.f32 0.0, %v6882
  %v6884 = vpop.f32.mrf.mxu0
  %6885 = vmatprep.mubr.f32.mxu0 0.0
  %6886 = vmatmul.mubr.f32.gmra.mxu0 %v6621
  %v6887 = vpop.f32.mrf.mxu0
  %v6888 = vadd.f32 0.0, %v6887
  %v6889 = vpop.f32.mrf.mxu0
  %6890 = vmatprep.mubr.f32.mxu0 0.0
  %6891 = vmatmul.mubr.f32.gmra.mxu0 %v6622
  %v6892 = vpop.f32.mrf.mxu0
  %v6893 = vadd.f32 0.0, %v6892
  %v6894 = vpop.f32.mrf.mxu0
  %6895 = vmatprep.mubr.f32.mxu0 0.0
  %6896 = vmatmul.mubr.f32.gmra.mxu0 %v6623
  %v6897 = vpop.f32.mrf.mxu0
  %v6898 = vadd.f32 0.0, %v6897
  %v6899 = vpop.f32.mrf.mxu0
  %6900 = vmatprep.mubr.f32.mxu0 0.0
  %6901 = vmatmul.mubr.f32.gmra.mxu0 %v6624
  %v6902 = vpop.f32.mrf.mxu0
  %v6903 = vadd.f32 0.0, %v6902
  %v6904 = vpop.f32.mrf.mxu0
  %6905 = vmatprep.mubr.f32.mxu0 0.0
  %6906 = vmatmul.mubr.f32.gmra.mxu0 %v6625
  %v6907 = vpop.f32.mrf.mxu0
  %v6908 = vadd.f32 0.0, %v6907
  %v6909 = vpop.f32.mrf.mxu0
  %6910 = vmatprep.mubr.f32.mxu0 0.0
  %6911 = vmatmul.mubr.f32.gmra.mxu0 %v6626
  %v6912 = vpop.f32.mrf.mxu0
  %v6913 = vadd.f32 0.0, %v6912
  %v6914 = vpop.f32.mrf.mxu0
  %6915 = vmatprep.mubr.f32.mxu0 0.0
  %6916 = vmatmul.mubr.f32.gmra.mxu0 %v6627
  %v6917 = vpop.f32.mrf.mxu0
  %v6918 = vadd.f32 0.0, %v6917
  %v6919 = vpop.f32.mrf.mxu0
  %6920 = vmatprep.mubr.f32.mxu0 0.0
  %6921 = vmatmul.mubr.f32.gmra.mxu0 %v6628
  %v6922 = vpop.f32.mrf.mxu0
  %v6923 = vadd.f32 0.0, %v6922
  %v6924 = vpop.f32.mrf.mxu0
  %6925 = vmatprep.mubr.f32.mxu0 0.0
  %6926 = vmatmul.mubr.f32.gmra.mxu0 %v6629
  %v6927 = vpop.f32.mrf.mxu0
  %v6928 = vadd.f32 0.0, %v6927
  %v6929 = vpop.f32.mrf.mxu0
  %6930 = vmatprep.mubr.f32.mxu0 0.0
  %6931 = vmatmul.mubr.f32.gmra.mxu0 %v6630
  %v6932 = vpop.f32.mrf.mxu0
  %v6933 = vadd.f32 0.0, %v6932
  %v6934 = vpop.f32.mrf.mxu0
  %6935 = vmatprep.mubr.f32.mxu0 0.0
  %6936 = vmatmul.mubr.f32.gmra.mxu0 %v6631
  %v6937 = vpop.f32.mrf.mxu0
  %v6938 = vadd.f32 0.0, %v6937
  %v6939 = vpop.f32.mrf.mxu0
  %6940 = vmatprep.mubr.f32.mxu0 0.0
  %6941 = vmatmul.mubr.f32.gmra.mxu0 %v6632
  %v6942 = vpop.f32.mrf.mxu0
  %v6943 = vadd.f32 0.0, %v6942
  %v6944 = vpop.f32.mrf.mxu0
  %6945 = vmatprep.mubr.f32.mxu0 0.0
  %6946 = vmatmul.mubr.f32.gmra.mxu0 %v6633
  %v6947 = vpop.f32.mrf.mxu0
  %v6948 = vadd.f32 0.0, %v6947
  %v6949 = vpop.f32.mrf.mxu0
  %6950 = vmatprep.mubr.f32.mxu0 0.0
  %6951 = vmatmul.mubr.f32.gmra.mxu0 %v6634
  %v6952 = vpop.f32.mrf.mxu0
  %v6953 = vadd.f32 0.0, %v6952
  %v6954 = vpop.f32.mrf.mxu0
  %6955 = vmatprep.mubr.f32.mxu0 0.0
  %6956 = vmatmul.mubr.f32.gmra.mxu0 %v6635
  %v6957 = vpop.f32.mrf.mxu0
  %v6958 = vadd.f32 0.0, %v6957
  %v6959 = vpop.f32.mrf.mxu0
  %6960 = vmatprep.mubr.f32.mxu0 0.0
  %6961 = vmatmul.mubr.f32.gmra.mxu0 %v6636
  %v6962 = vpop.f32.mrf.mxu0
  %v6963 = vadd.f32 0.0, %v6962
  %v6964 = vpop.f32.mrf.mxu0
  %6965 = vmatprep.mubr.f32.mxu0 0.0
  %6966 = vmatmul.mubr.f32.gmra.mxu0 %v6637
  %v6967 = vpop.f32.mrf.mxu0
  %v6968 = vadd.f32 0.0, %v6967
  %v6969 = vpop.f32.mrf.mxu0
  %6970 = vmatprep.mubr.f32.mxu0 0.0
  %6971 = vmatmul.mubr.f32.gmra.mxu0 %v6638
  %v6972 = vpop.f32.mrf.mxu0
  %v6973 = vadd.f32 0.0, %v6972
  %v6974 = vpop.f32.mrf.mxu0
  %6975 = vmatprep.mubr.f32.mxu0 0.0
  %6976 = vmatmul.mubr.f32.gmra.mxu0 %v6639
  %v6977 = vpop.f32.mrf.mxu0
  %v6978 = vadd.f32 0.0, %v6977
  %v6979 = vpop.f32.mrf.mxu0
  %6980 = vmatprep.mubr.f32.mxu0 0.0
  %6981 = vmatmul.mubr.f32.gmra.mxu0 %v6640
  %v6982 = vpop.f32.mrf.mxu0
  %v6983 = vadd.f32 0.0, %v6982
  %v6984 = vpop.f32.mrf.mxu0
  %6985 = vmatprep.mubr.f32.mxu0 0.0
  %6986 = vmatmul.mubr.f32.gmra.mxu0 %v6641
  %v6987 = vpop.f32.mrf.mxu0
  %v6988 = vadd.f32 0.0, %v6987
  %v6989 = vpop.f32.mrf.mxu0
  %6990 = vmatprep.mubr.f32.mxu0 0.0
  %6991 = vmatmul.mubr.f32.gmra.mxu0 %v6642
  %v6992 = vpop.f32.mrf.mxu0
  %v6993 = vadd.f32 0.0, %v6992
  %v6994 = vpop.f32.mrf.mxu0
  %6995 = vmatprep.mubr.f32.mxu0 0.0
  %6996 = vmatmul.mubr.f32.gmra.mxu0 %v6643
  %v6997 = vpop.f32.mrf.mxu0
  %v6998 = vadd.f32 0.0, %v6997
  %v6999 = vpop.f32.mrf.mxu0
  %7000 = vmatprep.mubr.f32.mxu0 0.0
  %7001 = vmatmul.mubr.f32.gmra.mxu0 %v6644
  %v7002 = vpop.f32.mrf.mxu0
  %v7003 = vadd.f32 0.0, %v7002
  %v7004 = vpop.f32.mrf.mxu0
  %7005 = vmatprep.mubr.f32.mxu0 0.0
  %7006 = vmatmul.mubr.f32.gmra.mxu0 %v6645
  %v7007 = vpop.f32.mrf.mxu0
  %v7008 = vadd.f32 0.0, %v7007
  %v7009 = vpop.f32.mrf.mxu0
  %7010 = vmatprep.mubr.f32.mxu0 0.0
  %7011 = vmatmul.mubr.f32.gmra.mxu0 %v6646
  %v7012 = vpop.f32.mrf.mxu0
  %v7013 = vadd.f32 0.0, %v7012
  %v7014 = vpop.f32.mrf.mxu0
  %7015 = vmatprep.mubr.f32.mxu0 0.0
  %7016 = vmatmul.mubr.f32.gmra.mxu0 %v6647
  %v7017 = vpop.f32.mrf.mxu0
  %v7018 = vadd.f32 0.0, %v7017
  %v7019 = vpop.f32.mrf.mxu0
  %7020 = vmatprep.mubr.f32.mxu0 0.0
  %7021 = vmatmul.mubr.f32.gmra.mxu0 %v6648
  %v7022 = vpop.f32.mrf.mxu0
  %v7023 = vadd.f32 0.0, %v7022
  %v7024 = vpop.f32.mrf.mxu0
  %7025 = vmatprep.mubr.f32.mxu0 0.0
  %7026 = vmatmul.mubr.f32.gmra.mxu0 %v6649
  %v7027 = vpop.f32.mrf.mxu0
  %v7028 = vadd.f32 0.0, %v7027
  %v7029 = vpop.f32.mrf.mxu0
  %7030 = vmatprep.mubr.f32.mxu0 0.0
  %7031 = vmatmul.mubr.f32.gmra.mxu0 %v6650
  %v7032 = vpop.f32.mrf.mxu0
  %v7033 = vadd.f32 0.0, %v7032
  %v7034 = vpop.f32.mrf.mxu0
  %7035 = vmatprep.mubr.f32.mxu0 0.0
  %7036 = vmatmul.mubr.f32.gmra.mxu0 %v6651
  %v7037 = vpop.f32.mrf.mxu0
  %v7038 = vadd.f32 0.0, %v7037
  %v7039 = vpop.f32.mrf.mxu0
  %7040 = vmatprep.mubr.f32.mxu0 0.0
  %7041 = vmatmul.mubr.f32.gmra.mxu0 %v6652
  %v7042 = vpop.f32.mrf.mxu0
  %v7043 = vadd.f32 0.0, %v7042
  %v7044 = vpop.f32.mrf.mxu0
  %7045 = vmatprep.mubr.f32.mxu0 0.0
  %7046 = vmatmul.mubr.f32.gmra.mxu0 %v6653
  %v7047 = vpop.f32.mrf.mxu0
  %v7048 = vadd.f32 0.0, %v7047
  %v7049 = vpop.f32.mrf.mxu0
  %7050 = vmatprep.mubr.f32.mxu0 0.0
  %7051 = vmatmul.mubr.f32.gmra.mxu0 %v6654
  %v7052 = vpop.f32.mrf.mxu0
  %v7053 = vadd.f32 0.0, %v7052
  %v7054 = vpop.f32.mrf.mxu0
  %7055 = vdwg.mxu0
  %v7056 = vadd.f32 %v6527, %v6738
  %v7057 = vadd.f32 %v6528, %v6743
  %v7058 = vadd.f32 %v6529, %v6748
  %v7059 = vadd.f32 %v6530, %v6753
  %v7060 = vadd.f32 %v6531, %v6758
  %v7061 = vadd.f32 %v6532, %v6763
  %v7062 = vadd.f32 %v6533, %v6768
  %v7063 = vadd.f32 %v6534, %v6773
  %v7064 = vadd.f32 %v6535, %v6778
  %v7065 = vadd.f32 %v6536, %v6783
  %v7066 = vadd.f32 %v6537, %v6788
  %v7067 = vadd.f32 %v6538, %v6793
  %v7068 = vadd.f32 %v6539, %v6798
  %v7069 = vadd.f32 %v6540, %v6803
  %v7070 = vadd.f32 %v6541, %v6808
  %v7071 = vadd.f32 %v6542, %v6813
  %v7072 = vadd.f32 %v6543, %v6818
  %v7073 = vadd.f32 %v6544, %v6823
  %v7074 = vadd.f32 %v6545, %v6828
  %v7075 = vadd.f32 %v6546, %v6833
  %v7076 = vadd.f32 %v6547, %v6838
  %v7077 = vadd.f32 %v6548, %v6843
  %v7078 = vadd.f32 %v6549, %v6848
  %v7079 = vadd.f32 %v6550, %v6853
  %v7080 = vadd.f32 %v6551, %v6858
  %v7081 = vadd.f32 %v6552, %v6863
  %v7082 = vadd.f32 %v6553, %v6868
  %v7083 = vadd.f32 %v6554, %v6873
  %v7084 = vadd.f32 %v6555, %v6878
  %v7085 = vadd.f32 %v6556, %v6883
  %v7086 = vadd.f32 %v6557, %v6888
  %v7087 = vadd.f32 %v6558, %v6893
  %v7088 = vadd.f32 %v6559, %v6898
  %v7089 = vadd.f32 %v6560, %v6903
  %v7090 = vadd.f32 %v6561, %v6908
  %v7091 = vadd.f32 %v6562, %v6913
  %v7092 = vadd.f32 %v6563, %v6918
  %v7093 = vadd.f32 %v6564, %v6923
  %v7094 = vadd.f32 %v6565, %v6928
  %v7095 = vadd.f32 %v6566, %v6933
  %v7096 = vadd.f32 %v6567, %v6938
  %v7097 = vadd.f32 %v6568, %v6943
  %v7098 = vadd.f32 %v6569, %v6948
  %v7099 = vadd.f32 %v6570, %v6953
  %v7100 = vadd.f32 %v6571, %v6958
  %v7101 = vadd.f32 %v6572, %v6963
  %v7102 = vadd.f32 %v6573, %v6968
  %v7103 = vadd.f32 %v6574, %v6973
  %v7104 = vadd.f32 %v6575, %v6978
  %v7105 = vadd.f32 %v6576, %v6983
  %v7106 = vadd.f32 %v6577, %v6988
  %v7107 = vadd.f32 %v6578, %v6993
  %v7108 = vadd.f32 %v6579, %v6998
  %v7109 = vadd.f32 %v6580, %v7003
  %v7110 = vadd.f32 %v6581, %v7008
  %v7111 = vadd.f32 %v6582, %v7013
  %v7112 = vadd.f32 %v6583, %v7018
  %v7113 = vadd.f32 %v6584, %v7023
  %v7114 = vadd.f32 %v6585, %v7028
  %v7115 = vadd.f32 %v6586, %v7033
  %v7116 = vadd.f32 %v6587, %v7038
  %v7117 = vadd.f32 %v6588, %v7043
  %v7118 = vadd.f32 %v6589, %v7048
  %v7119 = vadd.f32 %v6590, %v7053
  %v7120 = vadd.f32 %v7056, %v7057
  %v7121 = vadd.f32 %v7120, %v7058
  %v7122 = vadd.f32 %v7121, %v7059
  %v7123 = vadd.f32 %v7122, %v7060
  %v7124 = vadd.f32 %v7123, %v7061
  %v7125 = vadd.f32 %v7124, %v7062
  %v7126 = vadd.f32 %v7125, %v7063
  %v7127 = vadd.f32 %v7126, %v7064
  %v7128 = vadd.f32 %v7127, %v7065
  %v7129 = vadd.f32 %v7128, %v7066
  %v7130 = vadd.f32 %v7129, %v7067
  %v7131 = vadd.f32 %v7130, %v7068
  %v7132 = vadd.f32 %v7131, %v7069
  %v7133 = vadd.f32 %v7132, %v7070
  %v7134 = vadd.f32 %v7133, %v7071
  %v7135 = vadd.f32 %v7134, %v7072
  %v7136 = vadd.f32 %v7135, %v7073
  %v7137 = vadd.f32 %v7136, %v7074
  %v7138 = vadd.f32 %v7137, %v7075
  %v7139 = vadd.f32 %v7138, %v7076
  %v7140 = vadd.f32 %v7139, %v7077
  %v7141 = vadd.f32 %v7140, %v7078
  %v7142 = vadd.f32 %v7141, %v7079
  %v7143 = vadd.f32 %v7142, %v7080
  %v7144 = vadd.f32 %v7143, %v7081
  %v7145 = vadd.f32 %v7144, %v7082
  %v7146 = vadd.f32 %v7145, %v7083
  %v7147 = vadd.f32 %v7146, %v7084
  %v7148 = vadd.f32 %v7147, %v7085
  %v7149 = vadd.f32 %v7148, %v7086
  %v7150 = vadd.f32 %v7149, %v7087
  %v7151 = vadd.f32 %v7150, %v7088
  %v7152 = vadd.f32 %v7151, %v7089
  %v7153 = vadd.f32 %v7152, %v7090
  %v7154 = vadd.f32 %v7153, %v7091
  %v7155 = vadd.f32 %v7154, %v7092
  %v7156 = vadd.f32 %v7155, %v7093
  %v7157 = vadd.f32 %v7156, %v7094
  %v7158 = vadd.f32 %v7157, %v7095
  %v7159 = vadd.f32 %v7158, %v7096
  %v7160 = vadd.f32 %v7159, %v7097
  %v7161 = vadd.f32 %v7160, %v7098
  %v7162 = vadd.f32 %v7161, %v7099
  %v7163 = vadd.f32 %v7162, %v7100
  %v7164 = vadd.f32 %v7163, %v7101
  %v7165 = vadd.f32 %v7164, %v7102
  %v7166 = vadd.f32 %v7165, %v7103
  %v7167 = vadd.f32 %v7166, %v7104
  %v7168 = vadd.f32 %v7167, %v7105
  %v7169 = vadd.f32 %v7168, %v7106
  %v7170 = vadd.f32 %v7169, %v7107
  %v7171 = vadd.f32 %v7170, %v7108
  %v7172 = vadd.f32 %v7171, %v7109
  %v7173 = vadd.f32 %v7172, %v7110
  %v7174 = vadd.f32 %v7173, %v7111
  %v7175 = vadd.f32 %v7174, %v7112
  %v7176 = vadd.f32 %v7175, %v7113
  %v7177 = vadd.f32 %v7176, %v7114
  %v7178 = vadd.f32 %v7177, %v7115
  %v7179 = vadd.f32 %v7178, %v7116
  %v7180 = vadd.f32 %v7179, %v7117
  %v7181 = vadd.f32 %v7180, %v7118
  %v7182 = vadd.f32 %v7181, %v7119
  %v7183 = vrot.slane %v7182, 4
  %v7184 = vadd.f32 %v7182, %v7183
  %v7185 = vrot.slane %v7184, 2
  %v7186 = vadd.f32 %v7184, %v7185
  %v7187 = vrot.slane %v7186, 1
  %v7188 = vadd.f32 %v7186, %v7187
  %v7189 = vmul.f32 %v7188, %v3158
  %v7190 = vsub.f32 %v7056, %v7189
  %v7191 = vsub.f32 %v7057, %v7189
  %v7192 = vsub.f32 %v7058, %v7189
  %v7193 = vsub.f32 %v7059, %v7189
  %v7194 = vsub.f32 %v7060, %v7189
  %v7195 = vsub.f32 %v7061, %v7189
  %v7196 = vsub.f32 %v7062, %v7189
  %v7197 = vsub.f32 %v7063, %v7189
  %v7198 = vsub.f32 %v7064, %v7189
  %v7199 = vsub.f32 %v7065, %v7189
  %v7200 = vsub.f32 %v7066, %v7189
  %v7201 = vsub.f32 %v7067, %v7189
  %v7202 = vsub.f32 %v7068, %v7189
  %v7203 = vsub.f32 %v7069, %v7189
  %v7204 = vsub.f32 %v7070, %v7189
  %v7205 = vsub.f32 %v7071, %v7189
  %v7206 = vsub.f32 %v7072, %v7189
  %v7207 = vsub.f32 %v7073, %v7189
  %v7208 = vsub.f32 %v7074, %v7189
  %v7209 = vsub.f32 %v7075, %v7189
  %v7210 = vsub.f32 %v7076, %v7189
  %v7211 = vsub.f32 %v7077, %v7189
  %v7212 = vsub.f32 %v7078, %v7189
  %v7213 = vsub.f32 %v7079, %v7189
  %v7214 = vsub.f32 %v7080, %v7189
  %v7215 = vsub.f32 %v7081, %v7189
  %v7216 = vsub.f32 %v7082, %v7189
  %v7217 = vsub.f32 %v7083, %v7189
  %v7218 = vsub.f32 %v7084, %v7189
  %v7219 = vsub.f32 %v7085, %v7189
  %v7220 = vsub.f32 %v7086, %v7189
  %v7221 = vsub.f32 %v7087, %v7189
  %v7222 = vsub.f32 %v7088, %v7189
  %v7223 = vsub.f32 %v7089, %v7189
  %v7224 = vsub.f32 %v7090, %v7189
  %v7225 = vsub.f32 %v7091, %v7189
  %v7226 = vsub.f32 %v7092, %v7189
  %v7227 = vsub.f32 %v7093, %v7189
  %v7228 = vsub.f32 %v7094, %v7189
  %v7229 = vsub.f32 %v7095, %v7189
  %v7230 = vsub.f32 %v7096, %v7189
  %v7231 = vsub.f32 %v7097, %v7189
  %v7232 = vsub.f32 %v7098, %v7189
  %v7233 = vsub.f32 %v7099, %v7189
  %v7234 = vsub.f32 %v7100, %v7189
  %v7235 = vsub.f32 %v7101, %v7189
  %v7236 = vsub.f32 %v7102, %v7189
  %v7237 = vsub.f32 %v7103, %v7189
  %v7238 = vsub.f32 %v7104, %v7189
  %v7239 = vsub.f32 %v7105, %v7189
  %v7240 = vsub.f32 %v7106, %v7189
  %v7241 = vsub.f32 %v7107, %v7189
  %v7242 = vsub.f32 %v7108, %v7189
  %v7243 = vsub.f32 %v7109, %v7189
  %v7244 = vsub.f32 %v7110, %v7189
  %v7245 = vsub.f32 %v7111, %v7189
  %v7246 = vsub.f32 %v7112, %v7189
  %v7247 = vsub.f32 %v7113, %v7189
  %v7248 = vsub.f32 %v7114, %v7189
  %v7249 = vsub.f32 %v7115, %v7189
  %v7250 = vsub.f32 %v7116, %v7189
  %v7251 = vsub.f32 %v7117, %v7189
  %v7252 = vsub.f32 %v7118, %v7189
  %v7253 = vsub.f32 %v7119, %v7189
  %v7254 = vmul.f32 %v7190, %v7190
  %v7255 = vmul.f32 %v7191, %v7191
  %v7256 = vmul.f32 %v7192, %v7192
  %v7257 = vmul.f32 %v7193, %v7193
  %v7258 = vmul.f32 %v7194, %v7194
  %v7259 = vmul.f32 %v7195, %v7195
  %v7260 = vmul.f32 %v7196, %v7196
  %v7261 = vmul.f32 %v7197, %v7197
  %v7262 = vmul.f32 %v7198, %v7198
  %v7263 = vmul.f32 %v7199, %v7199
  %v7264 = vmul.f32 %v7200, %v7200
  %v7265 = vmul.f32 %v7201, %v7201
  %v7266 = vmul.f32 %v7202, %v7202
  %v7267 = vmul.f32 %v7203, %v7203
  %v7268 = vmul.f32 %v7204, %v7204
  %v7269 = vmul.f32 %v7205, %v7205
  %v7270 = vmul.f32 %v7206, %v7206
  %v7271 = vmul.f32 %v7207, %v7207
  %v7272 = vmul.f32 %v7208, %v7208
  %v7273 = vmul.f32 %v7209, %v7209
  %v7274 = vmul.f32 %v7210, %v7210
  %v7275 = vmul.f32 %v7211, %v7211
  %v7276 = vmul.f32 %v7212, %v7212
  %v7277 = vmul.f32 %v7213, %v7213
  %v7278 = vmul.f32 %v7214, %v7214
  %v7279 = vmul.f32 %v7215, %v7215
  %v7280 = vmul.f32 %v7216, %v7216
  %v7281 = vmul.f32 %v7217, %v7217
  %v7282 = vmul.f32 %v7218, %v7218
  %v7283 = vmul.f32 %v7219, %v7219
  %v7284 = vmul.f32 %v7220, %v7220
  %v7285 = vmul.f32 %v7221, %v7221
  %v7286 = vmul.f32 %v7222, %v7222
  %v7287 = vmul.f32 %v7223, %v7223
  %v7288 = vmul.f32 %v7224, %v7224
  %v7289 = vmul.f32 %v7225, %v7225
  %v7290 = vmul.f32 %v7226, %v7226
  %v7291 = vmul.f32 %v7227, %v7227
  %v7292 = vmul.f32 %v7228, %v7228
  %v7293 = vmul.f32 %v7229, %v7229
  %v7294 = vmul.f32 %v7230, %v7230
  %v7295 = vmul.f32 %v7231, %v7231
  %v7296 = vmul.f32 %v7232, %v7232
  %v7297 = vmul.f32 %v7233, %v7233
  %v7298 = vmul.f32 %v7234, %v7234
  %v7299 = vmul.f32 %v7235, %v7235
  %v7300 = vmul.f32 %v7236, %v7236
  %v7301 = vmul.f32 %v7237, %v7237
  %v7302 = vmul.f32 %v7238, %v7238
  %v7303 = vmul.f32 %v7239, %v7239
  %v7304 = vmul.f32 %v7240, %v7240
  %v7305 = vmul.f32 %v7241, %v7241
  %v7306 = vmul.f32 %v7242, %v7242
  %v7307 = vmul.f32 %v7243, %v7243
  %v7308 = vmul.f32 %v7244, %v7244
  %v7309 = vmul.f32 %v7245, %v7245
  %v7310 = vmul.f32 %v7246, %v7246
  %v7311 = vmul.f32 %v7247, %v7247
  %v7312 = vmul.f32 %v7248, %v7248
  %v7313 = vmul.f32 %v7249, %v7249
  %v7314 = vmul.f32 %v7250, %v7250
  %v7315 = vmul.f32 %v7251, %v7251
  %v7316 = vmul.f32 %v7252, %v7252
  %v7317 = vmul.f32 %v7253, %v7253
  %v7318 = vadd.f32 %v7254, %v7255
  %v7319 = vadd.f32 %v7318, %v7256
  %v7320 = vadd.f32 %v7319, %v7257
  %v7321 = vadd.f32 %v7320, %v7258
  %v7322 = vadd.f32 %v7321, %v7259
  %v7323 = vadd.f32 %v7322, %v7260
  %v7324 = vadd.f32 %v7323, %v7261
  %v7325 = vadd.f32 %v7324, %v7262
  %v7326 = vadd.f32 %v7325, %v7263
  %v7327 = vadd.f32 %v7326, %v7264
  %v7328 = vadd.f32 %v7327, %v7265
  %v7329 = vadd.f32 %v7328, %v7266
  %v7330 = vadd.f32 %v7329, %v7267
  %v7331 = vadd.f32 %v7330, %v7268
  %v7332 = vadd.f32 %v7331, %v7269
  %v7333 = vadd.f32 %v7332, %v7270
  %v7334 = vadd.f32 %v7333, %v7271
  %v7335 = vadd.f32 %v7334, %v7272
  %v7336 = vadd.f32 %v7335, %v7273
  %v7337 = vadd.f32 %v7336, %v7274
  %v7338 = vadd.f32 %v7337, %v7275
  %v7339 = vadd.f32 %v7338, %v7276
  %v7340 = vadd.f32 %v7339, %v7277
  %v7341 = vadd.f32 %v7340, %v7278
  %v7342 = vadd.f32 %v7341, %v7279
  %v7343 = vadd.f32 %v7342, %v7280
  %v7344 = vadd.f32 %v7343, %v7281
  %v7345 = vadd.f32 %v7344, %v7282
  %v7346 = vadd.f32 %v7345, %v7283
  %v7347 = vadd.f32 %v7346, %v7284
  %v7348 = vadd.f32 %v7347, %v7285
  %v7349 = vadd.f32 %v7348, %v7286
  %v7350 = vadd.f32 %v7349, %v7287
  %v7351 = vadd.f32 %v7350, %v7288
  %v7352 = vadd.f32 %v7351, %v7289
  %v7353 = vadd.f32 %v7352, %v7290
  %v7354 = vadd.f32 %v7353, %v7291
  %v7355 = vadd.f32 %v7354, %v7292
  %v7356 = vadd.f32 %v7355, %v7293
  %v7357 = vadd.f32 %v7356, %v7294
  %v7358 = vadd.f32 %v7357, %v7295
  %v7359 = vadd.f32 %v7358, %v7296
  %v7360 = vadd.f32 %v7359, %v7297
  %v7361 = vadd.f32 %v7360, %v7298
  %v7362 = vadd.f32 %v7361, %v7299
  %v7363 = vadd.f32 %v7362, %v7300
  %v7364 = vadd.f32 %v7363, %v7301
  %v7365 = vadd.f32 %v7364, %v7302
  %v7366 = vadd.f32 %v7365, %v7303
  %v7367 = vadd.f32 %v7366, %v7304
  %v7368 = vadd.f32 %v7367, %v7305
  %v7369 = vadd.f32 %v7368, %v7306
  %v7370 = vadd.f32 %v7369, %v7307
  %v7371 = vadd.f32 %v7370, %v7308
  %v7372 = vadd.f32 %v7371, %v7309
  %v7373 = vadd.f32 %v7372, %v7310
  %v7374 = vadd.f32 %v7373, %v7311
  %v7375 = vadd.f32 %v7374, %v7312
  %v7376 = vadd.f32 %v7375, %v7313
  %v7377 = vadd.f32 %v7376, %v7314
  %v7378 = vadd.f32 %v7377, %v7315
  %v7379 = vadd.f32 %v7378, %v7316
  %v7380 = vadd.f32 %v7379, %v7317
  %v7381 = vrot.slane %v7380, 4
  %v7382 = vadd.f32 %v7380, %v7381
  %v7383 = vrot.slane %v7382, 2
  %v7384 = vadd.f32 %v7382, %v7383
  %v7385 = vrot.slane %v7384, 1
  %v7386 = vadd.f32 %v7384, %v7385
  %v7387 = vmul.f32 %v7386, %v3158
  %v7388 = vadd.f32 %v7387, 1e-05
  %v7389 = vrsqrt.pop %v7388
  %v7390 = vmul.f32 %v7389, %v34
  %v7391 = vlaneseq
  %v7392 = vshrl.u32 %v7391, 7
  %v7393 = vsub.s32 0, %v7392
  %v7394 = vrot.slane %v7390, %v7393
  %v7395 = vmul.f32 %v7190, %v7394
  %v7396 = vmul.f32 %v7191, %v7394
  %v7397 = vmul.f32 %v7192, %v7394
  %v7398 = vmul.f32 %v7193, %v7394
  %v7399 = vmul.f32 %v7194, %v7394
  %v7400 = vmul.f32 %v7195, %v7394
  %v7401 = vmul.f32 %v7196, %v7394
  %v7402 = vmul.f32 %v7197, %v7394
  %v7403 = vmul.f32 %v7198, %v7394
  %v7404 = vmul.f32 %v7199, %v7394
  %v7405 = vmul.f32 %v7200, %v7394
  %v7406 = vmul.f32 %v7201, %v7394
  %v7407 = vmul.f32 %v7202, %v7394
  %v7408 = vmul.f32 %v7203, %v7394
  %v7409 = vmul.f32 %v7204, %v7394
  %v7410 = vmul.f32 %v7205, %v7394
  %v7411 = vmul.f32 %v7206, %v7394
  %v7412 = vmul.f32 %v7207, %v7394
  %v7413 = vmul.f32 %v7208, %v7394
  %v7414 = vmul.f32 %v7209, %v7394
  %v7415 = vmul.f32 %v7210, %v7394
  %v7416 = vmul.f32 %v7211, %v7394
  %v7417 = vmul.f32 %v7212, %v7394
  %v7418 = vmul.f32 %v7213, %v7394
  %v7419 = vmul.f32 %v7214, %v7394
  %v7420 = vmul.f32 %v7215, %v7394
  %v7421 = vmul.f32 %v7216, %v7394
  %v7422 = vmul.f32 %v7217, %v7394
  %v7423 = vmul.f32 %v7218, %v7394
  %v7424 = vmul.f32 %v7219, %v7394
  %v7425 = vmul.f32 %v7220, %v7394
  %v7426 = vmul.f32 %v7221, %v7394
  %v7427 = vmul.f32 %v7222, %v7394
  %v7428 = vmul.f32 %v7223, %v7394
  %v7429 = vmul.f32 %v7224, %v7394
  %v7430 = vmul.f32 %v7225, %v7394
  %v7431 = vmul.f32 %v7226, %v7394
  %v7432 = vmul.f32 %v7227, %v7394
  %v7433 = vmul.f32 %v7228, %v7394
  %v7434 = vmul.f32 %v7229, %v7394
  %v7435 = vmul.f32 %v7230, %v7394
  %v7436 = vmul.f32 %v7231, %v7394
  %v7437 = vmul.f32 %v7232, %v7394
  %v7438 = vmul.f32 %v7233, %v7394
  %v7439 = vmul.f32 %v7234, %v7394
  %v7440 = vmul.f32 %v7235, %v7394
  %v7441 = vmul.f32 %v7236, %v7394
  %v7442 = vmul.f32 %v7237, %v7394
  %v7443 = vmul.f32 %v7238, %v7394
  %v7444 = vmul.f32 %v7239, %v7394
  %v7445 = vmul.f32 %v7240, %v7394
  %v7446 = vmul.f32 %v7241, %v7394
  %v7447 = vmul.f32 %v7242, %v7394
  %v7448 = vmul.f32 %v7243, %v7394
  %v7449 = vmul.f32 %v7244, %v7394
  %v7450 = vmul.f32 %v7245, %v7394
  %v7451 = vmul.f32 %v7246, %v7394
  %v7452 = vmul.f32 %v7247, %v7394
  %v7453 = vmul.f32 %v7248, %v7394
  %v7454 = vmul.f32 %v7249, %v7394
  %v7455 = vmul.f32 %v7250, %v7394
  %v7456 = vmul.f32 %v7251, %v7394
  %v7457 = vmul.f32 %v7252, %v7394
  %v7458 = vmul.f32 %v7253, %v7394
  %v7459 = vlaneseq
  %v7460 = vshrl.u32 %v7459, 7
  %v7461 = vsub.s32 0, %v7460
  %v7462 = vrot.slane %v35, %v7461
  %v7463 = vadd.f32 %v7395, %v7462
  %v7464 = vadd.f32 %v7396, %v7462
  %v7465 = vadd.f32 %v7397, %v7462
  %v7466 = vadd.f32 %v7398, %v7462
  %v7467 = vadd.f32 %v7399, %v7462
  %v7468 = vadd.f32 %v7400, %v7462
  %v7469 = vadd.f32 %v7401, %v7462
  %v7470 = vadd.f32 %v7402, %v7462
  %v7471 = vadd.f32 %v7403, %v7462
  %v7472 = vadd.f32 %v7404, %v7462
  %v7473 = vadd.f32 %v7405, %v7462
  %v7474 = vadd.f32 %v7406, %v7462
  %v7475 = vadd.f32 %v7407, %v7462
  %v7476 = vadd.f32 %v7408, %v7462
  %v7477 = vadd.f32 %v7409, %v7462
  %v7478 = vadd.f32 %v7410, %v7462
  %v7479 = vadd.f32 %v7411, %v7462
  %v7480 = vadd.f32 %v7412, %v7462
  %v7481 = vadd.f32 %v7413, %v7462
  %v7482 = vadd.f32 %v7414, %v7462
  %v7483 = vadd.f32 %v7415, %v7462
  %v7484 = vadd.f32 %v7416, %v7462
  %v7485 = vadd.f32 %v7417, %v7462
  %v7486 = vadd.f32 %v7418, %v7462
  %v7487 = vadd.f32 %v7419, %v7462
  %v7488 = vadd.f32 %v7420, %v7462
  %v7489 = vadd.f32 %v7421, %v7462
  %v7490 = vadd.f32 %v7422, %v7462
  %v7491 = vadd.f32 %v7423, %v7462
  %v7492 = vadd.f32 %v7424, %v7462
  %v7493 = vadd.f32 %v7425, %v7462
  %v7494 = vadd.f32 %v7426, %v7462
  %v7495 = vadd.f32 %v7427, %v7462
  %v7496 = vadd.f32 %v7428, %v7462
  %v7497 = vadd.f32 %v7429, %v7462
  %v7498 = vadd.f32 %v7430, %v7462
  %v7499 = vadd.f32 %v7431, %v7462
  %v7500 = vadd.f32 %v7432, %v7462
  %v7501 = vadd.f32 %v7433, %v7462
  %v7502 = vadd.f32 %v7434, %v7462
  %v7503 = vadd.f32 %v7435, %v7462
  %v7504 = vadd.f32 %v7436, %v7462
  %v7505 = vadd.f32 %v7437, %v7462
  %v7506 = vadd.f32 %v7438, %v7462
  %v7507 = vadd.f32 %v7439, %v7462
  %v7508 = vadd.f32 %v7440, %v7462
  %v7509 = vadd.f32 %v7441, %v7462
  %v7510 = vadd.f32 %v7442, %v7462
  %v7511 = vadd.f32 %v7443, %v7462
  %v7512 = vadd.f32 %v7444, %v7462
  %v7513 = vadd.f32 %v7445, %v7462
  %v7514 = vadd.f32 %v7446, %v7462
  %v7515 = vadd.f32 %v7447, %v7462
  %v7516 = vadd.f32 %v7448, %v7462
  %v7517 = vadd.f32 %v7449, %v7462
  %v7518 = vadd.f32 %v7450, %v7462
  %v7519 = vadd.f32 %v7451, %v7462
  %v7520 = vadd.f32 %v7452, %v7462
  %v7521 = vadd.f32 %v7453, %v7462
  %v7522 = vadd.f32 %v7454, %v7462
  %v7523 = vadd.f32 %v7455, %v7462
  %v7524 = vadd.f32 %v7456, %v7462
  %v7525 = vadd.f32 %v7457, %v7462
  %v7526 = vadd.f32 %v7458, %v7462
  %v7527 = vxor.u32 %v7463, 2147483648
  %v7528 = vxor.u32 %v7464, 2147483648
  %v7529 = vxor.u32 %v7465, 2147483648
  %v7530 = vxor.u32 %v7466, 2147483648
  %v7531 = vxor.u32 %v7467, 2147483648
  %v7532 = vxor.u32 %v7468, 2147483648
  %v7533 = vxor.u32 %v7469, 2147483648
  %v7534 = vxor.u32 %v7470, 2147483648
  %v7535 = vxor.u32 %v7471, 2147483648
  %v7536 = vxor.u32 %v7472, 2147483648
  %v7537 = vxor.u32 %v7473, 2147483648
  %v7538 = vxor.u32 %v7474, 2147483648
  %v7539 = vxor.u32 %v7475, 2147483648
  %v7540 = vxor.u32 %v7476, 2147483648
  %v7541 = vxor.u32 %v7477, 2147483648
  %v7542 = vxor.u32 %v7478, 2147483648
  %v7543 = vxor.u32 %v7479, 2147483648
  %v7544 = vxor.u32 %v7480, 2147483648
  %v7545 = vxor.u32 %v7481, 2147483648
  %v7546 = vxor.u32 %v7482, 2147483648
  %v7547 = vxor.u32 %v7483, 2147483648
  %v7548 = vxor.u32 %v7484, 2147483648
  %v7549 = vxor.u32 %v7485, 2147483648
  %v7550 = vxor.u32 %v7486, 2147483648
  %v7551 = vxor.u32 %v7487, 2147483648
  %v7552 = vxor.u32 %v7488, 2147483648
  %v7553 = vxor.u32 %v7489, 2147483648
  %v7554 = vxor.u32 %v7490, 2147483648
  %v7555 = vxor.u32 %v7491, 2147483648
  %v7556 = vxor.u32 %v7492, 2147483648
  %v7557 = vxor.u32 %v7493, 2147483648
  %v7558 = vxor.u32 %v7494, 2147483648
  %v7559 = vxor.u32 %v7495, 2147483648
  %v7560 = vxor.u32 %v7496, 2147483648
  %v7561 = vxor.u32 %v7497, 2147483648
  %v7562 = vxor.u32 %v7498, 2147483648
  %v7563 = vxor.u32 %v7499, 2147483648
  %v7564 = vxor.u32 %v7500, 2147483648
  %v7565 = vxor.u32 %v7501, 2147483648
  %v7566 = vxor.u32 %v7502, 2147483648
  %v7567 = vxor.u32 %v7503, 2147483648
  %v7568 = vxor.u32 %v7504, 2147483648
  %v7569 = vxor.u32 %v7505, 2147483648
  %v7570 = vxor.u32 %v7506, 2147483648
  %v7571 = vxor.u32 %v7507, 2147483648
  %v7572 = vxor.u32 %v7508, 2147483648
  %v7573 = vxor.u32 %v7509, 2147483648
  %v7574 = vxor.u32 %v7510, 2147483648
  %v7575 = vxor.u32 %v7511, 2147483648
  %v7576 = vxor.u32 %v7512, 2147483648
  %v7577 = vxor.u32 %v7513, 2147483648
  %v7578 = vxor.u32 %v7514, 2147483648
  %v7579 = vxor.u32 %v7515, 2147483648
  %v7580 = vxor.u32 %v7516, 2147483648
  %v7581 = vxor.u32 %v7517, 2147483648
  %v7582 = vxor.u32 %v7518, 2147483648
  %v7583 = vxor.u32 %v7519, 2147483648
  %v7584 = vxor.u32 %v7520, 2147483648
  %v7585 = vxor.u32 %v7521, 2147483648
  %v7586 = vxor.u32 %v7522, 2147483648
  %v7587 = vxor.u32 %v7523, 2147483648
  %v7588 = vxor.u32 %v7524, 2147483648
  %v7589 = vxor.u32 %v7525, 2147483648
  %v7590 = vxor.u32 %v7526, 2147483648
  %v7591 = vmul.f32 %v7527, 1.442695
  %v7592 = vpow.pop %v7591
  %v7593 = vmul.f32 %v7528, 1.442695
  %v7594 = vpow.pop %v7593
  %v7595 = vmul.f32 %v7529, 1.442695
  %v7596 = vpow.pop %v7595
  %v7597 = vmul.f32 %v7530, 1.442695
  %v7598 = vpow.pop %v7597
  %v7599 = vmul.f32 %v7531, 1.442695
  %v7600 = vpow.pop %v7599
  %v7601 = vmul.f32 %v7532, 1.442695
  %v7602 = vpow.pop %v7601
  %v7603 = vmul.f32 %v7533, 1.442695
  %v7604 = vpow.pop %v7603
  %v7605 = vmul.f32 %v7534, 1.442695
  %v7606 = vpow.pop %v7605
  %v7607 = vmul.f32 %v7535, 1.442695
  %v7608 = vpow.pop %v7607
  %v7609 = vmul.f32 %v7536, 1.442695
  %v7610 = vpow.pop %v7609
  %v7611 = vmul.f32 %v7537, 1.442695
  %v7612 = vpow.pop %v7611
  %v7613 = vmul.f32 %v7538, 1.442695
  %v7614 = vpow.pop %v7613
  %v7615 = vmul.f32 %v7539, 1.442695
  %v7616 = vpow.pop %v7615
  %v7617 = vmul.f32 %v7540, 1.442695
  %v7618 = vpow.pop %v7617
  %v7619 = vmul.f32 %v7541, 1.442695
  %v7620 = vpow.pop %v7619
  %v7621 = vmul.f32 %v7542, 1.442695
  %v7622 = vpow.pop %v7621
  %v7623 = vmul.f32 %v7543, 1.442695
  %v7624 = vpow.pop %v7623
  %v7625 = vmul.f32 %v7544, 1.442695
  %v7626 = vpow.pop %v7625
  %v7627 = vmul.f32 %v7545, 1.442695
  %v7628 = vpow.pop %v7627
  %v7629 = vmul.f32 %v7546, 1.442695
  %v7630 = vpow.pop %v7629
  %v7631 = vmul.f32 %v7547, 1.442695
  %v7632 = vpow.pop %v7631
  %v7633 = vmul.f32 %v7548, 1.442695
  %v7634 = vpow.pop %v7633
  %v7635 = vmul.f32 %v7549, 1.442695
  %v7636 = vpow.pop %v7635
  %v7637 = vmul.f32 %v7550, 1.442695
  %v7638 = vpow.pop %v7637
  %v7639 = vmul.f32 %v7551, 1.442695
  %v7640 = vpow.pop %v7639
  %v7641 = vmul.f32 %v7552, 1.442695
  %v7642 = vpow.pop %v7641
  %v7643 = vmul.f32 %v7553, 1.442695
  %v7644 = vpow.pop %v7643
  %v7645 = vmul.f32 %v7554, 1.442695
  %v7646 = vpow.pop %v7645
  %v7647 = vmul.f32 %v7555, 1.442695
  %v7648 = vpow.pop %v7647
  %v7649 = vmul.f32 %v7556, 1.442695
  %v7650 = vpow.pop %v7649
  %v7651 = vmul.f32 %v7557, 1.442695
  %v7652 = vpow.pop %v7651
  %v7653 = vmul.f32 %v7558, 1.442695
  %v7654 = vpow.pop %v7653
  %v7655 = vmul.f32 %v7559, 1.442695
  %v7656 = vpow.pop %v7655
  %v7657 = vmul.f32 %v7560, 1.442695
  %v7658 = vpow.pop %v7657
  %v7659 = vmul.f32 %v7561, 1.442695
  %v7660 = vpow.pop %v7659
  %v7661 = vmul.f32 %v7562, 1.442695
  %v7662 = vpow.pop %v7661
  %v7663 = vmul.f32 %v7563, 1.442695
  %v7664 = vpow.pop %v7663
  %v7665 = vmul.f32 %v7564, 1.442695
  %v7666 = vpow.pop %v7665
  %v7667 = vmul.f32 %v7565, 1.442695
  %v7668 = vpow.pop %v7667
  %v7669 = vmul.f32 %v7566, 1.442695
  %v7670 = vpow.pop %v7669
  %v7671 = vmul.f32 %v7567, 1.442695
  %v7672 = vpow.pop %v7671
  %v7673 = vmul.f32 %v7568, 1.442695
  %v7674 = vpow.pop %v7673
  %v7675 = vmul.f32 %v7569, 1.442695
  %v7676 = vpow.pop %v7675
  %v7677 = vmul.f32 %v7570, 1.442695
  %v7678 = vpow.pop %v7677
  %v7679 = vmul.f32 %v7571, 1.442695
  %v7680 = vpow.pop %v7679
  %v7681 = vmul.f32 %v7572, 1.442695
  %v7682 = vpow.pop %v7681
  %v7683 = vmul.f32 %v7573, 1.442695
  %v7684 = vpow.pop %v7683
  %v7685 = vmul.f32 %v7574, 1.442695
  %v7686 = vpow.pop %v7685
  %v7687 = vmul.f32 %v7575, 1.442695
  %v7688 = vpow.pop %v7687
  %v7689 = vmul.f32 %v7576, 1.442695
  %v7690 = vpow.pop %v7689
  %v7691 = vmul.f32 %v7577, 1.442695
  %v7692 = vpow.pop %v7691
  %v7693 = vmul.f32 %v7578, 1.442695
  %v7694 = vpow.pop %v7693
  %v7695 = vmul.f32 %v7579, 1.442695
  %v7696 = vpow.pop %v7695
  %v7697 = vmul.f32 %v7580, 1.442695
  %v7698 = vpow.pop %v7697
  %v7699 = vmul.f32 %v7581, 1.442695
  %v7700 = vpow.pop %v7699
  %v7701 = vmul.f32 %v7582, 1.442695
  %v7702 = vpow.pop %v7701
  %v7703 = vmul.f32 %v7583, 1.442695
  %v7704 = vpow.pop %v7703
  %v7705 = vmul.f32 %v7584, 1.442695
  %v7706 = vpow.pop %v7705
  %v7707 = vmul.f32 %v7585, 1.442695
  %v7708 = vpow.pop %v7707
  %v7709 = vmul.f32 %v7586, 1.442695
  %v7710 = vpow.pop %v7709
  %v7711 = vmul.f32 %v7587, 1.442695
  %v7712 = vpow.pop %v7711
  %v7713 = vmul.f32 %v7588, 1.442695
  %v7714 = vpow.pop %v7713
  %v7715 = vmul.f32 %v7589, 1.442695
  %v7716 = vpow.pop %v7715
  %v7717 = vmul.f32 %v7590, 1.442695
  %v7718 = vpow.pop %v7717
  %v7719 = vadd.f32 %v7592, 1.0
  %v7720 = vadd.f32 %v7594, 1.0
  %v7721 = vadd.f32 %v7596, 1.0
  %v7722 = vadd.f32 %v7598, 1.0
  %v7723 = vadd.f32 %v7600, 1.0
  %v7724 = vadd.f32 %v7602, 1.0
  %v7725 = vadd.f32 %v7604, 1.0
  %v7726 = vadd.f32 %v7606, 1.0
  %v7727 = vadd.f32 %v7608, 1.0
  %v7728 = vadd.f32 %v7610, 1.0
  %v7729 = vadd.f32 %v7612, 1.0
  %v7730 = vadd.f32 %v7614, 1.0
  %v7731 = vadd.f32 %v7616, 1.0
  %v7732 = vadd.f32 %v7618, 1.0
  %v7733 = vadd.f32 %v7620, 1.0
  %v7734 = vadd.f32 %v7622, 1.0
  %v7735 = vadd.f32 %v7624, 1.0
  %v7736 = vadd.f32 %v7626, 1.0
  %v7737 = vadd.f32 %v7628, 1.0
  %v7738 = vadd.f32 %v7630, 1.0
  %v7739 = vadd.f32 %v7632, 1.0
  %v7740 = vadd.f32 %v7634, 1.0
  %v7741 = vadd.f32 %v7636, 1.0
  %v7742 = vadd.f32 %v7638, 1.0
  %v7743 = vadd.f32 %v7640, 1.0
  %v7744 = vadd.f32 %v7642, 1.0
  %v7745 = vadd.f32 %v7644, 1.0
  %v7746 = vadd.f32 %v7646, 1.0
  %v7747 = vadd.f32 %v7648, 1.0
  %v7748 = vadd.f32 %v7650, 1.0
  %v7749 = vadd.f32 %v7652, 1.0
  %v7750 = vadd.f32 %v7654, 1.0
  %v7751 = vadd.f32 %v7656, 1.0
  %v7752 = vadd.f32 %v7658, 1.0
  %v7753 = vadd.f32 %v7660, 1.0
  %v7754 = vadd.f32 %v7662, 1.0
  %v7755 = vadd.f32 %v7664, 1.0
  %v7756 = vadd.f32 %v7666, 1.0
  %v7757 = vadd.f32 %v7668, 1.0
  %v7758 = vadd.f32 %v7670, 1.0
  %v7759 = vadd.f32 %v7672, 1.0
  %v7760 = vadd.f32 %v7674, 1.0
  %v7761 = vadd.f32 %v7676, 1.0
  %v7762 = vadd.f32 %v7678, 1.0
  %v7763 = vadd.f32 %v7680, 1.0
  %v7764 = vadd.f32 %v7682, 1.0
  %v7765 = vadd.f32 %v7684, 1.0
  %v7766 = vadd.f32 %v7686, 1.0
  %v7767 = vadd.f32 %v7688, 1.0
  %v7768 = vadd.f32 %v7690, 1.0
  %v7769 = vadd.f32 %v7692, 1.0
  %v7770 = vadd.f32 %v7694, 1.0
  %v7771 = vadd.f32 %v7696, 1.0
  %v7772 = vadd.f32 %v7698, 1.0
  %v7773 = vadd.f32 %v7700, 1.0
  %v7774 = vadd.f32 %v7702, 1.0
  %v7775 = vadd.f32 %v7704, 1.0
  %v7776 = vadd.f32 %v7706, 1.0
  %v7777 = vadd.f32 %v7708, 1.0
  %v7778 = vadd.f32 %v7710, 1.0
  %v7779 = vadd.f32 %v7712, 1.0
  %v7780 = vadd.f32 %v7714, 1.0
  %v7781 = vadd.f32 %v7716, 1.0
  %v7782 = vadd.f32 %v7718, 1.0
  %v7783 = vrcp.pop %v7719
  %v7784 = vmul.f32 1.0, %v7783
  %v7785 = vrcp.pop %v7720
  %v7786 = vmul.f32 1.0, %v7785
  %v7787 = vrcp.pop %v7721
  %v7788 = vmul.f32 1.0, %v7787
  %v7789 = vrcp.pop %v7722
  %v7790 = vmul.f32 1.0, %v7789
  %v7791 = vrcp.pop %v7723
  %v7792 = vmul.f32 1.0, %v7791
  %v7793 = vrcp.pop %v7724
  %v7794 = vmul.f32 1.0, %v7793
  %v7795 = vrcp.pop %v7725
  %v7796 = vmul.f32 1.0, %v7795
  %v7797 = vrcp.pop %v7726
  %v7798 = vmul.f32 1.0, %v7797
  %v7799 = vrcp.pop %v7727
  %v7800 = vmul.f32 1.0, %v7799
  %v7801 = vrcp.pop %v7728
  %v7802 = vmul.f32 1.0, %v7801
  %v7803 = vrcp.pop %v7729
  %v7804 = vmul.f32 1.0, %v7803
  %v7805 = vrcp.pop %v7730
  %v7806 = vmul.f32 1.0, %v7805
  %v7807 = vrcp.pop %v7731
  %v7808 = vmul.f32 1.0, %v7807
  %v7809 = vrcp.pop %v7732
  %v7810 = vmul.f32 1.0, %v7809
  %v7811 = vrcp.pop %v7733
  %v7812 = vmul.f32 1.0, %v7811
  %v7813 = vrcp.pop %v7734
  %v7814 = vmul.f32 1.0, %v7813
  %v7815 = vrcp.pop %v7735
  %v7816 = vmul.f32 1.0, %v7815
  %v7817 = vrcp.pop %v7736
  %v7818 = vmul.f32 1.0, %v7817
  %v7819 = vrcp.pop %v7737
  %v7820 = vmul.f32 1.0, %v7819
  %v7821 = vrcp.pop %v7738
  %v7822 = vmul.f32 1.0, %v7821
  %v7823 = vrcp.pop %v7739
  %v7824 = vmul.f32 1.0, %v7823
  %v7825 = vrcp.pop %v7740
  %v7826 = vmul.f32 1.0, %v7825
  %v7827 = vrcp.pop %v7741
  %v7828 = vmul.f32 1.0, %v7827
  %v7829 = vrcp.pop %v7742
  %v7830 = vmul.f32 1.0, %v7829
  %v7831 = vrcp.pop %v7743
  %v7832 = vmul.f32 1.0, %v7831
  %v7833 = vrcp.pop %v7744
  %v7834 = vmul.f32 1.0, %v7833
  %v7835 = vrcp.pop %v7745
  %v7836 = vmul.f32 1.0, %v7835
  %v7837 = vrcp.pop %v7746
  %v7838 = vmul.f32 1.0, %v7837
  %v7839 = vrcp.pop %v7747
  %v7840 = vmul.f32 1.0, %v7839
  %v7841 = vrcp.pop %v7748
  %v7842 = vmul.f32 1.0, %v7841
  %v7843 = vrcp.pop %v7749
  %v7844 = vmul.f32 1.0, %v7843
  %v7845 = vrcp.pop %v7750
  %v7846 = vmul.f32 1.0, %v7845
  %v7847 = vrcp.pop %v7751
  %v7848 = vmul.f32 1.0, %v7847
  %v7849 = vrcp.pop %v7752
  %v7850 = vmul.f32 1.0, %v7849
  %v7851 = vrcp.pop %v7753
  %v7852 = vmul.f32 1.0, %v7851
  %v7853 = vrcp.pop %v7754
  %v7854 = vmul.f32 1.0, %v7853
  %v7855 = vrcp.pop %v7755
  %v7856 = vmul.f32 1.0, %v7855
  %v7857 = vrcp.pop %v7756
  %v7858 = vmul.f32 1.0, %v7857
  %v7859 = vrcp.pop %v7757
  %v7860 = vmul.f32 1.0, %v7859
  %v7861 = vrcp.pop %v7758
  %v7862 = vmul.f32 1.0, %v7861
  %v7863 = vrcp.pop %v7759
  %v7864 = vmul.f32 1.0, %v7863
  %v7865 = vrcp.pop %v7760
  %v7866 = vmul.f32 1.0, %v7865
  %v7867 = vrcp.pop %v7761
  %v7868 = vmul.f32 1.0, %v7867
  %v7869 = vrcp.pop %v7762
  %v7870 = vmul.f32 1.0, %v7869
  %v7871 = vrcp.pop %v7763
  %v7872 = vmul.f32 1.0, %v7871
  %v7873 = vrcp.pop %v7764
  %v7874 = vmul.f32 1.0, %v7873
  %v7875 = vrcp.pop %v7765
  %v7876 = vmul.f32 1.0, %v7875
  %v7877 = vrcp.pop %v7766
  %v7878 = vmul.f32 1.0, %v7877
  %v7879 = vrcp.pop %v7767
  %v7880 = vmul.f32 1.0, %v7879
  %v7881 = vrcp.pop %v7768
  %v7882 = vmul.f32 1.0, %v7881
  %v7883 = vrcp.pop %v7769
  %v7884 = vmul.f32 1.0, %v7883
  %v7885 = vrcp.pop %v7770
  %v7886 = vmul.f32 1.0, %v7885
  %v7887 = vrcp.pop %v7771
  %v7888 = vmul.f32 1.0, %v7887
  %v7889 = vrcp.pop %v7772
  %v7890 = vmul.f32 1.0, %v7889
  %v7891 = vrcp.pop %v7773
  %v7892 = vmul.f32 1.0, %v7891
  %v7893 = vrcp.pop %v7774
  %v7894 = vmul.f32 1.0, %v7893
  %v7895 = vrcp.pop %v7775
  %v7896 = vmul.f32 1.0, %v7895
  %v7897 = vrcp.pop %v7776
  %v7898 = vmul.f32 1.0, %v7897
  %v7899 = vrcp.pop %v7777
  %v7900 = vmul.f32 1.0, %v7899
  %v7901 = vrcp.pop %v7778
  %v7902 = vmul.f32 1.0, %v7901
  %v7903 = vrcp.pop %v7779
  %v7904 = vmul.f32 1.0, %v7903
  %v7905 = vrcp.pop %v7780
  %v7906 = vmul.f32 1.0, %v7905
  %v7907 = vrcp.pop %v7781
  %v7908 = vmul.f32 1.0, %v7907
  %v7909 = vrcp.pop %v7782
  %v7910 = vmul.f32 1.0, %v7909
  %v7911 = vmul.f32 %v7463, %v7784
  %v7912 = vmul.f32 %v7464, %v7786
  %v7913 = vmul.f32 %v7465, %v7788
  %v7914 = vmul.f32 %v7466, %v7790
  %v7915 = vmul.f32 %v7467, %v7792
  %v7916 = vmul.f32 %v7468, %v7794
  %v7917 = vmul.f32 %v7469, %v7796
  %v7918 = vmul.f32 %v7470, %v7798
  %v7919 = vmul.f32 %v7471, %v7800
  %v7920 = vmul.f32 %v7472, %v7802
  %v7921 = vmul.f32 %v7473, %v7804
  %v7922 = vmul.f32 %v7474, %v7806
  %v7923 = vmul.f32 %v7475, %v7808
  %v7924 = vmul.f32 %v7476, %v7810
  %v7925 = vmul.f32 %v7477, %v7812
  %v7926 = vmul.f32 %v7478, %v7814
  %v7927 = vmul.f32 %v7479, %v7816
  %v7928 = vmul.f32 %v7480, %v7818
  %v7929 = vmul.f32 %v7481, %v7820
  %v7930 = vmul.f32 %v7482, %v7822
  %v7931 = vmul.f32 %v7483, %v7824
  %v7932 = vmul.f32 %v7484, %v7826
  %v7933 = vmul.f32 %v7485, %v7828
  %v7934 = vmul.f32 %v7486, %v7830
  %v7935 = vmul.f32 %v7487, %v7832
  %v7936 = vmul.f32 %v7488, %v7834
  %v7937 = vmul.f32 %v7489, %v7836
  %v7938 = vmul.f32 %v7490, %v7838
  %v7939 = vmul.f32 %v7491, %v7840
  %v7940 = vmul.f32 %v7492, %v7842
  %v7941 = vmul.f32 %v7493, %v7844
  %v7942 = vmul.f32 %v7494, %v7846
  %v7943 = vmul.f32 %v7495, %v7848
  %v7944 = vmul.f32 %v7496, %v7850
  %v7945 = vmul.f32 %v7497, %v7852
  %v7946 = vmul.f32 %v7498, %v7854
  %v7947 = vmul.f32 %v7499, %v7856
  %v7948 = vmul.f32 %v7500, %v7858
  %v7949 = vmul.f32 %v7501, %v7860
  %v7950 = vmul.f32 %v7502, %v7862
  %v7951 = vmul.f32 %v7503, %v7864
  %v7952 = vmul.f32 %v7504, %v7866
  %v7953 = vmul.f32 %v7505, %v7868
  %v7954 = vmul.f32 %v7506, %v7870
  %v7955 = vmul.f32 %v7507, %v7872
  %v7956 = vmul.f32 %v7508, %v7874
  %v7957 = vmul.f32 %v7509, %v7876
  %v7958 = vmul.f32 %v7510, %v7878
  %v7959 = vmul.f32 %v7511, %v7880
  %v7960 = vmul.f32 %v7512, %v7882
  %v7961 = vmul.f32 %v7513, %v7884
  %v7962 = vmul.f32 %v7514, %v7886
  %v7963 = vmul.f32 %v7515, %v7888
  %v7964 = vmul.f32 %v7516, %v7890
  %v7965 = vmul.f32 %v7517, %v7892
  %v7966 = vmul.f32 %v7518, %v7894
  %v7967 = vmul.f32 %v7519, %v7896
  %v7968 = vmul.f32 %v7520, %v7898
  %v7969 = vmul.f32 %v7521, %v7900
  %v7970 = vmul.f32 %v7522, %v7902
  %v7971 = vmul.f32 %v7523, %v7904
  %v7972 = vmul.f32 %v7524, %v7906
  %v7973 = vmul.f32 %v7525, %v7908
  %v7974 = vmul.f32 %v7526, %v7910
  %v7975 = vld [vmem:[%s0] sm:$0xff]
  %v7976 = vld [vmem:[%s0 + $0x8] sm:$0xff]
  %v7977 = vld [vmem:[%s0 + $0x10] sm:$0xff]
  %v7978 = vld [vmem:[%s0 + $0x18] sm:$0xff]
  %v7979 = vld [vmem:[%s0 + $0x20] sm:$0xff]
  %v7980 = vld [vmem:[%s0 + $0x28] sm:$0xff]
  %v7981 = vld [vmem:[%s0 + $0x30] sm:$0xff]
  %v7982 = vld [vmem:[%s0 + $0x38] sm:$0xff]
  %v7983 = vld [vmem:[%s0 + $0x40] sm:$0xff]
  %v7984 = vld [vmem:[%s0 + $0x48] sm:$0xff]
  %v7985 = vld [vmem:[%s0 + $0x50] sm:$0xff]
  %v7986 = vld [vmem:[%s0 + $0x58] sm:$0xff]
  %v7987 = vld [vmem:[%s0 + $0x60] sm:$0xff]
  %v7988 = vld [vmem:[%s0 + $0x68] sm:$0xff]
  %v7989 = vld [vmem:[%s0 + $0x70] sm:$0xff]
  %v7990 = vld [vmem:[%s0 + $0x78] sm:$0xff]
  %v7991 = vld [vmem:[%s0 + $0x80] sm:$0xff]
  %v7992 = vld [vmem:[%s0 + $0x88] sm:$0xff]
  %v7993 = vld [vmem:[%s0 + $0x90] sm:$0xff]
  %v7994 = vld [vmem:[%s0 + $0x98] sm:$0xff]
  %v7995 = vld [vmem:[%s0 + $0xa0] sm:$0xff]
  %v7996 = vld [vmem:[%s0 + $0xa8] sm:$0xff]
  %v7997 = vld [vmem:[%s0 + $0xb0] sm:$0xff]
  %v7998 = vld [vmem:[%s0 + $0xb8] sm:$0xff]
  %v7999 = vld [vmem:[%s0 + $0xc0] sm:$0xff]
  %v8000 = vld [vmem:[%s0 + $0xc8] sm:$0xff]
  %v8001 = vld [vmem:[%s0 + $0xd0] sm:$0xff]
  %v8002 = vld [vmem:[%s0 + $0xd8] sm:$0xff]
  %v8003 = vld [vmem:[%s0 + $0xe0] sm:$0xff]
  %v8004 = vld [vmem:[%s0 + $0xe8] sm:$0xff]
  %v8005 = vld [vmem:[%s0 + $0xf0] sm:$0xff]
  %v8006 = vld [vmem:[%s0 + $0xf8] sm:$0xff]
  %v8007 = vld [vmem:[%s0 + $0x100] sm:$0xff]
  %v8008 = vld [vmem:[%s0 + $0x108] sm:$0xff]
  %v8009 = vld [vmem:[%s0 + $0x110] sm:$0xff]
  %v8010 = vld [vmem:[%s0 + $0x118] sm:$0xff]
  %v8011 = vld [vmem:[%s0 + $0x120] sm:$0xff]
  %v8012 = vld [vmem:[%s0 + $0x128] sm:$0xff]
  %v8013 = vld [vmem:[%s0 + $0x130] sm:$0xff]
  %v8014 = vld [vmem:[%s0 + $0x138] sm:$0xff]
  %v8015 = vld [vmem:[%s0 + $0x140] sm:$0xff]
  %v8016 = vld [vmem:[%s0 + $0x148] sm:$0xff]
  %v8017 = vld [vmem:[%s0 + $0x150] sm:$0xff]
  %v8018 = vld [vmem:[%s0 + $0x158] sm:$0xff]
  %v8019 = vld [vmem:[%s0 + $0x160] sm:$0xff]
  %v8020 = vld [vmem:[%s0 + $0x168] sm:$0xff]
  %v8021 = vld [vmem:[%s0 + $0x170] sm:$0xff]
  %v8022 = vld [vmem:[%s0 + $0x178] sm:$0xff]
  %v8023 = vld [vmem:[%s0 + $0x180] sm:$0xff]
  %v8024 = vld [vmem:[%s0 + $0x188] sm:$0xff]
  %v8025 = vld [vmem:[%s0 + $0x190] sm:$0xff]
  %v8026 = vld [vmem:[%s0 + $0x198] sm:$0xff]
  %v8027 = vld [vmem:[%s0 + $0x1a0] sm:$0xff]
  %v8028 = vld [vmem:[%s0 + $0x1a8] sm:$0xff]
  %v8029 = vld [vmem:[%s0 + $0x1b0] sm:$0xff]
  %v8030 = vld [vmem:[%s0 + $0x1b8] sm:$0xff]
  %v8031 = vld [vmem:[%s0 + $0x1c0] sm:$0xff]
  %v8032 = vld [vmem:[%s0 + $0x1c8] sm:$0xff]
  %v8033 = vld [vmem:[%s0 + $0x1d0] sm:$0xff]
  %v8034 = vld [vmem:[%s0 + $0x1d8] sm:$0xff]
  %v8035 = vld [vmem:[%s0 + $0x1e0] sm:$0xff]
  %v8036 = vld [vmem:[%s0 + $0x1e8] sm:$0xff]
  %v8037 = vld [vmem:[%s0 + $0x1f0] sm:$0xff]
  %v8038 = vld [vmem:[%s0 + $0x1f8] sm:$0xff]
  %v8039 = vld [vmem:[%s7] sm:$0xff]
  %v8040 = vld [vmem:[%s7 + $0x8] sm:$0xff]
  %v8041 = vld [vmem:[%s7 + $0x10] sm:$0xff]
  %v8042 = vld [vmem:[%s7 + $0x18] sm:$0xff]
  %v8043 = vld [vmem:[%s7 + $0x20] sm:$0xff]
  %v8044 = vld [vmem:[%s7 + $0x28] sm:$0xff]
  %v8045 = vld [vmem:[%s7 + $0x30] sm:$0xff]
  %v8046 = vld [vmem:[%s7 + $0x38] sm:$0xff]
  %v8047 = vld [vmem:[%s7 + $0x40] sm:$0xff]
  %v8048 = vld [vmem:[%s7 + $0x48] sm:$0xff]
  %v8049 = vld [vmem:[%s7 + $0x50] sm:$0xff]
  %v8050 = vld [vmem:[%s7 + $0x58] sm:$0xff]
  %v8051 = vld [vmem:[%s7 + $0x60] sm:$0xff]
  %v8052 = vld [vmem:[%s7 + $0x68] sm:$0xff]
  %v8053 = vld [vmem:[%s7 + $0x70] sm:$0xff]
  %v8054 = vld [vmem:[%s7 + $0x78] sm:$0xff]
  %v8055 = vlaneseq
  %v8056 = vshrl.u32 %v8055, 7
  %v8057 = vsub.s32 0, %v8056
  %v8058 = vrot.slane %v37, %v8057
  %8059 = vmatprep.subr.mxu0 0.0
  %8060 = vmatpush1.msra.mxu0 %v8054
  %8061 = vmatprep.subr.mxu0 0.0
  %8062 = vmatpush1.msra.mxu0 %v8053
  %8063 = vmatprep.subr.mxu0 0.0
  %8064 = vmatpush1.msra.mxu0 %v8052
  %8065 = vmatprep.subr.mxu0 0.0
  %8066 = vmatpush1.msra.mxu0 %v8051
  %8067 = vmatprep.subr.mxu0 0.0
  %8068 = vmatpush1.msra.mxu0 %v8050
  %8069 = vmatprep.subr.mxu0 0.0
  %8070 = vmatpush1.msra.mxu0 %v8049
  %8071 = vmatprep.subr.mxu0 0.0
  %8072 = vmatpush1.msra.mxu0 %v8048
  %8073 = vmatprep.subr.mxu0 0.0
  %8074 = vmatpush1.msra.mxu0 %v8047
  %8075 = vmatprep.subr.mxu0 0.0
  %8076 = vmatpush1.msra.mxu0 %v8046
  %8077 = vmatprep.subr.mxu0 0.0
  %8078 = vmatpush1.msra.mxu0 %v8045
  %8079 = vmatprep.subr.mxu0 0.0
  %8080 = vmatpush1.msra.mxu0 %v8044
  %8081 = vmatprep.subr.mxu0 0.0
  %8082 = vmatpush1.msra.mxu0 %v8043
  %8083 = vmatprep.subr.mxu0 0.0
  %8084 = vmatpush1.msra.mxu0 %v8042
  %8085 = vmatprep.subr.mxu0 0.0
  %8086 = vmatpush1.msra.mxu0 %v8041
  %8087 = vmatprep.subr.mxu0 0.0
  %8088 = vmatpush1.msra.mxu0 %v8040
  %8089 = vmatprep.subr.mxu0 0.0
  %8090 = vmatpush1.msra.mxu0 %v8039
  %8091 = vmatprep.subr.mxu0 0.0
  %8092 = vmatpush2.msra.mxu0 0.0
  %8093 = vmatprep.subr.mxu0 0.0
  %8094 = vmatpush2.msra.mxu0 0.0
  %8095 = vmatprep.subr.mxu0 0.0
  %8096 = vmatpush2.msra.mxu0 0.0
  %8097 = vmatprep.subr.mxu0 0.0
  %8098 = vmatpush2.msra.mxu0 0.0
  %8099 = vmatprep.subr.mxu0 0.0
  %8100 = vmatpush2.msra.mxu0 0.0
  %8101 = vmatprep.subr.mxu0 0.0
  %8102 = vmatpush2.msra.mxu0 0.0
  %8103 = vmatprep.subr.mxu0 0.0
  %8104 = vmatpush2.msra.mxu0 0.0
  %8105 = vmatprep.subr.mxu0 0.0
  %8106 = vmatpush2.msra.mxu0 0.0
  %8107 = vmatprep.subr.mxu0 0.0
  %8108 = vmatpush2.msra.mxu0 0.0
  %8109 = vmatprep.subr.mxu0 0.0
  %8110 = vmatpush2.msra.mxu0 0.0
  %8111 = vmatprep.subr.mxu0 0.0
  %8112 = vmatpush2.msra.mxu0 0.0
  %8113 = vmatprep.subr.mxu0 0.0
  %8114 = vmatpush2.msra.mxu0 0.0
  %8115 = vmatprep.subr.mxu0 0.0
  %8116 = vmatpush2.msra.mxu0 0.0
  %8117 = vmatprep.subr.mxu0 0.0
  %8118 = vmatpush2.msra.mxu0 0.0
  %8119 = vmatprep.subr.mxu0 0.0
  %8120 = vmatpush2.msra.mxu0 0.0
  %8121 = vmatprep.subr.mxu0 0.0
  %8122 = vmatpush2.msra.mxu0 0.0
  %8123 = vmatprep.mubr.f32.mxu0 0.0
  %8124 = vmatmul.mubr.f32.gmra.mxu0 %v7975
  %v8125 = vpop.f32.mrf.mxu0
  %v8126 = vadd.f32 %v8058, %v8125
  %v8127 = vpop.f32.mrf.mxu0
  %8128 = vmatprep.mubr.f32.mxu0 0.0
  %8129 = vmatmul.mubr.f32.gmra.mxu0 %v7976
  %v8130 = vpop.f32.mrf.mxu0
  %v8131 = vadd.f32 %v8058, %v8130
  %v8132 = vpop.f32.mrf.mxu0
  %8133 = vmatprep.mubr.f32.mxu0 0.0
  %8134 = vmatmul.mubr.f32.gmra.mxu0 %v7977
  %v8135 = vpop.f32.mrf.mxu0
  %v8136 = vadd.f32 %v8058, %v8135
  %v8137 = vpop.f32.mrf.mxu0
  %8138 = vmatprep.mubr.f32.mxu0 0.0
  %8139 = vmatmul.mubr.f32.gmra.mxu0 %v7978
  %v8140 = vpop.f32.mrf.mxu0
  %v8141 = vadd.f32 %v8058, %v8140
  %v8142 = vpop.f32.mrf.mxu0
  %8143 = vmatprep.mubr.f32.mxu0 0.0
  %8144 = vmatmul.mubr.f32.gmra.mxu0 %v7979
  %v8145 = vpop.f32.mrf.mxu0
  %v8146 = vadd.f32 %v8058, %v8145
  %v8147 = vpop.f32.mrf.mxu0
  %8148 = vmatprep.mubr.f32.mxu0 0.0
  %8149 = vmatmul.mubr.f32.gmra.mxu0 %v7980
  %v8150 = vpop.f32.mrf.mxu0
  %v8151 = vadd.f32 %v8058, %v8150
  %v8152 = vpop.f32.mrf.mxu0
  %8153 = vmatprep.mubr.f32.mxu0 0.0
  %8154 = vmatmul.mubr.f32.gmra.mxu0 %v7981
  %v8155 = vpop.f32.mrf.mxu0
  %v8156 = vadd.f32 %v8058, %v8155
  %v8157 = vpop.f32.mrf.mxu0
  %8158 = vmatprep.mubr.f32.mxu0 0.0
  %8159 = vmatmul.mubr.f32.gmra.mxu0 %v7982
  %v8160 = vpop.f32.mrf.mxu0
  %v8161 = vadd.f32 %v8058, %v8160
  %v8162 = vpop.f32.mrf.mxu0
  %8163 = vmatprep.mubr.f32.mxu0 0.0
  %8164 = vmatmul.mubr.f32.gmra.mxu0 %v7983
  %v8165 = vpop.f32.mrf.mxu0
  %v8166 = vadd.f32 %v8058, %v8165
  %v8167 = vpop.f32.mrf.mxu0
  %8168 = vmatprep.mubr.f32.mxu0 0.0
  %8169 = vmatmul.mubr.f32.gmra.mxu0 %v7984
  %v8170 = vpop.f32.mrf.mxu0
  %v8171 = vadd.f32 %v8058, %v8170
  %v8172 = vpop.f32.mrf.mxu0
  %8173 = vmatprep.mubr.f32.mxu0 0.0
  %8174 = vmatmul.mubr.f32.gmra.mxu0 %v7985
  %v8175 = vpop.f32.mrf.mxu0
  %v8176 = vadd.f32 %v8058, %v8175
  %v8177 = vpop.f32.mrf.mxu0
  %8178 = vmatprep.mubr.f32.mxu0 0.0
  %8179 = vmatmul.mubr.f32.gmra.mxu0 %v7986
  %v8180 = vpop.f32.mrf.mxu0
  %v8181 = vadd.f32 %v8058, %v8180
  %v8182 = vpop.f32.mrf.mxu0
  %8183 = vmatprep.mubr.f32.mxu0 0.0
  %8184 = vmatmul.mubr.f32.gmra.mxu0 %v7987
  %v8185 = vpop.f32.mrf.mxu0
  %v8186 = vadd.f32 %v8058, %v8185
  %v8187 = vpop.f32.mrf.mxu0
  %8188 = vmatprep.mubr.f32.mxu0 0.0
  %8189 = vmatmul.mubr.f32.gmra.mxu0 %v7988
  %v8190 = vpop.f32.mrf.mxu0
  %v8191 = vadd.f32 %v8058, %v8190
  %v8192 = vpop.f32.mrf.mxu0
  %8193 = vmatprep.mubr.f32.mxu0 0.0
  %8194 = vmatmul.mubr.f32.gmra.mxu0 %v7989
  %v8195 = vpop.f32.mrf.mxu0
  %v8196 = vadd.f32 %v8058, %v8195
  %v8197 = vpop.f32.mrf.mxu0
  %8198 = vmatprep.mubr.f32.mxu0 0.0
  %8199 = vmatmul.mubr.f32.gmra.mxu0 %v7990
  %v8200 = vpop.f32.mrf.mxu0
  %v8201 = vadd.f32 %v8058, %v8200
  %v8202 = vpop.f32.mrf.mxu0
  %8203 = vmatprep.mubr.f32.mxu0 0.0
  %8204 = vmatmul.mubr.f32.gmra.mxu0 %v7991
  %v8205 = vpop.f32.mrf.mxu0
  %v8206 = vadd.f32 %v8058, %v8205
  %v8207 = vpop.f32.mrf.mxu0
  %8208 = vmatprep.mubr.f32.mxu0 0.0
  %8209 = vmatmul.mubr.f32.gmra.mxu0 %v7992
  %v8210 = vpop.f32.mrf.mxu0
  %v8211 = vadd.f32 %v8058, %v8210
  %v8212 = vpop.f32.mrf.mxu0
  %8213 = vmatprep.mubr.f32.mxu0 0.0
  %8214 = vmatmul.mubr.f32.gmra.mxu0 %v7993
  %v8215 = vpop.f32.mrf.mxu0
  %v8216 = vadd.f32 %v8058, %v8215
  %v8217 = vpop.f32.mrf.mxu0
  %8218 = vmatprep.mubr.f32.mxu0 0.0
  %8219 = vmatmul.mubr.f32.gmra.mxu0 %v7994
  %v8220 = vpop.f32.mrf.mxu0
  %v8221 = vadd.f32 %v8058, %v8220
  %v8222 = vpop.f32.mrf.mxu0
  %8223 = vmatprep.mubr.f32.mxu0 0.0
  %8224 = vmatmul.mubr.f32.gmra.mxu0 %v7995
  %v8225 = vpop.f32.mrf.mxu0
  %v8226 = vadd.f32 %v8058, %v8225
  %v8227 = vpop.f32.mrf.mxu0
  %8228 = vmatprep.mubr.f32.mxu0 0.0
  %8229 = vmatmul.mubr.f32.gmra.mxu0 %v7996
  %v8230 = vpop.f32.mrf.mxu0
  %v8231 = vadd.f32 %v8058, %v8230
  %v8232 = vpop.f32.mrf.mxu0
  %8233 = vmatprep.mubr.f32.mxu0 0.0
  %8234 = vmatmul.mubr.f32.gmra.mxu0 %v7997
  %v8235 = vpop.f32.mrf.mxu0
  %v8236 = vadd.f32 %v8058, %v8235
  %v8237 = vpop.f32.mrf.mxu0
  %8238 = vmatprep.mubr.f32.mxu0 0.0
  %8239 = vmatmul.mubr.f32.gmra.mxu0 %v7998
  %v8240 = vpop.f32.mrf.mxu0
  %v8241 = vadd.f32 %v8058, %v8240
  %v8242 = vpop.f32.mrf.mxu0
  %8243 = vmatprep.mubr.f32.mxu0 0.0
  %8244 = vmatmul.mubr.f32.gmra.mxu0 %v7999
  %v8245 = vpop.f32.mrf.mxu0
  %v8246 = vadd.f32 %v8058, %v8245
  %v8247 = vpop.f32.mrf.mxu0
  %8248 = vmatprep.mubr.f32.mxu0 0.0
  %8249 = vmatmul.mubr.f32.gmra.mxu0 %v8000
  %v8250 = vpop.f32.mrf.mxu0
  %v8251 = vadd.f32 %v8058, %v8250
  %v8252 = vpop.f32.mrf.mxu0
  %8253 = vmatprep.mubr.f32.mxu0 0.0
  %8254 = vmatmul.mubr.f32.gmra.mxu0 %v8001
  %v8255 = vpop.f32.mrf.mxu0
  %v8256 = vadd.f32 %v8058, %v8255
  %v8257 = vpop.f32.mrf.mxu0
  %8258 = vmatprep.mubr.f32.mxu0 0.0
  %8259 = vmatmul.mubr.f32.gmra.mxu0 %v8002
  %v8260 = vpop.f32.mrf.mxu0
  %v8261 = vadd.f32 %v8058, %v8260
  %v8262 = vpop.f32.mrf.mxu0
  %8263 = vmatprep.mubr.f32.mxu0 0.0
  %8264 = vmatmul.mubr.f32.gmra.mxu0 %v8003
  %v8265 = vpop.f32.mrf.mxu0
  %v8266 = vadd.f32 %v8058, %v8265
  %v8267 = vpop.f32.mrf.mxu0
  %8268 = vmatprep.mubr.f32.mxu0 0.0
  %8269 = vmatmul.mubr.f32.gmra.mxu0 %v8004
  %v8270 = vpop.f32.mrf.mxu0
  %v8271 = vadd.f32 %v8058, %v8270
  %v8272 = vpop.f32.mrf.mxu0
  %8273 = vmatprep.mubr.f32.mxu0 0.0
  %8274 = vmatmul.mubr.f32.gmra.mxu0 %v8005
  %v8275 = vpop.f32.mrf.mxu0
  %v8276 = vadd.f32 %v8058, %v8275
  %v8277 = vpop.f32.mrf.mxu0
  %8278 = vmatprep.mubr.f32.mxu0 0.0
  %8279 = vmatmul.mubr.f32.gmra.mxu0 %v8006
  %v8280 = vpop.f32.mrf.mxu0
  %v8281 = vadd.f32 %v8058, %v8280
  %v8282 = vpop.f32.mrf.mxu0
  %8283 = vmatprep.mubr.f32.mxu0 0.0
  %8284 = vmatmul.mubr.f32.gmra.mxu0 %v8007
  %v8285 = vpop.f32.mrf.mxu0
  %v8286 = vadd.f32 %v8058, %v8285
  %v8287 = vpop.f32.mrf.mxu0
  %8288 = vmatprep.mubr.f32.mxu0 0.0
  %8289 = vmatmul.mubr.f32.gmra.mxu0 %v8008
  %v8290 = vpop.f32.mrf.mxu0
  %v8291 = vadd.f32 %v8058, %v8290
  %v8292 = vpop.f32.mrf.mxu0
  %8293 = vmatprep.mubr.f32.mxu0 0.0
  %8294 = vmatmul.mubr.f32.gmra.mxu0 %v8009
  %v8295 = vpop.f32.mrf.mxu0
  %v8296 = vadd.f32 %v8058, %v8295
  %v8297 = vpop.f32.mrf.mxu0
  %8298 = vmatprep.mubr.f32.mxu0 0.0
  %8299 = vmatmul.mubr.f32.gmra.mxu0 %v8010
  %v8300 = vpop.f32.mrf.mxu0
  %v8301 = vadd.f32 %v8058, %v8300
  %v8302 = vpop.f32.mrf.mxu0
  %8303 = vmatprep.mubr.f32.mxu0 0.0
  %8304 = vmatmul.mubr.f32.gmra.mxu0 %v8011
  %v8305 = vpop.f32.mrf.mxu0
  %v8306 = vadd.f32 %v8058, %v8305
  %v8307 = vpop.f32.mrf.mxu0
  %8308 = vmatprep.mubr.f32.mxu0 0.0
  %8309 = vmatmul.mubr.f32.gmra.mxu0 %v8012
  %v8310 = vpop.f32.mrf.mxu0
  %v8311 = vadd.f32 %v8058, %v8310
  %v8312 = vpop.f32.mrf.mxu0
  %8313 = vmatprep.mubr.f32.mxu0 0.0
  %8314 = vmatmul.mubr.f32.gmra.mxu0 %v8013
  %v8315 = vpop.f32.mrf.mxu0
  %v8316 = vadd.f32 %v8058, %v8315
  %v8317 = vpop.f32.mrf.mxu0
  %8318 = vmatprep.mubr.f32.mxu0 0.0
  %8319 = vmatmul.mubr.f32.gmra.mxu0 %v8014
  %v8320 = vpop.f32.mrf.mxu0
  %v8321 = vadd.f32 %v8058, %v8320
  %v8322 = vpop.f32.mrf.mxu0
  %8323 = vmatprep.mubr.f32.mxu0 0.0
  %8324 = vmatmul.mubr.f32.gmra.mxu0 %v8015
  %v8325 = vpop.f32.mrf.mxu0
  %v8326 = vadd.f32 %v8058, %v8325
  %v8327 = vpop.f32.mrf.mxu0
  %8328 = vmatprep.mubr.f32.mxu0 0.0
  %8329 = vmatmul.mubr.f32.gmra.mxu0 %v8016
  %v8330 = vpop.f32.mrf.mxu0
  %v8331 = vadd.f32 %v8058, %v8330
  %v8332 = vpop.f32.mrf.mxu0
  %8333 = vmatprep.mubr.f32.mxu0 0.0
  %8334 = vmatmul.mubr.f32.gmra.mxu0 %v8017
  %v8335 = vpop.f32.mrf.mxu0
  %v8336 = vadd.f32 %v8058, %v8335
  %v8337 = vpop.f32.mrf.mxu0
  %8338 = vmatprep.mubr.f32.mxu0 0.0
  %8339 = vmatmul.mubr.f32.gmra.mxu0 %v8018
  %v8340 = vpop.f32.mrf.mxu0
  %v8341 = vadd.f32 %v8058, %v8340
  %v8342 = vpop.f32.mrf.mxu0
  %8343 = vmatprep.mubr.f32.mxu0 0.0
  %8344 = vmatmul.mubr.f32.gmra.mxu0 %v8019
  %v8345 = vpop.f32.mrf.mxu0
  %v8346 = vadd.f32 %v8058, %v8345
  %v8347 = vpop.f32.mrf.mxu0
  %8348 = vmatprep.mubr.f32.mxu0 0.0
  %8349 = vmatmul.mubr.f32.gmra.mxu0 %v8020
  %v8350 = vpop.f32.mrf.mxu0
  %v8351 = vadd.f32 %v8058, %v8350
  %v8352 = vpop.f32.mrf.mxu0
  %8353 = vmatprep.mubr.f32.mxu0 0.0
  %8354 = vmatmul.mubr.f32.gmra.mxu0 %v8021
  %v8355 = vpop.f32.mrf.mxu0
  %v8356 = vadd.f32 %v8058, %v8355
  %v8357 = vpop.f32.mrf.mxu0
  %8358 = vmatprep.mubr.f32.mxu0 0.0
  %8359 = vmatmul.mubr.f32.gmra.mxu0 %v8022
  %v8360 = vpop.f32.mrf.mxu0
  %v8361 = vadd.f32 %v8058, %v8360
  %v8362 = vpop.f32.mrf.mxu0
  %8363 = vmatprep.mubr.f32.mxu0 0.0
  %8364 = vmatmul.mubr.f32.gmra.mxu0 %v8023
  %v8365 = vpop.f32.mrf.mxu0
  %v8366 = vadd.f32 %v8058, %v8365
  %v8367 = vpop.f32.mrf.mxu0
  %8368 = vmatprep.mubr.f32.mxu0 0.0
  %8369 = vmatmul.mubr.f32.gmra.mxu0 %v8024
  %v8370 = vpop.f32.mrf.mxu0
  %v8371 = vadd.f32 %v8058, %v8370
  %v8372 = vpop.f32.mrf.mxu0
  %8373 = vmatprep.mubr.f32.mxu0 0.0
  %8374 = vmatmul.mubr.f32.gmra.mxu0 %v8025
  %v8375 = vpop.f32.mrf.mxu0
  %v8376 = vadd.f32 %v8058, %v8375
  %v8377 = vpop.f32.mrf.mxu0
  %8378 = vmatprep.mubr.f32.mxu0 0.0
  %8379 = vmatmul.mubr.f32.gmra.mxu0 %v8026
  %v8380 = vpop.f32.mrf.mxu0
  %v8381 = vadd.f32 %v8058, %v8380
  %v8382 = vpop.f32.mrf.mxu0
  %8383 = vmatprep.mubr.f32.mxu0 0.0
  %8384 = vmatmul.mubr.f32.gmra.mxu0 %v8027
  %v8385 = vpop.f32.mrf.mxu0
  %v8386 = vadd.f32 %v8058, %v8385
  %v8387 = vpop.f32.mrf.mxu0
  %8388 = vmatprep.mubr.f32.mxu0 0.0
  %8389 = vmatmul.mubr.f32.gmra.mxu0 %v8028
  %v8390 = vpop.f32.mrf.mxu0
  %v8391 = vadd.f32 %v8058, %v8390
  %v8392 = vpop.f32.mrf.mxu0
  %8393 = vmatprep.mubr.f32.mxu0 0.0
  %8394 = vmatmul.mubr.f32.gmra.mxu0 %v8029
  %v8395 = vpop.f32.mrf.mxu0
  %v8396 = vadd.f32 %v8058, %v8395
  %v8397 = vpop.f32.mrf.mxu0
  %8398 = vmatprep.mubr.f32.mxu0 0.0
  %8399 = vmatmul.mubr.f32.gmra.mxu0 %v8030
  %v8400 = vpop.f32.mrf.mxu0
  %v8401 = vadd.f32 %v8058, %v8400
  %v8402 = vpop.f32.mrf.mxu0
  %8403 = vmatprep.mubr.f32.mxu0 0.0
  %8404 = vmatmul.mubr.f32.gmra.mxu0 %v8031
  %v8405 = vpop.f32.mrf.mxu0
  %v8406 = vadd.f32 %v8058, %v8405
  %v8407 = vpop.f32.mrf.mxu0
  %8408 = vmatprep.mubr.f32.mxu0 0.0
  %8409 = vmatmul.mubr.f32.gmra.mxu0 %v8032
  %v8410 = vpop.f32.mrf.mxu0
  %v8411 = vadd.f32 %v8058, %v8410
  %v8412 = vpop.f32.mrf.mxu0
  %8413 = vmatprep.mubr.f32.mxu0 0.0
  %8414 = vmatmul.mubr.f32.gmra.mxu0 %v8033
  %v8415 = vpop.f32.mrf.mxu0
  %v8416 = vadd.f32 %v8058, %v8415
  %v8417 = vpop.f32.mrf.mxu0
  %8418 = vmatprep.mubr.f32.mxu0 0.0
  %8419 = vmatmul.mubr.f32.gmra.mxu0 %v8034
  %v8420 = vpop.f32.mrf.mxu0
  %v8421 = vadd.f32 %v8058, %v8420
  %v8422 = vpop.f32.mrf.mxu0
  %8423 = vmatprep.mubr.f32.mxu0 0.0
  %8424 = vmatmul.mubr.f32.gmra.mxu0 %v8035
  %v8425 = vpop.f32.mrf.mxu0
  %v8426 = vadd.f32 %v8058, %v8425
  %v8427 = vpop.f32.mrf.mxu0
  %8428 = vmatprep.mubr.f32.mxu0 0.0
  %8429 = vmatmul.mubr.f32.gmra.mxu0 %v8036
  %v8430 = vpop.f32.mrf.mxu0
  %v8431 = vadd.f32 %v8058, %v8430
  %v8432 = vpop.f32.mrf.mxu0
  %8433 = vmatprep.mubr.f32.mxu0 0.0
  %8434 = vmatmul.mubr.f32.gmra.mxu0 %v8037
  %v8435 = vpop.f32.mrf.mxu0
  %v8436 = vadd.f32 %v8058, %v8435
  %v8437 = vpop.f32.mrf.mxu0
  %8438 = vmatprep.mubr.f32.mxu0 0.0
  %8439 = vmatmul.mubr.f32.gmra.mxu0 %v8038
  %v8440 = vpop.f32.mrf.mxu0
  %v8441 = vadd.f32 %v8058, %v8440
  %v8442 = vpop.f32.mrf.mxu0
  %8443 = vdwg.mxu0
  %v8444 = vadd.f32 %v7911, %v8126
  %v8445 = vadd.f32 %v7912, %v8131
  %v8446 = vadd.f32 %v7913, %v8136
  %v8447 = vadd.f32 %v7914, %v8141
  %v8448 = vadd.f32 %v7915, %v8146
  %v8449 = vadd.f32 %v7916, %v8151
  %v8450 = vadd.f32 %v7917, %v8156
  %v8451 = vadd.f32 %v7918, %v8161
  %v8452 = vadd.f32 %v7919, %v8166
  %v8453 = vadd.f32 %v7920, %v8171
  %v8454 = vadd.f32 %v7921, %v8176
  %v8455 = vadd.f32 %v7922, %v8181
  %v8456 = vadd.f32 %v7923, %v8186
  %v8457 = vadd.f32 %v7924, %v8191
  %v8458 = vadd.f32 %v7925, %v8196
  %v8459 = vadd.f32 %v7926, %v8201
  %v8460 = vadd.f32 %v7927, %v8206
  %v8461 = vadd.f32 %v7928, %v8211
  %v8462 = vadd.f32 %v7929, %v8216
  %v8463 = vadd.f32 %v7930, %v8221
  %v8464 = vadd.f32 %v7931, %v8226
  %v8465 = vadd.f32 %v7932, %v8231
  %v8466 = vadd.f32 %v7933, %v8236
  %v8467 = vadd.f32 %v7934, %v8241
  %v8468 = vadd.f32 %v7935, %v8246
  %v8469 = vadd.f32 %v7936, %v8251
  %v8470 = vadd.f32 %v7937, %v8256
  %v8471 = vadd.f32 %v7938, %v8261
  %v8472 = vadd.f32 %v7939, %v8266
  %v8473 = vadd.f32 %v7940, %v8271
  %v8474 = vadd.f32 %v7941, %v8276
  %v8475 = vadd.f32 %v7942, %v8281
  %v8476 = vadd.f32 %v7943, %v8286
  %v8477 = vadd.f32 %v7944, %v8291
  %v8478 = vadd.f32 %v7945, %v8296
  %v8479 = vadd.f32 %v7946, %v8301
  %v8480 = vadd.f32 %v7947, %v8306
  %v8481 = vadd.f32 %v7948, %v8311
  %v8482 = vadd.f32 %v7949, %v8316
  %v8483 = vadd.f32 %v7950, %v8321
  %v8484 = vadd.f32 %v7951, %v8326
  %v8485 = vadd.f32 %v7952, %v8331
  %v8486 = vadd.f32 %v7953, %v8336
  %v8487 = vadd.f32 %v7954, %v8341
  %v8488 = vadd.f32 %v7955, %v8346
  %v8489 = vadd.f32 %v7956, %v8351
  %v8490 = vadd.f32 %v7957, %v8356
  %v8491 = vadd.f32 %v7958, %v8361
  %v8492 = vadd.f32 %v7959, %v8366
  %v8493 = vadd.f32 %v7960, %v8371
  %v8494 = vadd.f32 %v7961, %v8376
  %v8495 = vadd.f32 %v7962, %v8381
  %v8496 = vadd.f32 %v7963, %v8386
  %v8497 = vadd.f32 %v7964, %v8391
  %v8498 = vadd.f32 %v7965, %v8396
  %v8499 = vadd.f32 %v7966, %v8401
  %v8500 = vadd.f32 %v7967, %v8406
  %v8501 = vadd.f32 %v7968, %v8411
  %v8502 = vadd.f32 %v7969, %v8416
  %v8503 = vadd.f32 %v7970, %v8421
  %v8504 = vadd.f32 %v7971, %v8426
  %v8505 = vadd.f32 %v7972, %v8431
  %v8506 = vadd.f32 %v7973, %v8436
  %v8507 = vadd.f32 %v7974, %v8441
  %vm8508 = vcmask 64512
  %8509 = vst.msk [vmem:[%s9] sm:$0xff] %vm8508, %v8444
  %8510 = vst.msk [vmem:[%s9 + $0x8] sm:$0xff] %vm8508, %v8445
  %8511 = vst.msk [vmem:[%s9 + $0x10] sm:$0xff] %vm8508, %v8446
  %8512 = vst.msk [vmem:[%s9 + $0x18] sm:$0xff] %vm8508, %v8447
  %8513 = vst.msk [vmem:[%s9 + $0x20] sm:$0xff] %vm8508, %v8448
  %8514 = vst.msk [vmem:[%s9 + $0x28] sm:$0xff] %vm8508, %v8449
  %8515 = vst.msk [vmem:[%s9 + $0x30] sm:$0xff] %vm8508, %v8450
  %8516 = vst.msk [vmem:[%s9 + $0x38] sm:$0xff] %vm8508, %v8451
  %8517 = vst.msk [vmem:[%s9 + $0x40] sm:$0xff] %vm8508, %v8452
  %8518 = vst.msk [vmem:[%s9 + $0x48] sm:$0xff] %vm8508, %v8453
  %8519 = vst.msk [vmem:[%s9 + $0x50] sm:$0xff] %vm8508, %v8454
  %8520 = vst.msk [vmem:[%s9 + $0x58] sm:$0xff] %vm8508, %v8455
  %8521 = vst.msk [vmem:[%s9 + $0x60] sm:$0xff] %vm8508, %v8456
  %8522 = vst.msk [vmem:[%s9 + $0x68] sm:$0xff] %vm8508, %v8457
  %8523 = vst.msk [vmem:[%s9 + $0x70] sm:$0xff] %vm8508, %v8458
  %8524 = vst.msk [vmem:[%s9 + $0x78] sm:$0xff] %vm8508, %v8459
  %8525 = vst.msk [vmem:[%s9 + $0x80] sm:$0xff] %vm8508, %v8460
  %8526 = vst.msk [vmem:[%s9 + $0x88] sm:$0xff] %vm8508, %v8461
  %8527 = vst.msk [vmem:[%s9 + $0x90] sm:$0xff] %vm8508, %v8462
  %8528 = vst.msk [vmem:[%s9 + $0x98] sm:$0xff] %vm8508, %v8463
  %8529 = vst.msk [vmem:[%s9 + $0xa0] sm:$0xff] %vm8508, %v8464
  %8530 = vst.msk [vmem:[%s9 + $0xa8] sm:$0xff] %vm8508, %v8465
  %8531 = vst.msk [vmem:[%s9 + $0xb0] sm:$0xff] %vm8508, %v8466
  %8532 = vst.msk [vmem:[%s9 + $0xb8] sm:$0xff] %vm8508, %v8467
  %8533 = vst.msk [vmem:[%s9 + $0xc0] sm:$0xff] %vm8508, %v8468
  %8534 = vst.msk [vmem:[%s9 + $0xc8] sm:$0xff] %vm8508, %v8469
  %8535 = vst.msk [vmem:[%s9 + $0xd0] sm:$0xff] %vm8508, %v8470
  %8536 = vst.msk [vmem:[%s9 + $0xd8] sm:$0xff] %vm8508, %v8471
  %8537 = vst.msk [vmem:[%s9 + $0xe0] sm:$0xff] %vm8508, %v8472
  %8538 = vst.msk [vmem:[%s9 + $0xe8] sm:$0xff] %vm8508, %v8473
  %8539 = vst.msk [vmem:[%s9 + $0xf0] sm:$0xff] %vm8508, %v8474
  %8540 = vst.msk [vmem:[%s9 + $0xf8] sm:$0xff] %vm8508, %v8475
  %8541 = vst.msk [vmem:[%s9 + $0x100] sm:$0xff] %vm8508, %v8476
  %8542 = vst.msk [vmem:[%s9 + $0x108] sm:$0xff] %vm8508, %v8477
  %8543 = vst.msk [vmem:[%s9 + $0x110] sm:$0xff] %vm8508, %v8478
  %8544 = vst.msk [vmem:[%s9 + $0x118] sm:$0xff] %vm8508, %v8479
  %8545 = vst.msk [vmem:[%s9 + $0x120] sm:$0xff] %vm8508, %v8480
  %8546 = vst.msk [vmem:[%s9 + $0x128] sm:$0xff] %vm8508, %v8481
  %8547 = vst.msk [vmem:[%s9 + $0x130] sm:$0xff] %vm8508, %v8482
  %8548 = vst.msk [vmem:[%s9 + $0x138] sm:$0xff] %vm8508, %v8483
  %8549 = vst.msk [vmem:[%s9 + $0x140] sm:$0xff] %vm8508, %v8484
  %8550 = vst.msk [vmem:[%s9 + $0x148] sm:$0xff] %vm8508, %v8485
  %8551 = vst.msk [vmem:[%s9 + $0x150] sm:$0xff] %vm8508, %v8486
  %8552 = vst.msk [vmem:[%s9 + $0x158] sm:$0xff] %vm8508, %v8487
  %8553 = vst.msk [vmem:[%s9 + $0x160] sm:$0xff] %vm8508, %v8488
  %8554 = vst.msk [vmem:[%s9 + $0x168] sm:$0xff] %vm8508, %v8489
  %8555 = vst.msk [vmem:[%s9 + $0x170] sm:$0xff] %vm8508, %v8490
  %8556 = vst.msk [vmem:[%s9 + $0x178] sm:$0xff] %vm8508, %v8491
  %8557 = vst.msk [vmem:[%s9 + $0x180] sm:$0xff] %vm8508, %v8492
  %8558 = vst.msk [vmem:[%s9 + $0x188] sm:$0xff] %vm8508, %v8493
  %8559 = vst.msk [vmem:[%s9 + $0x190] sm:$0xff] %vm8508, %v8494
  %8560 = vst.msk [vmem:[%s9 + $0x198] sm:$0xff] %vm8508, %v8495
  %8561 = vst.msk [vmem:[%s9 + $0x1a0] sm:$0xff] %vm8508, %v8496
  %8562 = vst.msk [vmem:[%s9 + $0x1a8] sm:$0xff] %vm8508, %v8497
  %8563 = vst.msk [vmem:[%s9 + $0x1b0] sm:$0xff] %vm8508, %v8498
  %8564 = vst.msk [vmem:[%s9 + $0x1b8] sm:$0xff] %vm8508, %v8499
  %8565 = vst.msk [vmem:[%s9 + $0x1c0] sm:$0xff] %vm8508, %v8500
  %8566 = vst.msk [vmem:[%s9 + $0x1c8] sm:$0xff] %vm8508, %v8501
  %8567 = vst.msk [vmem:[%s9 + $0x1d0] sm:$0xff] %vm8508, %v8502
  %8568 = vst.msk [vmem:[%s9 + $0x1d8] sm:$0xff] %vm8508, %v8503
  %8569 = vst.msk [vmem:[%s9 + $0x1e0] sm:$0xff] %vm8508, %v8504
  %8570 = vst.msk [vmem:[%s9 + $0x1e8] sm:$0xff] %vm8508, %v8505
  %8571 = vst.msk [vmem:[%s9 + $0x1f0] sm:$0xff] %vm8508, %v8506
  %8572 = vst.msk [vmem:[%s9 + $0x1f8] sm:$0xff] %vm8508, %v8507
  // Predicated region
  $region38: #{residual_block_pallas.1} parent=0 // pred_check
    _
  $region39: #{residual_block_pallas.1} parent=0 // pred_check_branch
    %8574 = sbr.rel (0) target = $region41
  $region40: #{residual_block_pallas.1} parent=0 // pred_region
    _
  $region41: #{residual_block_pallas.1} parent=0 // pred_fallthru
    _
  // Predicated region
  $region42: #{residual_block_pallas.1} parent=0 // pred_check
    _
  $region43: #{residual_block_pallas.1} parent=0 // pred_check_branch
    %8576 = sbr.rel (0) target = $region45
  $region44: #{residual_block_pallas.1} parent=0 // pred_region
    _
  $region45: #{residual_block_pallas.1} parent=0 // pred_fallthru
    _

</llo_original>
